<compile_context>
chip_gen: v7x
topology: tpu7x:2x2x1
jax: 0.10.0
libtpu: 0.0.40
codegen_flags: <defaults>
</compile_context>

<pallas_src>
import functools
import math

import jax
import jax.numpy as jnp
from jax.experimental import pallas as pl
from jax.experimental.pallas import tpu as pltpu


# ----------------------------- small in-kernel helpers -----------------------------
def _lstm_gates(gates, c_prev, hdim, gate_scale, gate_off):
    """PyTorch LSTM cell gates (i, f, g, o) with a single tanh pass.

    sigmoid(x) = 0.5*tanh(0.5*x) + 0.5, so with gate_scale = 0.5 on i/f/o lanes and
    1.0 on g lanes (and gate_off = 0.5 / 0.0 respectively):
        act = tanh(gates * gate_scale) * gate_scale + gate_off
    gives sigmoid on i/f/o and tanh on g in one transcendental pass.
    """
    act = jnp.tanh(gates * gate_scale) * gate_scale + gate_off
    i_g = act[:, 0:hdim]
    f_g = act[:, hdim:2 * hdim]
    g_g = act[:, 2 * hdim:3 * hdim]
    o_g = act[:, 3 * hdim:4 * hdim]
    c_new = f_g * c_prev + i_g * g_g
    h_new = o_g * jnp.tanh(c_new)
    return h_new, c_new


# --------------------------------- fused kernel ------------------------------------
def _rnntsp_kernel(x_tm_ref, x_bm_ref, wemb_ref, bemb_ref,
                   enc_wih_ref, enc_whh_ref, enc_b_ref,
                   dec_w_ref, dec_b_ref,
                   glm_wq_ref, glm_bq_ref, glm_v_ref, glm_vb_ref,
                   ptr_wq_ref, ptr_bq_ref, ptr_v_ref, ptr_vb_ref,
                   wr_cat_ref, wrb_cat_ref,
                   dec_start_ref, gum_ref,
                   lp_ref, idx_ref,
                   ench_ref,
                   *, B, S, H, E, C_ptr, C_glm, use_glimpse, dec_unroll):
    NEG = -100000.0
    f32 = jnp.float32

    # ---- hoisted weight / bias loads (each ref is read exactly once) ---------------
    wemb = wemb_ref[...]                      # [2, E]
    bemb = bemb_ref[...]                      # [1, E]
    enc_whh = enc_whh_ref[...]                # [H, 4H]
    dec_w = dec_w_ref[...]                    # [2H, 4H]  (concat of W_ih_T | W_hh_T)
    dec_b = dec_b_ref[...]                    # [1, 4H]
    glm_wq = glm_wq_ref[...]                  # [H, H]
    glm_bq = glm_bq_ref[...]                  # [1, H]
    glm_v3 = glm_v_ref[...].reshape(1, 1, H)  # [1, 1, H]
    glm_vb = glm_vb_ref[...]                  # [1, 1]
    ptr_wq = ptr_wq_ref[...]
    ptr_bq = ptr_bq_ref[...]
    ptr_v3 = ptr_v_ref[...].reshape(1, 1, H)
    ptr_vb = ptr_vb_ref[...]

    # per-lane selectors for the single-tanh gate activation (built once)
    lane = jax.lax.broadcasted_iota(jnp.int32, (1, 4 * H), 1)
    is_g = jnp.logical_and(lane >= 2 * H, lane < 3 * H)
    gate_scale = jnp.where(is_g, 1.0, 0.5).astype(f32)
    gate_off = jnp.where(is_g, 0.0, 0.5).astype(f32)

    # ---- preamble: embedding Linear(2, E) as two VPU FMAs (K=2 too shallow for MXU)
    # time-major copy feeds the hoisted encoder input projection; batch-major copy is
    # the decode-time gather layout (written directly, no per-step copies later).
    x_tm = x_tm_ref[...]                                            # [S*B, 2]
    x_bm = x_bm_ref[...]                                            # [B*S, 2]
    emb_tm = x_tm[:, 0:1] * wemb[0:1, :] + x_tm[:, 1:2] * wemb[1:2, :] + bemb
    emb_bm = (x_bm[:, 0:1] * wemb[0:1, :] + x_bm[:, 1:2] * wemb[1:2, :] + bemb
              ).reshape(B, S, E)                                    # [B, S, E]

    # hoisted encoder input projection + bias: ONE matmul for all timesteps
    gatesx = (jnp.dot(emb_tm, enc_wih_ref[...], preferred_element_type=f32)
              + enc_b_ref[...])                                     # [S*B, 4H]

    # ---- encoder recurrence (per step: one [B,H]@[H,4H] matmul + gates) ------------
    h = jnp.zeros((B, H), f32)
    c = jnp.zeros((B, H), f32)
    for t in range(S):                                              # static unroll
        gates = (gatesx[t * B:(t + 1) * B, :]
                 + jnp.dot(h, enc_whh, preferred_element_type=f32))
        h, c = _lstm_gates(gates, c, H, gate_scale, gate_off)
        ench_ref[:, t, :] = h                                       # batch-major store

    # ---- step-invariant attention reference projections: ONE fused matmul ----------
    enc_bm = ench_ref[...]                                          # [B, S, H]
    refproj = (jnp.dot(enc_bm.reshape(B * S, H), wr_cat_ref[...],
                       preferred_element_type=f32)
               + wrb_cat_ref[...]).reshape(B, S, 2 * H)
    tpg = refproj[:, :, :H]          # glimpse  W_ref(enc_out) + b_ref
    tpp = refproj[:, :, H:]          # pointer  W_ref(enc_out) + b_ref

    col_i = jax.lax.broadcasted_iota(jnp.int32, (B, S), 1)
    col_f = col_i.astype(f32)

    # ---- fused decode loop: LSTM cell + glimpse + pointer + Gumbel-max sample ------
    def dec_step(t, carry):
        h_d, c_d, dec_in, mask, lp_acc, idx_acc = carry             # mask: [B,S] float

        # decoder LSTM cell: single fused [B,2H]@[2H,4H] matmul on concat([x | h])
        xh = jnp.concatenate([dec_in, h_d], axis=-1)
        gates = jnp.dot(xh, dec_w, preferred_element_type=f32) + dec_b
        h_new, c_new = _lstm_gates(gates, c_d, H, gate_scale, gate_off)

        # glimpse attention (C = 10) -> updated query
        if use_glimpse:
            qg = jnp.dot(h_new, glm_wq, preferred_element_type=f32) + glm_bq
            ug = jnp.tanh(tpg + qg[:, None, :])                     # [B, S, H]
            lg = jnp.sum(ug * glm_v3, axis=-1) + glm_vb             # [B, S]
            lg = jnp.where(mask > 0.5, NEG, lg)                     # PyTorch order
            lg = C_glm * jnp.tanh(lg)
            lg = jnp.where(mask > 0.5, NEG, lg)                     # hard re-mask
            mg = jnp.max(lg, axis=1, keepdims=True)
            eg = jnp.exp(lg - mg)
            pg = eg / jnp.sum(eg, axis=1, keepdims=True)            # softmax / cities
            query = jnp.einsum('bqs,bsh->bqh', pg[:, None, :], enc_bm,
                               preferred_element_type=f32)[:, 0, :]  # [B, H]
        else:
            query = h_new

        # pointer attention (C = tanh_exploration)
        qp = jnp.dot(query, ptr_wq, preferred_element_type=f32) + ptr_bq
        up = jnp.tanh(tpp + qp[:, None, :])                          # [B, S, H]
        lgt = jnp.sum(up * ptr_v3, axis=-1) + ptr_vb                 # [B, S]
        lgt = jnp.where(mask > 0.5, NEG, lgt)                        # PyTorch order
        lgt = C_ptr * jnp.tanh(lgt)
        lgt = jnp.where(mask > 0.5, NEG, lgt)                        # hard re-mask

        # log-softmax over cities (lane axis)
        mx = jnp.max(lgt, axis=1, keepdims=True)
        shf = lgt - mx
        logp = shf - jnp.log(jnp.sum(jnp.exp(shf), axis=1, keepdims=True))

        # Gumbel-max categorical sample (== Categorical(softmax(lgt)).sample())
        score = lgt + gum_ref[t]                                     # [B, S]
        best = jnp.max(score, axis=1, keepdims=True)
        cand = jnp.where(score >= best, col_f, float(S))
        chosen_f = jnp.min(cand, axis=1, keepdims=True)              # [B, 1]
        onehot = col_f == chosen_f                                   # [B, S] bool
        chosen_i = chosen_f.astype(jnp.int32)

        # accumulate results in the carry; stored once after the loop
        lp_t = jnp.sum(jnp.where(onehot, logp, 0.0), axis=1, keepdims=True)
        at_t = col_i == t
        lp_acc = jnp.where(at_t, lp_t, lp_acc)
        idx_acc = jnp.where(at_t, chosen_i, idx_acc)

        new_mask = jnp.where(onehot, 1.0, mask)
        dec_in_new = jnp.einsum('bqs,bse->bqe',
                                onehot.astype(f32)[:, None, :], emb_bm,
                                preferred_element_type=f32)[:, 0, :]  # embedded gather
        return h_new, c_new, dec_in_new, new_mask, lp_acc, idx_acc

    dec_in0 = jnp.broadcast_to(dec_start_ref[...], (B, E))
    init = (h, c, dec_in0,
            jnp.zeros((B, S), f32),            # mask
            jnp.zeros((B, S), f32),            # log-prob accumulator
            jnp.zeros((B, S), jnp.int32))      # chosen-index accumulator
    _, _, _, _, lp_fin, idx_fin = jax.lax.fori_loop(0, S, dec_step, init,
                                                    unroll=dec_unroll)

    # single dense stores of the [B, S] result slabs
    lp_ref[...] = lp_fin
    idx_ref[...] = idx_fin


# ------------------------------- parameter init -------------------------------------
def init_params(key, embedding_size, hidden_size):
    E, H = embedding_size, hidden_size
    ks = jax.random.split(key, 24)

    def u(k, shape, bound):
        return jax.random.uniform(k, shape, jnp.float32, -bound, bound)

    b_emb = 1.0 / math.sqrt(2.0)
    b_h = 1.0 / math.sqrt(H)
    b_e = 1.0 / math.sqrt(E)

    return {
        "W_emb_T": u(ks[0], (2, E), b_emb),
        "b_emb": u(ks[1], (1, E), b_emb),
        "enc_Wih_T": u(ks[2], (E, 4 * H), b_h),
        "enc_Whh_T": u(ks[3], (H, 4 * H), b_h),
        "enc_b": u(ks[4], (1, 4 * H), b_h) + u(ks[5], (1, 4 * H), b_h),   # b_ih + b_hh
        "dec_Wih_T": u(ks[6], (E, 4 * H), b_h),
        "dec_Whh_T": u(ks[7], (H, 4 * H), b_h),
        "dec_b": u(ks[8], (1, 4 * H), b_h) + u(ks[9], (1, 4 * H), b_h),
        "glm_Wq_T": u(ks[10], (H, H), b_h),
        "glm_bq": u(ks[11], (1, H), b_h),
        "glm_Wr_T": u(ks[12], (H, H), b_h),
        "glm_br": u(ks[13], (1, H), b_h),
        "glm_v": u(ks[14], (1, H), b_h),
        "glm_vb": u(ks[15], (1, 1), b_h),
        "ptr_Wq_T": u(ks[16], (H, H), b_h),
        "ptr_bq": u(ks[17], (1, H), b_h),
        "ptr_Wr_T": u(ks[18], (H, H), b_h),
        "ptr_br": u(ks[19], (1, H), b_h),
        "ptr_v": u(ks[20], (1, H), b_h),
        "ptr_vb": u(ks[21], (1, 1), b_h),
        "decoder_start": u(ks[22], (1, E), b_e),
    }


# ----------------------------------- wrapper ----------------------------------------
def rnntsp_forward(params, inputs, sample_key, *, n_glimpses=1, tanh_exploration=10.0,
                   force_prob=0.0):
    B, S, _ = inputs.shape
    E = params["W_emb_T"].shape[1]
    H = params["enc_Whh_T"].shape[0]
    assert E == H, "PyTorch module wires LSTM(hidden, hidden) directly on the embedding"

    x = inputs.astype(jnp.float32)
    x_bm = x.reshape(B * S, 2)                                  # rows ordered (b, s)
    x_tm = jnp.transpose(x, (1, 0, 2)).reshape(S * B, 2)        # rows ordered (t, b)

    # wrapper-side weight plumbing (cheap, done once)
    dec_w = jnp.concatenate([params["dec_Wih_T"], params["dec_Whh_T"]], axis=0)  # [2H,4H]
    wr_cat = jnp.concatenate([params["glm_Wr_T"], params["ptr_Wr_T"]], axis=1)   # [H,2H]
    wrb_cat = jnp.concatenate([params["glm_br"], params["ptr_br"]], axis=1)      # [1,2H]

    # all sampling noise drawn once (Gumbel-max == Categorical sampling)
    gumbel = jax.random.gumbel(sample_key, (S, B, S), jnp.float32)

    dec_unroll = True if S <= 8 else 2       # cap unroll for larger S (review item)

    kernel = functools.partial(
        _rnntsp_kernel, B=B, S=S, H=H, E=E,
        C_ptr=float(tanh_exploration), C_glm=10.0,
        use_glimpse=(n_glimpses >= 1), dec_unroll=dec_unroll)

    n_inputs = 21
    vmem_specs = [pl.BlockSpec(memory_space=pltpu.MemorySpace.VMEM)
                  for _ in range(n_inputs)]

    lp, idx = pl.pallas_call(
        kernel,
        out_shape=(jax.ShapeDtypeStruct((B, S), jnp.float32),
                   jax.ShapeDtypeStruct((B, S), jnp.int32)),
        in_specs=vmem_specs,
        out_specs=(pl.BlockSpec(memory_space=pltpu.MemorySpace.VMEM),
                   pl.BlockSpec(memory_space=pltpu.MemorySpace.VMEM)),
        scratch_shapes=[pltpu.VMEM((B, S, H), jnp.float32)],   # batch-major enc outputs
    )(x_tm, x_bm,
      params["W_emb_T"], params["b_emb"],
      params["enc_Wih_T"], params["enc_Whh_T"], params["enc_b"],
      dec_w, params["dec_b"],
      params["glm_Wq_T"], params["glm_bq"], params["glm_v"], params["glm_vb"],
      params["ptr_Wq_T"], params["ptr_bq"], params["ptr_v"], params["ptr_vb"],
      wr_cat, wrb_cat,
      params["decoder_start"], gumbel)

    # TODO(synk): heuristic-forcing branch (torch.rand(1) < force_prob with a user
    #             heuristic callback) not implemented; force_prob=0.0 so it never fires.
    forced = [0] * S
    return lp, idx, forced   # [B, S] log-probs, [B, S] indices, forced flags


# ------------------------------------ main -------------------------------------------
if __name__ == "__main__":
    B, S, H = 2, 8, 32
    E = H  # embedding_size must equal hidden_size for the PyTorch LSTM wiring

    root = jax.random.PRNGKey(0)
    pkey, xkey, skey = jax.random.split(root, 3)

    params = init_params(pkey, E, H)
    inputs = jax.random.uniform(xkey, (B, S, 2), jnp.float32)   # Euclidean TSP points

    logprobs, indices, forced = rnntsp_forward(
        params, inputs, skey,
        n_glimpses=1, tanh_exploration=10.0, force_prob=0.0)

    logprobs = jax.block_until_ready(logprobs)
    indices = jax.block_until_ready(indices)

    assert logprobs.shape == (B, S)
    assert indices.shape == (B, S)
    assert bool(jnp.all(jnp.isfinite(logprobs)))
    assert bool(jnp.all(logprobs <= 1e-4))
    assert bool(jnp.all((indices >= 0) & (indices < S)))
    # valid tours: each batch visits every city exactly once
    assert bool(jnp.all(jnp.sort(indices, axis=1) == jnp.arange(S)[None, :]))
    assert len(forced) == S
    print("KERNEL_OK")
</pallas_src>

<mosaic_0001>
module attributes {stable_mosaic.version = 11 : i64} {
  func.func @_rnntsp_kernel(%arg0: memref<16x2xf32, #tpu.memory_space<vmem>>, %arg1: memref<16x2xf32, #tpu.memory_space<vmem>>, %arg2: memref<2x32xf32, #tpu.memory_space<vmem>>, %arg3: memref<1x32xf32, #tpu.memory_space<vmem>>, %arg4: memref<32x128xf32, #tpu.memory_space<vmem>>, %arg5: memref<32x128xf32, #tpu.memory_space<vmem>>, %arg6: memref<1x128xf32, #tpu.memory_space<vmem>>, %arg7: memref<64x128xf32, #tpu.memory_space<vmem>>, %arg8: memref<1x128xf32, #tpu.memory_space<vmem>>, %arg9: memref<32x32xf32, #tpu.memory_space<vmem>>, %arg10: memref<1x32xf32, #tpu.memory_space<vmem>>, %arg11: memref<1x32xf32, #tpu.memory_space<vmem>>, %arg12: memref<1x1xf32, #tpu.memory_space<vmem>>, %arg13: memref<32x32xf32, #tpu.memory_space<vmem>>, %arg14: memref<1x32xf32, #tpu.memory_space<vmem>>, %arg15: memref<1x32xf32, #tpu.memory_space<vmem>>, %arg16: memref<1x1xf32, #tpu.memory_space<vmem>>, %arg17: memref<32x64xf32, #tpu.memory_space<vmem>>, %arg18: memref<1x64xf32, #tpu.memory_space<vmem>>, %arg19: memref<1x32xf32, #tpu.memory_space<vmem>>, %arg20: memref<8x2x8xf32, #tpu.memory_space<vmem>>, %arg21: memref<2x8xf32, #tpu.memory_space<vmem>>, %arg22: memref<2x8xi32, #tpu.memory_space<vmem>>, %arg23: memref<2x8x32xf32, #tpu.memory_space<vmem>>) attributes {dimension_semantics = [], scalar_prefetch = 0 : i64, scratch_operands = 1 : i64, tpu.core_type = #tpu.core_type<tc>} {
    %c0 = arith.constant 0 : index
    %c0_0 = arith.constant 0 : index
    %0 = vector.load %arg2[%c0, %c0_0] : memref<2x32xf32, #tpu.memory_space<vmem>>, vector<2x32xf32>
    %c0_1 = arith.constant 0 : index
    %c0_2 = arith.constant 0 : index
    %1 = vector.load %arg3[%c0_1, %c0_2] : memref<1x32xf32, #tpu.memory_space<vmem>>, vector<1x32xf32>
    %c0_3 = arith.constant 0 : index
    %c0_4 = arith.constant 0 : index
    %2 = vector.load %arg5[%c0_3, %c0_4] : memref<32x128xf32, #tpu.memory_space<vmem>>, vector<32x128xf32>
    %c0_5 = arith.constant 0 : index
    %c0_6 = arith.constant 0 : index
    %3 = vector.load %arg7[%c0_5, %c0_6] : memref<64x128xf32, #tpu.memory_space<vmem>>, vector<64x128xf32>
    %c0_7 = arith.constant 0 : index
    %c0_8 = arith.constant 0 : index
    %4 = vector.load %arg8[%c0_7, %c0_8] : memref<1x128xf32, #tpu.memory_space<vmem>>, vector<1x128xf32>
    %c0_9 = arith.constant 0 : index
    %c0_10 = arith.constant 0 : index
    %5 = vector.load %arg9[%c0_9, %c0_10] : memref<32x32xf32, #tpu.memory_space<vmem>>, vector<32x32xf32>
    %c0_11 = arith.constant 0 : index
    %c0_12 = arith.constant 0 : index
    %6 = vector.load %arg10[%c0_11, %c0_12] : memref<1x32xf32, #tpu.memory_space<vmem>>, vector<1x32xf32>
    %c0_13 = arith.constant 0 : index
    %c0_14 = arith.constant 0 : index
    %7 = vector.load %arg11[%c0_13, %c0_14] : memref<1x32xf32, #tpu.memory_space<vmem>>, vector<1x32xf32>
    %8 = vector.shape_cast %7 : vector<1x32xf32> to vector<1x1x32xf32>
    %c0_15 = arith.constant 0 : index
    %c0_16 = arith.constant 0 : index
    %9 = vector.load %arg12[%c0_15, %c0_16] : memref<1x1xf32, #tpu.memory_space<vmem>>, vector<1x1xf32>
    %c0_17 = arith.constant 0 : index
    %c0_18 = arith.constant 0 : index
    %10 = vector.load %arg13[%c0_17, %c0_18] : memref<32x32xf32, #tpu.memory_space<vmem>>, vector<32x32xf32>
    %c0_19 = arith.constant 0 : index
    %c0_20 = arith.constant 0 : index
    %11 = vector.load %arg14[%c0_19, %c0_20] : memref<1x32xf32, #tpu.memory_space<vmem>>, vector<1x32xf32>
    %c0_21 = arith.constant 0 : index
    %c0_22 = arith.constant 0 : index
    %12 = vector.load %arg15[%c0_21, %c0_22] : memref<1x32xf32, #tpu.memory_space<vmem>>, vector<1x32xf32>
    %13 = vector.shape_cast %12 : vector<1x32xf32> to vector<1x1x32xf32>
    %c0_23 = arith.constant 0 : index
    %c0_24 = arith.constant 0 : index
    %14 = vector.load %arg16[%c0_23, %c0_24] : memref<1x1xf32, #tpu.memory_space<vmem>>, vector<1x1xf32>
    %15 = tpu.iota {dimensions = array<i32: 1>} : vector<1x128xi32>
    %c64_i32 = arith.constant 64 : i32
    %16 = vector.broadcast %c64_i32 : i32 to vector<1x128xi32>
    %17 = arith.cmpi sge, %15, %16 : vector<1x128xi32>
    %c96_i32 = arith.constant 96 : i32
    %18 = vector.broadcast %c96_i32 : i32 to vector<1x128xi32>
    %19 = arith.cmpi slt, %15, %18 : vector<1x128xi32>
    %20 = arith.andi %17, %19 : vector<1x128xi1>
    %cst = arith.constant 1.000000e+00 : f32
    %cst_25 = arith.constant 5.000000e-01 : f32
    %21 = vector.broadcast %cst : f32 to vector<1x128xf32>
    %22 = vector.broadcast %cst_25 : f32 to vector<1x128xf32>
    %23 = arith.select %20, %21, %22 : vector<1x128xi1>, vector<1x128xf32>
    %cst_26 = arith.constant 0.000000e+00 : f32
    %cst_27 = arith.constant 5.000000e-01 : f32
    %24 = vector.broadcast %cst_26 : f32 to vector<1x128xf32>
    %25 = vector.broadcast %cst_27 : f32 to vector<1x128xf32>
    %26 = arith.select %20, %24, %25 : vector<1x128xi1>, vector<1x128xf32>
    %c0_28 = arith.constant 0 : index
    %c0_29 = arith.constant 0 : index
    %27 = vector.load %arg0[%c0_28, %c0_29] : memref<16x2xf32, #tpu.memory_space<vmem>>, vector<16x2xf32>
    %c0_30 = arith.constant 0 : index
    %c0_31 = arith.constant 0 : index
    %28 = vector.load %arg1[%c0_30, %c0_31] : memref<16x2xf32, #tpu.memory_space<vmem>>, vector<16x2xf32>
    %29 = vector.extract_strided_slice %27 {offsets = [0, 0], sizes = [16, 1], strides = [1, 1]} : vector<16x2xf32> to vector<16x1xf32>
    %30 = vector.extract_strided_slice %0 {offsets = [0, 0], sizes = [1, 32], strides = [1, 1]} : vector<2x32xf32> to vector<1x32xf32>
    %31 = vector.broadcast %29 : vector<16x1xf32> to vector<16x32xf32>
    %32 = vector.broadcast %30 : vector<1x32xf32> to vector<16x32xf32>
    %33 = arith.mulf %31, %32 : vector<16x32xf32>
    %34 = vector.extract_strided_slice %27 {offsets = [0, 1], sizes = [16, 1], strides = [1, 1]} : vector<16x2xf32> to vector<16x1xf32>
    %35 = vector.extract_strided_slice %0 {offsets = [1, 0], sizes = [1, 32], strides = [1, 1]} : vector<2x32xf32> to vector<1x32xf32>
    %36 = vector.broadcast %34 : vector<16x1xf32> to vector<16x32xf32>
    %37 = vector.broadcast %35 : vector<1x32xf32> to vector<16x32xf32>
    %38 = arith.mulf %36, %37 : vector<16x32xf32>
    %39 = arith.addf %33, %38 : vector<16x32xf32>
    %40 = vector.broadcast %1 : vector<1x32xf32> to vector<16x32xf32>
    %41 = arith.addf %39, %40 : vector<16x32xf32>
    %42 = vector.extract_strided_slice %28 {offsets = [0, 0], sizes = [16, 1], strides = [1, 1]} : vector<16x2xf32> to vector<16x1xf32>
    %43 = vector.extract_strided_slice %0 {offsets = [0, 0], sizes = [1, 32], strides = [1, 1]} : vector<2x32xf32> to vector<1x32xf32>
    %44 = vector.broadcast %42 : vector<16x1xf32> to vector<16x32xf32>
    %45 = vector.broadcast %43 : vector<1x32xf32> to vector<16x32xf32>
    %46 = arith.mulf %44, %45 : vector<16x32xf32>
    %47 = vector.extract_strided_slice %28 {offsets = [0, 1], sizes = [16, 1], strides = [1, 1]} : vector<16x2xf32> to vector<16x1xf32>
    %48 = vector.extract_strided_slice %0 {offsets = [1, 0], sizes = [1, 32], strides = [1, 1]} : vector<2x32xf32> to vector<1x32xf32>
    %49 = vector.broadcast %47 : vector<16x1xf32> to vector<16x32xf32>
    %50 = vector.broadcast %48 : vector<1x32xf32> to vector<16x32xf32>
    %51 = arith.mulf %49, %50 : vector<16x32xf32>
    %52 = arith.addf %46, %51 : vector<16x32xf32>
    %53 = vector.broadcast %1 : vector<1x32xf32> to vector<16x32xf32>
    %54 = arith.addf %52, %53 : vector<16x32xf32>
    %55 = vector.shape_cast %54 : vector<16x32xf32> to vector<2x8x32xf32>
    %c0_32 = arith.constant 0 : index
    %c0_33 = arith.constant 0 : index
    %56 = vector.load %arg4[%c0_32, %c0_33] : memref<32x128xf32, #tpu.memory_space<vmem>>, vector<32x128xf32>
    %cst_34 = arith.constant dense<0.000000e+00> : vector<16x128xf32>
    %57 = tpu.matmul %41, %56, %cst_34 {dimension_numbers = #tpu.dot_dimension_numbers<[1], [0], [0], [1], [0, 0, 1, 1], [], []>} : vector<16x32xf32>, vector<32x128xf32>, vector<16x128xf32> -> vector<16x128xf32>
    %c0_35 = arith.constant 0 : index
    %c0_36 = arith.constant 0 : index
    %58 = vector.load %arg6[%c0_35, %c0_36] : memref<1x128xf32, #tpu.memory_space<vmem>>, vector<1x128xf32>
    %59 = vector.broadcast %58 : vector<1x128xf32> to vector<16x128xf32>
    %60 = arith.addf %57, %59 : vector<16x128xf32>
    %cst_37 = arith.constant 0.000000e+00 : f32
    %61 = vector.broadcast %cst_37 : f32 to vector<2x32xf32>
    %cst_38 = arith.constant 0.000000e+00 : f32
    %62 = vector.broadcast %cst_38 : f32 to vector<2x32xf32>
    %63 = vector.extract_strided_slice %60 {offsets = [0, 0], sizes = [2, 128], strides = [1, 1]} : vector<16x128xf32> to vector<2x128xf32>
    %cst_39 = arith.constant dense<0.000000e+00> : vector<2x128xf32>
    %64 = tpu.matmul %61, %2, %cst_39 {dimension_numbers = #tpu.dot_dimension_numbers<[1], [0], [0], [1], [0, 0, 1, 1], [], []>} : vector<2x32xf32>, vector<32x128xf32>, vector<2x128xf32> -> vector<2x128xf32>
    %65 = arith.addf %63, %64 : vector<2x128xf32>
    %66 = vector.broadcast %23 : vector<1x128xf32> to vector<2x128xf32>
    %67 = arith.mulf %65, %66 : vector<2x128xf32>
    %68 = math.tanh %67 : vector<2x128xf32>
    %69 = vector.broadcast %23 : vector<1x128xf32> to vector<2x128xf32>
    %70 = arith.mulf %68, %69 : vector<2x128xf32>
    %71 = vector.broadcast %26 : vector<1x128xf32> to vector<2x128xf32>
    %72 = arith.addf %70, %71 : vector<2x128xf32>
    %73 = vector.extract_strided_slice %72 {offsets = [0, 0], sizes = [2, 32], strides = [1, 1]} : vector<2x128xf32> to vector<2x32xf32>
    %74 = vector.extract_strided_slice %72 {offsets = [0, 32], sizes = [2, 32], strides = [1, 1]} : vector<2x128xf32> to vector<2x32xf32>
    %75 = vector.extract_strided_slice %72 {offsets = [0, 64], sizes = [2, 32], strides = [1, 1]} : vector<2x128xf32> to vector<2x32xf32>
    %76 = vector.extract_strided_slice %72 {offsets = [0, 96], sizes = [2, 32], strides = [1, 1]} : vector<2x128xf32> to vector<2x32xf32>
    %77 = arith.mulf %74, %62 : vector<2x32xf32>
    %78 = arith.mulf %73, %75 : vector<2x32xf32>
    %79 = arith.addf %77, %78 : vector<2x32xf32>
    %80 = math.tanh %79 : vector<2x32xf32>
    %81 = arith.mulf %76, %80 : vector<2x32xf32>
    %c0_40 = arith.constant 0 : index
    %c0_41 = arith.constant 0 : index
    %c0_42 = arith.constant 0 : index
    %82 = vector.load %arg23[%c0_40, %c0_41, %c0_42] : memref<2x8x32xf32, #tpu.memory_space<vmem>>, vector<2x1x32xf32>
    %83 = vector.shape_cast %82 : vector<2x1x32xf32> to vector<2x32xf32>
    %84 = vector.shape_cast %81 : vector<2x32xf32> to vector<2x1x32xf32>
    tpu.vector_store %arg23[%c0_40, %c0_41, %c0_42], %84 {strides = array<i32>} : memref<2x8x32xf32, #tpu.memory_space<vmem>>, vector<2x1x32xf32>,
    %85 = vector.extract_strided_slice %60 {offsets = [2, 0], sizes = [2, 128], strides = [1, 1]} : vector<16x128xf32> to vector<2x128xf32>
    %cst_43 = arith.constant dense<0.000000e+00> : vector<2x128xf32>
    %86 = tpu.matmul %81, %2, %cst_43 {dimension_numbers = #tpu.dot_dimension_numbers<[1], [0], [0], [1], [0, 0, 1, 1], [], []>} : vector<2x32xf32>, vector<32x128xf32>, vector<2x128xf32> -> vector<2x128xf32>
    %87 = arith.addf %85, %86 : vector<2x128xf32>
    %88 = vector.broadcast %23 : vector<1x128xf32> to vector<2x128xf32>
    %89 = arith.mulf %87, %88 : vector<2x128xf32>
    %90 = math.tanh %89 : vector<2x128xf32>
    %91 = vector.broadcast %23 : vector<1x128xf32> to vector<2x128xf32>
    %92 = arith.mulf %90, %91 : vector<2x128xf32>
    %93 = vector.broadcast %26 : vector<1x128xf32> to vector<2x128xf32>
    %94 = arith.addf %92, %93 : vector<2x128xf32>
    %95 = vector.extract_strided_slice %94 {offsets = [0, 0], sizes = [2, 32], strides = [1, 1]} : vector<2x128xf32> to vector<2x32xf32>
    %96 = vector.extract_strided_slice %94 {offsets = [0, 32], sizes = [2, 32], strides = [1, 1]} : vector<2x128xf32> to vector<2x32xf32>
    %97 = vector.extract_strided_slice %94 {offsets = [0, 64], sizes = [2, 32], strides = [1, 1]} : vector<2x128xf32> to vector<2x32xf32>
    %98 = vector.extract_strided_slice %94 {offsets = [0, 96], sizes = [2, 32], strides = [1, 1]} : vector<2x128xf32> to vector<2x32xf32>
    %99 = arith.mulf %96, %79 : vector<2x32xf32>
    %100 = arith.mulf %95, %97 : vector<2x32xf32>
    %101 = arith.addf %99, %100 : vector<2x32xf32>
    %102 = math.tanh %101 : vector<2x32xf32>
    %103 = arith.mulf %98, %102 : vector<2x32xf32>
    %c0_44 = arith.constant 0 : index
    %c1 = arith.constant 1 : index
    %c0_45 = arith.constant 0 : index
    %104 = vector.load %arg23[%c0_44, %c1, %c0_45] : memref<2x8x32xf32, #tpu.memory_space<vmem>>, vector<2x1x32xf32>
    %105 = vector.shape_cast %104 : vector<2x1x32xf32> to vector<2x32xf32>
    %106 = vector.shape_cast %103 : vector<2x32xf32> to vector<2x1x32xf32>
    tpu.vector_store %arg23[%c0_44, %c1, %c0_45], %106 {strides = array<i32>} : memref<2x8x32xf32, #tpu.memory_space<vmem>>, vector<2x1x32xf32>,
    %107 = vector.extract_strided_slice %60 {offsets = [4, 0], sizes = [2, 128], strides = [1, 1]} : vector<16x128xf32> to vector<2x128xf32>
    %cst_46 = arith.constant dense<0.000000e+00> : vector<2x128xf32>
    %108 = tpu.matmul %103, %2, %cst_46 {dimension_numbers = #tpu.dot_dimension_numbers<[1], [0], [0], [1], [0, 0, 1, 1], [], []>} : vector<2x32xf32>, vector<32x128xf32>, vector<2x128xf32> -> vector<2x128xf32>
    %109 = arith.addf %107, %108 : vector<2x128xf32>
    %110 = vector.broadcast %23 : vector<1x128xf32> to vector<2x128xf32>
    %111 = arith.mulf %109, %110 : vector<2x128xf32>
    %112 = math.tanh %111 : vector<2x128xf32>
    %113 = vector.broadcast %23 : vector<1x128xf32> to vector<2x128xf32>
    %114 = arith.mulf %112, %113 : vector<2x128xf32>
    %115 = vector.broadcast %26 : vector<1x128xf32> to vector<2x128xf32>
    %116 = arith.addf %114, %115 : vector<2x128xf32>
    %117 = vector.extract_strided_slice %116 {offsets = [0, 0], sizes = [2, 32], strides = [1, 1]} : vector<2x128xf32> to vector<2x32xf32>
    %118 = vector.extract_strided_slice %116 {offsets = [0, 32], sizes = [2, 32], strides = [1, 1]} : vector<2x128xf32> to vector<2x32xf32>
    %119 = vector.extract_strided_slice %116 {offsets = [0, 64], sizes = [2, 32], strides = [1, 1]} : vector<2x128xf32> to vector<2x32xf32>
    %120 = vector.extract_strided_slice %116 {offsets = [0, 96], sizes = [2, 32], strides = [1, 1]} : vector<2x128xf32> to vector<2x32xf32>
    %121 = arith.mulf %118, %101 : vector<2x32xf32>
    %122 = arith.mulf %117, %119 : vector<2x32xf32>
    %123 = arith.addf %121, %122 : vector<2x32xf32>
    %124 = math.tanh %123 : vector<2x32xf32>
    %125 = arith.mulf %120, %124 : vector<2x32xf32>
    %c0_47 = arith.constant 0 : index
    %c2 = arith.constant 2 : index
    %c0_48 = arith.constant 0 : index
    %126 = vector.load %arg23[%c0_47, %c2, %c0_48] : memref<2x8x32xf32, #tpu.memory_space<vmem>>, vector<2x1x32xf32>
    %127 = vector.shape_cast %126 : vector<2x1x32xf32> to vector<2x32xf32>
    %128 = vector.shape_cast %125 : vector<2x32xf32> to vector<2x1x32xf32>
    tpu.vector_store %arg23[%c0_47, %c2, %c0_48], %128 {strides = array<i32>} : memref<2x8x32xf32, #tpu.memory_space<vmem>>, vector<2x1x32xf32>,
    %129 = vector.extract_strided_slice %60 {offsets = [6, 0], sizes = [2, 128], strides = [1, 1]} : vector<16x128xf32> to vector<2x128xf32>
    %cst_49 = arith.constant dense<0.000000e+00> : vector<2x128xf32>
    %130 = tpu.matmul %125, %2, %cst_49 {dimension_numbers = #tpu.dot_dimension_numbers<[1], [0], [0], [1], [0, 0, 1, 1], [], []>} : vector<2x32xf32>, vector<32x128xf32>, vector<2x128xf32> -> vector<2x128xf32>
    %131 = arith.addf %129, %130 : vector<2x128xf32>
    %132 = vector.broadcast %23 : vector<1x128xf32> to vector<2x128xf32>
    %133 = arith.mulf %131, %132 : vector<2x128xf32>
    %134 = math.tanh %133 : vector<2x128xf32>
    %135 = vector.broadcast %23 : vector<1x128xf32> to vector<2x128xf32>
    %136 = arith.mulf %134, %135 : vector<2x128xf32>
    %137 = vector.broadcast %26 : vector<1x128xf32> to vector<2x128xf32>
    %138 = arith.addf %136, %137 : vector<2x128xf32>
    %139 = vector.extract_strided_slice %138 {offsets = [0, 0], sizes = [2, 32], strides = [1, 1]} : vector<2x128xf32> to vector<2x32xf32>
    %140 = vector.extract_strided_slice %138 {offsets = [0, 32], sizes = [2, 32], strides = [1, 1]} : vector<2x128xf32> to vector<2x32xf32>
    %141 = vector.extract_strided_slice %138 {offsets = [0, 64], sizes = [2, 32], strides = [1, 1]} : vector<2x128xf32> to vector<2x32xf32>
    %142 = vector.extract_strided_slice %138 {offsets = [0, 96], sizes = [2, 32], strides = [1, 1]} : vector<2x128xf32> to vector<2x32xf32>
    %143 = arith.mulf %140, %123 : vector<2x32xf32>
    %144 = arith.mulf %139, %141 : vector<2x32xf32>
    %145 = arith.addf %143, %144 : vector<2x32xf32>
    %146 = math.tanh %145 : vector<2x32xf32>
    %147 = arith.mulf %142, %146 : vector<2x32xf32>
    %c0_50 = arith.constant 0 : index
    %c3 = arith.constant 3 : index
    %c0_51 = arith.constant 0 : index
    %148 = vector.load %arg23[%c0_50, %c3, %c0_51] : memref<2x8x32xf32, #tpu.memory_space<vmem>>, vector<2x1x32xf32>
    %149 = vector.shape_cast %148 : vector<2x1x32xf32> to vector<2x32xf32>
    %150 = vector.shape_cast %147 : vector<2x32xf32> to vector<2x1x32xf32>
    tpu.vector_store %arg23[%c0_50, %c3, %c0_51], %150 {strides = array<i32>} : memref<2x8x32xf32, #tpu.memory_space<vmem>>, vector<2x1x32xf32>,
    %151 = vector.extract_strided_slice %60 {offsets = [8, 0], sizes = [2, 128], strides = [1, 1]} : vector<16x128xf32> to vector<2x128xf32>
    %cst_52 = arith.constant dense<0.000000e+00> : vector<2x128xf32>
    %152 = tpu.matmul %147, %2, %cst_52 {dimension_numbers = #tpu.dot_dimension_numbers<[1], [0], [0], [1], [0, 0, 1, 1], [], []>} : vector<2x32xf32>, vector<32x128xf32>, vector<2x128xf32> -> vector<2x128xf32>
    %153 = arith.addf %151, %152 : vector<2x128xf32>
    %154 = vector.broadcast %23 : vector<1x128xf32> to vector<2x128xf32>
    %155 = arith.mulf %153, %154 : vector<2x128xf32>
    %156 = math.tanh %155 : vector<2x128xf32>
    %157 = vector.broadcast %23 : vector<1x128xf32> to vector<2x128xf32>
    %158 = arith.mulf %156, %157 : vector<2x128xf32>
    %159 = vector.broadcast %26 : vector<1x128xf32> to vector<2x128xf32>
    %160 = arith.addf %158, %159 : vector<2x128xf32>
    %161 = vector.extract_strided_slice %160 {offsets = [0, 0], sizes = [2, 32], strides = [1, 1]} : vector<2x128xf32> to vector<2x32xf32>
    %162 = vector.extract_strided_slice %160 {offsets = [0, 32], sizes = [2, 32], strides = [1, 1]} : vector<2x128xf32> to vector<2x32xf32>
    %163 = vector.extract_strided_slice %160 {offsets = [0, 64], sizes = [2, 32], strides = [1, 1]} : vector<2x128xf32> to vector<2x32xf32>
    %164 = vector.extract_strided_slice %160 {offsets = [0, 96], sizes = [2, 32], strides = [1, 1]} : vector<2x128xf32> to vector<2x32xf32>
    %165 = arith.mulf %162, %145 : vector<2x32xf32>
    %166 = arith.mulf %161, %163 : vector<2x32xf32>
    %167 = arith.addf %165, %166 : vector<2x32xf32>
    %168 = math.tanh %167 : vector<2x32xf32>
    %169 = arith.mulf %164, %168 : vector<2x32xf32>
    %c0_53 = arith.constant 0 : index
    %c4 = arith.constant 4 : index
    %c0_54 = arith.constant 0 : index
    %170 = vector.load %arg23[%c0_53, %c4, %c0_54] : memref<2x8x32xf32, #tpu.memory_space<vmem>>, vector<2x1x32xf32>
    %171 = vector.shape_cast %170 : vector<2x1x32xf32> to vector<2x32xf32>
    %172 = vector.shape_cast %169 : vector<2x32xf32> to vector<2x1x32xf32>
    tpu.vector_store %arg23[%c0_53, %c4, %c0_54], %172 {strides = array<i32>} : memref<2x8x32xf32, #tpu.memory_space<vmem>>, vector<2x1x32xf32>,
    %173 = vector.extract_strided_slice %60 {offsets = [10, 0], sizes = [2, 128], strides = [1, 1]} : vector<16x128xf32> to vector<2x128xf32>
    %cst_55 = arith.constant dense<0.000000e+00> : vector<2x128xf32>
    %174 = tpu.matmul %169, %2, %cst_55 {dimension_numbers = #tpu.dot_dimension_numbers<[1], [0], [0], [1], [0, 0, 1, 1], [], []>} : vector<2x32xf32>, vector<32x128xf32>, vector<2x128xf32> -> vector<2x128xf32>
    %175 = arith.addf %173, %174 : vector<2x128xf32>
    %176 = vector.broadcast %23 : vector<1x128xf32> to vector<2x128xf32>
    %177 = arith.mulf %175, %176 : vector<2x128xf32>
    %178 = math.tanh %177 : vector<2x128xf32>
    %179 = vector.broadcast %23 : vector<1x128xf32> to vector<2x128xf32>
    %180 = arith.mulf %178, %179 : vector<2x128xf32>
    %181 = vector.broadcast %26 : vector<1x128xf32> to vector<2x128xf32>
    %182 = arith.addf %180, %181 : vector<2x128xf32>
    %183 = vector.extract_strided_slice %182 {offsets = [0, 0], sizes = [2, 32], strides = [1, 1]} : vector<2x128xf32> to vector<2x32xf32>
    %184 = vector.extract_strided_slice %182 {offsets = [0, 32], sizes = [2, 32], strides = [1, 1]} : vector<2x128xf32> to vector<2x32xf32>
    %185 = vector.extract_strided_slice %182 {offsets = [0, 64], sizes = [2, 32], strides = [1, 1]} : vector<2x128xf32> to vector<2x32xf32>
    %186 = vector.extract_strided_slice %182 {offsets = [0, 96], sizes = [2, 32], strides = [1, 1]} : vector<2x128xf32> to vector<2x32xf32>
    %187 = arith.mulf %184, %167 : vector<2x32xf32>
    %188 = arith.mulf %183, %185 : vector<2x32xf32>
    %189 = arith.addf %187, %188 : vector<2x32xf32>
    %190 = math.tanh %189 : vector<2x32xf32>
    %191 = arith.mulf %186, %190 : vector<2x32xf32>
    %c0_56 = arith.constant 0 : index
    %c5 = arith.constant 5 : index
    %c0_57 = arith.constant 0 : index
    %192 = vector.load %arg23[%c0_56, %c5, %c0_57] : memref<2x8x32xf32, #tpu.memory_space<vmem>>, vector<2x1x32xf32>
    %193 = vector.shape_cast %192 : vector<2x1x32xf32> to vector<2x32xf32>
    %194 = vector.shape_cast %191 : vector<2x32xf32> to vector<2x1x32xf32>
    tpu.vector_store %arg23[%c0_56, %c5, %c0_57], %194 {strides = array<i32>} : memref<2x8x32xf32, #tpu.memory_space<vmem>>, vector<2x1x32xf32>,
    %195 = vector.extract_strided_slice %60 {offsets = [12, 0], sizes = [2, 128], strides = [1, 1]} : vector<16x128xf32> to vector<2x128xf32>
    %cst_58 = arith.constant dense<0.000000e+00> : vector<2x128xf32>
    %196 = tpu.matmul %191, %2, %cst_58 {dimension_numbers = #tpu.dot_dimension_numbers<[1], [0], [0], [1], [0, 0, 1, 1], [], []>} : vector<2x32xf32>, vector<32x128xf32>, vector<2x128xf32> -> vector<2x128xf32>
    %197 = arith.addf %195, %196 : vector<2x128xf32>
    %198 = vector.broadcast %23 : vector<1x128xf32> to vector<2x128xf32>
    %199 = arith.mulf %197, %198 : vector<2x128xf32>
    %200 = math.tanh %199 : vector<2x128xf32>
    %201 = vector.broadcast %23 : vector<1x128xf32> to vector<2x128xf32>
    %202 = arith.mulf %200, %201 : vector<2x128xf32>
    %203 = vector.broadcast %26 : vector<1x128xf32> to vector<2x128xf32>
    %204 = arith.addf %202, %203 : vector<2x128xf32>
    %205 = vector.extract_strided_slice %204 {offsets = [0, 0], sizes = [2, 32], strides = [1, 1]} : vector<2x128xf32> to vector<2x32xf32>
    %206 = vector.extract_strided_slice %204 {offsets = [0, 32], sizes = [2, 32], strides = [1, 1]} : vector<2x128xf32> to vector<2x32xf32>
    %207 = vector.extract_strided_slice %204 {offsets = [0, 64], sizes = [2, 32], strides = [1, 1]} : vector<2x128xf32> to vector<2x32xf32>
    %208 = vector.extract_strided_slice %204 {offsets = [0, 96], sizes = [2, 32], strides = [1, 1]} : vector<2x128xf32> to vector<2x32xf32>
    %209 = arith.mulf %206, %189 : vector<2x32xf32>
    %210 = arith.mulf %205, %207 : vector<2x32xf32>
    %211 = arith.addf %209, %210 : vector<2x32xf32>
    %212 = math.tanh %211 : vector<2x32xf32>
    %213 = arith.mulf %208, %212 : vector<2x32xf32>
    %c0_59 = arith.constant 0 : index
    %c6 = arith.constant 6 : index
    %c0_60 = arith.constant 0 : index
    %214 = vector.load %arg23[%c0_59, %c6, %c0_60] : memref<2x8x32xf32, #tpu.memory_space<vmem>>, vector<2x1x32xf32>
    %215 = vector.shape_cast %214 : vector<2x1x32xf32> to vector<2x32xf32>
    %216 = vector.shape_cast %213 : vector<2x32xf32> to vector<2x1x32xf32>
    tpu.vector_store %arg23[%c0_59, %c6, %c0_60], %216 {strides = array<i32>} : memref<2x8x32xf32, #tpu.memory_space<vmem>>, vector<2x1x32xf32>,
    %217 = vector.extract_strided_slice %60 {offsets = [14, 0], sizes = [2, 128], strides = [1, 1]} : vector<16x128xf32> to vector<2x128xf32>
    %cst_61 = arith.constant dense<0.000000e+00> : vector<2x128xf32>
    %218 = tpu.matmul %213, %2, %cst_61 {dimension_numbers = #tpu.dot_dimension_numbers<[1], [0], [0], [1], [0, 0, 1, 1], [], []>} : vector<2x32xf32>, vector<32x128xf32>, vector<2x128xf32> -> vector<2x128xf32>
    %219 = arith.addf %217, %218 : vector<2x128xf32>
    %220 = vector.broadcast %23 : vector<1x128xf32> to vector<2x128xf32>
    %221 = arith.mulf %219, %220 : vector<2x128xf32>
    %222 = math.tanh %221 : vector<2x128xf32>
    %223 = vector.broadcast %23 : vector<1x128xf32> to vector<2x128xf32>
    %224 = arith.mulf %222, %223 : vector<2x128xf32>
    %225 = vector.broadcast %26 : vector<1x128xf32> to vector<2x128xf32>
    %226 = arith.addf %224, %225 : vector<2x128xf32>
    %227 = vector.extract_strided_slice %226 {offsets = [0, 0], sizes = [2, 32], strides = [1, 1]} : vector<2x128xf32> to vector<2x32xf32>
    %228 = vector.extract_strided_slice %226 {offsets = [0, 32], sizes = [2, 32], strides = [1, 1]} : vector<2x128xf32> to vector<2x32xf32>
    %229 = vector.extract_strided_slice %226 {offsets = [0, 64], sizes = [2, 32], strides = [1, 1]} : vector<2x128xf32> to vector<2x32xf32>
    %230 = vector.extract_strided_slice %226 {offsets = [0, 96], sizes = [2, 32], strides = [1, 1]} : vector<2x128xf32> to vector<2x32xf32>
    %231 = arith.mulf %228, %211 : vector<2x32xf32>
    %232 = arith.mulf %227, %229 : vector<2x32xf32>
    %233 = arith.addf %231, %232 : vector<2x32xf32>
    %234 = math.tanh %233 : vector<2x32xf32>
    %235 = arith.mulf %230, %234 : vector<2x32xf32>
    %c0_62 = arith.constant 0 : index
    %c7 = arith.constant 7 : index
    %c0_63 = arith.constant 0 : index
    %236 = vector.load %arg23[%c0_62, %c7, %c0_63] : memref<2x8x32xf32, #tpu.memory_space<vmem>>, vector<2x1x32xf32>
    %237 = vector.shape_cast %236 : vector<2x1x32xf32> to vector<2x32xf32>
    %238 = vector.shape_cast %235 : vector<2x32xf32> to vector<2x1x32xf32>
    tpu.vector_store %arg23[%c0_62, %c7, %c0_63], %238 {strides = array<i32>} : memref<2x8x32xf32, #tpu.memory_space<vmem>>, vector<2x1x32xf32>,
    %c0_64 = arith.constant 0 : index
    %c0_65 = arith.constant 0 : index
    %c0_66 = arith.constant 0 : index
    %239 = vector.load %arg23[%c0_64, %c0_65, %c0_66] : memref<2x8x32xf32, #tpu.memory_space<vmem>>, vector<2x8x32xf32>
    %240 = vector.shape_cast %239 : vector<2x8x32xf32> to vector<16x32xf32>
    %c0_67 = arith.constant 0 : index
    %c0_68 = arith.constant 0 : index
    %241 = vector.load %arg17[%c0_67, %c0_68] : memref<32x64xf32, #tpu.memory_space<vmem>>, vector<32x64xf32>
    %cst_69 = arith.constant dense<0.000000e+00> : vector<16x64xf32>
    %242 = tpu.matmul %240, %241, %cst_69 {dimension_numbers = #tpu.dot_dimension_numbers<[1], [0], [0], [1], [0, 0, 1, 1], [], []>} : vector<16x32xf32>, vector<32x64xf32>, vector<16x64xf32> -> vector<16x64xf32>
    %c0_70 = arith.constant 0 : index
    %c0_71 = arith.constant 0 : index
    %243 = vector.load %arg18[%c0_70, %c0_71] : memref<1x64xf32, #tpu.memory_space<vmem>>, vector<1x64xf32>
    %244 = vector.broadcast %243 : vector<1x64xf32> to vector<16x64xf32>
    %245 = arith.addf %242, %244 : vector<16x64xf32>
    %246 = vector.shape_cast %245 : vector<16x64xf32> to vector<2x8x64xf32>
    %247 = vector.extract_strided_slice %246 {offsets = [0, 0, 0], sizes = [2, 8, 32], strides = [1, 1, 1]} : vector<2x8x64xf32> to vector<2x8x32xf32>
    %248 = vector.extract_strided_slice %246 {offsets = [0, 0, 32], sizes = [2, 8, 32], strides = [1, 1, 1]} : vector<2x8x64xf32> to vector<2x8x32xf32>
    %249 = tpu.iota {dimensions = array<i32: 1>} : vector<2x8xi32>
    %250 = arith.sitofp %249 : vector<2x8xi32> to vector<2x8xf32>
    %c0_72 = arith.constant 0 : index
    %c0_73 = arith.constant 0 : index
    %251 = vector.load %arg19[%c0_72, %c0_73] : memref<1x32xf32, #tpu.memory_space<vmem>>, vector<1x32xf32>
    %252 = vector.shape_cast %251 : vector<1x32xf32> to vector<1x32xf32>
    %253 = vector.broadcast %252 : vector<1x32xf32> to vector<2x32xf32>
    %cst_74 = arith.constant 0.000000e+00 : f32
    %254 = vector.broadcast %cst_74 : f32 to vector<2x8xf32>
    %cst_75 = arith.constant 0.000000e+00 : f32
    %255 = vector.broadcast %cst_75 : f32 to vector<2x8xf32>
    %c0_i32 = arith.constant 0 : i32
    %256 = vector.broadcast %c0_i32 : i32 to vector<2x8xi32>
    %c0_i32_76 = arith.constant 0 : i32
    %257 = tpu.concatenate %253, %235 in 1 : vector<2x32xf32>, vector<2x32xf32> -> vector<2x64xf32>
    %cst_77 = arith.constant dense<0.000000e+00> : vector<2x128xf32>
    %258 = tpu.matmul %257, %3, %cst_77 {dimension_numbers = #tpu.dot_dimension_numbers<[1], [0], [0], [1], [0, 0, 1, 1], [], []>} : vector<2x64xf32>, vector<64x128xf32>, vector<2x128xf32> -> vector<2x128xf32>
    %259 = vector.broadcast %4 : vector<1x128xf32> to vector<2x128xf32>
    %260 = arith.addf %258, %259 : vector<2x128xf32>
    %261 = vector.broadcast %23 : vector<1x128xf32> to vector<2x128xf32>
    %262 = arith.mulf %260, %261 : vector<2x128xf32>
    %263 = math.tanh %262 : vector<2x128xf32>
    %264 = vector.broadcast %23 : vector<1x128xf32> to vector<2x128xf32>
    %265 = arith.mulf %263, %264 : vector<2x128xf32>
    %266 = vector.broadcast %26 : vector<1x128xf32> to vector<2x128xf32>
    %267 = arith.addf %265, %266 : vector<2x128xf32>
    %268 = vector.extract_strided_slice %267 {offsets = [0, 0], sizes = [2, 32], strides = [1, 1]} : vector<2x128xf32> to vector<2x32xf32>
    %269 = vector.extract_strided_slice %267 {offsets = [0, 32], sizes = [2, 32], strides = [1, 1]} : vector<2x128xf32> to vector<2x32xf32>
    %270 = vector.extract_strided_slice %267 {offsets = [0, 64], sizes = [2, 32], strides = [1, 1]} : vector<2x128xf32> to vector<2x32xf32>
    %271 = vector.extract_strided_slice %267 {offsets = [0, 96], sizes = [2, 32], strides = [1, 1]} : vector<2x128xf32> to vector<2x32xf32>
    %272 = arith.mulf %269, %233 : vector<2x32xf32>
    %273 = arith.mulf %268, %270 : vector<2x32xf32>
    %274 = arith.addf %272, %273 : vector<2x32xf32>
    %275 = math.tanh %274 : vector<2x32xf32>
    %276 = arith.mulf %271, %275 : vector<2x32xf32>
    %cst_78 = arith.constant dense<0.000000e+00> : vector<2x32xf32>
    %277 = tpu.matmul %276, %5, %cst_78 {dimension_numbers = #tpu.dot_dimension_numbers<[1], [0], [0], [1], [0, 0, 1, 1], [], []>} : vector<2x32xf32>, vector<32x32xf32>, vector<2x32xf32> -> vector<2x32xf32>
    %278 = vector.broadcast %6 : vector<1x32xf32> to vector<2x32xf32>
    %279 = arith.addf %277, %278 : vector<2x32xf32>
    %280 = vector.shape_cast %279 : vector<2x32xf32> to vector<2x1x32xf32>
    %281 = vector.broadcast %280 : vector<2x1x32xf32> to vector<2x8x32xf32>
    %282 = arith.addf %247, %281 : vector<2x8x32xf32>
    %283 = math.tanh %282 : vector<2x8x32xf32>
    %284 = vector.broadcast %8 : vector<1x1x32xf32> to vector<2x8x32xf32>
    %285 = arith.mulf %283, %284 : vector<2x8x32xf32>
    %cst_79 = arith.constant dense<0.000000e+00> : vector<2x8xf32>
    %286 = vector.multi_reduction <add>, %285, %cst_79 [2] : vector<2x8x32xf32> to vector<2x8xf32>
    %287 = vector.broadcast %9 : vector<1x1xf32> to vector<2x8xf32>
    %288 = arith.addf %286, %287 : vector<2x8xf32>
    %cst_80 = arith.constant 5.000000e-01 : f32
    %289 = vector.broadcast %cst_80 : f32 to vector<2x8xf32>
    %290 = arith.cmpf ogt, %254, %289 : vector<2x8xf32>
    %cst_81 = arith.constant -1.000000e+05 : f32
    %291 = vector.broadcast %cst_81 : f32 to vector<2x8xf32>
    %292 = arith.select %290, %291, %288 : vector<2x8xi1>, vector<2x8xf32>
    %293 = math.tanh %292 : vector<2x8xf32>
    %cst_82 = arith.constant 1.000000e+01 : f32
    %294 = vector.broadcast %cst_82 : f32 to vector<2x8xf32>
    %295 = arith.mulf %294, %293 : vector<2x8xf32>
    %cst_83 = arith.constant 5.000000e-01 : f32
    %296 = vector.broadcast %cst_83 : f32 to vector<2x8xf32>
    %297 = arith.cmpf ogt, %254, %296 : vector<2x8xf32>
    %cst_84 = arith.constant -1.000000e+05 : f32
    %298 = vector.broadcast %cst_84 : f32 to vector<2x8xf32>
    %299 = arith.select %297, %298, %295 : vector<2x8xi1>, vector<2x8xf32>
    %cst_85 = arith.constant dense<0xFF800000> : vector<2xf32>
    %300 = vector.multi_reduction <maximumf>, %299, %cst_85 [1] : vector<2x8xf32> to vector<2xf32>
    %301 = vector.shape_cast %300 : vector<2xf32> to vector<2x1xf32>
    %302 = vector.broadcast %301 : vector<2x1xf32> to vector<2x8xf32>
    %303 = arith.subf %299, %302 : vector<2x8xf32>
    %304 = math.exp %303 : vector<2x8xf32>
    %cst_86 = arith.constant dense<0.000000e+00> : vector<2xf32>
    %305 = vector.multi_reduction <add>, %304, %cst_86 [1] : vector<2x8xf32> to vector<2xf32>
    %306 = vector.shape_cast %305 : vector<2xf32> to vector<2x1xf32>
    %307 = vector.broadcast %306 : vector<2x1xf32> to vector<2x8xf32>
    %308 = arith.divf %304, %307 : vector<2x8xf32>
    %309 = vector.shape_cast %308 : vector<2x8xf32> to vector<2x1x8xf32>
    "tpu.trace_start"() <{level = 10 : i32, message = "bqs,bsh->bqh"}> : () -> ()
    %cst_87 = arith.constant dense<0.000000e+00> : vector<2x1x32xf32>
    %310 = tpu.matmul %309, %239, %cst_87 {dimension_numbers = #tpu.dot_dimension_numbers<[2], [1], [1], [2], [0, 0, 0, 1, 1, 2], [0], [0]>} : vector<2x1x8xf32>, vector<2x8x32xf32>, vector<2x1x32xf32> -> vector<2x1x32xf32>
    "tpu.trace_stop"() : () -> ()
    %311 = vector.shape_cast %310 : vector<2x1x32xf32> to vector<2x32xf32>
    %cst_88 = arith.constant dense<0.000000e+00> : vector<2x32xf32>
    %312 = tpu.matmul %311, %10, %cst_88 {dimension_numbers = #tpu.dot_dimension_numbers<[1], [0], [0], [1], [0, 0, 1, 1], [], []>} : vector<2x32xf32>, vector<32x32xf32>, vector<2x32xf32> -> vector<2x32xf32>
    %313 = vector.broadcast %11 : vector<1x32xf32> to vector<2x32xf32>
    %314 = arith.addf %312, %313 : vector<2x32xf32>
    %315 = vector.shape_cast %314 : vector<2x32xf32> to vector<2x1x32xf32>
    %316 = vector.broadcast %315 : vector<2x1x32xf32> to vector<2x8x32xf32>
    %317 = arith.addf %248, %316 : vector<2x8x32xf32>
    %318 = math.tanh %317 : vector<2x8x32xf32>
    %319 = vector.broadcast %13 : vector<1x1x32xf32> to vector<2x8x32xf32>
    %320 = arith.mulf %318, %319 : vector<2x8x32xf32>
    %cst_89 = arith.constant dense<0.000000e+00> : vector<2x8xf32>
    %321 = vector.multi_reduction <add>, %320, %cst_89 [2] : vector<2x8x32xf32> to vector<2x8xf32>
    %322 = vector.broadcast %14 : vector<1x1xf32> to vector<2x8xf32>
    %323 = arith.addf %321, %322 : vector<2x8xf32>
    %cst_90 = arith.constant 5.000000e-01 : f32
    %324 = vector.broadcast %cst_90 : f32 to vector<2x8xf32>
    %325 = arith.cmpf ogt, %254, %324 : vector<2x8xf32>
    %cst_91 = arith.constant -1.000000e+05 : f32
    %326 = vector.broadcast %cst_91 : f32 to vector<2x8xf32>
    %327 = arith.select %325, %326, %323 : vector<2x8xi1>, vector<2x8xf32>
    %328 = math.tanh %327 : vector<2x8xf32>
    %cst_92 = arith.constant 1.000000e+01 : f32
    %329 = vector.broadcast %cst_92 : f32 to vector<2x8xf32>
    %330 = arith.mulf %329, %328 : vector<2x8xf32>
    %cst_93 = arith.constant 5.000000e-01 : f32
    %331 = vector.broadcast %cst_93 : f32 to vector<2x8xf32>
    %332 = arith.cmpf ogt, %254, %331 : vector<2x8xf32>
    %cst_94 = arith.constant -1.000000e+05 : f32
    %333 = vector.broadcast %cst_94 : f32 to vector<2x8xf32>
    %334 = arith.select %332, %333, %330 : vector<2x8xi1>, vector<2x8xf32>
    %cst_95 = arith.constant dense<0xFF800000> : vector<2xf32>
    %335 = vector.multi_reduction <maximumf>, %334, %cst_95 [1] : vector<2x8xf32> to vector<2xf32>
    %336 = vector.shape_cast %335 : vector<2xf32> to vector<2x1xf32>
    %337 = vector.broadcast %336 : vector<2x1xf32> to vector<2x8xf32>
    %338 = arith.subf %334, %337 : vector<2x8xf32>
    %339 = math.exp %338 : vector<2x8xf32>
    %cst_96 = arith.constant dense<0.000000e+00> : vector<2xf32>
    %340 = vector.multi_reduction <add>, %339, %cst_96 [1] : vector<2x8xf32> to vector<2xf32>
    %341 = vector.shape_cast %340 : vector<2xf32> to vector<2x1xf32>
    %342 = math.log %341 : vector<2x1xf32>
    %343 = vector.broadcast %342 : vector<2x1xf32> to vector<2x8xf32>
    %344 = arith.subf %338, %343 : vector<2x8xf32>
    %345 = arith.index_cast %c0_i32_76 : i32 to index
    %c0_97 = arith.constant 0 : index
    %c0_98 = arith.constant 0 : index
    %346 = vector.load %arg20[%345, %c0_97, %c0_98] : memref<8x2x8xf32, #tpu.memory_space<vmem>>, vector<1x2x8xf32>
    %347 = vector.shape_cast %346 : vector<1x2x8xf32> to vector<2x8xf32>
    %348 = arith.addf %334, %347 : vector<2x8xf32>
    %cst_99 = arith.constant dense<0xFF800000> : vector<2xf32>
    %349 = vector.multi_reduction <maximumf>, %348, %cst_99 [1] : vector<2x8xf32> to vector<2xf32>
    %350 = vector.shape_cast %349 : vector<2xf32> to vector<2x1xf32>
    %351 = vector.broadcast %350 : vector<2x1xf32> to vector<2x8xf32>
    %352 = arith.cmpf oge, %348, %351 : vector<2x8xf32>
    %cst_100 = arith.constant 8.000000e+00 : f32
    %353 = vector.broadcast %cst_100 : f32 to vector<2x8xf32>
    %354 = arith.select %352, %250, %353 : vector<2x8xi1>, vector<2x8xf32>
    %cst_101 = arith.constant dense<0x7F800000> : vector<2xf32>
    %355 = vector.multi_reduction <minimumf>, %354, %cst_101 [1] : vector<2x8xf32> to vector<2xf32>
    %356 = vector.shape_cast %355 : vector<2xf32> to vector<2x1xf32>
    %357 = vector.broadcast %356 : vector<2x1xf32> to vector<2x8xf32>
    %358 = arith.cmpf oeq, %250, %357 : vector<2x8xf32>
    %359 = arith.fptosi %356 : vector<2x1xf32> to vector<2x1xi32>
    %cst_102 = arith.constant 0.000000e+00 : f32
    %360 = vector.broadcast %cst_102 : f32 to vector<2x8xf32>
    %361 = arith.select %358, %344, %360 : vector<2x8xi1>, vector<2x8xf32>
    %cst_103 = arith.constant dense<0.000000e+00> : vector<2xf32>
    %362 = vector.multi_reduction <add>, %361, %cst_103 [1] : vector<2x8xf32> to vector<2xf32>
    %363 = vector.shape_cast %362 : vector<2xf32> to vector<2x1xf32>
    %364 = vector.broadcast %c0_i32_76 : i32 to vector<2x8xi32>
    %365 = arith.cmpi eq, %249, %364 : vector<2x8xi32>
    %366 = vector.shape_cast %363 : vector<2x1xf32> to vector<2x1xf32>
    %367 = vector.broadcast %366 : vector<2x1xf32> to vector<2x8xf32>
    %368 = arith.select %365, %367, %255 : vector<2x8xi1>, vector<2x8xf32>
    %369 = vector.shape_cast %359 : vector<2x1xi32> to vector<2x1xi32>
    %370 = vector.broadcast %369 : vector<2x1xi32> to vector<2x8xi32>
    %371 = arith.select %365, %370, %256 : vector<2x8xi1>, vector<2x8xi32>
    %cst_104 = arith.constant 1.000000e+00 : f32
    %372 = vector.broadcast %cst_104 : f32 to vector<2x8xf32>
    %373 = arith.select %358, %372, %254 : vector<2x8xi1>, vector<2x8xf32>
    %374 = arith.extui %358 : vector<2x8xi1> to vector<2x8xi32>
    %375 = arith.sitofp %374 : vector<2x8xi32> to vector<2x8xf32>
    %376 = vector.shape_cast %375 : vector<2x8xf32> to vector<2x1x8xf32>
    "tpu.trace_start"() <{level = 10 : i32, message = "bqs,bse->bqe"}> : () -> ()
    %cst_105 = arith.constant dense<0.000000e+00> : vector<2x1x32xf32>
    %377 = tpu.matmul %376, %55, %cst_105 {dimension_numbers = #tpu.dot_dimension_numbers<[2], [1], [1], [2], [0, 0, 0, 1, 1, 2], [0], [0]>} : vector<2x1x8xf32>, vector<2x8x32xf32>, vector<2x1x32xf32> -> vector<2x1x32xf32>
    "tpu.trace_stop"() : () -> ()
    %378 = vector.shape_cast %377 : vector<2x1x32xf32> to vector<2x32xf32>
    %c1_i32 = arith.constant 1 : i32
    %379 = tpu.concatenate %378, %276 in 1 : vector<2x32xf32>, vector<2x32xf32> -> vector<2x64xf32>
    %cst_106 = arith.constant dense<0.000000e+00> : vector<2x128xf32>
    %380 = tpu.matmul %379, %3, %cst_106 {dimension_numbers = #tpu.dot_dimension_numbers<[1], [0], [0], [1], [0, 0, 1, 1], [], []>} : vector<2x64xf32>, vector<64x128xf32>, vector<2x128xf32> -> vector<2x128xf32>
    %381 = vector.broadcast %4 : vector<1x128xf32> to vector<2x128xf32>
    %382 = arith.addf %380, %381 : vector<2x128xf32>
    %383 = vector.broadcast %23 : vector<1x128xf32> to vector<2x128xf32>
    %384 = arith.mulf %382, %383 : vector<2x128xf32>
    %385 = math.tanh %384 : vector<2x128xf32>
    %386 = vector.broadcast %23 : vector<1x128xf32> to vector<2x128xf32>
    %387 = arith.mulf %385, %386 : vector<2x128xf32>
    %388 = vector.broadcast %26 : vector<1x128xf32> to vector<2x128xf32>
    %389 = arith.addf %387, %388 : vector<2x128xf32>
    %390 = vector.extract_strided_slice %389 {offsets = [0, 0], sizes = [2, 32], strides = [1, 1]} : vector<2x128xf32> to vector<2x32xf32>
    %391 = vector.extract_strided_slice %389 {offsets = [0, 32], sizes = [2, 32], strides = [1, 1]} : vector<2x128xf32> to vector<2x32xf32>
    %392 = vector.extract_strided_slice %389 {offsets = [0, 64], sizes = [2, 32], strides = [1, 1]} : vector<2x128xf32> to vector<2x32xf32>
    %393 = vector.extract_strided_slice %389 {offsets = [0, 96], sizes = [2, 32], strides = [1, 1]} : vector<2x128xf32> to vector<2x32xf32>
    %394 = arith.mulf %391, %274 : vector<2x32xf32>
    %395 = arith.mulf %390, %392 : vector<2x32xf32>
    %396 = arith.addf %394, %395 : vector<2x32xf32>
    %397 = math.tanh %396 : vector<2x32xf32>
    %398 = arith.mulf %393, %397 : vector<2x32xf32>
    %cst_107 = arith.constant dense<0.000000e+00> : vector<2x32xf32>
    %399 = tpu.matmul %398, %5, %cst_107 {dimension_numbers = #tpu.dot_dimension_numbers<[1], [0], [0], [1], [0, 0, 1, 1], [], []>} : vector<2x32xf32>, vector<32x32xf32>, vector<2x32xf32> -> vector<2x32xf32>
    %400 = vector.broadcast %6 : vector<1x32xf32> to vector<2x32xf32>
    %401 = arith.addf %399, %400 : vector<2x32xf32>
    %402 = vector.shape_cast %401 : vector<2x32xf32> to vector<2x1x32xf32>
    %403 = vector.broadcast %402 : vector<2x1x32xf32> to vector<2x8x32xf32>
    %404 = arith.addf %247, %403 : vector<2x8x32xf32>
    %405 = math.tanh %404 : vector<2x8x32xf32>
    %406 = vector.broadcast %8 : vector<1x1x32xf32> to vector<2x8x32xf32>
    %407 = arith.mulf %405, %406 : vector<2x8x32xf32>
    %cst_108 = arith.constant dense<0.000000e+00> : vector<2x8xf32>
    %408 = vector.multi_reduction <add>, %407, %cst_108 [2] : vector<2x8x32xf32> to vector<2x8xf32>
    %409 = vector.broadcast %9 : vector<1x1xf32> to vector<2x8xf32>
    %410 = arith.addf %408, %409 : vector<2x8xf32>
    %cst_109 = arith.constant 5.000000e-01 : f32
    %411 = vector.broadcast %cst_109 : f32 to vector<2x8xf32>
    %412 = arith.cmpf ogt, %373, %411 : vector<2x8xf32>
    %cst_110 = arith.constant -1.000000e+05 : f32
    %413 = vector.broadcast %cst_110 : f32 to vector<2x8xf32>
    %414 = arith.select %412, %413, %410 : vector<2x8xi1>, vector<2x8xf32>
    %415 = math.tanh %414 : vector<2x8xf32>
    %cst_111 = arith.constant 1.000000e+01 : f32
    %416 = vector.broadcast %cst_111 : f32 to vector<2x8xf32>
    %417 = arith.mulf %416, %415 : vector<2x8xf32>
    %cst_112 = arith.constant 5.000000e-01 : f32
    %418 = vector.broadcast %cst_112 : f32 to vector<2x8xf32>
    %419 = arith.cmpf ogt, %373, %418 : vector<2x8xf32>
    %cst_113 = arith.constant -1.000000e+05 : f32
    %420 = vector.broadcast %cst_113 : f32 to vector<2x8xf32>
    %421 = arith.select %419, %420, %417 : vector<2x8xi1>, vector<2x8xf32>
    %cst_114 = arith.constant dense<0xFF800000> : vector<2xf32>
    %422 = vector.multi_reduction <maximumf>, %421, %cst_114 [1] : vector<2x8xf32> to vector<2xf32>
    %423 = vector.shape_cast %422 : vector<2xf32> to vector<2x1xf32>
    %424 = vector.broadcast %423 : vector<2x1xf32> to vector<2x8xf32>
    %425 = arith.subf %421, %424 : vector<2x8xf32>
    %426 = math.exp %425 : vector<2x8xf32>
    %cst_115 = arith.constant dense<0.000000e+00> : vector<2xf32>
    %427 = vector.multi_reduction <add>, %426, %cst_115 [1] : vector<2x8xf32> to vector<2xf32>
    %428 = vector.shape_cast %427 : vector<2xf32> to vector<2x1xf32>
    %429 = vector.broadcast %428 : vector<2x1xf32> to vector<2x8xf32>
    %430 = arith.divf %426, %429 : vector<2x8xf32>
    %431 = vector.shape_cast %430 : vector<2x8xf32> to vector<2x1x8xf32>
    "tpu.trace_start"() <{level = 10 : i32, message = "bqs,bsh->bqh"}> : () -> ()
    %cst_116 = arith.constant dense<0.000000e+00> : vector<2x1x32xf32>
    %432 = tpu.matmul %431, %239, %cst_116 {dimension_numbers = #tpu.dot_dimension_numbers<[2], [1], [1], [2], [0, 0, 0, 1, 1, 2], [0], [0]>} : vector<2x1x8xf32>, vector<2x8x32xf32>, vector<2x1x32xf32> -> vector<2x1x32xf32>
    "tpu.trace_stop"() : () -> ()
    %433 = vector.shape_cast %432 : vector<2x1x32xf32> to vector<2x32xf32>
    %cst_117 = arith.constant dense<0.000000e+00> : vector<2x32xf32>
    %434 = tpu.matmul %433, %10, %cst_117 {dimension_numbers = #tpu.dot_dimension_numbers<[1], [0], [0], [1], [0, 0, 1, 1], [], []>} : vector<2x32xf32>, vector<32x32xf32>, vector<2x32xf32> -> vector<2x32xf32>
    %435 = vector.broadcast %11 : vector<1x32xf32> to vector<2x32xf32>
    %436 = arith.addf %434, %435 : vector<2x32xf32>
    %437 = vector.shape_cast %436 : vector<2x32xf32> to vector<2x1x32xf32>
    %438 = vector.broadcast %437 : vector<2x1x32xf32> to vector<2x8x32xf32>
    %439 = arith.addf %248, %438 : vector<2x8x32xf32>
    %440 = math.tanh %439 : vector<2x8x32xf32>
    %441 = vector.broadcast %13 : vector<1x1x32xf32> to vector<2x8x32xf32>
    %442 = arith.mulf %440, %441 : vector<2x8x32xf32>
    %cst_118 = arith.constant dense<0.000000e+00> : vector<2x8xf32>
    %443 = vector.multi_reduction <add>, %442, %cst_118 [2] : vector<2x8x32xf32> to vector<2x8xf32>
    %444 = vector.broadcast %14 : vector<1x1xf32> to vector<2x8xf32>
    %445 = arith.addf %443, %444 : vector<2x8xf32>
    %cst_119 = arith.constant 5.000000e-01 : f32
    %446 = vector.broadcast %cst_119 : f32 to vector<2x8xf32>
    %447 = arith.cmpf ogt, %373, %446 : vector<2x8xf32>
    %cst_120 = arith.constant -1.000000e+05 : f32
    %448 = vector.broadcast %cst_120 : f32 to vector<2x8xf32>
    %449 = arith.select %447, %448, %445 : vector<2x8xi1>, vector<2x8xf32>
    %450 = math.tanh %449 : vector<2x8xf32>
    %cst_121 = arith.constant 1.000000e+01 : f32
    %451 = vector.broadcast %cst_121 : f32 to vector<2x8xf32>
    %452 = arith.mulf %451, %450 : vector<2x8xf32>
    %cst_122 = arith.constant 5.000000e-01 : f32
    %453 = vector.broadcast %cst_122 : f32 to vector<2x8xf32>
    %454 = arith.cmpf ogt, %373, %453 : vector<2x8xf32>
    %cst_123 = arith.constant -1.000000e+05 : f32
    %455 = vector.broadcast %cst_123 : f32 to vector<2x8xf32>
    %456 = arith.select %454, %455, %452 : vector<2x8xi1>, vector<2x8xf32>
    %cst_124 = arith.constant dense<0xFF800000> : vector<2xf32>
    %457 = vector.multi_reduction <maximumf>, %456, %cst_124 [1] : vector<2x8xf32> to vector<2xf32>
    %458 = vector.shape_cast %457 : vector<2xf32> to vector<2x1xf32>
    %459 = vector.broadcast %458 : vector<2x1xf32> to vector<2x8xf32>
    %460 = arith.subf %456, %459 : vector<2x8xf32>
    %461 = math.exp %460 : vector<2x8xf32>
    %cst_125 = arith.constant dense<0.000000e+00> : vector<2xf32>
    %462 = vector.multi_reduction <add>, %461, %cst_125 [1] : vector<2x8xf32> to vector<2xf32>
    %463 = vector.shape_cast %462 : vector<2xf32> to vector<2x1xf32>
    %464 = math.log %463 : vector<2x1xf32>
    %465 = vector.broadcast %464 : vector<2x1xf32> to vector<2x8xf32>
    %466 = arith.subf %460, %465 : vector<2x8xf32>
    %467 = arith.index_cast %c1_i32 : i32 to index
    %c0_126 = arith.constant 0 : index
    %c0_127 = arith.constant 0 : index
    %468 = vector.load %arg20[%467, %c0_126, %c0_127] : memref<8x2x8xf32, #tpu.memory_space<vmem>>, vector<1x2x8xf32>
    %469 = vector.shape_cast %468 : vector<1x2x8xf32> to vector<2x8xf32>
    %470 = arith.addf %456, %469 : vector<2x8xf32>
    %cst_128 = arith.constant dense<0xFF800000> : vector<2xf32>
    %471 = vector.multi_reduction <maximumf>, %470, %cst_128 [1] : vector<2x8xf32> to vector<2xf32>
    %472 = vector.shape_cast %471 : vector<2xf32> to vector<2x1xf32>
    %473 = vector.broadcast %472 : vector<2x1xf32> to vector<2x8xf32>
    %474 = arith.cmpf oge, %470, %473 : vector<2x8xf32>
    %cst_129 = arith.constant 8.000000e+00 : f32
    %475 = vector.broadcast %cst_129 : f32 to vector<2x8xf32>
    %476 = arith.select %474, %250, %475 : vector<2x8xi1>, vector<2x8xf32>
    %cst_130 = arith.constant dense<0x7F800000> : vector<2xf32>
    %477 = vector.multi_reduction <minimumf>, %476, %cst_130 [1] : vector<2x8xf32> to vector<2xf32>
    %478 = vector.shape_cast %477 : vector<2xf32> to vector<2x1xf32>
    %479 = vector.broadcast %478 : vector<2x1xf32> to vector<2x8xf32>
    %480 = arith.cmpf oeq, %250, %479 : vector<2x8xf32>
    %481 = arith.fptosi %478 : vector<2x1xf32> to vector<2x1xi32>
    %cst_131 = arith.constant 0.000000e+00 : f32
    %482 = vector.broadcast %cst_131 : f32 to vector<2x8xf32>
    %483 = arith.select %480, %466, %482 : vector<2x8xi1>, vector<2x8xf32>
    %cst_132 = arith.constant dense<0.000000e+00> : vector<2xf32>
    %484 = vector.multi_reduction <add>, %483, %cst_132 [1] : vector<2x8xf32> to vector<2xf32>
    %485 = vector.shape_cast %484 : vector<2xf32> to vector<2x1xf32>
    %486 = vector.broadcast %c1_i32 : i32 to vector<2x8xi32>
    %487 = arith.cmpi eq, %249, %486 : vector<2x8xi32>
    %488 = vector.shape_cast %485 : vector<2x1xf32> to vector<2x1xf32>
    %489 = vector.broadcast %488 : vector<2x1xf32> to vector<2x8xf32>
    %490 = arith.select %487, %489, %368 : vector<2x8xi1>, vector<2x8xf32>
    %491 = vector.shape_cast %481 : vector<2x1xi32> to vector<2x1xi32>
    %492 = vector.broadcast %491 : vector<2x1xi32> to vector<2x8xi32>
    %493 = arith.select %487, %492, %371 : vector<2x8xi1>, vector<2x8xi32>
    %cst_133 = arith.constant 1.000000e+00 : f32
    %494 = vector.broadcast %cst_133 : f32 to vector<2x8xf32>
    %495 = arith.select %480, %494, %373 : vector<2x8xi1>, vector<2x8xf32>
    %496 = arith.extui %480 : vector<2x8xi1> to vector<2x8xi32>
    %497 = arith.sitofp %496 : vector<2x8xi32> to vector<2x8xf32>
    %498 = vector.shape_cast %497 : vector<2x8xf32> to vector<2x1x8xf32>
    "tpu.trace_start"() <{level = 10 : i32, message = "bqs,bse->bqe"}> : () -> ()
    %cst_134 = arith.constant dense<0.000000e+00> : vector<2x1x32xf32>
    %499 = tpu.matmul %498, %55, %cst_134 {dimension_numbers = #tpu.dot_dimension_numbers<[2], [1], [1], [2], [0, 0, 0, 1, 1, 2], [0], [0]>} : vector<2x1x8xf32>, vector<2x8x32xf32>, vector<2x1x32xf32> -> vector<2x1x32xf32>
    "tpu.trace_stop"() : () -> ()
    %500 = vector.shape_cast %499 : vector<2x1x32xf32> to vector<2x32xf32>
    %c2_i32 = arith.constant 2 : i32
    %501 = tpu.concatenate %500, %398 in 1 : vector<2x32xf32>, vector<2x32xf32> -> vector<2x64xf32>
    %cst_135 = arith.constant dense<0.000000e+00> : vector<2x128xf32>
    %502 = tpu.matmul %501, %3, %cst_135 {dimension_numbers = #tpu.dot_dimension_numbers<[1], [0], [0], [1], [0, 0, 1, 1], [], []>} : vector<2x64xf32>, vector<64x128xf32>, vector<2x128xf32> -> vector<2x128xf32>
    %503 = vector.broadcast %4 : vector<1x128xf32> to vector<2x128xf32>
    %504 = arith.addf %502, %503 : vector<2x128xf32>
    %505 = vector.broadcast %23 : vector<1x128xf32> to vector<2x128xf32>
    %506 = arith.mulf %504, %505 : vector<2x128xf32>
    %507 = math.tanh %506 : vector<2x128xf32>
    %508 = vector.broadcast %23 : vector<1x128xf32> to vector<2x128xf32>
    %509 = arith.mulf %507, %508 : vector<2x128xf32>
    %510 = vector.broadcast %26 : vector<1x128xf32> to vector<2x128xf32>
    %511 = arith.addf %509, %510 : vector<2x128xf32>
    %512 = vector.extract_strided_slice %511 {offsets = [0, 0], sizes = [2, 32], strides = [1, 1]} : vector<2x128xf32> to vector<2x32xf32>
    %513 = vector.extract_strided_slice %511 {offsets = [0, 32], sizes = [2, 32], strides = [1, 1]} : vector<2x128xf32> to vector<2x32xf32>
    %514 = vector.extract_strided_slice %511 {offsets = [0, 64], sizes = [2, 32], strides = [1, 1]} : vector<2x128xf32> to vector<2x32xf32>
    %515 = vector.extract_strided_slice %511 {offsets = [0, 96], sizes = [2, 32], strides = [1, 1]} : vector<2x128xf32> to vector<2x32xf32>
    %516 = arith.mulf %513, %396 : vector<2x32xf32>
    %517 = arith.mulf %512, %514 : vector<2x32xf32>
    %518 = arith.addf %516, %517 : vector<2x32xf32>
    %519 = math.tanh %518 : vector<2x32xf32>
    %520 = arith.mulf %515, %519 : vector<2x32xf32>
    %cst_136 = arith.constant dense<0.000000e+00> : vector<2x32xf32>
    %521 = tpu.matmul %520, %5, %cst_136 {dimension_numbers = #tpu.dot_dimension_numbers<[1], [0], [0], [1], [0, 0, 1, 1], [], []>} : vector<2x32xf32>, vector<32x32xf32>, vector<2x32xf32> -> vector<2x32xf32>
    %522 = vector.broadcast %6 : vector<1x32xf32> to vector<2x32xf32>
    %523 = arith.addf %521, %522 : vector<2x32xf32>
    %524 = vector.shape_cast %523 : vector<2x32xf32> to vector<2x1x32xf32>
    %525 = vector.broadcast %524 : vector<2x1x32xf32> to vector<2x8x32xf32>
    %526 = arith.addf %247, %525 : vector<2x8x32xf32>
    %527 = math.tanh %526 : vector<2x8x32xf32>
    %528 = vector.broadcast %8 : vector<1x1x32xf32> to vector<2x8x32xf32>
    %529 = arith.mulf %527, %528 : vector<2x8x32xf32>
    %cst_137 = arith.constant dense<0.000000e+00> : vector<2x8xf32>
    %530 = vector.multi_reduction <add>, %529, %cst_137 [2] : vector<2x8x32xf32> to vector<2x8xf32>
    %531 = vector.broadcast %9 : vector<1x1xf32> to vector<2x8xf32>
    %532 = arith.addf %530, %531 : vector<2x8xf32>
    %cst_138 = arith.constant 5.000000e-01 : f32
    %533 = vector.broadcast %cst_138 : f32 to vector<2x8xf32>
    %534 = arith.cmpf ogt, %495, %533 : vector<2x8xf32>
    %cst_139 = arith.constant -1.000000e+05 : f32
    %535 = vector.broadcast %cst_139 : f32 to vector<2x8xf32>
    %536 = arith.select %534, %535, %532 : vector<2x8xi1>, vector<2x8xf32>
    %537 = math.tanh %536 : vector<2x8xf32>
    %cst_140 = arith.constant 1.000000e+01 : f32
    %538 = vector.broadcast %cst_140 : f32 to vector<2x8xf32>
    %539 = arith.mulf %538, %537 : vector<2x8xf32>
    %cst_141 = arith.constant 5.000000e-01 : f32
    %540 = vector.broadcast %cst_141 : f32 to vector<2x8xf32>
    %541 = arith.cmpf ogt, %495, %540 : vector<2x8xf32>
    %cst_142 = arith.constant -1.000000e+05 : f32
    %542 = vector.broadcast %cst_142 : f32 to vector<2x8xf32>
    %543 = arith.select %541, %542, %539 : vector<2x8xi1>, vector<2x8xf32>
    %cst_143 = arith.constant dense<0xFF800000> : vector<2xf32>
    %544 = vector.multi_reduction <maximumf>, %543, %cst_143 [1] : vector<2x8xf32> to vector<2xf32>
    %545 = vector.shape_cast %544 : vector<2xf32> to vector<2x1xf32>
    %546 = vector.broadcast %545 : vector<2x1xf32> to vector<2x8xf32>
    %547 = arith.subf %543, %546 : vector<2x8xf32>
    %548 = math.exp %547 : vector<2x8xf32>
    %cst_144 = arith.constant dense<0.000000e+00> : vector<2xf32>
    %549 = vector.multi_reduction <add>, %548, %cst_144 [1] : vector<2x8xf32> to vector<2xf32>
    %550 = vector.shape_cast %549 : vector<2xf32> to vector<2x1xf32>
    %551 = vector.broadcast %550 : vector<2x1xf32> to vector<2x8xf32>
    %552 = arith.divf %548, %551 : vector<2x8xf32>
    %553 = vector.shape_cast %552 : vector<2x8xf32> to vector<2x1x8xf32>
    "tpu.trace_start"() <{level = 10 : i32, message = "bqs,bsh->bqh"}> : () -> ()
    %cst_145 = arith.constant dense<0.000000e+00> : vector<2x1x32xf32>
    %554 = tpu.matmul %553, %239, %cst_145 {dimension_numbers = #tpu.dot_dimension_numbers<[2], [1], [1], [2], [0, 0, 0, 1, 1, 2], [0], [0]>} : vector<2x1x8xf32>, vector<2x8x32xf32>, vector<2x1x32xf32> -> vector<2x1x32xf32>
    "tpu.trace_stop"() : () -> ()
    %555 = vector.shape_cast %554 : vector<2x1x32xf32> to vector<2x32xf32>
    %cst_146 = arith.constant dense<0.000000e+00> : vector<2x32xf32>
    %556 = tpu.matmul %555, %10, %cst_146 {dimension_numbers = #tpu.dot_dimension_numbers<[1], [0], [0], [1], [0, 0, 1, 1], [], []>} : vector<2x32xf32>, vector<32x32xf32>, vector<2x32xf32> -> vector<2x32xf32>
    %557 = vector.broadcast %11 : vector<1x32xf32> to vector<2x32xf32>
    %558 = arith.addf %556, %557 : vector<2x32xf32>
    %559 = vector.shape_cast %558 : vector<2x32xf32> to vector<2x1x32xf32>
    %560 = vector.broadcast %559 : vector<2x1x32xf32> to vector<2x8x32xf32>
    %561 = arith.addf %248, %560 : vector<2x8x32xf32>
    %562 = math.tanh %561 : vector<2x8x32xf32>
    %563 = vector.broadcast %13 : vector<1x1x32xf32> to vector<2x8x32xf32>
    %564 = arith.mulf %562, %563 : vector<2x8x32xf32>
    %cst_147 = arith.constant dense<0.000000e+00> : vector<2x8xf32>
    %565 = vector.multi_reduction <add>, %564, %cst_147 [2] : vector<2x8x32xf32> to vector<2x8xf32>
    %566 = vector.broadcast %14 : vector<1x1xf32> to vector<2x8xf32>
    %567 = arith.addf %565, %566 : vector<2x8xf32>
    %cst_148 = arith.constant 5.000000e-01 : f32
    %568 = vector.broadcast %cst_148 : f32 to vector<2x8xf32>
    %569 = arith.cmpf ogt, %495, %568 : vector<2x8xf32>
    %cst_149 = arith.constant -1.000000e+05 : f32
    %570 = vector.broadcast %cst_149 : f32 to vector<2x8xf32>
    %571 = arith.select %569, %570, %567 : vector<2x8xi1>, vector<2x8xf32>
    %572 = math.tanh %571 : vector<2x8xf32>
    %cst_150 = arith.constant 1.000000e+01 : f32
    %573 = vector.broadcast %cst_150 : f32 to vector<2x8xf32>
    %574 = arith.mulf %573, %572 : vector<2x8xf32>
    %cst_151 = arith.constant 5.000000e-01 : f32
    %575 = vector.broadcast %cst_151 : f32 to vector<2x8xf32>
    %576 = arith.cmpf ogt, %495, %575 : vector<2x8xf32>
    %cst_152 = arith.constant -1.000000e+05 : f32
    %577 = vector.broadcast %cst_152 : f32 to vector<2x8xf32>
    %578 = arith.select %576, %577, %574 : vector<2x8xi1>, vector<2x8xf32>
    %cst_153 = arith.constant dense<0xFF800000> : vector<2xf32>
    %579 = vector.multi_reduction <maximumf>, %578, %cst_153 [1] : vector<2x8xf32> to vector<2xf32>
    %580 = vector.shape_cast %579 : vector<2xf32> to vector<2x1xf32>
    %581 = vector.broadcast %580 : vector<2x1xf32> to vector<2x8xf32>
    %582 = arith.subf %578, %581 : vector<2x8xf32>
    %583 = math.exp %582 : vector<2x8xf32>
    %cst_154 = arith.constant dense<0.000000e+00> : vector<2xf32>
    %584 = vector.multi_reduction <add>, %583, %cst_154 [1] : vector<2x8xf32> to vector<2xf32>
    %585 = vector.shape_cast %584 : vector<2xf32> to vector<2x1xf32>
    %586 = math.log %585 : vector<2x1xf32>
    %587 = vector.broadcast %586 : vector<2x1xf32> to vector<2x8xf32>
    %588 = arith.subf %582, %587 : vector<2x8xf32>
    %589 = arith.index_cast %c2_i32 : i32 to index
    %c0_155 = arith.constant 0 : index
    %c0_156 = arith.constant 0 : index
    %590 = vector.load %arg20[%589, %c0_155, %c0_156] : memref<8x2x8xf32, #tpu.memory_space<vmem>>, vector<1x2x8xf32>
    %591 = vector.shape_cast %590 : vector<1x2x8xf32> to vector<2x8xf32>
    %592 = arith.addf %578, %591 : vector<2x8xf32>
    %cst_157 = arith.constant dense<0xFF800000> : vector<2xf32>
    %593 = vector.multi_reduction <maximumf>, %592, %cst_157 [1] : vector<2x8xf32> to vector<2xf32>
    %594 = vector.shape_cast %593 : vector<2xf32> to vector<2x1xf32>
    %595 = vector.broadcast %594 : vector<2x1xf32> to vector<2x8xf32>
    %596 = arith.cmpf oge, %592, %595 : vector<2x8xf32>
    %cst_158 = arith.constant 8.000000e+00 : f32
    %597 = vector.broadcast %cst_158 : f32 to vector<2x8xf32>
    %598 = arith.select %596, %250, %597 : vector<2x8xi1>, vector<2x8xf32>
    %cst_159 = arith.constant dense<0x7F800000> : vector<2xf32>
    %599 = vector.multi_reduction <minimumf>, %598, %cst_159 [1] : vector<2x8xf32> to vector<2xf32>
    %600 = vector.shape_cast %599 : vector<2xf32> to vector<2x1xf32>
    %601 = vector.broadcast %600 : vector<2x1xf32> to vector<2x8xf32>
    %602 = arith.cmpf oeq, %250, %601 : vector<2x8xf32>
    %603 = arith.fptosi %600 : vector<2x1xf32> to vector<2x1xi32>
    %cst_160 = arith.constant 0.000000e+00 : f32
    %604 = vector.broadcast %cst_160 : f32 to vector<2x8xf32>
    %605 = arith.select %602, %588, %604 : vector<2x8xi1>, vector<2x8xf32>
    %cst_161 = arith.constant dense<0.000000e+00> : vector<2xf32>
    %606 = vector.multi_reduction <add>, %605, %cst_161 [1] : vector<2x8xf32> to vector<2xf32>
    %607 = vector.shape_cast %606 : vector<2xf32> to vector<2x1xf32>
    %608 = vector.broadcast %c2_i32 : i32 to vector<2x8xi32>
    %609 = arith.cmpi eq, %249, %608 : vector<2x8xi32>
    %610 = vector.shape_cast %607 : vector<2x1xf32> to vector<2x1xf32>
    %611 = vector.broadcast %610 : vector<2x1xf32> to vector<2x8xf32>
    %612 = arith.select %609, %611, %490 : vector<2x8xi1>, vector<2x8xf32>
    %613 = vector.shape_cast %603 : vector<2x1xi32> to vector<2x1xi32>
    %614 = vector.broadcast %613 : vector<2x1xi32> to vector<2x8xi32>
    %615 = arith.select %609, %614, %493 : vector<2x8xi1>, vector<2x8xi32>
    %cst_162 = arith.constant 1.000000e+00 : f32
    %616 = vector.broadcast %cst_162 : f32 to vector<2x8xf32>
    %617 = arith.select %602, %616, %495 : vector<2x8xi1>, vector<2x8xf32>
    %618 = arith.extui %602 : vector<2x8xi1> to vector<2x8xi32>
    %619 = arith.sitofp %618 : vector<2x8xi32> to vector<2x8xf32>
    %620 = vector.shape_cast %619 : vector<2x8xf32> to vector<2x1x8xf32>
    "tpu.trace_start"() <{level = 10 : i32, message = "bqs,bse->bqe"}> : () -> ()
    %cst_163 = arith.constant dense<0.000000e+00> : vector<2x1x32xf32>
    %621 = tpu.matmul %620, %55, %cst_163 {dimension_numbers = #tpu.dot_dimension_numbers<[2], [1], [1], [2], [0, 0, 0, 1, 1, 2], [0], [0]>} : vector<2x1x8xf32>, vector<2x8x32xf32>, vector<2x1x32xf32> -> vector<2x1x32xf32>
    "tpu.trace_stop"() : () -> ()
    %622 = vector.shape_cast %621 : vector<2x1x32xf32> to vector<2x32xf32>
    %c3_i32 = arith.constant 3 : i32
    %623 = tpu.concatenate %622, %520 in 1 : vector<2x32xf32>, vector<2x32xf32> -> vector<2x64xf32>
    %cst_164 = arith.constant dense<0.000000e+00> : vector<2x128xf32>
    %624 = tpu.matmul %623, %3, %cst_164 {dimension_numbers = #tpu.dot_dimension_numbers<[1], [0], [0], [1], [0, 0, 1, 1], [], []>} : vector<2x64xf32>, vector<64x128xf32>, vector<2x128xf32> -> vector<2x128xf32>
    %625 = vector.broadcast %4 : vector<1x128xf32> to vector<2x128xf32>
    %626 = arith.addf %624, %625 : vector<2x128xf32>
    %627 = vector.broadcast %23 : vector<1x128xf32> to vector<2x128xf32>
    %628 = arith.mulf %626, %627 : vector<2x128xf32>
    %629 = math.tanh %628 : vector<2x128xf32>
    %630 = vector.broadcast %23 : vector<1x128xf32> to vector<2x128xf32>
    %631 = arith.mulf %629, %630 : vector<2x128xf32>
    %632 = vector.broadcast %26 : vector<1x128xf32> to vector<2x128xf32>
    %633 = arith.addf %631, %632 : vector<2x128xf32>
    %634 = vector.extract_strided_slice %633 {offsets = [0, 0], sizes = [2, 32], strides = [1, 1]} : vector<2x128xf32> to vector<2x32xf32>
    %635 = vector.extract_strided_slice %633 {offsets = [0, 32], sizes = [2, 32], strides = [1, 1]} : vector<2x128xf32> to vector<2x32xf32>
    %636 = vector.extract_strided_slice %633 {offsets = [0, 64], sizes = [2, 32], strides = [1, 1]} : vector<2x128xf32> to vector<2x32xf32>
    %637 = vector.extract_strided_slice %633 {offsets = [0, 96], sizes = [2, 32], strides = [1, 1]} : vector<2x128xf32> to vector<2x32xf32>
    %638 = arith.mulf %635, %518 : vector<2x32xf32>
    %639 = arith.mulf %634, %636 : vector<2x32xf32>
    %640 = arith.addf %638, %639 : vector<2x32xf32>
    %641 = math.tanh %640 : vector<2x32xf32>
    %642 = arith.mulf %637, %641 : vector<2x32xf32>
    %cst_165 = arith.constant dense<0.000000e+00> : vector<2x32xf32>
    %643 = tpu.matmul %642, %5, %cst_165 {dimension_numbers = #tpu.dot_dimension_numbers<[1], [0], [0], [1], [0, 0, 1, 1], [], []>} : vector<2x32xf32>, vector<32x32xf32>, vector<2x32xf32> -> vector<2x32xf32>
    %644 = vector.broadcast %6 : vector<1x32xf32> to vector<2x32xf32>
    %645 = arith.addf %643, %644 : vector<2x32xf32>
    %646 = vector.shape_cast %645 : vector<2x32xf32> to vector<2x1x32xf32>
    %647 = vector.broadcast %646 : vector<2x1x32xf32> to vector<2x8x32xf32>
    %648 = arith.addf %247, %647 : vector<2x8x32xf32>
    %649 = math.tanh %648 : vector<2x8x32xf32>
    %650 = vector.broadcast %8 : vector<1x1x32xf32> to vector<2x8x32xf32>
    %651 = arith.mulf %649, %650 : vector<2x8x32xf32>
    %cst_166 = arith.constant dense<0.000000e+00> : vector<2x8xf32>
    %652 = vector.multi_reduction <add>, %651, %cst_166 [2] : vector<2x8x32xf32> to vector<2x8xf32>
    %653 = vector.broadcast %9 : vector<1x1xf32> to vector<2x8xf32>
    %654 = arith.addf %652, %653 : vector<2x8xf32>
    %cst_167 = arith.constant 5.000000e-01 : f32
    %655 = vector.broadcast %cst_167 : f32 to vector<2x8xf32>
    %656 = arith.cmpf ogt, %617, %655 : vector<2x8xf32>
    %cst_168 = arith.constant -1.000000e+05 : f32
    %657 = vector.broadcast %cst_168 : f32 to vector<2x8xf32>
    %658 = arith.select %656, %657, %654 : vector<2x8xi1>, vector<2x8xf32>
    %659 = math.tanh %658 : vector<2x8xf32>
    %cst_169 = arith.constant 1.000000e+01 : f32
    %660 = vector.broadcast %cst_169 : f32 to vector<2x8xf32>
    %661 = arith.mulf %660, %659 : vector<2x8xf32>
    %cst_170 = arith.constant 5.000000e-01 : f32
    %662 = vector.broadcast %cst_170 : f32 to vector<2x8xf32>
    %663 = arith.cmpf ogt, %617, %662 : vector<2x8xf32>
    %cst_171 = arith.constant -1.000000e+05 : f32
    %664 = vector.broadcast %cst_171 : f32 to vector<2x8xf32>
    %665 = arith.select %663, %664, %661 : vector<2x8xi1>, vector<2x8xf32>
    %cst_172 = arith.constant dense<0xFF800000> : vector<2xf32>
    %666 = vector.multi_reduction <maximumf>, %665, %cst_172 [1] : vector<2x8xf32> to vector<2xf32>
    %667 = vector.shape_cast %666 : vector<2xf32> to vector<2x1xf32>
    %668 = vector.broadcast %667 : vector<2x1xf32> to vector<2x8xf32>
    %669 = arith.subf %665, %668 : vector<2x8xf32>
    %670 = math.exp %669 : vector<2x8xf32>
    %cst_173 = arith.constant dense<0.000000e+00> : vector<2xf32>
    %671 = vector.multi_reduction <add>, %670, %cst_173 [1] : vector<2x8xf32> to vector<2xf32>
    %672 = vector.shape_cast %671 : vector<2xf32> to vector<2x1xf32>
    %673 = vector.broadcast %672 : vector<2x1xf32> to vector<2x8xf32>
    %674 = arith.divf %670, %673 : vector<2x8xf32>
    %675 = vector.shape_cast %674 : vector<2x8xf32> to vector<2x1x8xf32>
    "tpu.trace_start"() <{level = 10 : i32, message = "bqs,bsh->bqh"}> : () -> ()
    %cst_174 = arith.constant dense<0.000000e+00> : vector<2x1x32xf32>
    %676 = tpu.matmul %675, %239, %cst_174 {dimension_numbers = #tpu.dot_dimension_numbers<[2], [1], [1], [2], [0, 0, 0, 1, 1, 2], [0], [0]>} : vector<2x1x8xf32>, vector<2x8x32xf32>, vector<2x1x32xf32> -> vector<2x1x32xf32>
    "tpu.trace_stop"() : () -> ()
    %677 = vector.shape_cast %676 : vector<2x1x32xf32> to vector<2x32xf32>
    %cst_175 = arith.constant dense<0.000000e+00> : vector<2x32xf32>
    %678 = tpu.matmul %677, %10, %cst_175 {dimension_numbers = #tpu.dot_dimension_numbers<[1], [0], [0], [1], [0, 0, 1, 1], [], []>} : vector<2x32xf32>, vector<32x32xf32>, vector<2x32xf32> -> vector<2x32xf32>
    %679 = vector.broadcast %11 : vector<1x32xf32> to vector<2x32xf32>
    %680 = arith.addf %678, %679 : vector<2x32xf32>
    %681 = vector.shape_cast %680 : vector<2x32xf32> to vector<2x1x32xf32>
    %682 = vector.broadcast %681 : vector<2x1x32xf32> to vector<2x8x32xf32>
    %683 = arith.addf %248, %682 : vector<2x8x32xf32>
    %684 = math.tanh %683 : vector<2x8x32xf32>
    %685 = vector.broadcast %13 : vector<1x1x32xf32> to vector<2x8x32xf32>
    %686 = arith.mulf %684, %685 : vector<2x8x32xf32>
    %cst_176 = arith.constant dense<0.000000e+00> : vector<2x8xf32>
    %687 = vector.multi_reduction <add>, %686, %cst_176 [2] : vector<2x8x32xf32> to vector<2x8xf32>
    %688 = vector.broadcast %14 : vector<1x1xf32> to vector<2x8xf32>
    %689 = arith.addf %687, %688 : vector<2x8xf32>
    %cst_177 = arith.constant 5.000000e-01 : f32
    %690 = vector.broadcast %cst_177 : f32 to vector<2x8xf32>
    %691 = arith.cmpf ogt, %617, %690 : vector<2x8xf32>
    %cst_178 = arith.constant -1.000000e+05 : f32
    %692 = vector.broadcast %cst_178 : f32 to vector<2x8xf32>
    %693 = arith.select %691, %692, %689 : vector<2x8xi1>, vector<2x8xf32>
    %694 = math.tanh %693 : vector<2x8xf32>
    %cst_179 = arith.constant 1.000000e+01 : f32
    %695 = vector.broadcast %cst_179 : f32 to vector<2x8xf32>
    %696 = arith.mulf %695, %694 : vector<2x8xf32>
    %cst_180 = arith.constant 5.000000e-01 : f32
    %697 = vector.broadcast %cst_180 : f32 to vector<2x8xf32>
    %698 = arith.cmpf ogt, %617, %697 : vector<2x8xf32>
    %cst_181 = arith.constant -1.000000e+05 : f32
    %699 = vector.broadcast %cst_181 : f32 to vector<2x8xf32>
    %700 = arith.select %698, %699, %696 : vector<2x8xi1>, vector<2x8xf32>
    %cst_182 = arith.constant dense<0xFF800000> : vector<2xf32>
    %701 = vector.multi_reduction <maximumf>, %700, %cst_182 [1] : vector<2x8xf32> to vector<2xf32>
    %702 = vector.shape_cast %701 : vector<2xf32> to vector<2x1xf32>
    %703 = vector.broadcast %702 : vector<2x1xf32> to vector<2x8xf32>
    %704 = arith.subf %700, %703 : vector<2x8xf32>
    %705 = math.exp %704 : vector<2x8xf32>
    %cst_183 = arith.constant dense<0.000000e+00> : vector<2xf32>
    %706 = vector.multi_reduction <add>, %705, %cst_183 [1] : vector<2x8xf32> to vector<2xf32>
    %707 = vector.shape_cast %706 : vector<2xf32> to vector<2x1xf32>
    %708 = math.log %707 : vector<2x1xf32>
    %709 = vector.broadcast %708 : vector<2x1xf32> to vector<2x8xf32>
    %710 = arith.subf %704, %709 : vector<2x8xf32>
    %711 = arith.index_cast %c3_i32 : i32 to index
    %c0_184 = arith.constant 0 : index
    %c0_185 = arith.constant 0 : index
    %712 = vector.load %arg20[%711, %c0_184, %c0_185] : memref<8x2x8xf32, #tpu.memory_space<vmem>>, vector<1x2x8xf32>
    %713 = vector.shape_cast %712 : vector<1x2x8xf32> to vector<2x8xf32>
    %714 = arith.addf %700, %713 : vector<2x8xf32>
    %cst_186 = arith.constant dense<0xFF800000> : vector<2xf32>
    %715 = vector.multi_reduction <maximumf>, %714, %cst_186 [1] : vector<2x8xf32> to vector<2xf32>
    %716 = vector.shape_cast %715 : vector<2xf32> to vector<2x1xf32>
    %717 = vector.broadcast %716 : vector<2x1xf32> to vector<2x8xf32>
    %718 = arith.cmpf oge, %714, %717 : vector<2x8xf32>
    %cst_187 = arith.constant 8.000000e+00 : f32
    %719 = vector.broadcast %cst_187 : f32 to vector<2x8xf32>
    %720 = arith.select %718, %250, %719 : vector<2x8xi1>, vector<2x8xf32>
    %cst_188 = arith.constant dense<0x7F800000> : vector<2xf32>
    %721 = vector.multi_reduction <minimumf>, %720, %cst_188 [1] : vector<2x8xf32> to vector<2xf32>
    %722 = vector.shape_cast %721 : vector<2xf32> to vector<2x1xf32>
    %723 = vector.broadcast %722 : vector<2x1xf32> to vector<2x8xf32>
    %724 = arith.cmpf oeq, %250, %723 : vector<2x8xf32>
    %725 = arith.fptosi %722 : vector<2x1xf32> to vector<2x1xi32>
    %cst_189 = arith.constant 0.000000e+00 : f32
    %726 = vector.broadcast %cst_189 : f32 to vector<2x8xf32>
    %727 = arith.select %724, %710, %726 : vector<2x8xi1>, vector<2x8xf32>
    %cst_190 = arith.constant dense<0.000000e+00> : vector<2xf32>
    %728 = vector.multi_reduction <add>, %727, %cst_190 [1] : vector<2x8xf32> to vector<2xf32>
    %729 = vector.shape_cast %728 : vector<2xf32> to vector<2x1xf32>
    %730 = vector.broadcast %c3_i32 : i32 to vector<2x8xi32>
    %731 = arith.cmpi eq, %249, %730 : vector<2x8xi32>
    %732 = vector.shape_cast %729 : vector<2x1xf32> to vector<2x1xf32>
    %733 = vector.broadcast %732 : vector<2x1xf32> to vector<2x8xf32>
    %734 = arith.select %731, %733, %612 : vector<2x8xi1>, vector<2x8xf32>
    %735 = vector.shape_cast %725 : vector<2x1xi32> to vector<2x1xi32>
    %736 = vector.broadcast %735 : vector<2x1xi32> to vector<2x8xi32>
    %737 = arith.select %731, %736, %615 : vector<2x8xi1>, vector<2x8xi32>
    %cst_191 = arith.constant 1.000000e+00 : f32
    %738 = vector.broadcast %cst_191 : f32 to vector<2x8xf32>
    %739 = arith.select %724, %738, %617 : vector<2x8xi1>, vector<2x8xf32>
    %740 = arith.extui %724 : vector<2x8xi1> to vector<2x8xi32>
    %741 = arith.sitofp %740 : vector<2x8xi32> to vector<2x8xf32>
    %742 = vector.shape_cast %741 : vector<2x8xf32> to vector<2x1x8xf32>
    "tpu.trace_start"() <{level = 10 : i32, message = "bqs,bse->bqe"}> : () -> ()
    %cst_192 = arith.constant dense<0.000000e+00> : vector<2x1x32xf32>
    %743 = tpu.matmul %742, %55, %cst_192 {dimension_numbers = #tpu.dot_dimension_numbers<[2], [1], [1], [2], [0, 0, 0, 1, 1, 2], [0], [0]>} : vector<2x1x8xf32>, vector<2x8x32xf32>, vector<2x1x32xf32> -> vector<2x1x32xf32>
    "tpu.trace_stop"() : () -> ()
    %744 = vector.shape_cast %743 : vector<2x1x32xf32> to vector<2x32xf32>
    %c4_i32 = arith.constant 4 : i32
    %745 = tpu.concatenate %744, %642 in 1 : vector<2x32xf32>, vector<2x32xf32> -> vector<2x64xf32>
    %cst_193 = arith.constant dense<0.000000e+00> : vector<2x128xf32>
    %746 = tpu.matmul %745, %3, %cst_193 {dimension_numbers = #tpu.dot_dimension_numbers<[1], [0], [0], [1], [0, 0, 1, 1], [], []>} : vector<2x64xf32>, vector<64x128xf32>, vector<2x128xf32> -> vector<2x128xf32>
    %747 = vector.broadcast %4 : vector<1x128xf32> to vector<2x128xf32>
    %748 = arith.addf %746, %747 : vector<2x128xf32>
    %749 = vector.broadcast %23 : vector<1x128xf32> to vector<2x128xf32>
    %750 = arith.mulf %748, %749 : vector<2x128xf32>
    %751 = math.tanh %750 : vector<2x128xf32>
    %752 = vector.broadcast %23 : vector<1x128xf32> to vector<2x128xf32>
    %753 = arith.mulf %751, %752 : vector<2x128xf32>
    %754 = vector.broadcast %26 : vector<1x128xf32> to vector<2x128xf32>
    %755 = arith.addf %753, %754 : vector<2x128xf32>
    %756 = vector.extract_strided_slice %755 {offsets = [0, 0], sizes = [2, 32], strides = [1, 1]} : vector<2x128xf32> to vector<2x32xf32>
    %757 = vector.extract_strided_slice %755 {offsets = [0, 32], sizes = [2, 32], strides = [1, 1]} : vector<2x128xf32> to vector<2x32xf32>
    %758 = vector.extract_strided_slice %755 {offsets = [0, 64], sizes = [2, 32], strides = [1, 1]} : vector<2x128xf32> to vector<2x32xf32>
    %759 = vector.extract_strided_slice %755 {offsets = [0, 96], sizes = [2, 32], strides = [1, 1]} : vector<2x128xf32> to vector<2x32xf32>
    %760 = arith.mulf %757, %640 : vector<2x32xf32>
    %761 = arith.mulf %756, %758 : vector<2x32xf32>
    %762 = arith.addf %760, %761 : vector<2x32xf32>
    %763 = math.tanh %762 : vector<2x32xf32>
    %764 = arith.mulf %759, %763 : vector<2x32xf32>
    %cst_194 = arith.constant dense<0.000000e+00> : vector<2x32xf32>
    %765 = tpu.matmul %764, %5, %cst_194 {dimension_numbers = #tpu.dot_dimension_numbers<[1], [0], [0], [1], [0, 0, 1, 1], [], []>} : vector<2x32xf32>, vector<32x32xf32>, vector<2x32xf32> -> vector<2x32xf32>
    %766 = vector.broadcast %6 : vector<1x32xf32> to vector<2x32xf32>
    %767 = arith.addf %765, %766 : vector<2x32xf32>
    %768 = vector.shape_cast %767 : vector<2x32xf32> to vector<2x1x32xf32>
    %769 = vector.broadcast %768 : vector<2x1x32xf32> to vector<2x8x32xf32>
    %770 = arith.addf %247, %769 : vector<2x8x32xf32>
    %771 = math.tanh %770 : vector<2x8x32xf32>
    %772 = vector.broadcast %8 : vector<1x1x32xf32> to vector<2x8x32xf32>
    %773 = arith.mulf %771, %772 : vector<2x8x32xf32>
    %cst_195 = arith.constant dense<0.000000e+00> : vector<2x8xf32>
    %774 = vector.multi_reduction <add>, %773, %cst_195 [2] : vector<2x8x32xf32> to vector<2x8xf32>
    %775 = vector.broadcast %9 : vector<1x1xf32> to vector<2x8xf32>
    %776 = arith.addf %774, %775 : vector<2x8xf32>
    %cst_196 = arith.constant 5.000000e-01 : f32
    %777 = vector.broadcast %cst_196 : f32 to vector<2x8xf32>
    %778 = arith.cmpf ogt, %739, %777 : vector<2x8xf32>
    %cst_197 = arith.constant -1.000000e+05 : f32
    %779 = vector.broadcast %cst_197 : f32 to vector<2x8xf32>
    %780 = arith.select %778, %779, %776 : vector<2x8xi1>, vector<2x8xf32>
    %781 = math.tanh %780 : vector<2x8xf32>
    %cst_198 = arith.constant 1.000000e+01 : f32
    %782 = vector.broadcast %cst_198 : f32 to vector<2x8xf32>
    %783 = arith.mulf %782, %781 : vector<2x8xf32>
    %cst_199 = arith.constant 5.000000e-01 : f32
    %784 = vector.broadcast %cst_199 : f32 to vector<2x8xf32>
    %785 = arith.cmpf ogt, %739, %784 : vector<2x8xf32>
    %cst_200 = arith.constant -1.000000e+05 : f32
    %786 = vector.broadcast %cst_200 : f32 to vector<2x8xf32>
    %787 = arith.select %785, %786, %783 : vector<2x8xi1>, vector<2x8xf32>
    %cst_201 = arith.constant dense<0xFF800000> : vector<2xf32>
    %788 = vector.multi_reduction <maximumf>, %787, %cst_201 [1] : vector<2x8xf32> to vector<2xf32>
    %789 = vector.shape_cast %788 : vector<2xf32> to vector<2x1xf32>
    %790 = vector.broadcast %789 : vector<2x1xf32> to vector<2x8xf32>
    %791 = arith.subf %787, %790 : vector<2x8xf32>
    %792 = math.exp %791 : vector<2x8xf32>
    %cst_202 = arith.constant dense<0.000000e+00> : vector<2xf32>
    %793 = vector.multi_reduction <add>, %792, %cst_202 [1] : vector<2x8xf32> to vector<2xf32>
    %794 = vector.shape_cast %793 : vector<2xf32> to vector<2x1xf32>
    %795 = vector.broadcast %794 : vector<2x1xf32> to vector<2x8xf32>
    %796 = arith.divf %792, %795 : vector<2x8xf32>
    %797 = vector.shape_cast %796 : vector<2x8xf32> to vector<2x1x8xf32>
    "tpu.trace_start"() <{level = 10 : i32, message = "bqs,bsh->bqh"}> : () -> ()
    %cst_203 = arith.constant dense<0.000000e+00> : vector<2x1x32xf32>
    %798 = tpu.matmul %797, %239, %cst_203 {dimension_numbers = #tpu.dot_dimension_numbers<[2], [1], [1], [2], [0, 0, 0, 1, 1, 2], [0], [0]>} : vector<2x1x8xf32>, vector<2x8x32xf32>, vector<2x1x32xf32> -> vector<2x1x32xf32>
    "tpu.trace_stop"() : () -> ()
    %799 = vector.shape_cast %798 : vector<2x1x32xf32> to vector<2x32xf32>
    %cst_204 = arith.constant dense<0.000000e+00> : vector<2x32xf32>
    %800 = tpu.matmul %799, %10, %cst_204 {dimension_numbers = #tpu.dot_dimension_numbers<[1], [0], [0], [1], [0, 0, 1, 1], [], []>} : vector<2x32xf32>, vector<32x32xf32>, vector<2x32xf32> -> vector<2x32xf32>
    %801 = vector.broadcast %11 : vector<1x32xf32> to vector<2x32xf32>
    %802 = arith.addf %800, %801 : vector<2x32xf32>
    %803 = vector.shape_cast %802 : vector<2x32xf32> to vector<2x1x32xf32>
    %804 = vector.broadcast %803 : vector<2x1x32xf32> to vector<2x8x32xf32>
    %805 = arith.addf %248, %804 : vector<2x8x32xf32>
    %806 = math.tanh %805 : vector<2x8x32xf32>
    %807 = vector.broadcast %13 : vector<1x1x32xf32> to vector<2x8x32xf32>
    %808 = arith.mulf %806, %807 : vector<2x8x32xf32>
    %cst_205 = arith.constant dense<0.000000e+00> : vector<2x8xf32>
    %809 = vector.multi_reduction <add>, %808, %cst_205 [2] : vector<2x8x32xf32> to vector<2x8xf32>
    %810 = vector.broadcast %14 : vector<1x1xf32> to vector<2x8xf32>
    %811 = arith.addf %809, %810 : vector<2x8xf32>
    %cst_206 = arith.constant 5.000000e-01 : f32
    %812 = vector.broadcast %cst_206 : f32 to vector<2x8xf32>
    %813 = arith.cmpf ogt, %739, %812 : vector<2x8xf32>
    %cst_207 = arith.constant -1.000000e+05 : f32
    %814 = vector.broadcast %cst_207 : f32 to vector<2x8xf32>
    %815 = arith.select %813, %814, %811 : vector<2x8xi1>, vector<2x8xf32>
    %816 = math.tanh %815 : vector<2x8xf32>
    %cst_208 = arith.constant 1.000000e+01 : f32
    %817 = vector.broadcast %cst_208 : f32 to vector<2x8xf32>
    %818 = arith.mulf %817, %816 : vector<2x8xf32>
    %cst_209 = arith.constant 5.000000e-01 : f32
    %819 = vector.broadcast %cst_209 : f32 to vector<2x8xf32>
    %820 = arith.cmpf ogt, %739, %819 : vector<2x8xf32>
    %cst_210 = arith.constant -1.000000e+05 : f32
    %821 = vector.broadcast %cst_210 : f32 to vector<2x8xf32>
    %822 = arith.select %820, %821, %818 : vector<2x8xi1>, vector<2x8xf32>
    %cst_211 = arith.constant dense<0xFF800000> : vector<2xf32>
    %823 = vector.multi_reduction <maximumf>, %822, %cst_211 [1] : vector<2x8xf32> to vector<2xf32>
    %824 = vector.shape_cast %823 : vector<2xf32> to vector<2x1xf32>
    %825 = vector.broadcast %824 : vector<2x1xf32> to vector<2x8xf32>
    %826 = arith.subf %822, %825 : vector<2x8xf32>
    %827 = math.exp %826 : vector<2x8xf32>
    %cst_212 = arith.constant dense<0.000000e+00> : vector<2xf32>
    %828 = vector.multi_reduction <add>, %827, %cst_212 [1] : vector<2x8xf32> to vector<2xf32>
    %829 = vector.shape_cast %828 : vector<2xf32> to vector<2x1xf32>
    %830 = math.log %829 : vector<2x1xf32>
    %831 = vector.broadcast %830 : vector<2x1xf32> to vector<2x8xf32>
    %832 = arith.subf %826, %831 : vector<2x8xf32>
    %833 = arith.index_cast %c4_i32 : i32 to index
    %c0_213 = arith.constant 0 : index
    %c0_214 = arith.constant 0 : index
    %834 = vector.load %arg20[%833, %c0_213, %c0_214] : memref<8x2x8xf32, #tpu.memory_space<vmem>>, vector<1x2x8xf32>
    %835 = vector.shape_cast %834 : vector<1x2x8xf32> to vector<2x8xf32>
    %836 = arith.addf %822, %835 : vector<2x8xf32>
    %cst_215 = arith.constant dense<0xFF800000> : vector<2xf32>
    %837 = vector.multi_reduction <maximumf>, %836, %cst_215 [1] : vector<2x8xf32> to vector<2xf32>
    %838 = vector.shape_cast %837 : vector<2xf32> to vector<2x1xf32>
    %839 = vector.broadcast %838 : vector<2x1xf32> to vector<2x8xf32>
    %840 = arith.cmpf oge, %836, %839 : vector<2x8xf32>
    %cst_216 = arith.constant 8.000000e+00 : f32
    %841 = vector.broadcast %cst_216 : f32 to vector<2x8xf32>
    %842 = arith.select %840, %250, %841 : vector<2x8xi1>, vector<2x8xf32>
    %cst_217 = arith.constant dense<0x7F800000> : vector<2xf32>
    %843 = vector.multi_reduction <minimumf>, %842, %cst_217 [1] : vector<2x8xf32> to vector<2xf32>
    %844 = vector.shape_cast %843 : vector<2xf32> to vector<2x1xf32>
    %845 = vector.broadcast %844 : vector<2x1xf32> to vector<2x8xf32>
    %846 = arith.cmpf oeq, %250, %845 : vector<2x8xf32>
    %847 = arith.fptosi %844 : vector<2x1xf32> to vector<2x1xi32>
    %cst_218 = arith.constant 0.000000e+00 : f32
    %848 = vector.broadcast %cst_218 : f32 to vector<2x8xf32>
    %849 = arith.select %846, %832, %848 : vector<2x8xi1>, vector<2x8xf32>
    %cst_219 = arith.constant dense<0.000000e+00> : vector<2xf32>
    %850 = vector.multi_reduction <add>, %849, %cst_219 [1] : vector<2x8xf32> to vector<2xf32>
    %851 = vector.shape_cast %850 : vector<2xf32> to vector<2x1xf32>
    %852 = vector.broadcast %c4_i32 : i32 to vector<2x8xi32>
    %853 = arith.cmpi eq, %249, %852 : vector<2x8xi32>
    %854 = vector.shape_cast %851 : vector<2x1xf32> to vector<2x1xf32>
    %855 = vector.broadcast %854 : vector<2x1xf32> to vector<2x8xf32>
    %856 = arith.select %853, %855, %734 : vector<2x8xi1>, vector<2x8xf32>
    %857 = vector.shape_cast %847 : vector<2x1xi32> to vector<2x1xi32>
    %858 = vector.broadcast %857 : vector<2x1xi32> to vector<2x8xi32>
    %859 = arith.select %853, %858, %737 : vector<2x8xi1>, vector<2x8xi32>
    %cst_220 = arith.constant 1.000000e+00 : f32
    %860 = vector.broadcast %cst_220 : f32 to vector<2x8xf32>
    %861 = arith.select %846, %860, %739 : vector<2x8xi1>, vector<2x8xf32>
    %862 = arith.extui %846 : vector<2x8xi1> to vector<2x8xi32>
    %863 = arith.sitofp %862 : vector<2x8xi32> to vector<2x8xf32>
    %864 = vector.shape_cast %863 : vector<2x8xf32> to vector<2x1x8xf32>
    "tpu.trace_start"() <{level = 10 : i32, message = "bqs,bse->bqe"}> : () -> ()
    %cst_221 = arith.constant dense<0.000000e+00> : vector<2x1x32xf32>
    %865 = tpu.matmul %864, %55, %cst_221 {dimension_numbers = #tpu.dot_dimension_numbers<[2], [1], [1], [2], [0, 0, 0, 1, 1, 2], [0], [0]>} : vector<2x1x8xf32>, vector<2x8x32xf32>, vector<2x1x32xf32> -> vector<2x1x32xf32>
    "tpu.trace_stop"() : () -> ()
    %866 = vector.shape_cast %865 : vector<2x1x32xf32> to vector<2x32xf32>
    %c5_i32 = arith.constant 5 : i32
    %867 = tpu.concatenate %866, %764 in 1 : vector<2x32xf32>, vector<2x32xf32> -> vector<2x64xf32>
    %cst_222 = arith.constant dense<0.000000e+00> : vector<2x128xf32>
    %868 = tpu.matmul %867, %3, %cst_222 {dimension_numbers = #tpu.dot_dimension_numbers<[1], [0], [0], [1], [0, 0, 1, 1], [], []>} : vector<2x64xf32>, vector<64x128xf32>, vector<2x128xf32> -> vector<2x128xf32>
    %869 = vector.broadcast %4 : vector<1x128xf32> to vector<2x128xf32>
    %870 = arith.addf %868, %869 : vector<2x128xf32>
    %871 = vector.broadcast %23 : vector<1x128xf32> to vector<2x128xf32>
    %872 = arith.mulf %870, %871 : vector<2x128xf32>
    %873 = math.tanh %872 : vector<2x128xf32>
    %874 = vector.broadcast %23 : vector<1x128xf32> to vector<2x128xf32>
    %875 = arith.mulf %873, %874 : vector<2x128xf32>
    %876 = vector.broadcast %26 : vector<1x128xf32> to vector<2x128xf32>
    %877 = arith.addf %875, %876 : vector<2x128xf32>
    %878 = vector.extract_strided_slice %877 {offsets = [0, 0], sizes = [2, 32], strides = [1, 1]} : vector<2x128xf32> to vector<2x32xf32>
    %879 = vector.extract_strided_slice %877 {offsets = [0, 32], sizes = [2, 32], strides = [1, 1]} : vector<2x128xf32> to vector<2x32xf32>
    %880 = vector.extract_strided_slice %877 {offsets = [0, 64], sizes = [2, 32], strides = [1, 1]} : vector<2x128xf32> to vector<2x32xf32>
    %881 = vector.extract_strided_slice %877 {offsets = [0, 96], sizes = [2, 32], strides = [1, 1]} : vector<2x128xf32> to vector<2x32xf32>
    %882 = arith.mulf %879, %762 : vector<2x32xf32>
    %883 = arith.mulf %878, %880 : vector<2x32xf32>
    %884 = arith.addf %882, %883 : vector<2x32xf32>
    %885 = math.tanh %884 : vector<2x32xf32>
    %886 = arith.mulf %881, %885 : vector<2x32xf32>
    %cst_223 = arith.constant dense<0.000000e+00> : vector<2x32xf32>
    %887 = tpu.matmul %886, %5, %cst_223 {dimension_numbers = #tpu.dot_dimension_numbers<[1], [0], [0], [1], [0, 0, 1, 1], [], []>} : vector<2x32xf32>, vector<32x32xf32>, vector<2x32xf32> -> vector<2x32xf32>
    %888 = vector.broadcast %6 : vector<1x32xf32> to vector<2x32xf32>
    %889 = arith.addf %887, %888 : vector<2x32xf32>
    %890 = vector.shape_cast %889 : vector<2x32xf32> to vector<2x1x32xf32>
    %891 = vector.broadcast %890 : vector<2x1x32xf32> to vector<2x8x32xf32>
    %892 = arith.addf %247, %891 : vector<2x8x32xf32>
    %893 = math.tanh %892 : vector<2x8x32xf32>
    %894 = vector.broadcast %8 : vector<1x1x32xf32> to vector<2x8x32xf32>
    %895 = arith.mulf %893, %894 : vector<2x8x32xf32>
    %cst_224 = arith.constant dense<0.000000e+00> : vector<2x8xf32>
    %896 = vector.multi_reduction <add>, %895, %cst_224 [2] : vector<2x8x32xf32> to vector<2x8xf32>
    %897 = vector.broadcast %9 : vector<1x1xf32> to vector<2x8xf32>
    %898 = arith.addf %896, %897 : vector<2x8xf32>
    %cst_225 = arith.constant 5.000000e-01 : f32
    %899 = vector.broadcast %cst_225 : f32 to vector<2x8xf32>
    %900 = arith.cmpf ogt, %861, %899 : vector<2x8xf32>
    %cst_226 = arith.constant -1.000000e+05 : f32
    %901 = vector.broadcast %cst_226 : f32 to vector<2x8xf32>
    %902 = arith.select %900, %901, %898 : vector<2x8xi1>, vector<2x8xf32>
    %903 = math.tanh %902 : vector<2x8xf32>
    %cst_227 = arith.constant 1.000000e+01 : f32
    %904 = vector.broadcast %cst_227 : f32 to vector<2x8xf32>
    %905 = arith.mulf %904, %903 : vector<2x8xf32>
    %cst_228 = arith.constant 5.000000e-01 : f32
    %906 = vector.broadcast %cst_228 : f32 to vector<2x8xf32>
    %907 = arith.cmpf ogt, %861, %906 : vector<2x8xf32>
    %cst_229 = arith.constant -1.000000e+05 : f32
    %908 = vector.broadcast %cst_229 : f32 to vector<2x8xf32>
    %909 = arith.select %907, %908, %905 : vector<2x8xi1>, vector<2x8xf32>
    %cst_230 = arith.constant dense<0xFF800000> : vector<2xf32>
    %910 = vector.multi_reduction <maximumf>, %909, %cst_230 [1] : vector<2x8xf32> to vector<2xf32>
    %911 = vector.shape_cast %910 : vector<2xf32> to vector<2x1xf32>
    %912 = vector.broadcast %911 : vector<2x1xf32> to vector<2x8xf32>
    %913 = arith.subf %909, %912 : vector<2x8xf32>
    %914 = math.exp %913 : vector<2x8xf32>
    %cst_231 = arith.constant dense<0.000000e+00> : vector<2xf32>
    %915 = vector.multi_reduction <add>, %914, %cst_231 [1] : vector<2x8xf32> to vector<2xf32>
    %916 = vector.shape_cast %915 : vector<2xf32> to vector<2x1xf32>
    %917 = vector.broadcast %916 : vector<2x1xf32> to vector<2x8xf32>
    %918 = arith.divf %914, %917 : vector<2x8xf32>
    %919 = vector.shape_cast %918 : vector<2x8xf32> to vector<2x1x8xf32>
    "tpu.trace_start"() <{level = 10 : i32, message = "bqs,bsh->bqh"}> : () -> ()
    %cst_232 = arith.constant dense<0.000000e+00> : vector<2x1x32xf32>
    %920 = tpu.matmul %919, %239, %cst_232 {dimension_numbers = #tpu.dot_dimension_numbers<[2], [1], [1], [2], [0, 0, 0, 1, 1, 2], [0], [0]>} : vector<2x1x8xf32>, vector<2x8x32xf32>, vector<2x1x32xf32> -> vector<2x1x32xf32>
    "tpu.trace_stop"() : () -> ()
    %921 = vector.shape_cast %920 : vector<2x1x32xf32> to vector<2x32xf32>
    %cst_233 = arith.constant dense<0.000000e+00> : vector<2x32xf32>
    %922 = tpu.matmul %921, %10, %cst_233 {dimension_numbers = #tpu.dot_dimension_numbers<[1], [0], [0], [1], [0, 0, 1, 1], [], []>} : vector<2x32xf32>, vector<32x32xf32>, vector<2x32xf32> -> vector<2x32xf32>
    %923 = vector.broadcast %11 : vector<1x32xf32> to vector<2x32xf32>
    %924 = arith.addf %922, %923 : vector<2x32xf32>
    %925 = vector.shape_cast %924 : vector<2x32xf32> to vector<2x1x32xf32>
    %926 = vector.broadcast %925 : vector<2x1x32xf32> to vector<2x8x32xf32>
    %927 = arith.addf %248, %926 : vector<2x8x32xf32>
    %928 = math.tanh %927 : vector<2x8x32xf32>
    %929 = vector.broadcast %13 : vector<1x1x32xf32> to vector<2x8x32xf32>
    %930 = arith.mulf %928, %929 : vector<2x8x32xf32>
    %cst_234 = arith.constant dense<0.000000e+00> : vector<2x8xf32>
    %931 = vector.multi_reduction <add>, %930, %cst_234 [2] : vector<2x8x32xf32> to vector<2x8xf32>
    %932 = vector.broadcast %14 : vector<1x1xf32> to vector<2x8xf32>
    %933 = arith.addf %931, %932 : vector<2x8xf32>
    %cst_235 = arith.constant 5.000000e-01 : f32
    %934 = vector.broadcast %cst_235 : f32 to vector<2x8xf32>
    %935 = arith.cmpf ogt, %861, %934 : vector<2x8xf32>
    %cst_236 = arith.constant -1.000000e+05 : f32
    %936 = vector.broadcast %cst_236 : f32 to vector<2x8xf32>
    %937 = arith.select %935, %936, %933 : vector<2x8xi1>, vector<2x8xf32>
    %938 = math.tanh %937 : vector<2x8xf32>
    %cst_237 = arith.constant 1.000000e+01 : f32
    %939 = vector.broadcast %cst_237 : f32 to vector<2x8xf32>
    %940 = arith.mulf %939, %938 : vector<2x8xf32>
    %cst_238 = arith.constant 5.000000e-01 : f32
    %941 = vector.broadcast %cst_238 : f32 to vector<2x8xf32>
    %942 = arith.cmpf ogt, %861, %941 : vector<2x8xf32>
    %cst_239 = arith.constant -1.000000e+05 : f32
    %943 = vector.broadcast %cst_239 : f32 to vector<2x8xf32>
    %944 = arith.select %942, %943, %940 : vector<2x8xi1>, vector<2x8xf32>
    %cst_240 = arith.constant dense<0xFF800000> : vector<2xf32>
    %945 = vector.multi_reduction <maximumf>, %944, %cst_240 [1] : vector<2x8xf32> to vector<2xf32>
    %946 = vector.shape_cast %945 : vector<2xf32> to vector<2x1xf32>
    %947 = vector.broadcast %946 : vector<2x1xf32> to vector<2x8xf32>
    %948 = arith.subf %944, %947 : vector<2x8xf32>
    %949 = math.exp %948 : vector<2x8xf32>
    %cst_241 = arith.constant dense<0.000000e+00> : vector<2xf32>
    %950 = vector.multi_reduction <add>, %949, %cst_241 [1] : vector<2x8xf32> to vector<2xf32>
    %951 = vector.shape_cast %950 : vector<2xf32> to vector<2x1xf32>
    %952 = math.log %951 : vector<2x1xf32>
    %953 = vector.broadcast %952 : vector<2x1xf32> to vector<2x8xf32>
    %954 = arith.subf %948, %953 : vector<2x8xf32>
    %955 = arith.index_cast %c5_i32 : i32 to index
    %c0_242 = arith.constant 0 : index
    %c0_243 = arith.constant 0 : index
    %956 = vector.load %arg20[%955, %c0_242, %c0_243] : memref<8x2x8xf32, #tpu.memory_space<vmem>>, vector<1x2x8xf32>
    %957 = vector.shape_cast %956 : vector<1x2x8xf32> to vector<2x8xf32>
    %958 = arith.addf %944, %957 : vector<2x8xf32>
    %cst_244 = arith.constant dense<0xFF800000> : vector<2xf32>
    %959 = vector.multi_reduction <maximumf>, %958, %cst_244 [1] : vector<2x8xf32> to vector<2xf32>
    %960 = vector.shape_cast %959 : vector<2xf32> to vector<2x1xf32>
    %961 = vector.broadcast %960 : vector<2x1xf32> to vector<2x8xf32>
    %962 = arith.cmpf oge, %958, %961 : vector<2x8xf32>
    %cst_245 = arith.constant 8.000000e+00 : f32
    %963 = vector.broadcast %cst_245 : f32 to vector<2x8xf32>
    %964 = arith.select %962, %250, %963 : vector<2x8xi1>, vector<2x8xf32>
    %cst_246 = arith.constant dense<0x7F800000> : vector<2xf32>
    %965 = vector.multi_reduction <minimumf>, %964, %cst_246 [1] : vector<2x8xf32> to vector<2xf32>
    %966 = vector.shape_cast %965 : vector<2xf32> to vector<2x1xf32>
    %967 = vector.broadcast %966 : vector<2x1xf32> to vector<2x8xf32>
    %968 = arith.cmpf oeq, %250, %967 : vector<2x8xf32>
    %969 = arith.fptosi %966 : vector<2x1xf32> to vector<2x1xi32>
    %cst_247 = arith.constant 0.000000e+00 : f32
    %970 = vector.broadcast %cst_247 : f32 to vector<2x8xf32>
    %971 = arith.select %968, %954, %970 : vector<2x8xi1>, vector<2x8xf32>
    %cst_248 = arith.constant dense<0.000000e+00> : vector<2xf32>
    %972 = vector.multi_reduction <add>, %971, %cst_248 [1] : vector<2x8xf32> to vector<2xf32>
    %973 = vector.shape_cast %972 : vector<2xf32> to vector<2x1xf32>
    %974 = vector.broadcast %c5_i32 : i32 to vector<2x8xi32>
    %975 = arith.cmpi eq, %249, %974 : vector<2x8xi32>
    %976 = vector.shape_cast %973 : vector<2x1xf32> to vector<2x1xf32>
    %977 = vector.broadcast %976 : vector<2x1xf32> to vector<2x8xf32>
    %978 = arith.select %975, %977, %856 : vector<2x8xi1>, vector<2x8xf32>
    %979 = vector.shape_cast %969 : vector<2x1xi32> to vector<2x1xi32>
    %980 = vector.broadcast %979 : vector<2x1xi32> to vector<2x8xi32>
    %981 = arith.select %975, %980, %859 : vector<2x8xi1>, vector<2x8xi32>
    %cst_249 = arith.constant 1.000000e+00 : f32
    %982 = vector.broadcast %cst_249 : f32 to vector<2x8xf32>
    %983 = arith.select %968, %982, %861 : vector<2x8xi1>, vector<2x8xf32>
    %984 = arith.extui %968 : vector<2x8xi1> to vector<2x8xi32>
    %985 = arith.sitofp %984 : vector<2x8xi32> to vector<2x8xf32>
    %986 = vector.shape_cast %985 : vector<2x8xf32> to vector<2x1x8xf32>
    "tpu.trace_start"() <{level = 10 : i32, message = "bqs,bse->bqe"}> : () -> ()
    %cst_250 = arith.constant dense<0.000000e+00> : vector<2x1x32xf32>
    %987 = tpu.matmul %986, %55, %cst_250 {dimension_numbers = #tpu.dot_dimension_numbers<[2], [1], [1], [2], [0, 0, 0, 1, 1, 2], [0], [0]>} : vector<2x1x8xf32>, vector<2x8x32xf32>, vector<2x1x32xf32> -> vector<2x1x32xf32>
    "tpu.trace_stop"() : () -> ()
    %988 = vector.shape_cast %987 : vector<2x1x32xf32> to vector<2x32xf32>
    %c6_i32 = arith.constant 6 : i32
    %989 = tpu.concatenate %988, %886 in 1 : vector<2x32xf32>, vector<2x32xf32> -> vector<2x64xf32>
    %cst_251 = arith.constant dense<0.000000e+00> : vector<2x128xf32>
    %990 = tpu.matmul %989, %3, %cst_251 {dimension_numbers = #tpu.dot_dimension_numbers<[1], [0], [0], [1], [0, 0, 1, 1], [], []>} : vector<2x64xf32>, vector<64x128xf32>, vector<2x128xf32> -> vector<2x128xf32>
    %991 = vector.broadcast %4 : vector<1x128xf32> to vector<2x128xf32>
    %992 = arith.addf %990, %991 : vector<2x128xf32>
    %993 = vector.broadcast %23 : vector<1x128xf32> to vector<2x128xf32>
    %994 = arith.mulf %992, %993 : vector<2x128xf32>
    %995 = math.tanh %994 : vector<2x128xf32>
    %996 = vector.broadcast %23 : vector<1x128xf32> to vector<2x128xf32>
    %997 = arith.mulf %995, %996 : vector<2x128xf32>
    %998 = vector.broadcast %26 : vector<1x128xf32> to vector<2x128xf32>
    %999 = arith.addf %997, %998 : vector<2x128xf32>
    %1000 = vector.extract_strided_slice %999 {offsets = [0, 0], sizes = [2, 32], strides = [1, 1]} : vector<2x128xf32> to vector<2x32xf32>
    %1001 = vector.extract_strided_slice %999 {offsets = [0, 32], sizes = [2, 32], strides = [1, 1]} : vector<2x128xf32> to vector<2x32xf32>
    %1002 = vector.extract_strided_slice %999 {offsets = [0, 64], sizes = [2, 32], strides = [1, 1]} : vector<2x128xf32> to vector<2x32xf32>
    %1003 = vector.extract_strided_slice %999 {offsets = [0, 96], sizes = [2, 32], strides = [1, 1]} : vector<2x128xf32> to vector<2x32xf32>
    %1004 = arith.mulf %1001, %884 : vector<2x32xf32>
    %1005 = arith.mulf %1000, %1002 : vector<2x32xf32>
    %1006 = arith.addf %1004, %1005 : vector<2x32xf32>
    %1007 = math.tanh %1006 : vector<2x32xf32>
    %1008 = arith.mulf %1003, %1007 : vector<2x32xf32>
    %cst_252 = arith.constant dense<0.000000e+00> : vector<2x32xf32>
    %1009 = tpu.matmul %1008, %5, %cst_252 {dimension_numbers = #tpu.dot_dimension_numbers<[1], [0], [0], [1], [0, 0, 1, 1], [], []>} : vector<2x32xf32>, vector<32x32xf32>, vector<2x32xf32> -> vector<2x32xf32>
    %1010 = vector.broadcast %6 : vector<1x32xf32> to vector<2x32xf32>
    %1011 = arith.addf %1009, %1010 : vector<2x32xf32>
    %1012 = vector.shape_cast %1011 : vector<2x32xf32> to vector<2x1x32xf32>
    %1013 = vector.broadcast %1012 : vector<2x1x32xf32> to vector<2x8x32xf32>
    %1014 = arith.addf %247, %1013 : vector<2x8x32xf32>
    %1015 = math.tanh %1014 : vector<2x8x32xf32>
    %1016 = vector.broadcast %8 : vector<1x1x32xf32> to vector<2x8x32xf32>
    %1017 = arith.mulf %1015, %1016 : vector<2x8x32xf32>
    %cst_253 = arith.constant dense<0.000000e+00> : vector<2x8xf32>
    %1018 = vector.multi_reduction <add>, %1017, %cst_253 [2] : vector<2x8x32xf32> to vector<2x8xf32>
    %1019 = vector.broadcast %9 : vector<1x1xf32> to vector<2x8xf32>
    %1020 = arith.addf %1018, %1019 : vector<2x8xf32>
    %cst_254 = arith.constant 5.000000e-01 : f32
    %1021 = vector.broadcast %cst_254 : f32 to vector<2x8xf32>
    %1022 = arith.cmpf ogt, %983, %1021 : vector<2x8xf32>
    %cst_255 = arith.constant -1.000000e+05 : f32
    %1023 = vector.broadcast %cst_255 : f32 to vector<2x8xf32>
    %1024 = arith.select %1022, %1023, %1020 : vector<2x8xi1>, vector<2x8xf32>
    %1025 = math.tanh %1024 : vector<2x8xf32>
    %cst_256 = arith.constant 1.000000e+01 : f32
    %1026 = vector.broadcast %cst_256 : f32 to vector<2x8xf32>
    %1027 = arith.mulf %1026, %1025 : vector<2x8xf32>
    %cst_257 = arith.constant 5.000000e-01 : f32
    %1028 = vector.broadcast %cst_257 : f32 to vector<2x8xf32>
    %1029 = arith.cmpf ogt, %983, %1028 : vector<2x8xf32>
    %cst_258 = arith.constant -1.000000e+05 : f32
    %1030 = vector.broadcast %cst_258 : f32 to vector<2x8xf32>
    %1031 = arith.select %1029, %1030, %1027 : vector<2x8xi1>, vector<2x8xf32>
    %cst_259 = arith.constant dense<0xFF800000> : vector<2xf32>
    %1032 = vector.multi_reduction <maximumf>, %1031, %cst_259 [1] : vector<2x8xf32> to vector<2xf32>
    %1033 = vector.shape_cast %1032 : vector<2xf32> to vector<2x1xf32>
    %1034 = vector.broadcast %1033 : vector<2x1xf32> to vector<2x8xf32>
    %1035 = arith.subf %1031, %1034 : vector<2x8xf32>
    %1036 = math.exp %1035 : vector<2x8xf32>
    %cst_260 = arith.constant dense<0.000000e+00> : vector<2xf32>
    %1037 = vector.multi_reduction <add>, %1036, %cst_260 [1] : vector<2x8xf32> to vector<2xf32>
    %1038 = vector.shape_cast %1037 : vector<2xf32> to vector<2x1xf32>
    %1039 = vector.broadcast %1038 : vector<2x1xf32> to vector<2x8xf32>
    %1040 = arith.divf %1036, %1039 : vector<2x8xf32>
    %1041 = vector.shape_cast %1040 : vector<2x8xf32> to vector<2x1x8xf32>
    "tpu.trace_start"() <{level = 10 : i32, message = "bqs,bsh->bqh"}> : () -> ()
    %cst_261 = arith.constant dense<0.000000e+00> : vector<2x1x32xf32>
    %1042 = tpu.matmul %1041, %239, %cst_261 {dimension_numbers = #tpu.dot_dimension_numbers<[2], [1], [1], [2], [0, 0, 0, 1, 1, 2], [0], [0]>} : vector<2x1x8xf32>, vector<2x8x32xf32>, vector<2x1x32xf32> -> vector<2x1x32xf32>
    "tpu.trace_stop"() : () -> ()
    %1043 = vector.shape_cast %1042 : vector<2x1x32xf32> to vector<2x32xf32>
    %cst_262 = arith.constant dense<0.000000e+00> : vector<2x32xf32>
    %1044 = tpu.matmul %1043, %10, %cst_262 {dimension_numbers = #tpu.dot_dimension_numbers<[1], [0], [0], [1], [0, 0, 1, 1], [], []>} : vector<2x32xf32>, vector<32x32xf32>, vector<2x32xf32> -> vector<2x32xf32>
    %1045 = vector.broadcast %11 : vector<1x32xf32> to vector<2x32xf32>
    %1046 = arith.addf %1044, %1045 : vector<2x32xf32>
    %1047 = vector.shape_cast %1046 : vector<2x32xf32> to vector<2x1x32xf32>
    %1048 = vector.broadcast %1047 : vector<2x1x32xf32> to vector<2x8x32xf32>
    %1049 = arith.addf %248, %1048 : vector<2x8x32xf32>
    %1050 = math.tanh %1049 : vector<2x8x32xf32>
    %1051 = vector.broadcast %13 : vector<1x1x32xf32> to vector<2x8x32xf32>
    %1052 = arith.mulf %1050, %1051 : vector<2x8x32xf32>
    %cst_263 = arith.constant dense<0.000000e+00> : vector<2x8xf32>
    %1053 = vector.multi_reduction <add>, %1052, %cst_263 [2] : vector<2x8x32xf32> to vector<2x8xf32>
    %1054 = vector.broadcast %14 : vector<1x1xf32> to vector<2x8xf32>
    %1055 = arith.addf %1053, %1054 : vector<2x8xf32>
    %cst_264 = arith.constant 5.000000e-01 : f32
    %1056 = vector.broadcast %cst_264 : f32 to vector<2x8xf32>
    %1057 = arith.cmpf ogt, %983, %1056 : vector<2x8xf32>
    %cst_265 = arith.constant -1.000000e+05 : f32
    %1058 = vector.broadcast %cst_265 : f32 to vector<2x8xf32>
    %1059 = arith.select %1057, %1058, %1055 : vector<2x8xi1>, vector<2x8xf32>
    %1060 = math.tanh %1059 : vector<2x8xf32>
    %cst_266 = arith.constant 1.000000e+01 : f32
    %1061 = vector.broadcast %cst_266 : f32 to vector<2x8xf32>
    %1062 = arith.mulf %1061, %1060 : vector<2x8xf32>
    %cst_267 = arith.constant 5.000000e-01 : f32
    %1063 = vector.broadcast %cst_267 : f32 to vector<2x8xf32>
    %1064 = arith.cmpf ogt, %983, %1063 : vector<2x8xf32>
    %cst_268 = arith.constant -1.000000e+05 : f32
    %1065 = vector.broadcast %cst_268 : f32 to vector<2x8xf32>
    %1066 = arith.select %1064, %1065, %1062 : vector<2x8xi1>, vector<2x8xf32>
    %cst_269 = arith.constant dense<0xFF800000> : vector<2xf32>
    %1067 = vector.multi_reduction <maximumf>, %1066, %cst_269 [1] : vector<2x8xf32> to vector<2xf32>
    %1068 = vector.shape_cast %1067 : vector<2xf32> to vector<2x1xf32>
    %1069 = vector.broadcast %1068 : vector<2x1xf32> to vector<2x8xf32>
    %1070 = arith.subf %1066, %1069 : vector<2x8xf32>
    %1071 = math.exp %1070 : vector<2x8xf32>
    %cst_270 = arith.constant dense<0.000000e+00> : vector<2xf32>
    %1072 = vector.multi_reduction <add>, %1071, %cst_270 [1] : vector<2x8xf32> to vector<2xf32>
    %1073 = vector.shape_cast %1072 : vector<2xf32> to vector<2x1xf32>
    %1074 = math.log %1073 : vector<2x1xf32>
    %1075 = vector.broadcast %1074 : vector<2x1xf32> to vector<2x8xf32>
    %1076 = arith.subf %1070, %1075 : vector<2x8xf32>
    %1077 = arith.index_cast %c6_i32 : i32 to index
    %c0_271 = arith.constant 0 : index
    %c0_272 = arith.constant 0 : index
    %1078 = vector.load %arg20[%1077, %c0_271, %c0_272] : memref<8x2x8xf32, #tpu.memory_space<vmem>>, vector<1x2x8xf32>
    %1079 = vector.shape_cast %1078 : vector<1x2x8xf32> to vector<2x8xf32>
    %1080 = arith.addf %1066, %1079 : vector<2x8xf32>
    %cst_273 = arith.constant dense<0xFF800000> : vector<2xf32>
    %1081 = vector.multi_reduction <maximumf>, %1080, %cst_273 [1] : vector<2x8xf32> to vector<2xf32>
    %1082 = vector.shape_cast %1081 : vector<2xf32> to vector<2x1xf32>
    %1083 = vector.broadcast %1082 : vector<2x1xf32> to vector<2x8xf32>
    %1084 = arith.cmpf oge, %1080, %1083 : vector<2x8xf32>
    %cst_274 = arith.constant 8.000000e+00 : f32
    %1085 = vector.broadcast %cst_274 : f32 to vector<2x8xf32>
    %1086 = arith.select %1084, %250, %1085 : vector<2x8xi1>, vector<2x8xf32>
    %cst_275 = arith.constant dense<0x7F800000> : vector<2xf32>
    %1087 = vector.multi_reduction <minimumf>, %1086, %cst_275 [1] : vector<2x8xf32> to vector<2xf32>
    %1088 = vector.shape_cast %1087 : vector<2xf32> to vector<2x1xf32>
    %1089 = vector.broadcast %1088 : vector<2x1xf32> to vector<2x8xf32>
    %1090 = arith.cmpf oeq, %250, %1089 : vector<2x8xf32>
    %1091 = arith.fptosi %1088 : vector<2x1xf32> to vector<2x1xi32>
    %cst_276 = arith.constant 0.000000e+00 : f32
    %1092 = vector.broadcast %cst_276 : f32 to vector<2x8xf32>
    %1093 = arith.select %1090, %1076, %1092 : vector<2x8xi1>, vector<2x8xf32>
    %cst_277 = arith.constant dense<0.000000e+00> : vector<2xf32>
    %1094 = vector.multi_reduction <add>, %1093, %cst_277 [1] : vector<2x8xf32> to vector<2xf32>
    %1095 = vector.shape_cast %1094 : vector<2xf32> to vector<2x1xf32>
    %1096 = vector.broadcast %c6_i32 : i32 to vector<2x8xi32>
    %1097 = arith.cmpi eq, %249, %1096 : vector<2x8xi32>
    %1098 = vector.shape_cast %1095 : vector<2x1xf32> to vector<2x1xf32>
    %1099 = vector.broadcast %1098 : vector<2x1xf32> to vector<2x8xf32>
    %1100 = arith.select %1097, %1099, %978 : vector<2x8xi1>, vector<2x8xf32>
    %1101 = vector.shape_cast %1091 : vector<2x1xi32> to vector<2x1xi32>
    %1102 = vector.broadcast %1101 : vector<2x1xi32> to vector<2x8xi32>
    %1103 = arith.select %1097, %1102, %981 : vector<2x8xi1>, vector<2x8xi32>
    %cst_278 = arith.constant 1.000000e+00 : f32
    %1104 = vector.broadcast %cst_278 : f32 to vector<2x8xf32>
    %1105 = arith.select %1090, %1104, %983 : vector<2x8xi1>, vector<2x8xf32>
    %1106 = arith.extui %1090 : vector<2x8xi1> to vector<2x8xi32>
    %1107 = arith.sitofp %1106 : vector<2x8xi32> to vector<2x8xf32>
    %1108 = vector.shape_cast %1107 : vector<2x8xf32> to vector<2x1x8xf32>
    "tpu.trace_start"() <{level = 10 : i32, message = "bqs,bse->bqe"}> : () -> ()
    %cst_279 = arith.constant dense<0.000000e+00> : vector<2x1x32xf32>
    %1109 = tpu.matmul %1108, %55, %cst_279 {dimension_numbers = #tpu.dot_dimension_numbers<[2], [1], [1], [2], [0, 0, 0, 1, 1, 2], [0], [0]>} : vector<2x1x8xf32>, vector<2x8x32xf32>, vector<2x1x32xf32> -> vector<2x1x32xf32>
    "tpu.trace_stop"() : () -> ()
    %1110 = vector.shape_cast %1109 : vector<2x1x32xf32> to vector<2x32xf32>
    %c7_i32 = arith.constant 7 : i32
    %1111 = tpu.concatenate %1110, %1008 in 1 : vector<2x32xf32>, vector<2x32xf32> -> vector<2x64xf32>
    %cst_280 = arith.constant dense<0.000000e+00> : vector<2x128xf32>
    %1112 = tpu.matmul %1111, %3, %cst_280 {dimension_numbers = #tpu.dot_dimension_numbers<[1], [0], [0], [1], [0, 0, 1, 1], [], []>} : vector<2x64xf32>, vector<64x128xf32>, vector<2x128xf32> -> vector<2x128xf32>
    %1113 = vector.broadcast %4 : vector<1x128xf32> to vector<2x128xf32>
    %1114 = arith.addf %1112, %1113 : vector<2x128xf32>
    %1115 = vector.broadcast %23 : vector<1x128xf32> to vector<2x128xf32>
    %1116 = arith.mulf %1114, %1115 : vector<2x128xf32>
    %1117 = math.tanh %1116 : vector<2x128xf32>
    %1118 = vector.broadcast %23 : vector<1x128xf32> to vector<2x128xf32>
    %1119 = arith.mulf %1117, %1118 : vector<2x128xf32>
    %1120 = vector.broadcast %26 : vector<1x128xf32> to vector<2x128xf32>
    %1121 = arith.addf %1119, %1120 : vector<2x128xf32>
    %1122 = vector.extract_strided_slice %1121 {offsets = [0, 0], sizes = [2, 32], strides = [1, 1]} : vector<2x128xf32> to vector<2x32xf32>
    %1123 = vector.extract_strided_slice %1121 {offsets = [0, 32], sizes = [2, 32], strides = [1, 1]} : vector<2x128xf32> to vector<2x32xf32>
    %1124 = vector.extract_strided_slice %1121 {offsets = [0, 64], sizes = [2, 32], strides = [1, 1]} : vector<2x128xf32> to vector<2x32xf32>
    %1125 = vector.extract_strided_slice %1121 {offsets = [0, 96], sizes = [2, 32], strides = [1, 1]} : vector<2x128xf32> to vector<2x32xf32>
    %1126 = arith.mulf %1123, %1006 : vector<2x32xf32>
    %1127 = arith.mulf %1122, %1124 : vector<2x32xf32>
    %1128 = arith.addf %1126, %1127 : vector<2x32xf32>
    %1129 = math.tanh %1128 : vector<2x32xf32>
    %1130 = arith.mulf %1125, %1129 : vector<2x32xf32>
    %cst_281 = arith.constant dense<0.000000e+00> : vector<2x32xf32>
    %1131 = tpu.matmul %1130, %5, %cst_281 {dimension_numbers = #tpu.dot_dimension_numbers<[1], [0], [0], [1], [0, 0, 1, 1], [], []>} : vector<2x32xf32>, vector<32x32xf32>, vector<2x32xf32> -> vector<2x32xf32>
    %1132 = vector.broadcast %6 : vector<1x32xf32> to vector<2x32xf32>
    %1133 = arith.addf %1131, %1132 : vector<2x32xf32>
    %1134 = vector.shape_cast %1133 : vector<2x32xf32> to vector<2x1x32xf32>
    %1135 = vector.broadcast %1134 : vector<2x1x32xf32> to vector<2x8x32xf32>
    %1136 = arith.addf %247, %1135 : vector<2x8x32xf32>
    %1137 = math.tanh %1136 : vector<2x8x32xf32>
    %1138 = vector.broadcast %8 : vector<1x1x32xf32> to vector<2x8x32xf32>
    %1139 = arith.mulf %1137, %1138 : vector<2x8x32xf32>
    %cst_282 = arith.constant dense<0.000000e+00> : vector<2x8xf32>
    %1140 = vector.multi_reduction <add>, %1139, %cst_282 [2] : vector<2x8x32xf32> to vector<2x8xf32>
    %1141 = vector.broadcast %9 : vector<1x1xf32> to vector<2x8xf32>
    %1142 = arith.addf %1140, %1141 : vector<2x8xf32>
    %cst_283 = arith.constant 5.000000e-01 : f32
    %1143 = vector.broadcast %cst_283 : f32 to vector<2x8xf32>
    %1144 = arith.cmpf ogt, %1105, %1143 : vector<2x8xf32>
    %cst_284 = arith.constant -1.000000e+05 : f32
    %1145 = vector.broadcast %cst_284 : f32 to vector<2x8xf32>
    %1146 = arith.select %1144, %1145, %1142 : vector<2x8xi1>, vector<2x8xf32>
    %1147 = math.tanh %1146 : vector<2x8xf32>
    %cst_285 = arith.constant 1.000000e+01 : f32
    %1148 = vector.broadcast %cst_285 : f32 to vector<2x8xf32>
    %1149 = arith.mulf %1148, %1147 : vector<2x8xf32>
    %cst_286 = arith.constant 5.000000e-01 : f32
    %1150 = vector.broadcast %cst_286 : f32 to vector<2x8xf32>
    %1151 = arith.cmpf ogt, %1105, %1150 : vector<2x8xf32>
    %cst_287 = arith.constant -1.000000e+05 : f32
    %1152 = vector.broadcast %cst_287 : f32 to vector<2x8xf32>
    %1153 = arith.select %1151, %1152, %1149 : vector<2x8xi1>, vector<2x8xf32>
    %cst_288 = arith.constant dense<0xFF800000> : vector<2xf32>
    %1154 = vector.multi_reduction <maximumf>, %1153, %cst_288 [1] : vector<2x8xf32> to vector<2xf32>
    %1155 = vector.shape_cast %1154 : vector<2xf32> to vector<2x1xf32>
    %1156 = vector.broadcast %1155 : vector<2x1xf32> to vector<2x8xf32>
    %1157 = arith.subf %1153, %1156 : vector<2x8xf32>
    %1158 = math.exp %1157 : vector<2x8xf32>
    %cst_289 = arith.constant dense<0.000000e+00> : vector<2xf32>
    %1159 = vector.multi_reduction <add>, %1158, %cst_289 [1] : vector<2x8xf32> to vector<2xf32>
    %1160 = vector.shape_cast %1159 : vector<2xf32> to vector<2x1xf32>
    %1161 = vector.broadcast %1160 : vector<2x1xf32> to vector<2x8xf32>
    %1162 = arith.divf %1158, %1161 : vector<2x8xf32>
    %1163 = vector.shape_cast %1162 : vector<2x8xf32> to vector<2x1x8xf32>
    "tpu.trace_start"() <{level = 10 : i32, message = "bqs,bsh->bqh"}> : () -> ()
    %cst_290 = arith.constant dense<0.000000e+00> : vector<2x1x32xf32>
    %1164 = tpu.matmul %1163, %239, %cst_290 {dimension_numbers = #tpu.dot_dimension_numbers<[2], [1], [1], [2], [0, 0, 0, 1, 1, 2], [0], [0]>} : vector<2x1x8xf32>, vector<2x8x32xf32>, vector<2x1x32xf32> -> vector<2x1x32xf32>
    "tpu.trace_stop"() : () -> ()
    %1165 = vector.shape_cast %1164 : vector<2x1x32xf32> to vector<2x32xf32>
    %cst_291 = arith.constant dense<0.000000e+00> : vector<2x32xf32>
    %1166 = tpu.matmul %1165, %10, %cst_291 {dimension_numbers = #tpu.dot_dimension_numbers<[1], [0], [0], [1], [0, 0, 1, 1], [], []>} : vector<2x32xf32>, vector<32x32xf32>, vector<2x32xf32> -> vector<2x32xf32>
    %1167 = vector.broadcast %11 : vector<1x32xf32> to vector<2x32xf32>
    %1168 = arith.addf %1166, %1167 : vector<2x32xf32>
    %1169 = vector.shape_cast %1168 : vector<2x32xf32> to vector<2x1x32xf32>
    %1170 = vector.broadcast %1169 : vector<2x1x32xf32> to vector<2x8x32xf32>
    %1171 = arith.addf %248, %1170 : vector<2x8x32xf32>
    %1172 = math.tanh %1171 : vector<2x8x32xf32>
    %1173 = vector.broadcast %13 : vector<1x1x32xf32> to vector<2x8x32xf32>
    %1174 = arith.mulf %1172, %1173 : vector<2x8x32xf32>
    %cst_292 = arith.constant dense<0.000000e+00> : vector<2x8xf32>
    %1175 = vector.multi_reduction <add>, %1174, %cst_292 [2] : vector<2x8x32xf32> to vector<2x8xf32>
    %1176 = vector.broadcast %14 : vector<1x1xf32> to vector<2x8xf32>
    %1177 = arith.addf %1175, %1176 : vector<2x8xf32>
    %cst_293 = arith.constant 5.000000e-01 : f32
    %1178 = vector.broadcast %cst_293 : f32 to vector<2x8xf32>
    %1179 = arith.cmpf ogt, %1105, %1178 : vector<2x8xf32>
    %cst_294 = arith.constant -1.000000e+05 : f32
    %1180 = vector.broadcast %cst_294 : f32 to vector<2x8xf32>
    %1181 = arith.select %1179, %1180, %1177 : vector<2x8xi1>, vector<2x8xf32>
    %1182 = math.tanh %1181 : vector<2x8xf32>
    %cst_295 = arith.constant 1.000000e+01 : f32
    %1183 = vector.broadcast %cst_295 : f32 to vector<2x8xf32>
    %1184 = arith.mulf %1183, %1182 : vector<2x8xf32>
    %cst_296 = arith.constant 5.000000e-01 : f32
    %1185 = vector.broadcast %cst_296 : f32 to vector<2x8xf32>
    %1186 = arith.cmpf ogt, %1105, %1185 : vector<2x8xf32>
    %cst_297 = arith.constant -1.000000e+05 : f32
    %1187 = vector.broadcast %cst_297 : f32 to vector<2x8xf32>
    %1188 = arith.select %1186, %1187, %1184 : vector<2x8xi1>, vector<2x8xf32>
    %cst_298 = arith.constant dense<0xFF800000> : vector<2xf32>
    %1189 = vector.multi_reduction <maximumf>, %1188, %cst_298 [1] : vector<2x8xf32> to vector<2xf32>
    %1190 = vector.shape_cast %1189 : vector<2xf32> to vector<2x1xf32>
    %1191 = vector.broadcast %1190 : vector<2x1xf32> to vector<2x8xf32>
    %1192 = arith.subf %1188, %1191 : vector<2x8xf32>
    %1193 = math.exp %1192 : vector<2x8xf32>
    %cst_299 = arith.constant dense<0.000000e+00> : vector<2xf32>
    %1194 = vector.multi_reduction <add>, %1193, %cst_299 [1] : vector<2x8xf32> to vector<2xf32>
    %1195 = vector.shape_cast %1194 : vector<2xf32> to vector<2x1xf32>
    %1196 = math.log %1195 : vector<2x1xf32>
    %1197 = vector.broadcast %1196 : vector<2x1xf32> to vector<2x8xf32>
    %1198 = arith.subf %1192, %1197 : vector<2x8xf32>
    %1199 = arith.index_cast %c7_i32 : i32 to index
    %c0_300 = arith.constant 0 : index
    %c0_301 = arith.constant 0 : index
    %1200 = vector.load %arg20[%1199, %c0_300, %c0_301] : memref<8x2x8xf32, #tpu.memory_space<vmem>>, vector<1x2x8xf32>
    %1201 = vector.shape_cast %1200 : vector<1x2x8xf32> to vector<2x8xf32>
    %1202 = arith.addf %1188, %1201 : vector<2x8xf32>
    %cst_302 = arith.constant dense<0xFF800000> : vector<2xf32>
    %1203 = vector.multi_reduction <maximumf>, %1202, %cst_302 [1] : vector<2x8xf32> to vector<2xf32>
    %1204 = vector.shape_cast %1203 : vector<2xf32> to vector<2x1xf32>
    %1205 = vector.broadcast %1204 : vector<2x1xf32> to vector<2x8xf32>
    %1206 = arith.cmpf oge, %1202, %1205 : vector<2x8xf32>
    %cst_303 = arith.constant 8.000000e+00 : f32
    %1207 = vector.broadcast %cst_303 : f32 to vector<2x8xf32>
    %1208 = arith.select %1206, %250, %1207 : vector<2x8xi1>, vector<2x8xf32>
    %cst_304 = arith.constant dense<0x7F800000> : vector<2xf32>
    %1209 = vector.multi_reduction <minimumf>, %1208, %cst_304 [1] : vector<2x8xf32> to vector<2xf32>
    %1210 = vector.shape_cast %1209 : vector<2xf32> to vector<2x1xf32>
    %1211 = vector.broadcast %1210 : vector<2x1xf32> to vector<2x8xf32>
    %1212 = arith.cmpf oeq, %250, %1211 : vector<2x8xf32>
    %1213 = arith.fptosi %1210 : vector<2x1xf32> to vector<2x1xi32>
    %cst_305 = arith.constant 0.000000e+00 : f32
    %1214 = vector.broadcast %cst_305 : f32 to vector<2x8xf32>
    %1215 = arith.select %1212, %1198, %1214 : vector<2x8xi1>, vector<2x8xf32>
    %cst_306 = arith.constant dense<0.000000e+00> : vector<2xf32>
    %1216 = vector.multi_reduction <add>, %1215, %cst_306 [1] : vector<2x8xf32> to vector<2xf32>
    %1217 = vector.shape_cast %1216 : vector<2xf32> to vector<2x1xf32>
    %1218 = vector.broadcast %c7_i32 : i32 to vector<2x8xi32>
    %1219 = arith.cmpi eq, %249, %1218 : vector<2x8xi32>
    %1220 = vector.shape_cast %1217 : vector<2x1xf32> to vector<2x1xf32>
    %1221 = vector.broadcast %1220 : vector<2x1xf32> to vector<2x8xf32>
    %1222 = arith.select %1219, %1221, %1100 : vector<2x8xi1>, vector<2x8xf32>
    %1223 = vector.shape_cast %1213 : vector<2x1xi32> to vector<2x1xi32>
    %1224 = vector.broadcast %1223 : vector<2x1xi32> to vector<2x8xi32>
    %1225 = arith.select %1219, %1224, %1103 : vector<2x8xi1>, vector<2x8xi32>
    %cst_307 = arith.constant 1.000000e+00 : f32
    %1226 = vector.broadcast %cst_307 : f32 to vector<2x8xf32>
    %1227 = arith.select %1212, %1226, %1105 : vector<2x8xi1>, vector<2x8xf32>
    %1228 = arith.extui %1212 : vector<2x8xi1> to vector<2x8xi32>
    %1229 = arith.sitofp %1228 : vector<2x8xi32> to vector<2x8xf32>
    %1230 = vector.shape_cast %1229 : vector<2x8xf32> to vector<2x1x8xf32>
    "tpu.trace_start"() <{level = 10 : i32, message = "bqs,bse->bqe"}> : () -> ()
    %cst_308 = arith.constant dense<0.000000e+00> : vector<2x1x32xf32>
    %1231 = tpu.matmul %1230, %55, %cst_308 {dimension_numbers = #tpu.dot_dimension_numbers<[2], [1], [1], [2], [0, 0, 0, 1, 1, 2], [0], [0]>} : vector<2x1x8xf32>, vector<2x8x32xf32>, vector<2x1x32xf32> -> vector<2x1x32xf32>
    "tpu.trace_stop"() : () -> ()
    %1232 = vector.shape_cast %1231 : vector<2x1x32xf32> to vector<2x32xf32>
    %c8_i32 = arith.constant 8 : i32
    %c0_309 = arith.constant 0 : index
    %c0_310 = arith.constant 0 : index
    %1233 = vector.load %arg21[%c0_309, %c0_310] : memref<2x8xf32, #tpu.memory_space<vmem>>, vector<2x8xf32>
    tpu.vector_store %arg21[%c0_309, %c0_310], %1222 {strides = array<i32>} : memref<2x8xf32, #tpu.memory_space<vmem>>, vector<2x8xf32>,
    %c0_311 = arith.constant 0 : index
    %c0_312 = arith.constant 0 : index
    %1234 = vector.load %arg22[%c0_311, %c0_312] : memref<2x8xi32, #tpu.memory_space<vmem>>, vector<2x8xi32>
    tpu.vector_store %arg22[%c0_311, %c0_312], %1225 {strides = array<i32>} : memref<2x8xi32, #tpu.memory_space<vmem>>, vector<2x8xi32>,
    return
  }
}

</mosaic_0001>

<llo_original>
// kernel: tpu_custom_call.1
$region0: #{tpu_custom_call.1}
  #allocation0 [shape = 'u32[]', space=smem, size = 0x4, offset = 0x4, fixed_abs, tag = 'smem constant byte address 0x4 - core index']
  #allocation1 [shape = 'u32[144,128]{1,0:T(1,128)}', space=vmem, size = 0x12000, scoped, tag = 'internal scratch']
  #allocation2 [shape = 'f32[2,8,32]{2,1,0:T(8,128)}', space=vmem, size = 0x2000, scoped, tag = 'scratch operand']
  #allocation3 [shape = 'f32[1,1]{1,0:T(1,128)S(1)}', space=vmem, size = 0x200, scoped, tag = 'scoped memory for tpu_custom_call.1']
  #allocation4 [shape = 'f32[1,1]{1,0:T(1,128)S(1)}', space=vmem, size = 0x200, scoped, tag = 'scoped memory for tpu_custom_call.1']
  %s0 = inlined_call_operand.vmem [shape: f32[16,2], index: 0, kind: input, shape index: {}]
  %s1 = inlined_call_operand.vmem [shape: f32[16,2], index: 1, kind: input, shape index: {}]
  %s2 = inlined_call_operand.hbm [shape: f32[2,32], index: 2, kind: input, shape index: {}]
  %s3 = inlined_call_operand.hbm [shape: f32[1,32], index: 3, kind: input, shape index: {}]
  %s4 = inlined_call_operand.hbm [shape: f32[32,128], index: 4, kind: input, shape index: {}]
  %s5 = inlined_call_operand.hbm [shape: f32[32,128], index: 5, kind: input, shape index: {}]
  %s6 = inlined_call_operand.hbm [shape: f32[1,128], index: 6, kind: input, shape index: {}]
  %s7 = inlined_call_operand.vmem [shape: f32[64,128], index: 7, kind: input, shape index: {}]
  %s8 = inlined_call_operand.hbm [shape: f32[1,128], index: 8, kind: input, shape index: {}]
  %s9 = inlined_call_operand.hbm [shape: f32[32,32], index: 9, kind: input, shape index: {}]
  %s10 = inlined_call_operand.hbm [shape: f32[1,32], index: 10, kind: input, shape index: {}]
  %s11 = inlined_call_operand.hbm [shape: f32[1,32], index: 11, kind: input, shape index: {}]
  %s12 = inlined_call_operand.<no memory space> [shape: f32[1,1], index: 12, kind: input, shape index: {}]
  %s13 = inlined_call_operand.hbm [shape: f32[32,32], index: 13, kind: input, shape index: {}]
  %s14 = inlined_call_operand.hbm [shape: f32[1,32], index: 14, kind: input, shape index: {}]
  %s15 = inlined_call_operand.hbm [shape: f32[1,32], index: 15, kind: input, shape index: {}]
  %s16 = inlined_call_operand.<no memory space> [shape: f32[1,1], index: 16, kind: input, shape index: {}]
  %s17 = inlined_call_operand.vmem [shape: f32[32,64], index: 17, kind: input, shape index: {}]
  %s18 = inlined_call_operand.vmem [shape: f32[1,64], index: 18, kind: input, shape index: {}]
  %s19 = inlined_call_operand.vmem [shape: f32[1,32], index: 19, kind: input, shape index: {}]
  %s20 = inlined_call_operand.hbm [shape: f32[8,2,8], index: 20, kind: input, shape index: {}]
  %s21 = inlined_call_operand.hbm [shape: f32[2,8], index: 21, kind: output, shape index: {0}]
  %s22 = inlined_call_operand.hbm [shape: s32[2,8], index: 22, kind: output, shape index: {1}]
  %23 = xla_tuple %s21, %s22
  %s24 = sld [smem:[#allocation0]]
  $region154: #{tpu_custom_call.1} parent=0
    _
  %s26 = ssub.s32 1, %s24
  %s27 = scalar_select 0, %s26, %s24
  %v28 = vstv %s12
  %29 = vst [vmem:[#allocation3] sm:$0x1] %v28
  %v30 = vstv %s16
  %31 = vst [vmem:[#allocation4] sm:$0x1] %v30
  $region1: #{tpu_custom_call.1} parent=0
    #allocation5 [shape = 'u8[1024]{0}', space=vmem, size = 0x400, scoped, tag = 'input window, operand 2, single buffered']
    #allocation6 [shape = 's32[1]{0}', space=sflag, size = 0x4, scoped, tag = 'scoped memory for tpu_custom_call.1']
    #allocation7 [shape = 's32[1]{0}', space=sflag, size = 0x4, scoped, tag = 'scoped memory for tpu_custom_call.1']
    #allocation8 [shape = 'u8[512]{0}', space=vmem, size = 0x400, scoped, tag = 'input window, operand 3, single buffered']
    #allocation9 [shape = 's32[1]{0}', space=sflag, size = 0x4, scoped, tag = 'scoped memory for tpu_custom_call.1']
    #allocation10 [shape = 'u8[16384]{0}', space=vmem, size = 0x4000, scoped, tag = 'input window, operand 4, single buffered']
    #allocation11 [shape = 'u8[16384]{0}', space=vmem, size = 0x4000, scoped, tag = 'input window, operand 5, single buffered']
    #allocation12 [shape = 's32[1]{0}', space=sflag, size = 0x4, scoped, tag = 'scoped memory for tpu_custom_call.1']
    #allocation13 [shape = 'u8[512]{0}', space=vmem, size = 0x400, scoped, tag = 'input window, operand 6, single buffered']
    #allocation14 [shape = 'u8[512]{0}', space=vmem, size = 0x400, scoped, tag = 'input window, operand 8, single buffered']
    #allocation15 [shape = 's32[1]{0}', space=sflag, size = 0x4, scoped, tag = 'scoped memory for tpu_custom_call.1']
    #allocation16 [shape = 'u8[16384]{0}', space=vmem, size = 0x4000, scoped, tag = 'input window, operand 9, single buffered']
    #allocation17 [shape = 'u8[512]{0}', space=vmem, size = 0x400, scoped, tag = 'input window, operand 10, single buffered']
    #allocation18 [shape = 's32[1]{0}', space=sflag, size = 0x4, scoped, tag = 'scoped memory for tpu_custom_call.1']
    #allocation19 [shape = 'u8[512]{0}', space=vmem, size = 0x400, scoped, tag = 'input window, operand 11, single buffered']
    #allocation20 [shape = 'u8[16384]{0}', space=vmem, size = 0x4000, scoped, tag = 'input window, operand 13, single buffered']
    #allocation21 [shape = 's32[1]{0}', space=sflag, size = 0x4, scoped, tag = 'scoped memory for tpu_custom_call.1']
    #allocation22 [shape = 'u8[512]{0}', space=vmem, size = 0x400, scoped, tag = 'input window, operand 14, single buffered']
    #allocation23 [shape = 'u8[512]{0}', space=vmem, size = 0x400, scoped, tag = 'input window, operand 15, single buffered']
    #allocation24 [shape = 's32[1]{0}', space=sflag, size = 0x4, scoped, tag = 'scoped memory for tpu_custom_call.1']
    #allocation25 [shape = 'u8[8192]{0}', space=vmem, size = 0x2000, scoped, tag = 'input window, operand 20, single buffered']
    #allocation26 [shape = 'u8[1024]{0}', space=vmem, size = 0x400, scoped, tag = 'output window, operand 0, single buffered']
    #allocation27 [shape = 'u8[1024]{0}', space=vmem, size = 0x400, scoped, tag = 'output window, operand 1, single buffered']
    #allocation28 [shape = 's32[1]{0}', space=sflag, size = 0x4, scoped, tag = 'scoped memory for tpu_custom_call.1']
    %32 = vsyncpa [#allocation6], 0
    %33 = vsyncpa [#allocation9], 0
    %34 = vsyncpa [#allocation12], 0
    %35 = vsyncpa [#allocation15], 0
    %36 = vsyncpa [#allocation18], 0
    %37 = vsyncpa [#allocation21], 0
    %38 = vsyncpa [#allocation24], 0
    %39 = vsyncpa [#allocation7], 0
    %40 = vsyncpa [#allocation28], 0
    // Predicated region
    $region2: #{tpu_custom_call.1} parent=1 // pred_check
      _
    $region3: #{tpu_custom_call.1} parent=1 // pred_check_branch
      %42 = sbr.rel (0) target = $region5
    $region4: #{tpu_custom_call.1} parent=1 // pred_region
      _
    $region5: #{tpu_custom_call.1} parent=1 // pred_fallthru
      _
    // Predicated region
    $region6: #{tpu_custom_call.1} parent=1 // pred_check
      _
    $region7: #{tpu_custom_call.1} parent=1 // pred_check_branch
      %44 = sbr.rel (0) target = $region9
    $region8: #{tpu_custom_call.1} parent=1 // pred_region
      _
    $region9: #{tpu_custom_call.1} parent=1 // pred_fallthru
      _
    // Predicated region
    $region10: #{tpu_custom_call.1} parent=1 // pred_check
      _
    $region11: #{tpu_custom_call.1} parent=1 // pred_check_branch
      %46 = sbr.rel (0) target = $region13
    $region12: #{tpu_custom_call.1} parent=1 // pred_region
      %s48 = ssub.s32 32, 32
      %49 = vsyncadd [#allocation6], %s48
      %s51 = sshll.u32 [#allocation5], 4
      %s52 = int_to_ptr.vmem [resolvable:$true] %s51
      %54 = dma.hbm_to_vmem [thread:$0]  %s2, 32, %s52, [#allocation6]
    $region13: #{tpu_custom_call.1} parent=1 // pred_fallthru
      _
    // Predicated region
    $region14: #{tpu_custom_call.1} parent=1 // pred_check
      _
    $region15: #{tpu_custom_call.1} parent=1 // pred_check_branch
      %56 = sbr.rel (0) target = $region17
    $region16: #{tpu_custom_call.1} parent=1 // pred_region
      %s58 = ssub.s32 16, 16
      %59 = vsyncadd [#allocation9], %s58
      %s61 = sshll.u32 [#allocation8], 4
      %s62 = int_to_ptr.vmem [resolvable:$true] %s61
      %64 = dma.hbm_to_vmem [thread:$0]  %s3, 16, %s62, [#allocation9]
    $region17: #{tpu_custom_call.1} parent=1 // pred_fallthru
      _
    // Predicated region
    $region18: #{tpu_custom_call.1} parent=1 // pred_check
      _
    $region19: #{tpu_custom_call.1} parent=1 // pred_check_branch
      %66 = sbr.rel (0) target = $region21
    $region20: #{tpu_custom_call.1} parent=1 // pred_region
      %s68 = ssub.s32 512, 512
      %69 = vsyncadd [#allocation9], %s68
      %s70 = sshll.u32 [#allocation10], 4
      %s71 = int_to_ptr.vmem [resolvable:$true] %s70
      %76 = dma.hbm_to_vmem [thread:$0]  %s4, 512, %s71, [#allocation9], 128, 128, 8
    $region21: #{tpu_custom_call.1} parent=1 // pred_fallthru
      _
    // Predicated region
    $region22: #{tpu_custom_call.1} parent=1 // pred_check
      _
    $region23: #{tpu_custom_call.1} parent=1 // pred_check_branch
      %78 = sbr.rel (0) target = $region25
    $region24: #{tpu_custom_call.1} parent=1 // pred_region
      %s80 = ssub.s32 512, 512
      %81 = vsyncadd [#allocation12], %s80
      %s82 = sshll.u32 [#allocation11], 4
      %s83 = int_to_ptr.vmem [resolvable:$true] %s82
      %88 = dma.hbm_to_vmem [thread:$0]  %s5, 512, %s83, [#allocation12], 128, 128, 8
    $region25: #{tpu_custom_call.1} parent=1 // pred_fallthru
      _
    // Predicated region
    $region26: #{tpu_custom_call.1} parent=1 // pred_check
      _
    $region27: #{tpu_custom_call.1} parent=1 // pred_check_branch
      %90 = sbr.rel (0) target = $region29
    $region28: #{tpu_custom_call.1} parent=1 // pred_region
      %s92 = ssub.s32 16, 16
      %93 = vsyncadd [#allocation12], %s92
      %s95 = sshll.u32 [#allocation13], 4
      %s96 = int_to_ptr.vmem [resolvable:$true] %s95
      %98 = dma.hbm_to_vmem [thread:$0]  %s6, 16, %s96, [#allocation12]
    $region29: #{tpu_custom_call.1} parent=1 // pred_fallthru
      _
    // Predicated region
    $region30: #{tpu_custom_call.1} parent=1 // pred_check
      _
    $region31: #{tpu_custom_call.1} parent=1 // pred_check_branch
      %100 = sbr.rel (0) target = $region33
    $region32: #{tpu_custom_call.1} parent=1 // pred_region
      _
    $region33: #{tpu_custom_call.1} parent=1 // pred_fallthru
      _
    // Predicated region
    $region34: #{tpu_custom_call.1} parent=1 // pred_check
      _
    $region35: #{tpu_custom_call.1} parent=1 // pred_check_branch
      %102 = sbr.rel (0) target = $region37
    $region36: #{tpu_custom_call.1} parent=1 // pred_region
      %s104 = ssub.s32 16, 16
      %105 = vsyncadd [#allocation15], %s104
      %s107 = sshll.u32 [#allocation14], 4
      %s108 = int_to_ptr.vmem [resolvable:$true] %s107
      %110 = dma.hbm_to_vmem [thread:$0]  %s8, 16, %s108, [#allocation15]
    $region37: #{tpu_custom_call.1} parent=1 // pred_fallthru
      _
    // Predicated region
    $region38: #{tpu_custom_call.1} parent=1 // pred_check
      _
    $region39: #{tpu_custom_call.1} parent=1 // pred_check_branch
      %112 = sbr.rel (0) target = $region41
    $region40: #{tpu_custom_call.1} parent=1 // pred_region
      %s114 = ssub.s32 512, 512
      %115 = vsyncadd [#allocation15], %s114
      %s116 = sshll.u32 [#allocation16], 4
      %s117 = int_to_ptr.vmem [resolvable:$true] %s116
      %122 = dma.hbm_to_vmem [thread:$0]  %s9, 512, %s117, [#allocation15], 128, 128, 8
    $region41: #{tpu_custom_call.1} parent=1 // pred_fallthru
      _
    // Predicated region
    $region42: #{tpu_custom_call.1} parent=1 // pred_check
      _
    $region43: #{tpu_custom_call.1} parent=1 // pred_check_branch
      %124 = sbr.rel (0) target = $region45
    $region44: #{tpu_custom_call.1} parent=1 // pred_region
      %s126 = ssub.s32 16, 16
      %127 = vsyncadd [#allocation18], %s126
      %s129 = sshll.u32 [#allocation17], 4
      %s130 = int_to_ptr.vmem [resolvable:$true] %s129
      %132 = dma.hbm_to_vmem [thread:$0]  %s10, 16, %s130, [#allocation18]
    $region45: #{tpu_custom_call.1} parent=1 // pred_fallthru
      _
    // Predicated region
    $region46: #{tpu_custom_call.1} parent=1 // pred_check
      _
    $region47: #{tpu_custom_call.1} parent=1 // pred_check_branch
      %134 = sbr.rel (0) target = $region49
    $region48: #{tpu_custom_call.1} parent=1 // pred_region
      %s136 = ssub.s32 16, 16
      %137 = vsyncadd [#allocation18], %s136
      %s139 = sshll.u32 [#allocation19], 4
      %s140 = int_to_ptr.vmem [resolvable:$true] %s139
      %142 = dma.hbm_to_vmem [thread:$0]  %s11, 16, %s140, [#allocation18]
    $region49: #{tpu_custom_call.1} parent=1 // pred_fallthru
      _
    // Predicated region
    $region50: #{tpu_custom_call.1} parent=1 // pred_check
      _
    $region51: #{tpu_custom_call.1} parent=1 // pred_check_branch
      %144 = sbr.rel (0) target = $region53
    $region52: #{tpu_custom_call.1} parent=1 // pred_region
      _
    $region53: #{tpu_custom_call.1} parent=1 // pred_fallthru
      _
    // Predicated region
    $region54: #{tpu_custom_call.1} parent=1 // pred_check
      _
    $region55: #{tpu_custom_call.1} parent=1 // pred_check_branch
      %146 = sbr.rel (0) target = $region57
    $region56: #{tpu_custom_call.1} parent=1 // pred_region
      %s148 = ssub.s32 512, 512
      %149 = vsyncadd [#allocation21], %s148
      %s150 = sshll.u32 [#allocation20], 4
      %s151 = int_to_ptr.vmem [resolvable:$true] %s150
      %156 = dma.hbm_to_vmem [thread:$0]  %s13, 512, %s151, [#allocation21], 128, 128, 8
    $region57: #{tpu_custom_call.1} parent=1 // pred_fallthru
      _
    // Predicated region
    $region58: #{tpu_custom_call.1} parent=1 // pred_check
      _
    $region59: #{tpu_custom_call.1} parent=1 // pred_check_branch
      %158 = sbr.rel (0) target = $region61
    $region60: #{tpu_custom_call.1} parent=1 // pred_region
      %s160 = ssub.s32 16, 16
      %161 = vsyncadd [#allocation21], %s160
      %s163 = sshll.u32 [#allocation22], 4
      %s164 = int_to_ptr.vmem [resolvable:$true] %s163
      %166 = dma.hbm_to_vmem [thread:$0]  %s14, 16, %s164, [#allocation21]
    $region61: #{tpu_custom_call.1} parent=1 // pred_fallthru
      _
    // Predicated region
    $region62: #{tpu_custom_call.1} parent=1 // pred_check
      _
    $region63: #{tpu_custom_call.1} parent=1 // pred_check_branch
      %168 = sbr.rel (0) target = $region65
    $region64: #{tpu_custom_call.1} parent=1 // pred_region
      %s170 = ssub.s32 16, 16
      %171 = vsyncadd [#allocation24], %s170
      %s173 = sshll.u32 [#allocation23], 4
      %s174 = int_to_ptr.vmem [resolvable:$true] %s173
      %176 = dma.hbm_to_vmem [thread:$0]  %s15, 16, %s174, [#allocation24]
    $region65: #{tpu_custom_call.1} parent=1 // pred_fallthru
      _
    // Predicated region
    $region66: #{tpu_custom_call.1} parent=1 // pred_check
      _
    $region67: #{tpu_custom_call.1} parent=1 // pred_check_branch
      %178 = sbr.rel (0) target = $region69
    $region68: #{tpu_custom_call.1} parent=1 // pred_region
      _
    $region69: #{tpu_custom_call.1} parent=1 // pred_fallthru
      _
    // Predicated region
    $region70: #{tpu_custom_call.1} parent=1 // pred_check
      _
    $region71: #{tpu_custom_call.1} parent=1 // pred_check_branch
      %180 = sbr.rel (0) target = $region73
    $region72: #{tpu_custom_call.1} parent=1 // pred_region
      _
    $region73: #{tpu_custom_call.1} parent=1 // pred_fallthru
      _
    // Predicated region
    $region74: #{tpu_custom_call.1} parent=1 // pred_check
      _
    $region75: #{tpu_custom_call.1} parent=1 // pred_check_branch
      %182 = sbr.rel (0) target = $region77
    $region76: #{tpu_custom_call.1} parent=1 // pred_region
      _
    $region77: #{tpu_custom_call.1} parent=1 // pred_fallthru
      _
    // Predicated region
    $region78: #{tpu_custom_call.1} parent=1 // pred_check
      _
    $region79: #{tpu_custom_call.1} parent=1 // pred_check_branch
      %184 = sbr.rel (0) target = $region81
    $region80: #{tpu_custom_call.1} parent=1 // pred_region
      _
    $region81: #{tpu_custom_call.1} parent=1 // pred_fallthru
      _
    // Predicated region
    $region82: #{tpu_custom_call.1} parent=1 // pred_check
      _
    $region83: #{tpu_custom_call.1} parent=1 // pred_check_branch
      %186 = sbr.rel (0) target = $region85
    $region84: #{tpu_custom_call.1} parent=1 // pred_region
      %s188 = ssub.s32 256, 256
      %189 = vsyncadd [#allocation24], %s188
      %s190 = sshll.u32 [#allocation25], 4
      %s191 = int_to_ptr.vmem [resolvable:$true] %s190
      %196 = dma.hbm_to_vmem [thread:$0]  %s20, 256, %s191, [#allocation24], 32, 32, 2
    $region85: #{tpu_custom_call.1} parent=1 // pred_fallthru
      _
    // Predicated region
    $region86: #{tpu_custom_call.1} parent=1 // pred_check
      _
    $region87: #{tpu_custom_call.1} parent=1 // pred_check_branch
      %198 = sbr.rel (0) target = $region89
    $region88: #{tpu_custom_call.1} parent=1 // pred_region
      %199 = dma.done [#allocation6], 32
    $region89: #{tpu_custom_call.1} parent=1 // pred_fallthru
      _
    // Predicated region
    $region90: #{tpu_custom_call.1} parent=1 // pred_check
      _
    $region91: #{tpu_custom_call.1} parent=1 // pred_check_branch
      %201 = sbr.rel (0) target = $region93
    $region92: #{tpu_custom_call.1} parent=1 // pred_region
      %202 = dma.done [#allocation9], 16
    $region93: #{tpu_custom_call.1} parent=1 // pred_fallthru
      _
    // Predicated region
    $region94: #{tpu_custom_call.1} parent=1 // pred_check
      _
    $region95: #{tpu_custom_call.1} parent=1 // pred_check_branch
      %204 = sbr.rel (0) target = $region97
    $region96: #{tpu_custom_call.1} parent=1 // pred_region
      %205 = dma.done [#allocation9], 512
    $region97: #{tpu_custom_call.1} parent=1 // pred_fallthru
      _
    // Predicated region
    $region98: #{tpu_custom_call.1} parent=1 // pred_check
      _
    $region99: #{tpu_custom_call.1} parent=1 // pred_check_branch
      %207 = sbr.rel (0) target = $region101
    $region100: #{tpu_custom_call.1} parent=1 // pred_region
      %208 = dma.done [#allocation12], 512
    $region101: #{tpu_custom_call.1} parent=1 // pred_fallthru
      _
    // Predicated region
    $region102: #{tpu_custom_call.1} parent=1 // pred_check
      _
    $region103: #{tpu_custom_call.1} parent=1 // pred_check_branch
      %210 = sbr.rel (0) target = $region105
    $region104: #{tpu_custom_call.1} parent=1 // pred_region
      %211 = dma.done [#allocation12], 16
    $region105: #{tpu_custom_call.1} parent=1 // pred_fallthru
      _
    // Predicated region
    $region106: #{tpu_custom_call.1} parent=1 // pred_check
      _
    $region107: #{tpu_custom_call.1} parent=1 // pred_check_branch
      %213 = sbr.rel (0) target = $region109
    $region108: #{tpu_custom_call.1} parent=1 // pred_region
      %214 = dma.done [#allocation15], 16
    $region109: #{tpu_custom_call.1} parent=1 // pred_fallthru
      _
    // Predicated region
    $region110: #{tpu_custom_call.1} parent=1 // pred_check
      _
    $region111: #{tpu_custom_call.1} parent=1 // pred_check_branch
      %216 = sbr.rel (0) target = $region113
    $region112: #{tpu_custom_call.1} parent=1 // pred_region
      %217 = dma.done [#allocation15], 512
    $region113: #{tpu_custom_call.1} parent=1 // pred_fallthru
      _
    // Predicated region
    $region114: #{tpu_custom_call.1} parent=1 // pred_check
      _
    $region115: #{tpu_custom_call.1} parent=1 // pred_check_branch
      %219 = sbr.rel (0) target = $region117
    $region116: #{tpu_custom_call.1} parent=1 // pred_region
      %220 = dma.done [#allocation18], 16
    $region117: #{tpu_custom_call.1} parent=1 // pred_fallthru
      _
    // Predicated region
    $region118: #{tpu_custom_call.1} parent=1 // pred_check
      _
    $region119: #{tpu_custom_call.1} parent=1 // pred_check_branch
      %222 = sbr.rel (0) target = $region121
    $region120: #{tpu_custom_call.1} parent=1 // pred_region
      %223 = dma.done [#allocation18], 16
    $region121: #{tpu_custom_call.1} parent=1 // pred_fallthru
      _
    // Predicated region
    $region122: #{tpu_custom_call.1} parent=1 // pred_check
      _
    $region123: #{tpu_custom_call.1} parent=1 // pred_check_branch
      %225 = sbr.rel (0) target = $region125
    $region124: #{tpu_custom_call.1} parent=1 // pred_region
      %226 = dma.done [#allocation21], 512
    $region125: #{tpu_custom_call.1} parent=1 // pred_fallthru
      _
    // Predicated region
    $region126: #{tpu_custom_call.1} parent=1 // pred_check
      _
    $region127: #{tpu_custom_call.1} parent=1 // pred_check_branch
      %228 = sbr.rel (0) target = $region129
    $region128: #{tpu_custom_call.1} parent=1 // pred_region
      %229 = dma.done [#allocation21], 16
    $region129: #{tpu_custom_call.1} parent=1 // pred_fallthru
      _
    // Predicated region
    $region130: #{tpu_custom_call.1} parent=1 // pred_check
      _
    $region131: #{tpu_custom_call.1} parent=1 // pred_check_branch
      %231 = sbr.rel (0) target = $region133
    $region132: #{tpu_custom_call.1} parent=1 // pred_region
      %232 = dma.done [#allocation24], 16
    $region133: #{tpu_custom_call.1} parent=1 // pred_fallthru
      _
    // Predicated region
    $region134: #{tpu_custom_call.1} parent=1 // pred_check
      _
    $region135: #{tpu_custom_call.1} parent=1 // pred_check_branch
      %234 = sbr.rel (0) target = $region137
    $region136: #{tpu_custom_call.1} parent=1 // pred_region
      %235 = dma.done [#allocation24], 256
    $region137: #{tpu_custom_call.1} parent=1 // pred_fallthru
      _
    %v236 = vld [vmem:[#allocation5] sm:$0x3]
    %v237 = vld [vmem:[#allocation8] sm:$0x1]
    %v238 = vld [vmem:[#allocation11] sm:$0xff]
    %v239 = vld [vmem:[#allocation11 + $0x8] sm:$0xff]
    %v240 = vld [vmem:[#allocation11 + $0x10] sm:$0xff]
    %v241 = vld [vmem:[#allocation11 + $0x18] sm:$0xff]
    %v242 = vld [vmem:[%s7] sm:$0xff]
    %v243 = vld [vmem:[%s7 + $0x8] sm:$0xff]
    %v244 = vld [vmem:[%s7 + $0x10] sm:$0xff]
    %v245 = vld [vmem:[%s7 + $0x18] sm:$0xff]
    %v246 = vld [vmem:[%s7 + $0x20] sm:$0xff]
    %v247 = vld [vmem:[%s7 + $0x28] sm:$0xff]
    %v248 = vld [vmem:[%s7 + $0x30] sm:$0xff]
    %v249 = vld [vmem:[%s7 + $0x38] sm:$0xff]
    %v250 = vld [vmem:[#allocation14] sm:$0x1]
    %v251 = vld [vmem:[#allocation16] sm:$0xff]
    %v252 = vld [vmem:[#allocation16 + $0x8] sm:$0xff]
    %v253 = vld [vmem:[#allocation16 + $0x10] sm:$0xff]
    %v254 = vld [vmem:[#allocation16 + $0x18] sm:$0xff]
    %v255 = vld [vmem:[#allocation17] sm:$0x1]
    %v256 = vld [vmem:[#allocation19] sm:$0x1]
    %v257 = vld [vmem:[#allocation3] sm:$0x1]
    %v258 = vld [vmem:[#allocation20] sm:$0xff]
    %v259 = vld [vmem:[#allocation20 + $0x8] sm:$0xff]
    %v260 = vld [vmem:[#allocation20 + $0x10] sm:$0xff]
    %v261 = vld [vmem:[#allocation20 + $0x18] sm:$0xff]
    %v262 = vld [vmem:[#allocation22] sm:$0x1]
    %v263 = vld [vmem:[#allocation23] sm:$0x1]
    %v264 = vld [vmem:[#allocation4] sm:$0x1]
    %v265 = vlaneseq
    %v266 = vand.u32 %v265, 127
    %vm267 = vcmp.ge.s32.totalorder %v266, 64
    %vm268 = vcmp.lt.s32.totalorder %v266, 96
    %vm269 = vmand %vm267, %vm268
    %v270 = vsel %vm269, 1.0, 0.5
    %v271 = vsel %vm269, 0.0, 0.5
    %v272 = vld [vmem:[%s0] sm:$0xff]
    %v273 = vld [vmem:[%s0 + $0x8] sm:$0xff]
    %v274 = vld [vmem:[%s1] sm:$0xff]
    %v275 = vld [vmem:[%s1 + $0x8] sm:$0xff]
    %277 = vset.pattern.permute.xlu0 0
    %278 = vperm.xlu0 %277, %v272
    %v279 = vpop.permute.xlu0 %278
    %282 = vset.pattern.permute.xlu0 0
    %283 = vperm.xlu0 %282, %v273
    %v284 = vpop.permute.xlu0 %283
    %v286 = vlaneseq
    %v287 = vshrl.u32 %v286, 7
    %v288 = vsub.s32 0, %v287
    %v289 = vrot.slane %v236, %v288
    %v290 = vmul.f32 %v279, %v289
    %v291 = vmul.f32 %v284, %v289
    %292 = vset.pattern.permute.xlu0 1
    %293 = vperm.xlu0 %292, %v272
    %v294 = vpop.permute.xlu0 %293
    %296 = vset.pattern.permute.xlu0 1
    %297 = vperm.xlu0 %296, %v273
    %v298 = vpop.permute.xlu0 %297
    %v300 = vlaneseq
    %v301 = vshrl.u32 %v300, 7
    %v302 = vsub.s32 1, %v301
    %v303 = vrot.slane %v236, %v302
    %v304 = vmul.f32 %v294, %v303
    %v305 = vmul.f32 %v298, %v303
    %v306 = vadd.f32 %v290, %v304
    %v307 = vadd.f32 %v291, %v305
    %v309 = vlaneseq
    %v310 = vshrl.u32 %v309, 7
    %v311 = vsub.s32 0, %v310
    %v312 = vrot.slane %v237, %v311
    %v314 = vadd.f32 %v306, %v312
    %v315 = vadd.f32 %v307, %v312
    %317 = vset.pattern.permute.xlu0 0
    %318 = vperm.xlu0 %317, %v274
    %v319 = vpop.permute.xlu0 %318
    %322 = vset.pattern.permute.xlu0 0
    %323 = vperm.xlu0 %322, %v275
    %v324 = vpop.permute.xlu0 %323
    %v326 = vmul.f32 %v319, %v289
    %v327 = vmul.f32 %v324, %v289
    %328 = vset.pattern.permute.xlu0 1
    %329 = vperm.xlu0 %328, %v274
    %v330 = vpop.permute.xlu0 %329
    %332 = vset.pattern.permute.xlu0 1
    %333 = vperm.xlu0 %332, %v275
    %v334 = vpop.permute.xlu0 %333
    %v336 = vmul.f32 %v330, %v303
    %v337 = vmul.f32 %v334, %v303
    %v338 = vadd.f32 %v326, %v336
    %v339 = vadd.f32 %v327, %v337
    %v340 = vadd.f32 %v338, %v312
    %v341 = vadd.f32 %v339, %v312
    %v342 = vld [vmem:[#allocation10] sm:$0xff]
    %v343 = vld [vmem:[#allocation10 + $0x8] sm:$0xff]
    %v344 = vld [vmem:[#allocation10 + $0x10] sm:$0xff]
    %v345 = vld [vmem:[#allocation10 + $0x18] sm:$0xff]
    %v346 = vld [vmem:[#allocation13] sm:$0x1]
    %v348 = vlaneseq
    %v349 = vshrl.u32 %v348, 7
    %v350 = vsub.s32 0, %v349
    %v351 = vrot.slane %v346, %v350
    %vm353 = vcmask 261120
    %v355 = vsel %vm353, %v314, 0
    %v358 = vsel %vm353, %v315, 0
    %360 = vmatprep.subr.mxu0 0.0
    %361 = vmatpush1.msra.mxu0 %v342
    %362 = vmatprep.subr.mxu0 0.0
    %363 = vmatpush1.msra.mxu0 %v343
    %364 = vmatprep.subr.mxu0 0.0
    %365 = vmatpush1.msra.mxu0 %v344
    %366 = vmatprep.subr.mxu0 0.0
    %367 = vmatpush1.msra.mxu0 %v345
    %368 = vmatprep.subr.mxu0 0.0
    %369 = vmatpush1.msra.mxu0 0.0
    %370 = vmatprep.subr.mxu0 0.0
    %371 = vmatpush1.msra.mxu0 0.0
    %372 = vmatprep.subr.mxu0 0.0
    %373 = vmatpush1.msra.mxu0 0.0
    %374 = vmatprep.subr.mxu0 0.0
    %375 = vmatpush1.msra.mxu0 0.0
    %376 = vmatprep.subr.mxu0 0.0
    %377 = vmatpush1.msra.mxu0 0.0
    %378 = vmatprep.subr.mxu0 0.0
    %379 = vmatpush1.msra.mxu0 0.0
    %380 = vmatprep.subr.mxu0 0.0
    %381 = vmatpush1.msra.mxu0 0.0
    %382 = vmatprep.subr.mxu0 0.0
    %383 = vmatpush1.msra.mxu0 0.0
    %384 = vmatprep.subr.mxu0 0.0
    %385 = vmatpush1.msra.mxu0 0.0
    %386 = vmatprep.subr.mxu0 0.0
    %387 = vmatpush1.msra.mxu0 0.0
    %388 = vmatprep.subr.mxu0 0.0
    %389 = vmatpush1.msra.mxu0 0.0
    %390 = vmatprep.subr.mxu0 0.0
    %391 = vmatpush1.msra.mxu0 0.0
    %392 = vmatprep.subr.mxu0 0.0
    %393 = vmatpush1.msra.mxu0 0.0
    %394 = vmatprep.subr.mxu0 0.0
    %395 = vmatpush1.msra.mxu0 0.0
    %396 = vmatprep.subr.mxu0 0.0
    %397 = vmatpush1.msra.mxu0 0.0
    %398 = vmatprep.subr.mxu0 0.0
    %399 = vmatpush1.msra.mxu0 0.0
    %400 = vmatprep.subr.mxu0 0.0
    %401 = vmatpush1.msra.mxu0 0.0
    %402 = vmatprep.subr.mxu0 0.0
    %403 = vmatpush1.msra.mxu0 0.0
    %404 = vmatprep.subr.mxu0 0.0
    %405 = vmatpush1.msra.mxu0 0.0
    %406 = vmatprep.subr.mxu0 0.0
    %407 = vmatpush1.msra.mxu0 0.0
    %408 = vmatprep.subr.mxu0 0.0
    %409 = vmatpush1.msra.mxu0 0.0
    %410 = vmatprep.subr.mxu0 0.0
    %411 = vmatpush1.msra.mxu0 0.0
    %412 = vmatprep.subr.mxu0 0.0
    %413 = vmatpush1.msra.mxu0 0.0
    %414 = vmatprep.subr.mxu0 0.0
    %415 = vmatpush1.msra.mxu0 0.0
    %416 = vmatprep.subr.mxu0 0.0
    %417 = vmatpush1.msra.mxu0 0.0
    %418 = vmatprep.subr.mxu0 0.0
    %419 = vmatpush1.msra.mxu0 0.0
    %420 = vmatprep.subr.mxu0 0.0
    %421 = vmatpush1.msra.mxu0 0.0
    %422 = vmatprep.subr.mxu0 0.0
    %423 = vmatpush1.msra.mxu0 0.0
    %424 = vmatprep.mubr.f32.mxu0 0.0
    %425 = vmatmul.mubr.f32.gmra.mrb[0].mxu0 %v355
    %v426 = vpop.f32.mrb[0].mxu0
    %v427 = vadd.f32 %v351, %v426
    %v428 = vpop.f32.mrb[0].mxu0
    %429 = vmatprep.mubr.f32.mxu0 0.0
    %430 = vmatmul.mubr.f32.gmra.mrb[0].mxu0 %v358
    %v431 = vpop.f32.mrb[0].mxu0
    %v432 = vadd.f32 %v351, %v431
    %v433 = vpop.f32.mrb[0].mxu0
    %434 = vdwg.mxu0
    %v436 = vsel %vm353, 0.0, 0
    %438 = vmatprep.subr.mxu0 0.0
    %439 = vmatpush1.msra.mxu0 %v238
    %440 = vmatprep.subr.mxu0 0.0
    %441 = vmatpush1.msra.mxu0 %v239
    %442 = vmatprep.subr.mxu0 0.0
    %443 = vmatpush1.msra.mxu0 %v240
    %444 = vmatprep.subr.mxu0 0.0
    %445 = vmatpush1.msra.mxu0 %v241
    %446 = vmatprep.subr.mxu0 0.0
    %447 = vmatpush1.msra.mxu0 0.0
    %448 = vmatprep.subr.mxu0 0.0
    %449 = vmatpush1.msra.mxu0 0.0
    %450 = vmatprep.subr.mxu0 0.0
    %451 = vmatpush1.msra.mxu0 0.0
    %452 = vmatprep.subr.mxu0 0.0
    %453 = vmatpush1.msra.mxu0 0.0
    %454 = vmatprep.subr.mxu0 0.0
    %455 = vmatpush1.msra.mxu0 0.0
    %456 = vmatprep.subr.mxu0 0.0
    %457 = vmatpush1.msra.mxu0 0.0
    %458 = vmatprep.subr.mxu0 0.0
    %459 = vmatpush1.msra.mxu0 0.0
    %460 = vmatprep.subr.mxu0 0.0
    %461 = vmatpush1.msra.mxu0 0.0
    %462 = vmatprep.subr.mxu0 0.0
    %463 = vmatpush1.msra.mxu0 0.0
    %464 = vmatprep.subr.mxu0 0.0
    %465 = vmatpush1.msra.mxu0 0.0
    %466 = vmatprep.subr.mxu0 0.0
    %467 = vmatpush1.msra.mxu0 0.0
    %468 = vmatprep.subr.mxu0 0.0
    %469 = vmatpush1.msra.mxu0 0.0
    %470 = vmatprep.subr.mxu0 0.0
    %471 = vmatpush1.msra.mxu0 0.0
    %472 = vmatprep.subr.mxu0 0.0
    %473 = vmatpush1.msra.mxu0 0.0
    %474 = vmatprep.subr.mxu0 0.0
    %475 = vmatpush1.msra.mxu0 0.0
    %476 = vmatprep.subr.mxu0 0.0
    %477 = vmatpush1.msra.mxu0 0.0
    %478 = vmatprep.subr.mxu0 0.0
    %479 = vmatpush1.msra.mxu0 0.0
    %480 = vmatprep.subr.mxu0 0.0
    %481 = vmatpush1.msra.mxu0 0.0
    %482 = vmatprep.subr.mxu0 0.0
    %483 = vmatpush1.msra.mxu0 0.0
    %484 = vmatprep.subr.mxu0 0.0
    %485 = vmatpush1.msra.mxu0 0.0
    %486 = vmatprep.subr.mxu0 0.0
    %487 = vmatpush1.msra.mxu0 0.0
    %488 = vmatprep.subr.mxu0 0.0
    %489 = vmatpush1.msra.mxu0 0.0
    %490 = vmatprep.subr.mxu0 0.0
    %491 = vmatpush1.msra.mxu0 0.0
    %492 = vmatprep.subr.mxu0 0.0
    %493 = vmatpush1.msra.mxu0 0.0
    %494 = vmatprep.subr.mxu0 0.0
    %495 = vmatpush1.msra.mxu0 0.0
    %496 = vmatprep.subr.mxu0 0.0
    %497 = vmatpush1.msra.mxu0 0.0
    %498 = vmatprep.subr.mxu0 0.0
    %499 = vmatpush1.msra.mxu0 0.0
    %500 = vmatprep.subr.mxu0 0.0
    %501 = vmatpush1.msra.mxu0 0.0
    %502 = vmatprep.mubr.f32.mxu0 0.0
    %503 = vmatmul.mubr.f32.gmra.mrb[0].mxu0 %v436
    %v504 = vpop.f32.mrb[0].mxu0
    %v505 = vadd.f32 0.0, %v504
    %v506 = vpop.f32.mrb[0].mxu0
    %507 = vdwg.mxu0
    %v508 = vadd.f32 %v427, %v505
    %v509 = vmul.f32 %v508, %v270
    %v510 = vtanh.pop %v509
    %v511 = vmul.f32 %v510, %v270
    %v512 = vadd.f32 %v511, %v271
    %v513 = vmul.f32 %v512, 0.0
    %515 = vrot.lane.b32.xlu0 %v512, 64
    %v516 = vpop.permute.xlu0 %515
    %v518 = vmul.f32 %v512, %v516
    %520 = vrot.lane.b32.xlu0 %v518, 32
    %v521 = vpop.permute.xlu0 %520
    %v523 = vadd.f32 %v513, %v521
    %v524 = vtanh.pop %v523
    %526 = vrot.lane.b32.xlu0 %v524, 64
    %v527 = vpop.permute.xlu0 %526
    %v529 = vmul.f32 %v512, %v527
    %v532 = vunpack.c.l.s4 1966171168
    %v533 = vunpack.c.0.s8 %v532
    %v534 = vlaneseq
    %v535 = vshrl.u32 %v534, 7
    %v536 = vsub.s32 %v533, %v535
    %v537 = vrot.slane %v529, %v536
    %v538 = vcombine.high %v537, %v537
    %v540 = vunpack.c.l.s4 1966171168
    %v541 = vunpack.c.0.s8 %v540
    %v542 = vlaneseq
    %v543 = vshrl.u32 %v542, 7
    %v544 = vsub.s32 %v541, %v543
    %v545 = vrot.slane %v537, %v544
    %v547 = vunpack.c.l.s4 1966171168
    %v548 = vunpack.c.0.s8 %v547
    %v549 = vlaneseq
    %v550 = vshrl.u32 %v549, 7
    %v551 = vsub.s32 %v548, %v550
    %v552 = vrot.slane %v538, %v551
    %v553 = vlaneseq
    %v554 = vshrl.u32 %v553, 7
    %v555 = vsub.s32 0, %v554
    %v556 = vrot.slane %v545, %v555
    %v557 = vlaneseq
    %v558 = vshrl.u32 %v557, 7
    %v559 = vsub.s32 0, %v558
    %v560 = vrot.slane %v552, %v559
    %561 = vrot.lane.b32.xlu0 %v556, 32
    %v562 = vpop.permute.xlu0 %561
    %563 = vrot.lane.b32.xlu0 %v560, 32
    %v564 = vpop.permute.xlu0 %563
    %vm567 = vcmask 253952
    %568 = vst.msk [vmem:[#allocation2] sm:$0x1] %vm567, %v562
    %569 = vst.msk [vmem:[#allocation2 + $0x8] sm:$0x1] %vm567, %v564
    %570 = vrot.lane.b32.xlu0 %v529, 32
    %v571 = vpop.permute.xlu0 %570
    %v572 = vsel %vm353, %v571, 0
    %574 = vmatprep.subr.mxu0 0.0
    %575 = vmatpush1.msra.mxu0 %v238
    %576 = vmatprep.subr.mxu0 0.0
    %577 = vmatpush1.msra.mxu0 %v239
    %578 = vmatprep.subr.mxu0 0.0
    %579 = vmatpush1.msra.mxu0 %v240
    %580 = vmatprep.subr.mxu0 0.0
    %581 = vmatpush1.msra.mxu0 %v241
    %582 = vmatprep.subr.mxu0 0.0
    %583 = vmatpush1.msra.mxu0 0.0
    %584 = vmatprep.subr.mxu0 0.0
    %585 = vmatpush1.msra.mxu0 0.0
    %586 = vmatprep.subr.mxu0 0.0
    %587 = vmatpush1.msra.mxu0 0.0
    %588 = vmatprep.subr.mxu0 0.0
    %589 = vmatpush1.msra.mxu0 0.0
    %590 = vmatprep.subr.mxu0 0.0
    %591 = vmatpush1.msra.mxu0 0.0
    %592 = vmatprep.subr.mxu0 0.0
    %593 = vmatpush1.msra.mxu0 0.0
    %594 = vmatprep.subr.mxu0 0.0
    %595 = vmatpush1.msra.mxu0 0.0
    %596 = vmatprep.subr.mxu0 0.0
    %597 = vmatpush1.msra.mxu0 0.0
    %598 = vmatprep.subr.mxu0 0.0
    %599 = vmatpush1.msra.mxu0 0.0
    %600 = vmatprep.subr.mxu0 0.0
    %601 = vmatpush1.msra.mxu0 0.0
    %602 = vmatprep.subr.mxu0 0.0
    %603 = vmatpush1.msra.mxu0 0.0
    %604 = vmatprep.subr.mxu0 0.0
    %605 = vmatpush1.msra.mxu0 0.0
    %606 = vmatprep.subr.mxu0 0.0
    %607 = vmatpush1.msra.mxu0 0.0
    %608 = vmatprep.subr.mxu0 0.0
    %609 = vmatpush1.msra.mxu0 0.0
    %610 = vmatprep.subr.mxu0 0.0
    %611 = vmatpush1.msra.mxu0 0.0
    %612 = vmatprep.subr.mxu0 0.0
    %613 = vmatpush1.msra.mxu0 0.0
    %614 = vmatprep.subr.mxu0 0.0
    %615 = vmatpush1.msra.mxu0 0.0
    %616 = vmatprep.subr.mxu0 0.0
    %617 = vmatpush1.msra.mxu0 0.0
    %618 = vmatprep.subr.mxu0 0.0
    %619 = vmatpush1.msra.mxu0 0.0
    %620 = vmatprep.subr.mxu0 0.0
    %621 = vmatpush1.msra.mxu0 0.0
    %622 = vmatprep.subr.mxu0 0.0
    %623 = vmatpush1.msra.mxu0 0.0
    %624 = vmatprep.subr.mxu0 0.0
    %625 = vmatpush1.msra.mxu0 0.0
    %626 = vmatprep.subr.mxu0 0.0
    %627 = vmatpush1.msra.mxu0 0.0
    %628 = vmatprep.subr.mxu0 0.0
    %629 = vmatpush1.msra.mxu0 0.0
    %630 = vmatprep.subr.mxu0 0.0
    %631 = vmatpush1.msra.mxu0 0.0
    %632 = vmatprep.subr.mxu0 0.0
    %633 = vmatpush1.msra.mxu0 0.0
    %634 = vmatprep.subr.mxu0 0.0
    %635 = vmatpush1.msra.mxu0 0.0
    %636 = vmatprep.subr.mxu0 0.0
    %637 = vmatpush1.msra.mxu0 0.0
    %638 = vmatprep.mubr.f32.mxu0 0.0
    %639 = vmatmul.mubr.f32.gmra.mrb[0].mxu0 %v572
    %v640 = vpop.f32.mrb[0].mxu0
    %v641 = vadd.f32 0.0, %v640
    %v642 = vpop.f32.mrb[0].mxu0
    %643 = vdwg.mxu0
    %v645 = vrot.slane %v641, 6
    %v647 = vadd.f32 %v427, %v645
    %v648 = vmul.f32 %v647, %v270
    %v649 = vtanh.pop %v648
    %v650 = vmul.f32 %v649, %v270
    %v651 = vadd.f32 %v650, %v271
    %v653 = vrot.slane %v523, 6
    %v655 = vmul.f32 %v651, %v653
    %657 = vrot.lane.b32.xlu0 %v651, 64
    %v658 = vpop.permute.xlu0 %657
    %v660 = vmul.f32 %v651, %v658
    %662 = vrot.lane.b32.xlu0 %v660, 32
    %v663 = vpop.permute.xlu0 %662
    %v665 = vadd.f32 %v655, %v663
    %v666 = vtanh.pop %v665
    %668 = vrot.lane.b32.xlu0 %v666, 64
    %v669 = vpop.permute.xlu0 %668
    %v671 = vmul.f32 %v651, %v669
    %v674 = vunpack.c.l.s4 1966171168
    %v675 = vunpack.c.0.s8 %v674
    %v676 = vlaneseq
    %v677 = vshrl.u32 %v676, 7
    %v678 = vsub.s32 %v675, %v677
    %v679 = vrot.slane %v671, %v678
    %v680 = vcombine.high %v679, %v679
    %v682 = vunpack.c.l.s4 1966171168
    %v683 = vunpack.c.0.s8 %v682
    %v684 = vlaneseq
    %v685 = vshrl.u32 %v684, 7
    %v686 = vsub.s32 %v683, %v685
    %v687 = vrot.slane %v679, %v686
    %v689 = vunpack.c.l.s4 1966171168
    %v690 = vunpack.c.0.s8 %v689
    %v691 = vlaneseq
    %v692 = vshrl.u32 %v691, 7
    %v693 = vsub.s32 %v690, %v692
    %v694 = vrot.slane %v680, %v693
    %v695 = vcombine.high %v687, %v687
    %v696 = vcombine.high %v694, %v694
    %v697 = vlaneseq
    %v698 = vshrl.u32 %v697, 7
    %v699 = vsub.s32 0, %v698
    %v700 = vrot.slane %v695, %v699
    %v701 = vlaneseq
    %v702 = vshrl.u32 %v701, 7
    %v703 = vsub.s32 0, %v702
    %v704 = vrot.slane %v696, %v703
    %705 = vrot.lane.b32.xlu0 %v700, 32
    %v706 = vpop.permute.xlu0 %705
    %707 = vrot.lane.b32.xlu0 %v704, 32
    %v708 = vpop.permute.xlu0 %707
    %711 = vst.msk [vmem:[#allocation2 + $0x1] sm:$0x1] %vm567, %v706
    %712 = vst.msk [vmem:[#allocation2 + $0x9] sm:$0x1] %vm567, %v708
    %v713 = vrot.slane %v671, 2
    %714 = vrot.lane.b32.xlu0 %v713, 32
    %v715 = vpop.permute.xlu0 %714
    %v716 = vsel %vm353, %v715, 0
    %718 = vmatprep.subr.mxu0 0.0
    %719 = vmatpush1.msra.mxu0 %v238
    %720 = vmatprep.subr.mxu0 0.0
    %721 = vmatpush1.msra.mxu0 %v239
    %722 = vmatprep.subr.mxu0 0.0
    %723 = vmatpush1.msra.mxu0 %v240
    %724 = vmatprep.subr.mxu0 0.0
    %725 = vmatpush1.msra.mxu0 %v241
    %726 = vmatprep.subr.mxu0 0.0
    %727 = vmatpush1.msra.mxu0 0.0
    %728 = vmatprep.subr.mxu0 0.0
    %729 = vmatpush1.msra.mxu0 0.0
    %730 = vmatprep.subr.mxu0 0.0
    %731 = vmatpush1.msra.mxu0 0.0
    %732 = vmatprep.subr.mxu0 0.0
    %733 = vmatpush1.msra.mxu0 0.0
    %734 = vmatprep.subr.mxu0 0.0
    %735 = vmatpush1.msra.mxu0 0.0
    %736 = vmatprep.subr.mxu0 0.0
    %737 = vmatpush1.msra.mxu0 0.0
    %738 = vmatprep.subr.mxu0 0.0
    %739 = vmatpush1.msra.mxu0 0.0
    %740 = vmatprep.subr.mxu0 0.0
    %741 = vmatpush1.msra.mxu0 0.0
    %742 = vmatprep.subr.mxu0 0.0
    %743 = vmatpush1.msra.mxu0 0.0
    %744 = vmatprep.subr.mxu0 0.0
    %745 = vmatpush1.msra.mxu0 0.0
    %746 = vmatprep.subr.mxu0 0.0
    %747 = vmatpush1.msra.mxu0 0.0
    %748 = vmatprep.subr.mxu0 0.0
    %749 = vmatpush1.msra.mxu0 0.0
    %750 = vmatprep.subr.mxu0 0.0
    %751 = vmatpush1.msra.mxu0 0.0
    %752 = vmatprep.subr.mxu0 0.0
    %753 = vmatpush1.msra.mxu0 0.0
    %754 = vmatprep.subr.mxu0 0.0
    %755 = vmatpush1.msra.mxu0 0.0
    %756 = vmatprep.subr.mxu0 0.0
    %757 = vmatpush1.msra.mxu0 0.0
    %758 = vmatprep.subr.mxu0 0.0
    %759 = vmatpush1.msra.mxu0 0.0
    %760 = vmatprep.subr.mxu0 0.0
    %761 = vmatpush1.msra.mxu0 0.0
    %762 = vmatprep.subr.mxu0 0.0
    %763 = vmatpush1.msra.mxu0 0.0
    %764 = vmatprep.subr.mxu0 0.0
    %765 = vmatpush1.msra.mxu0 0.0
    %766 = vmatprep.subr.mxu0 0.0
    %767 = vmatpush1.msra.mxu0 0.0
    %768 = vmatprep.subr.mxu0 0.0
    %769 = vmatpush1.msra.mxu0 0.0
    %770 = vmatprep.subr.mxu0 0.0
    %771 = vmatpush1.msra.mxu0 0.0
    %772 = vmatprep.subr.mxu0 0.0
    %773 = vmatpush1.msra.mxu0 0.0
    %774 = vmatprep.subr.mxu0 0.0
    %775 = vmatpush1.msra.mxu0 0.0
    %776 = vmatprep.subr.mxu0 0.0
    %777 = vmatpush1.msra.mxu0 0.0
    %778 = vmatprep.subr.mxu0 0.0
    %779 = vmatpush1.msra.mxu0 0.0
    %780 = vmatprep.subr.mxu0 0.0
    %781 = vmatpush1.msra.mxu0 0.0
    %782 = vmatprep.mubr.f32.mxu0 0.0
    %783 = vmatmul.mubr.f32.gmra.mrb[0].mxu0 %v716
    %v784 = vpop.f32.mrb[0].mxu0
    %v785 = vadd.f32 0.0, %v784
    %v786 = vpop.f32.mrb[0].mxu0
    %787 = vdwg.mxu0
    %v789 = vrot.slane %v785, 4
    %v791 = vadd.f32 %v427, %v789
    %v792 = vmul.f32 %v791, %v270
    %v793 = vtanh.pop %v792
    %v794 = vmul.f32 %v793, %v270
    %v795 = vadd.f32 %v794, %v271
    %v797 = vrot.slane %v665, 6
    %v799 = vmul.f32 %v795, %v797
    %801 = vrot.lane.b32.xlu0 %v795, 64
    %v802 = vpop.permute.xlu0 %801
    %v804 = vmul.f32 %v795, %v802
    %806 = vrot.lane.b32.xlu0 %v804, 32
    %v807 = vpop.permute.xlu0 %806
    %v809 = vadd.f32 %v799, %v807
    %v810 = vtanh.pop %v809
    %812 = vrot.lane.b32.xlu0 %v810, 64
    %v813 = vpop.permute.xlu0 %812
    %v815 = vmul.f32 %v795, %v813
    %v817 = vcombine.high %v815, %v815
    %v819 = vunpack.c.l.s4 1966171168
    %v820 = vunpack.c.0.s8 %v819
    %v821 = vlaneseq
    %v822 = vshrl.u32 %v821, 7
    %v823 = vsub.s32 %v820, %v822
    %v824 = vrot.slane %v817, %v823
    %v825 = vcombine.high %v824, %v824
    %v827 = vunpack.c.l.s4 1966171168
    %v828 = vunpack.c.0.s8 %v827
    %v829 = vlaneseq
    %v830 = vshrl.u32 %v829, 7
    %v831 = vsub.s32 %v828, %v830
    %v832 = vrot.slane %v824, %v831
    %v834 = vunpack.c.l.s4 1966171168
    %v835 = vunpack.c.0.s8 %v834
    %v836 = vlaneseq
    %v837 = vshrl.u32 %v836, 7
    %v838 = vsub.s32 %v835, %v837
    %v839 = vrot.slane %v825, %v838
    %v840 = vlaneseq
    %v841 = vshrl.u32 %v840, 7
    %v842 = vsub.s32 0, %v841
    %v843 = vrot.slane %v832, %v842
    %v844 = vlaneseq
    %v845 = vshrl.u32 %v844, 7
    %v846 = vsub.s32 0, %v845
    %v847 = vrot.slane %v839, %v846
    %848 = vrot.lane.b32.xlu0 %v843, 32
    %v849 = vpop.permute.xlu0 %848
    %850 = vrot.lane.b32.xlu0 %v847, 32
    %v851 = vpop.permute.xlu0 %850
    %854 = vst.msk [vmem:[#allocation2 + $0x2] sm:$0x1] %vm567, %v849
    %855 = vst.msk [vmem:[#allocation2 + $0xa] sm:$0x1] %vm567, %v851
    %v856 = vrot.slane %v815, 4
    %857 = vrot.lane.b32.xlu0 %v856, 32
    %v858 = vpop.permute.xlu0 %857
    %v859 = vsel %vm353, %v858, 0
    %861 = vmatprep.subr.mxu0 0.0
    %862 = vmatpush1.msra.mxu0 %v238
    %863 = vmatprep.subr.mxu0 0.0
    %864 = vmatpush1.msra.mxu0 %v239
    %865 = vmatprep.subr.mxu0 0.0
    %866 = vmatpush1.msra.mxu0 %v240
    %867 = vmatprep.subr.mxu0 0.0
    %868 = vmatpush1.msra.mxu0 %v241
    %869 = vmatprep.subr.mxu0 0.0
    %870 = vmatpush1.msra.mxu0 0.0
    %871 = vmatprep.subr.mxu0 0.0
    %872 = vmatpush1.msra.mxu0 0.0
    %873 = vmatprep.subr.mxu0 0.0
    %874 = vmatpush1.msra.mxu0 0.0
    %875 = vmatprep.subr.mxu0 0.0
    %876 = vmatpush1.msra.mxu0 0.0
    %877 = vmatprep.subr.mxu0 0.0
    %878 = vmatpush1.msra.mxu0 0.0
    %879 = vmatprep.subr.mxu0 0.0
    %880 = vmatpush1.msra.mxu0 0.0
    %881 = vmatprep.subr.mxu0 0.0
    %882 = vmatpush1.msra.mxu0 0.0
    %883 = vmatprep.subr.mxu0 0.0
    %884 = vmatpush1.msra.mxu0 0.0
    %885 = vmatprep.subr.mxu0 0.0
    %886 = vmatpush1.msra.mxu0 0.0
    %887 = vmatprep.subr.mxu0 0.0
    %888 = vmatpush1.msra.mxu0 0.0
    %889 = vmatprep.subr.mxu0 0.0
    %890 = vmatpush1.msra.mxu0 0.0
    %891 = vmatprep.subr.mxu0 0.0
    %892 = vmatpush1.msra.mxu0 0.0
    %893 = vmatprep.subr.mxu0 0.0
    %894 = vmatpush1.msra.mxu0 0.0
    %895 = vmatprep.subr.mxu0 0.0
    %896 = vmatpush1.msra.mxu0 0.0
    %897 = vmatprep.subr.mxu0 0.0
    %898 = vmatpush1.msra.mxu0 0.0
    %899 = vmatprep.subr.mxu0 0.0
    %900 = vmatpush1.msra.mxu0 0.0
    %901 = vmatprep.subr.mxu0 0.0
    %902 = vmatpush1.msra.mxu0 0.0
    %903 = vmatprep.subr.mxu0 0.0
    %904 = vmatpush1.msra.mxu0 0.0
    %905 = vmatprep.subr.mxu0 0.0
    %906 = vmatpush1.msra.mxu0 0.0
    %907 = vmatprep.subr.mxu0 0.0
    %908 = vmatpush1.msra.mxu0 0.0
    %909 = vmatprep.subr.mxu0 0.0
    %910 = vmatpush1.msra.mxu0 0.0
    %911 = vmatprep.subr.mxu0 0.0
    %912 = vmatpush1.msra.mxu0 0.0
    %913 = vmatprep.subr.mxu0 0.0
    %914 = vmatpush1.msra.mxu0 0.0
    %915 = vmatprep.subr.mxu0 0.0
    %916 = vmatpush1.msra.mxu0 0.0
    %917 = vmatprep.subr.mxu0 0.0
    %918 = vmatpush1.msra.mxu0 0.0
    %919 = vmatprep.subr.mxu0 0.0
    %920 = vmatpush1.msra.mxu0 0.0
    %921 = vmatprep.subr.mxu0 0.0
    %922 = vmatpush1.msra.mxu0 0.0
    %923 = vmatprep.subr.mxu0 0.0
    %924 = vmatpush1.msra.mxu0 0.0
    %925 = vmatprep.mubr.f32.mxu0 0.0
    %926 = vmatmul.mubr.f32.gmra.mrb[0].mxu0 %v859
    %v927 = vpop.f32.mrb[0].mxu0
    %v928 = vadd.f32 0.0, %v927
    %v929 = vpop.f32.mrb[0].mxu0
    %930 = vdwg.mxu0
    %v932 = vrot.slane %v928, 2
    %v934 = vadd.f32 %v427, %v932
    %v935 = vmul.f32 %v934, %v270
    %v936 = vtanh.pop %v935
    %v937 = vmul.f32 %v936, %v270
    %v938 = vadd.f32 %v937, %v271
    %v940 = vrot.slane %v809, 6
    %v942 = vmul.f32 %v938, %v940
    %944 = vrot.lane.b32.xlu0 %v938, 64
    %v945 = vpop.permute.xlu0 %944
    %v947 = vmul.f32 %v938, %v945
    %949 = vrot.lane.b32.xlu0 %v947, 32
    %v950 = vpop.permute.xlu0 %949
    %v952 = vadd.f32 %v942, %v950
    %v953 = vtanh.pop %v952
    %955 = vrot.lane.b32.xlu0 %v953, 64
    %v956 = vpop.permute.xlu0 %955
    %v958 = vmul.f32 %v938, %v956
    %v960 = vcombine.high %v958, %v958
    %v962 = vunpack.c.l.s4 1966171168
    %v963 = vunpack.c.0.s8 %v962
    %v964 = vlaneseq
    %v965 = vshrl.u32 %v964, 7
    %v966 = vsub.s32 %v963, %v965
    %v967 = vrot.slane %v960, %v966
    %v968 = vcombine.high %v967, %v967
    %v970 = vunpack.c.l.s4 1966171168
    %v971 = vunpack.c.0.s8 %v970
    %v972 = vlaneseq
    %v973 = vshrl.u32 %v972, 7
    %v974 = vsub.s32 %v971, %v973
    %v975 = vrot.slane %v967, %v974
    %v977 = vunpack.c.l.s4 1966171168
    %v978 = vunpack.c.0.s8 %v977
    %v979 = vlaneseq
    %v980 = vshrl.u32 %v979, 7
    %v981 = vsub.s32 %v978, %v980
    %v982 = vrot.slane %v968, %v981
    %v983 = vcombine.high %v975, %v975
    %v984 = vcombine.high %v982, %v982
    %v985 = vlaneseq
    %v986 = vshrl.u32 %v985, 7
    %v987 = vsub.s32 0, %v986
    %v988 = vrot.slane %v983, %v987
    %v989 = vlaneseq
    %v990 = vshrl.u32 %v989, 7
    %v991 = vsub.s32 0, %v990
    %v992 = vrot.slane %v984, %v991
    %993 = vrot.lane.b32.xlu0 %v988, 32
    %v994 = vpop.permute.xlu0 %993
    %995 = vrot.lane.b32.xlu0 %v992, 32
    %v996 = vpop.permute.xlu0 %995
    %999 = vst.msk [vmem:[#allocation2 + $0x3] sm:$0x1] %vm567, %v994
    %1000 = vst.msk [vmem:[#allocation2 + $0xb] sm:$0x1] %vm567, %v996
    %v1001 = vrot.slane %v958, 6
    %1002 = vrot.lane.b32.xlu0 %v1001, 32
    %v1003 = vpop.permute.xlu0 %1002
    %v1004 = vsel %vm353, %v1003, 0
    %1006 = vmatprep.subr.mxu0 0.0
    %1007 = vmatpush1.msra.mxu0 %v238
    %1008 = vmatprep.subr.mxu0 0.0
    %1009 = vmatpush1.msra.mxu0 %v239
    %1010 = vmatprep.subr.mxu0 0.0
    %1011 = vmatpush1.msra.mxu0 %v240
    %1012 = vmatprep.subr.mxu0 0.0
    %1013 = vmatpush1.msra.mxu0 %v241
    %1014 = vmatprep.subr.mxu0 0.0
    %1015 = vmatpush1.msra.mxu0 0.0
    %1016 = vmatprep.subr.mxu0 0.0
    %1017 = vmatpush1.msra.mxu0 0.0
    %1018 = vmatprep.subr.mxu0 0.0
    %1019 = vmatpush1.msra.mxu0 0.0
    %1020 = vmatprep.subr.mxu0 0.0
    %1021 = vmatpush1.msra.mxu0 0.0
    %1022 = vmatprep.subr.mxu0 0.0
    %1023 = vmatpush1.msra.mxu0 0.0
    %1024 = vmatprep.subr.mxu0 0.0
    %1025 = vmatpush1.msra.mxu0 0.0
    %1026 = vmatprep.subr.mxu0 0.0
    %1027 = vmatpush1.msra.mxu0 0.0
    %1028 = vmatprep.subr.mxu0 0.0
    %1029 = vmatpush1.msra.mxu0 0.0
    %1030 = vmatprep.subr.mxu0 0.0
    %1031 = vmatpush1.msra.mxu0 0.0
    %1032 = vmatprep.subr.mxu0 0.0
    %1033 = vmatpush1.msra.mxu0 0.0
    %1034 = vmatprep.subr.mxu0 0.0
    %1035 = vmatpush1.msra.mxu0 0.0
    %1036 = vmatprep.subr.mxu0 0.0
    %1037 = vmatpush1.msra.mxu0 0.0
    %1038 = vmatprep.subr.mxu0 0.0
    %1039 = vmatpush1.msra.mxu0 0.0
    %1040 = vmatprep.subr.mxu0 0.0
    %1041 = vmatpush1.msra.mxu0 0.0
    %1042 = vmatprep.subr.mxu0 0.0
    %1043 = vmatpush1.msra.mxu0 0.0
    %1044 = vmatprep.subr.mxu0 0.0
    %1045 = vmatpush1.msra.mxu0 0.0
    %1046 = vmatprep.subr.mxu0 0.0
    %1047 = vmatpush1.msra.mxu0 0.0
    %1048 = vmatprep.subr.mxu0 0.0
    %1049 = vmatpush1.msra.mxu0 0.0
    %1050 = vmatprep.subr.mxu0 0.0
    %1051 = vmatpush1.msra.mxu0 0.0
    %1052 = vmatprep.subr.mxu0 0.0
    %1053 = vmatpush1.msra.mxu0 0.0
    %1054 = vmatprep.subr.mxu0 0.0
    %1055 = vmatpush1.msra.mxu0 0.0
    %1056 = vmatprep.subr.mxu0 0.0
    %1057 = vmatpush1.msra.mxu0 0.0
    %1058 = vmatprep.subr.mxu0 0.0
    %1059 = vmatpush1.msra.mxu0 0.0
    %1060 = vmatprep.subr.mxu0 0.0
    %1061 = vmatpush1.msra.mxu0 0.0
    %1062 = vmatprep.subr.mxu0 0.0
    %1063 = vmatpush1.msra.mxu0 0.0
    %1064 = vmatprep.subr.mxu0 0.0
    %1065 = vmatpush1.msra.mxu0 0.0
    %1066 = vmatprep.subr.mxu0 0.0
    %1067 = vmatpush1.msra.mxu0 0.0
    %1068 = vmatprep.subr.mxu0 0.0
    %1069 = vmatpush1.msra.mxu0 0.0
    %1070 = vmatprep.mubr.f32.mxu0 0.0
    %1071 = vmatmul.mubr.f32.gmra.mrb[0].mxu0 %v1004
    %v1072 = vpop.f32.mrb[0].mxu0
    %v1073 = vadd.f32 0.0, %v1072
    %v1074 = vpop.f32.mrb[0].mxu0
    %1075 = vdwg.mxu0
    %v1076 = vadd.f32 %v432, %v1073
    %v1077 = vmul.f32 %v1076, %v270
    %v1078 = vtanh.pop %v1077
    %v1079 = vmul.f32 %v1078, %v270
    %v1080 = vadd.f32 %v1079, %v271
    %v1082 = vrot.slane %v952, 6
    %v1084 = vmul.f32 %v1080, %v1082
    %1086 = vrot.lane.b32.xlu0 %v1080, 64
    %v1087 = vpop.permute.xlu0 %1086
    %v1089 = vmul.f32 %v1080, %v1087
    %1091 = vrot.lane.b32.xlu0 %v1089, 32
    %v1092 = vpop.permute.xlu0 %1091
    %v1094 = vadd.f32 %v1084, %v1092
    %v1095 = vtanh.pop %v1094
    %1097 = vrot.lane.b32.xlu0 %v1095, 64
    %v1098 = vpop.permute.xlu0 %1097
    %v1100 = vmul.f32 %v1080, %v1098
    %v1103 = vunpack.c.l.s4 1966171168
    %v1104 = vunpack.c.0.s8 %v1103
    %v1105 = vlaneseq
    %v1106 = vshrl.u32 %v1105, 7
    %v1107 = vsub.s32 %v1104, %v1106
    %v1108 = vrot.slane %v1100, %v1107
    %v1109 = vcombine.high %v1108, %v1108
    %v1111 = vunpack.c.l.s4 1966171168
    %v1112 = vunpack.c.0.s8 %v1111
    %v1113 = vlaneseq
    %v1114 = vshrl.u32 %v1113, 7
    %v1115 = vsub.s32 %v1112, %v1114
    %v1116 = vrot.slane %v1108, %v1115
    %v1118 = vunpack.c.l.s4 1966171168
    %v1119 = vunpack.c.0.s8 %v1118
    %v1120 = vlaneseq
    %v1121 = vshrl.u32 %v1120, 7
    %v1122 = vsub.s32 %v1119, %v1121
    %v1123 = vrot.slane %v1109, %v1122
    %v1124 = vlaneseq
    %v1125 = vshrl.u32 %v1124, 7
    %v1126 = vsub.s32 0, %v1125
    %v1127 = vrot.slane %v1116, %v1126
    %v1128 = vlaneseq
    %v1129 = vshrl.u32 %v1128, 7
    %v1130 = vsub.s32 0, %v1129
    %v1131 = vrot.slane %v1123, %v1130
    %1132 = vrot.lane.b32.xlu0 %v1127, 32
    %v1133 = vpop.permute.xlu0 %1132
    %1134 = vrot.lane.b32.xlu0 %v1131, 32
    %v1135 = vpop.permute.xlu0 %1134
    %1138 = vst.msk [vmem:[#allocation2 + $0x4] sm:$0x1] %vm567, %v1133
    %1139 = vst.msk [vmem:[#allocation2 + $0xc] sm:$0x1] %vm567, %v1135
    %1140 = vrot.lane.b32.xlu0 %v1100, 32
    %v1141 = vpop.permute.xlu0 %1140
    %v1142 = vsel %vm353, %v1141, 0
    %1144 = vmatprep.subr.mxu0 0.0
    %1145 = vmatpush1.msra.mxu0 %v238
    %1146 = vmatprep.subr.mxu0 0.0
    %1147 = vmatpush1.msra.mxu0 %v239
    %1148 = vmatprep.subr.mxu0 0.0
    %1149 = vmatpush1.msra.mxu0 %v240
    %1150 = vmatprep.subr.mxu0 0.0
    %1151 = vmatpush1.msra.mxu0 %v241
    %1152 = vmatprep.subr.mxu0 0.0
    %1153 = vmatpush1.msra.mxu0 0.0
    %1154 = vmatprep.subr.mxu0 0.0
    %1155 = vmatpush1.msra.mxu0 0.0
    %1156 = vmatprep.subr.mxu0 0.0
    %1157 = vmatpush1.msra.mxu0 0.0
    %1158 = vmatprep.subr.mxu0 0.0
    %1159 = vmatpush1.msra.mxu0 0.0
    %1160 = vmatprep.subr.mxu0 0.0
    %1161 = vmatpush1.msra.mxu0 0.0
    %1162 = vmatprep.subr.mxu0 0.0
    %1163 = vmatpush1.msra.mxu0 0.0
    %1164 = vmatprep.subr.mxu0 0.0
    %1165 = vmatpush1.msra.mxu0 0.0
    %1166 = vmatprep.subr.mxu0 0.0
    %1167 = vmatpush1.msra.mxu0 0.0
    %1168 = vmatprep.subr.mxu0 0.0
    %1169 = vmatpush1.msra.mxu0 0.0
    %1170 = vmatprep.subr.mxu0 0.0
    %1171 = vmatpush1.msra.mxu0 0.0
    %1172 = vmatprep.subr.mxu0 0.0
    %1173 = vmatpush1.msra.mxu0 0.0
    %1174 = vmatprep.subr.mxu0 0.0
    %1175 = vmatpush1.msra.mxu0 0.0
    %1176 = vmatprep.subr.mxu0 0.0
    %1177 = vmatpush1.msra.mxu0 0.0
    %1178 = vmatprep.subr.mxu0 0.0
    %1179 = vmatpush1.msra.mxu0 0.0
    %1180 = vmatprep.subr.mxu0 0.0
    %1181 = vmatpush1.msra.mxu0 0.0
    %1182 = vmatprep.subr.mxu0 0.0
    %1183 = vmatpush1.msra.mxu0 0.0
    %1184 = vmatprep.subr.mxu0 0.0
    %1185 = vmatpush1.msra.mxu0 0.0
    %1186 = vmatprep.subr.mxu0 0.0
    %1187 = vmatpush1.msra.mxu0 0.0
    %1188 = vmatprep.subr.mxu0 0.0
    %1189 = vmatpush1.msra.mxu0 0.0
    %1190 = vmatprep.subr.mxu0 0.0
    %1191 = vmatpush1.msra.mxu0 0.0
    %1192 = vmatprep.subr.mxu0 0.0
    %1193 = vmatpush1.msra.mxu0 0.0
    %1194 = vmatprep.subr.mxu0 0.0
    %1195 = vmatpush1.msra.mxu0 0.0
    %1196 = vmatprep.subr.mxu0 0.0
    %1197 = vmatpush1.msra.mxu0 0.0
    %1198 = vmatprep.subr.mxu0 0.0
    %1199 = vmatpush1.msra.mxu0 0.0
    %1200 = vmatprep.subr.mxu0 0.0
    %1201 = vmatpush1.msra.mxu0 0.0
    %1202 = vmatprep.subr.mxu0 0.0
    %1203 = vmatpush1.msra.mxu0 0.0
    %1204 = vmatprep.subr.mxu0 0.0
    %1205 = vmatpush1.msra.mxu0 0.0
    %1206 = vmatprep.subr.mxu0 0.0
    %1207 = vmatpush1.msra.mxu0 0.0
    %1208 = vmatprep.mubr.f32.mxu0 0.0
    %1209 = vmatmul.mubr.f32.gmra.mrb[0].mxu0 %v1142
    %v1210 = vpop.f32.mrb[0].mxu0
    %v1211 = vadd.f32 0.0, %v1210
    %v1212 = vpop.f32.mrb[0].mxu0
    %1213 = vdwg.mxu0
    %v1215 = vrot.slane %v1211, 6
    %v1217 = vadd.f32 %v432, %v1215
    %v1218 = vmul.f32 %v1217, %v270
    %v1219 = vtanh.pop %v1218
    %v1220 = vmul.f32 %v1219, %v270
    %v1221 = vadd.f32 %v1220, %v271
    %v1223 = vrot.slane %v1094, 6
    %v1225 = vmul.f32 %v1221, %v1223
    %1227 = vrot.lane.b32.xlu0 %v1221, 64
    %v1228 = vpop.permute.xlu0 %1227
    %v1230 = vmul.f32 %v1221, %v1228
    %1232 = vrot.lane.b32.xlu0 %v1230, 32
    %v1233 = vpop.permute.xlu0 %1232
    %v1235 = vadd.f32 %v1225, %v1233
    %v1236 = vtanh.pop %v1235
    %1238 = vrot.lane.b32.xlu0 %v1236, 64
    %v1239 = vpop.permute.xlu0 %1238
    %v1241 = vmul.f32 %v1221, %v1239
    %v1244 = vunpack.c.l.s4 1966171168
    %v1245 = vunpack.c.0.s8 %v1244
    %v1246 = vlaneseq
    %v1247 = vshrl.u32 %v1246, 7
    %v1248 = vsub.s32 %v1245, %v1247
    %v1249 = vrot.slane %v1241, %v1248
    %v1250 = vcombine.high %v1249, %v1249
    %v1252 = vunpack.c.l.s4 1966171168
    %v1253 = vunpack.c.0.s8 %v1252
    %v1254 = vlaneseq
    %v1255 = vshrl.u32 %v1254, 7
    %v1256 = vsub.s32 %v1253, %v1255
    %v1257 = vrot.slane %v1249, %v1256
    %v1259 = vunpack.c.l.s4 1966171168
    %v1260 = vunpack.c.0.s8 %v1259
    %v1261 = vlaneseq
    %v1262 = vshrl.u32 %v1261, 7
    %v1263 = vsub.s32 %v1260, %v1262
    %v1264 = vrot.slane %v1250, %v1263
    %v1265 = vcombine.high %v1257, %v1257
    %v1266 = vcombine.high %v1264, %v1264
    %v1267 = vlaneseq
    %v1268 = vshrl.u32 %v1267, 7
    %v1269 = vsub.s32 0, %v1268
    %v1270 = vrot.slane %v1265, %v1269
    %v1271 = vlaneseq
    %v1272 = vshrl.u32 %v1271, 7
    %v1273 = vsub.s32 0, %v1272
    %v1274 = vrot.slane %v1266, %v1273
    %1275 = vrot.lane.b32.xlu0 %v1270, 32
    %v1276 = vpop.permute.xlu0 %1275
    %1277 = vrot.lane.b32.xlu0 %v1274, 32
    %v1278 = vpop.permute.xlu0 %1277
    %1281 = vst.msk [vmem:[#allocation2 + $0x5] sm:$0x1] %vm567, %v1276
    %1282 = vst.msk [vmem:[#allocation2 + $0xd] sm:$0x1] %vm567, %v1278
    %v1283 = vrot.slane %v1241, 2
    %1284 = vrot.lane.b32.xlu0 %v1283, 32
    %v1285 = vpop.permute.xlu0 %1284
    %v1286 = vsel %vm353, %v1285, 0
    %1288 = vmatprep.subr.mxu0 0.0
    %1289 = vmatpush1.msra.mxu0 %v238
    %1290 = vmatprep.subr.mxu0 0.0
    %1291 = vmatpush1.msra.mxu0 %v239
    %1292 = vmatprep.subr.mxu0 0.0
    %1293 = vmatpush1.msra.mxu0 %v240
    %1294 = vmatprep.subr.mxu0 0.0
    %1295 = vmatpush1.msra.mxu0 %v241
    %1296 = vmatprep.subr.mxu0 0.0
    %1297 = vmatpush1.msra.mxu0 0.0
    %1298 = vmatprep.subr.mxu0 0.0
    %1299 = vmatpush1.msra.mxu0 0.0
    %1300 = vmatprep.subr.mxu0 0.0
    %1301 = vmatpush1.msra.mxu0 0.0
    %1302 = vmatprep.subr.mxu0 0.0
    %1303 = vmatpush1.msra.mxu0 0.0
    %1304 = vmatprep.subr.mxu0 0.0
    %1305 = vmatpush1.msra.mxu0 0.0
    %1306 = vmatprep.subr.mxu0 0.0
    %1307 = vmatpush1.msra.mxu0 0.0
    %1308 = vmatprep.subr.mxu0 0.0
    %1309 = vmatpush1.msra.mxu0 0.0
    %1310 = vmatprep.subr.mxu0 0.0
    %1311 = vmatpush1.msra.mxu0 0.0
    %1312 = vmatprep.subr.mxu0 0.0
    %1313 = vmatpush1.msra.mxu0 0.0
    %1314 = vmatprep.subr.mxu0 0.0
    %1315 = vmatpush1.msra.mxu0 0.0
    %1316 = vmatprep.subr.mxu0 0.0
    %1317 = vmatpush1.msra.mxu0 0.0
    %1318 = vmatprep.subr.mxu0 0.0
    %1319 = vmatpush1.msra.mxu0 0.0
    %1320 = vmatprep.subr.mxu0 0.0
    %1321 = vmatpush1.msra.mxu0 0.0
    %1322 = vmatprep.subr.mxu0 0.0
    %1323 = vmatpush1.msra.mxu0 0.0
    %1324 = vmatprep.subr.mxu0 0.0
    %1325 = vmatpush1.msra.mxu0 0.0
    %1326 = vmatprep.subr.mxu0 0.0
    %1327 = vmatpush1.msra.mxu0 0.0
    %1328 = vmatprep.subr.mxu0 0.0
    %1329 = vmatpush1.msra.mxu0 0.0
    %1330 = vmatprep.subr.mxu0 0.0
    %1331 = vmatpush1.msra.mxu0 0.0
    %1332 = vmatprep.subr.mxu0 0.0
    %1333 = vmatpush1.msra.mxu0 0.0
    %1334 = vmatprep.subr.mxu0 0.0
    %1335 = vmatpush1.msra.mxu0 0.0
    %1336 = vmatprep.subr.mxu0 0.0
    %1337 = vmatpush1.msra.mxu0 0.0
    %1338 = vmatprep.subr.mxu0 0.0
    %1339 = vmatpush1.msra.mxu0 0.0
    %1340 = vmatprep.subr.mxu0 0.0
    %1341 = vmatpush1.msra.mxu0 0.0
    %1342 = vmatprep.subr.mxu0 0.0
    %1343 = vmatpush1.msra.mxu0 0.0
    %1344 = vmatprep.subr.mxu0 0.0
    %1345 = vmatpush1.msra.mxu0 0.0
    %1346 = vmatprep.subr.mxu0 0.0
    %1347 = vmatpush1.msra.mxu0 0.0
    %1348 = vmatprep.subr.mxu0 0.0
    %1349 = vmatpush1.msra.mxu0 0.0
    %1350 = vmatprep.subr.mxu0 0.0
    %1351 = vmatpush1.msra.mxu0 0.0
    %1352 = vmatprep.mubr.f32.mxu0 0.0
    %1353 = vmatmul.mubr.f32.gmra.mrb[0].mxu0 %v1286
    %v1354 = vpop.f32.mrb[0].mxu0
    %v1355 = vadd.f32 0.0, %v1354
    %v1356 = vpop.f32.mrb[0].mxu0
    %1357 = vdwg.mxu0
    %v1359 = vrot.slane %v1355, 4
    %v1361 = vadd.f32 %v432, %v1359
    %v1362 = vmul.f32 %v1361, %v270
    %v1363 = vtanh.pop %v1362
    %v1364 = vmul.f32 %v1363, %v270
    %v1365 = vadd.f32 %v1364, %v271
    %v1367 = vrot.slane %v1235, 6
    %v1369 = vmul.f32 %v1365, %v1367
    %1371 = vrot.lane.b32.xlu0 %v1365, 64
    %v1372 = vpop.permute.xlu0 %1371
    %v1374 = vmul.f32 %v1365, %v1372
    %1376 = vrot.lane.b32.xlu0 %v1374, 32
    %v1377 = vpop.permute.xlu0 %1376
    %v1379 = vadd.f32 %v1369, %v1377
    %v1380 = vtanh.pop %v1379
    %1382 = vrot.lane.b32.xlu0 %v1380, 64
    %v1383 = vpop.permute.xlu0 %1382
    %v1385 = vmul.f32 %v1365, %v1383
    %v1387 = vcombine.high %v1385, %v1385
    %v1389 = vunpack.c.l.s4 1966171168
    %v1390 = vunpack.c.0.s8 %v1389
    %v1391 = vlaneseq
    %v1392 = vshrl.u32 %v1391, 7
    %v1393 = vsub.s32 %v1390, %v1392
    %v1394 = vrot.slane %v1387, %v1393
    %v1395 = vcombine.high %v1394, %v1394
    %v1397 = vunpack.c.l.s4 1966171168
    %v1398 = vunpack.c.0.s8 %v1397
    %v1399 = vlaneseq
    %v1400 = vshrl.u32 %v1399, 7
    %v1401 = vsub.s32 %v1398, %v1400
    %v1402 = vrot.slane %v1394, %v1401
    %v1404 = vunpack.c.l.s4 1966171168
    %v1405 = vunpack.c.0.s8 %v1404
    %v1406 = vlaneseq
    %v1407 = vshrl.u32 %v1406, 7
    %v1408 = vsub.s32 %v1405, %v1407
    %v1409 = vrot.slane %v1395, %v1408
    %v1410 = vlaneseq
    %v1411 = vshrl.u32 %v1410, 7
    %v1412 = vsub.s32 0, %v1411
    %v1413 = vrot.slane %v1402, %v1412
    %v1414 = vlaneseq
    %v1415 = vshrl.u32 %v1414, 7
    %v1416 = vsub.s32 0, %v1415
    %v1417 = vrot.slane %v1409, %v1416
    %1418 = vrot.lane.b32.xlu0 %v1413, 32
    %v1419 = vpop.permute.xlu0 %1418
    %1420 = vrot.lane.b32.xlu0 %v1417, 32
    %v1421 = vpop.permute.xlu0 %1420
    %1424 = vst.msk [vmem:[#allocation2 + $0x6] sm:$0x1] %vm567, %v1419
    %1425 = vst.msk [vmem:[#allocation2 + $0xe] sm:$0x1] %vm567, %v1421
    %v1426 = vrot.slane %v1385, 4
    %1427 = vrot.lane.b32.xlu0 %v1426, 32
    %v1428 = vpop.permute.xlu0 %1427
    %v1429 = vsel %vm353, %v1428, 0
    %1431 = vmatprep.subr.mxu0 0.0
    %1432 = vmatpush1.msra.mxu0 %v238
    %1433 = vmatprep.subr.mxu0 0.0
    %1434 = vmatpush1.msra.mxu0 %v239
    %1435 = vmatprep.subr.mxu0 0.0
    %1436 = vmatpush1.msra.mxu0 %v240
    %1437 = vmatprep.subr.mxu0 0.0
    %1438 = vmatpush1.msra.mxu0 %v241
    %1439 = vmatprep.subr.mxu0 0.0
    %1440 = vmatpush1.msra.mxu0 0.0
    %1441 = vmatprep.subr.mxu0 0.0
    %1442 = vmatpush1.msra.mxu0 0.0
    %1443 = vmatprep.subr.mxu0 0.0
    %1444 = vmatpush1.msra.mxu0 0.0
    %1445 = vmatprep.subr.mxu0 0.0
    %1446 = vmatpush1.msra.mxu0 0.0
    %1447 = vmatprep.subr.mxu0 0.0
    %1448 = vmatpush1.msra.mxu0 0.0
    %1449 = vmatprep.subr.mxu0 0.0
    %1450 = vmatpush1.msra.mxu0 0.0
    %1451 = vmatprep.subr.mxu0 0.0
    %1452 = vmatpush1.msra.mxu0 0.0
    %1453 = vmatprep.subr.mxu0 0.0
    %1454 = vmatpush1.msra.mxu0 0.0
    %1455 = vmatprep.subr.mxu0 0.0
    %1456 = vmatpush1.msra.mxu0 0.0
    %1457 = vmatprep.subr.mxu0 0.0
    %1458 = vmatpush1.msra.mxu0 0.0
    %1459 = vmatprep.subr.mxu0 0.0
    %1460 = vmatpush1.msra.mxu0 0.0
    %1461 = vmatprep.subr.mxu0 0.0
    %1462 = vmatpush1.msra.mxu0 0.0
    %1463 = vmatprep.subr.mxu0 0.0
    %1464 = vmatpush1.msra.mxu0 0.0
    %1465 = vmatprep.subr.mxu0 0.0
    %1466 = vmatpush1.msra.mxu0 0.0
    %1467 = vmatprep.subr.mxu0 0.0
    %1468 = vmatpush1.msra.mxu0 0.0
    %1469 = vmatprep.subr.mxu0 0.0
    %1470 = vmatpush1.msra.mxu0 0.0
    %1471 = vmatprep.subr.mxu0 0.0
    %1472 = vmatpush1.msra.mxu0 0.0
    %1473 = vmatprep.subr.mxu0 0.0
    %1474 = vmatpush1.msra.mxu0 0.0
    %1475 = vmatprep.subr.mxu0 0.0
    %1476 = vmatpush1.msra.mxu0 0.0
    %1477 = vmatprep.subr.mxu0 0.0
    %1478 = vmatpush1.msra.mxu0 0.0
    %1479 = vmatprep.subr.mxu0 0.0
    %1480 = vmatpush1.msra.mxu0 0.0
    %1481 = vmatprep.subr.mxu0 0.0
    %1482 = vmatpush1.msra.mxu0 0.0
    %1483 = vmatprep.subr.mxu0 0.0
    %1484 = vmatpush1.msra.mxu0 0.0
    %1485 = vmatprep.subr.mxu0 0.0
    %1486 = vmatpush1.msra.mxu0 0.0
    %1487 = vmatprep.subr.mxu0 0.0
    %1488 = vmatpush1.msra.mxu0 0.0
    %1489 = vmatprep.subr.mxu0 0.0
    %1490 = vmatpush1.msra.mxu0 0.0
    %1491 = vmatprep.subr.mxu0 0.0
    %1492 = vmatpush1.msra.mxu0 0.0
    %1493 = vmatprep.subr.mxu0 0.0
    %1494 = vmatpush1.msra.mxu0 0.0
    %1495 = vmatprep.mubr.f32.mxu0 0.0
    %1496 = vmatmul.mubr.f32.gmra.mrb[0].mxu0 %v1429
    %v1497 = vpop.f32.mrb[0].mxu0
    %v1498 = vadd.f32 0.0, %v1497
    %v1499 = vpop.f32.mrb[0].mxu0
    %1500 = vdwg.mxu0
    %v1502 = vrot.slane %v1498, 2
    %v1504 = vadd.f32 %v432, %v1502
    %v1505 = vmul.f32 %v1504, %v270
    %v1506 = vtanh.pop %v1505
    %v1507 = vmul.f32 %v1506, %v270
    %v1508 = vadd.f32 %v1507, %v271
    %v1510 = vrot.slane %v1379, 6
    %v1512 = vmul.f32 %v1508, %v1510
    %1514 = vrot.lane.b32.xlu0 %v1508, 64
    %v1515 = vpop.permute.xlu0 %1514
    %v1517 = vmul.f32 %v1508, %v1515
    %1519 = vrot.lane.b32.xlu0 %v1517, 32
    %v1520 = vpop.permute.xlu0 %1519
    %v1522 = vadd.f32 %v1512, %v1520
    %v1523 = vtanh.pop %v1522
    %1525 = vrot.lane.b32.xlu0 %v1523, 64
    %v1526 = vpop.permute.xlu0 %1525
    %v1528 = vmul.f32 %v1508, %v1526
    %v1530 = vcombine.high %v1528, %v1528
    %v1532 = vunpack.c.l.s4 1966171168
    %v1533 = vunpack.c.0.s8 %v1532
    %v1534 = vlaneseq
    %v1535 = vshrl.u32 %v1534, 7
    %v1536 = vsub.s32 %v1533, %v1535
    %v1537 = vrot.slane %v1530, %v1536
    %v1538 = vcombine.high %v1537, %v1537
    %v1540 = vunpack.c.l.s4 1966171168
    %v1541 = vunpack.c.0.s8 %v1540
    %v1542 = vlaneseq
    %v1543 = vshrl.u32 %v1542, 7
    %v1544 = vsub.s32 %v1541, %v1543
    %v1545 = vrot.slane %v1537, %v1544
    %v1547 = vunpack.c.l.s4 1966171168
    %v1548 = vunpack.c.0.s8 %v1547
    %v1549 = vlaneseq
    %v1550 = vshrl.u32 %v1549, 7
    %v1551 = vsub.s32 %v1548, %v1550
    %v1552 = vrot.slane %v1538, %v1551
    %v1553 = vcombine.high %v1545, %v1545
    %v1554 = vcombine.high %v1552, %v1552
    %v1555 = vlaneseq
    %v1556 = vshrl.u32 %v1555, 7
    %v1557 = vsub.s32 0, %v1556
    %v1558 = vrot.slane %v1553, %v1557
    %v1559 = vlaneseq
    %v1560 = vshrl.u32 %v1559, 7
    %v1561 = vsub.s32 0, %v1560
    %v1562 = vrot.slane %v1554, %v1561
    %1563 = vrot.lane.b32.xlu0 %v1558, 32
    %v1564 = vpop.permute.xlu0 %1563
    %1565 = vrot.lane.b32.xlu0 %v1562, 32
    %v1566 = vpop.permute.xlu0 %1565
    %1569 = vst.msk [vmem:[#allocation2 + $0x7] sm:$0x1] %vm567, %v1564
    %1570 = vst.msk [vmem:[#allocation2 + $0xf] sm:$0x1] %vm567, %v1566
    %v1571 = vld [vmem:[#allocation2] sm:$0xff]
    %v1572 = vld [vmem:[#allocation2 + $0x8] sm:$0xff]
    %v1573 = vld [vmem:[%s17] sm:$0xff]
    %v1574 = vld [vmem:[%s17 + $0x8] sm:$0xff]
    %v1575 = vld [vmem:[%s17 + $0x10] sm:$0xff]
    %v1576 = vld [vmem:[%s17 + $0x18] sm:$0xff]
    %v1577 = vld [vmem:[%s18] sm:$0x1]
    %v1579 = vlaneseq
    %v1580 = vshrl.u32 %v1579, 7
    %v1581 = vsub.s32 0, %v1580
    %v1582 = vrot.slane %v1577, %v1581
    %v1585 = vsel %vm353, %v1571, 0
    %v1588 = vsel %vm353, %v1572, 0
    %1590 = vmatprep.subr.mxu0 0.0
    %1591 = vmatpush1.msra.mxu0 %v1573
    %1592 = vmatprep.subr.mxu0 0.0
    %1593 = vmatpush1.msra.mxu0 %v1574
    %1594 = vmatprep.subr.mxu0 0.0
    %1595 = vmatpush1.msra.mxu0 %v1575
    %1596 = vmatprep.subr.mxu0 0.0
    %1597 = vmatpush1.msra.mxu0 %v1576
    %1598 = vmatprep.subr.mxu0 0.0
    %1599 = vmatpush1.msra.mxu0 0.0
    %1600 = vmatprep.subr.mxu0 0.0
    %1601 = vmatpush1.msra.mxu0 0.0
    %1602 = vmatprep.subr.mxu0 0.0
    %1603 = vmatpush1.msra.mxu0 0.0
    %1604 = vmatprep.subr.mxu0 0.0
    %1605 = vmatpush1.msra.mxu0 0.0
    %1606 = vmatprep.subr.mxu0 0.0
    %1607 = vmatpush1.msra.mxu0 0.0
    %1608 = vmatprep.subr.mxu0 0.0
    %1609 = vmatpush1.msra.mxu0 0.0
    %1610 = vmatprep.subr.mxu0 0.0
    %1611 = vmatpush1.msra.mxu0 0.0
    %1612 = vmatprep.subr.mxu0 0.0
    %1613 = vmatpush1.msra.mxu0 0.0
    %1614 = vmatprep.subr.mxu0 0.0
    %1615 = vmatpush1.msra.mxu0 0.0
    %1616 = vmatprep.subr.mxu0 0.0
    %1617 = vmatpush1.msra.mxu0 0.0
    %1618 = vmatprep.subr.mxu0 0.0
    %1619 = vmatpush1.msra.mxu0 0.0
    %1620 = vmatprep.subr.mxu0 0.0
    %1621 = vmatpush1.msra.mxu0 0.0
    %1622 = vmatprep.subr.mxu0 0.0
    %1623 = vmatpush1.msra.mxu0 0.0
    %1624 = vmatprep.subr.mxu0 0.0
    %1625 = vmatpush1.msra.mxu0 0.0
    %1626 = vmatprep.subr.mxu0 0.0
    %1627 = vmatpush1.msra.mxu0 0.0
    %1628 = vmatprep.subr.mxu0 0.0
    %1629 = vmatpush1.msra.mxu0 0.0
    %1630 = vmatprep.subr.mxu0 0.0
    %1631 = vmatpush1.msra.mxu0 0.0
    %1632 = vmatprep.subr.mxu0 0.0
    %1633 = vmatpush1.msra.mxu0 0.0
    %1634 = vmatprep.subr.mxu0 0.0
    %1635 = vmatpush1.msra.mxu0 0.0
    %1636 = vmatprep.subr.mxu0 0.0
    %1637 = vmatpush1.msra.mxu0 0.0
    %1638 = vmatprep.subr.mxu0 0.0
    %1639 = vmatpush1.msra.mxu0 0.0
    %1640 = vmatprep.subr.mxu0 0.0
    %1641 = vmatpush1.msra.mxu0 0.0
    %1642 = vmatprep.subr.mxu0 0.0
    %1643 = vmatpush1.msra.mxu0 0.0
    %1644 = vmatprep.subr.mxu0 0.0
    %1645 = vmatpush1.msra.mxu0 0.0
    %1646 = vmatprep.subr.mxu0 0.0
    %1647 = vmatpush1.msra.mxu0 0.0
    %1648 = vmatprep.subr.mxu0 0.0
    %1649 = vmatpush1.msra.mxu0 0.0
    %1650 = vmatprep.subr.mxu0 0.0
    %1651 = vmatpush1.msra.mxu0 0.0
    %1652 = vmatprep.subr.mxu0 0.0
    %1653 = vmatpush1.msra.mxu0 0.0
    %1654 = vmatprep.mubr.f32.mxu0 0.0
    %1655 = vmatmul.mubr.f32.gmra.mrb[0].mxu0 %v1585
    %v1656 = vpop.f32.mrb[0].mxu0
    %v1657 = vadd.f32 %v1582, %v1656
    %v1658 = vpop.f32.mrb[0].mxu0
    %1659 = vmatprep.mubr.f32.mxu0 0.0
    %1660 = vmatmul.mubr.f32.gmra.mrb[0].mxu0 %v1588
    %v1661 = vpop.f32.mrb[0].mxu0
    %v1662 = vadd.f32 %v1582, %v1661
    %v1663 = vpop.f32.mrb[0].mxu0
    %1664 = vdwg.mxu0
    %v1665 = vcvt.s32.f32 %v266
    %v1666 = vld [vmem:[%s19] sm:$0x1]
    %v1668 = vlaneseq
    %v1669 = vshrl.u32 %v1668, 7
    %v1670 = vsub.s32 0, %v1669
    %v1671 = vrot.slane %v1666, %v1670
    %v1673 = vrot.slane %v1528, 6
    %1674 = vrot.lane.b32.xlu0 %v1673, 64
    %v1675 = vpop.permute.xlu0 %1674
    %v1677 = vsel %vm353, %v1671, %v1675
    %v1679 = vlaneseq
    %v1680 = vshrl.u32 %v1679, 7
    %v1681 = vsub.s32 0, %v1680
    %v1682 = vrot.slane %v250, %v1681
    %vm1684 = vcmask 523264
    %v1686 = vsel %vm1684, %v1677, 0
    %1688 = vmatprep.subr.mxu0 0.0
    %1689 = vmatpush1.msra.mxu0 %v242
    %1690 = vmatprep.subr.mxu0 0.0
    %1691 = vmatpush1.msra.mxu0 %v243
    %1692 = vmatprep.subr.mxu0 0.0
    %1693 = vmatpush1.msra.mxu0 %v244
    %1694 = vmatprep.subr.mxu0 0.0
    %1695 = vmatpush1.msra.mxu0 %v245
    %1696 = vmatprep.subr.mxu0 0.0
    %1697 = vmatpush1.msra.mxu0 %v246
    %1698 = vmatprep.subr.mxu0 0.0
    %1699 = vmatpush1.msra.mxu0 %v247
    %1700 = vmatprep.subr.mxu0 0.0
    %1701 = vmatpush1.msra.mxu0 %v248
    %1702 = vmatprep.subr.mxu0 0.0
    %1703 = vmatpush1.msra.mxu0 %v249
    %1704 = vmatprep.subr.mxu0 0.0
    %1705 = vmatpush1.msra.mxu0 0.0
    %1706 = vmatprep.subr.mxu0 0.0
    %1707 = vmatpush1.msra.mxu0 0.0
    %1708 = vmatprep.subr.mxu0 0.0
    %1709 = vmatpush1.msra.mxu0 0.0
    %1710 = vmatprep.subr.mxu0 0.0
    %1711 = vmatpush1.msra.mxu0 0.0
    %1712 = vmatprep.subr.mxu0 0.0
    %1713 = vmatpush1.msra.mxu0 0.0
    %1714 = vmatprep.subr.mxu0 0.0
    %1715 = vmatpush1.msra.mxu0 0.0
    %1716 = vmatprep.subr.mxu0 0.0
    %1717 = vmatpush1.msra.mxu0 0.0
    %1718 = vmatprep.subr.mxu0 0.0
    %1719 = vmatpush1.msra.mxu0 0.0
    %1720 = vmatprep.subr.mxu0 0.0
    %1721 = vmatpush1.msra.mxu0 0.0
    %1722 = vmatprep.subr.mxu0 0.0
    %1723 = vmatpush1.msra.mxu0 0.0
    %1724 = vmatprep.subr.mxu0 0.0
    %1725 = vmatpush1.msra.mxu0 0.0
    %1726 = vmatprep.subr.mxu0 0.0
    %1727 = vmatpush1.msra.mxu0 0.0
    %1728 = vmatprep.subr.mxu0 0.0
    %1729 = vmatpush1.msra.mxu0 0.0
    %1730 = vmatprep.subr.mxu0 0.0
    %1731 = vmatpush1.msra.mxu0 0.0
    %1732 = vmatprep.subr.mxu0 0.0
    %1733 = vmatpush1.msra.mxu0 0.0
    %1734 = vmatprep.subr.mxu0 0.0
    %1735 = vmatpush1.msra.mxu0 0.0
    %1736 = vmatprep.subr.mxu0 0.0
    %1737 = vmatpush1.msra.mxu0 0.0
    %1738 = vmatprep.subr.mxu0 0.0
    %1739 = vmatpush1.msra.mxu0 0.0
    %1740 = vmatprep.subr.mxu0 0.0
    %1741 = vmatpush1.msra.mxu0 0.0
    %1742 = vmatprep.subr.mxu0 0.0
    %1743 = vmatpush1.msra.mxu0 0.0
    %1744 = vmatprep.subr.mxu0 0.0
    %1745 = vmatpush1.msra.mxu0 0.0
    %1746 = vmatprep.subr.mxu0 0.0
    %1747 = vmatpush1.msra.mxu0 0.0
    %1748 = vmatprep.subr.mxu0 0.0
    %1749 = vmatpush1.msra.mxu0 0.0
    %1750 = vmatprep.subr.mxu0 0.0
    %1751 = vmatpush1.msra.mxu0 0.0
    %1752 = vmatprep.mubr.f32.mxu0 0.0
    %1753 = vmatmul.mubr.f32.gmra.mrb[0].mxu0 %v1686
    %v1754 = vpop.f32.mrb[0].mxu0
    %v1755 = vadd.f32 %v1682, %v1754
    %v1756 = vpop.f32.mrb[0].mxu0
    %1757 = vdwg.mxu0
    %v1758 = vmul.f32 %v1755, %v270
    %v1759 = vtanh.pop %v1758
    %v1760 = vmul.f32 %v1759, %v270
    %v1761 = vadd.f32 %v1760, %v271
    %v1763 = vrot.slane %v1522, 6
    %v1765 = vmul.f32 %v1761, %v1763
    %1767 = vrot.lane.b32.xlu0 %v1761, 64
    %v1768 = vpop.permute.xlu0 %1767
    %v1770 = vmul.f32 %v1761, %v1768
    %1772 = vrot.lane.b32.xlu0 %v1770, 32
    %v1773 = vpop.permute.xlu0 %1772
    %v1775 = vadd.f32 %v1765, %v1773
    %v1776 = vtanh.pop %v1775
    %1778 = vrot.lane.b32.xlu0 %v1776, 64
    %v1779 = vpop.permute.xlu0 %1778
    %v1781 = vmul.f32 %v1761, %v1779
    %v1783 = vlaneseq
    %v1784 = vshrl.u32 %v1783, 7
    %v1785 = vsub.s32 0, %v1784
    %v1786 = vrot.slane %v255, %v1785
    %1789 = vrot.lane.b32.xlu0 %v1781, 32
    %v1790 = vpop.permute.xlu0 %1789
    %v1791 = vsel %vm353, %v1790, 0
    %1793 = vmatprep.subr.mxu0 0.0
    %1794 = vmatpush1.msra.mxu0 %v251
    %1795 = vmatprep.subr.mxu0 0.0
    %1796 = vmatpush1.msra.mxu0 %v252
    %1797 = vmatprep.subr.mxu0 0.0
    %1798 = vmatpush1.msra.mxu0 %v253
    %1799 = vmatprep.subr.mxu0 0.0
    %1800 = vmatpush1.msra.mxu0 %v254
    %1801 = vmatprep.subr.mxu0 0.0
    %1802 = vmatpush1.msra.mxu0 0.0
    %1803 = vmatprep.subr.mxu0 0.0
    %1804 = vmatpush1.msra.mxu0 0.0
    %1805 = vmatprep.subr.mxu0 0.0
    %1806 = vmatpush1.msra.mxu0 0.0
    %1807 = vmatprep.subr.mxu0 0.0
    %1808 = vmatpush1.msra.mxu0 0.0
    %1809 = vmatprep.subr.mxu0 0.0
    %1810 = vmatpush1.msra.mxu0 0.0
    %1811 = vmatprep.subr.mxu0 0.0
    %1812 = vmatpush1.msra.mxu0 0.0
    %1813 = vmatprep.subr.mxu0 0.0
    %1814 = vmatpush1.msra.mxu0 0.0
    %1815 = vmatprep.subr.mxu0 0.0
    %1816 = vmatpush1.msra.mxu0 0.0
    %1817 = vmatprep.subr.mxu0 0.0
    %1818 = vmatpush1.msra.mxu0 0.0
    %1819 = vmatprep.subr.mxu0 0.0
    %1820 = vmatpush1.msra.mxu0 0.0
    %1821 = vmatprep.subr.mxu0 0.0
    %1822 = vmatpush1.msra.mxu0 0.0
    %1823 = vmatprep.subr.mxu0 0.0
    %1824 = vmatpush1.msra.mxu0 0.0
    %1825 = vmatprep.subr.mxu0 0.0
    %1826 = vmatpush1.msra.mxu0 0.0
    %1827 = vmatprep.subr.mxu0 0.0
    %1828 = vmatpush1.msra.mxu0 0.0
    %1829 = vmatprep.subr.mxu0 0.0
    %1830 = vmatpush1.msra.mxu0 0.0
    %1831 = vmatprep.subr.mxu0 0.0
    %1832 = vmatpush1.msra.mxu0 0.0
    %1833 = vmatprep.subr.mxu0 0.0
    %1834 = vmatpush1.msra.mxu0 0.0
    %1835 = vmatprep.subr.mxu0 0.0
    %1836 = vmatpush1.msra.mxu0 0.0
    %1837 = vmatprep.subr.mxu0 0.0
    %1838 = vmatpush1.msra.mxu0 0.0
    %1839 = vmatprep.subr.mxu0 0.0
    %1840 = vmatpush1.msra.mxu0 0.0
    %1841 = vmatprep.subr.mxu0 0.0
    %1842 = vmatpush1.msra.mxu0 0.0
    %1843 = vmatprep.subr.mxu0 0.0
    %1844 = vmatpush1.msra.mxu0 0.0
    %1845 = vmatprep.subr.mxu0 0.0
    %1846 = vmatpush1.msra.mxu0 0.0
    %1847 = vmatprep.subr.mxu0 0.0
    %1848 = vmatpush1.msra.mxu0 0.0
    %1849 = vmatprep.subr.mxu0 0.0
    %1850 = vmatpush1.msra.mxu0 0.0
    %1851 = vmatprep.subr.mxu0 0.0
    %1852 = vmatpush1.msra.mxu0 0.0
    %1853 = vmatprep.subr.mxu0 0.0
    %1854 = vmatpush1.msra.mxu0 0.0
    %1855 = vmatprep.subr.mxu0 0.0
    %1856 = vmatpush1.msra.mxu0 0.0
    %1857 = vmatprep.mubr.f32.mxu0 0.0
    %1858 = vmatmul.mubr.f32.gmra.mrb[0].mxu0 %v1791
    %v1859 = vpop.f32.mrb[0].mxu0
    %v1860 = vadd.f32 %v1786, %v1859
    %v1861 = vpop.f32.mrb[0].mxu0
    %1862 = vdwg.mxu0
    %v1865 = vunpack.c.l.s4 1966171168
    %v1866 = vunpack.c.0.s8 %v1865
    %v1867 = vlaneseq
    %v1868 = vshrl.u32 %v1867, 7
    %v1869 = vsub.s32 %v1866, %v1868
    %v1870 = vrot.slane %v1860, %v1869
    %v1871 = vcombine.high %v1870, %v1870
    %v1873 = vunpack.c.l.s4 1966171168
    %v1874 = vunpack.c.0.s8 %v1873
    %v1875 = vlaneseq
    %v1876 = vshrl.u32 %v1875, 7
    %v1877 = vsub.s32 %v1874, %v1876
    %v1878 = vrot.slane %v1870, %v1877
    %v1880 = vunpack.c.l.s4 1966171168
    %v1881 = vunpack.c.0.s8 %v1880
    %v1882 = vlaneseq
    %v1883 = vshrl.u32 %v1882, 7
    %v1884 = vsub.s32 %v1881, %v1883
    %v1885 = vrot.slane %v1871, %v1884
    %v1886 = vlaneseq
    %v1887 = vshrl.u32 %v1886, 7
    %v1888 = vsub.s32 0, %v1887
    %v1889 = vrot.slane %v1878, %v1888
    %v1890 = vlaneseq
    %v1891 = vshrl.u32 %v1890, 7
    %v1892 = vsub.s32 0, %v1891
    %v1893 = vrot.slane %v1885, %v1892
    %v1896 = vadd.f32 %v1657, %v1889
    %v1897 = vadd.f32 %v1662, %v1893
    %v1898 = vtanh.pop %v1896
    %v1899 = vtanh.pop %v1897
    %v1901 = vlaneseq
    %v1902 = vshrl.u32 %v1901, 7
    %v1903 = vsub.s32 0, %v1902
    %v1904 = vrot.slane %v256, %v1903
    %v1906 = vmul.f32 %v1898, %v1904
    %v1907 = vmul.f32 %v1899, %v1904
    %v1908 = vsel %vm353, %v1906, 0.0
    %1909 = vadd.xlane.f32.xlu0 %v1908
    %v1910 = vpop.xlane.xlu0 %1909
    %v1911 = vsel %vm353, %v1907, 0.0
    %1912 = vadd.xlane.f32.xlu0 %v1911
    %v1913 = vpop.xlane.xlu0 %1912
    %v1915 = vlaneseq
    %v1916 = vshrl.u32 %v1915, 7
    %v1917 = vsub.s32 0, %v1916
    %v1918 = vrot.slane %v257, %v1917
    %1919 = vset.pattern.permute.xlu0 0
    %1920 = vperm.xlu0 %1919, %v1918
    %v1921 = vpop.permute.xlu0 %1920
    %v1923 = vadd.f32 %v1910, %v1921
    %v1924 = vadd.f32 %v1913, %v1921
    %vm1925 = vcmp.gt.f32.partialorder 0.0, 0.5
    %v1926 = vsel %vm1925, -100000.0, %v1923
    %v1927 = vsel %vm1925, -100000.0, %v1924
    %v1928 = vtanh.pop %v1926
    %v1929 = vtanh.pop %v1927
    %v1930 = vmul.f32 %v1928, 10.0
    %v1931 = vmul.f32 %v1929, 10.0
    %v1932 = vsel %vm1925, -100000.0, %v1930
    %v1933 = vsel %vm1925, -100000.0, %v1931
    %v1936 = vlaneseq
    %v1937 = vshrl.u32 %v1936, 7
    %v1938 = vsub.s32 %v266, %v1937
    %v1939 = vrot.slane %v1932, %v1938
    %v1940 = vlaneseq
    %v1941 = vshrl.u32 %v1940, 7
    %v1942 = vsub.s32 %v266, %v1941
    %v1943 = vrot.slane %v1933, %v1942
    %vm1944 = vcmask 1041409
    %v1945 = vsel %vm1944, %v1943, %v1939
    %vm1947 = vcmask 58368
    %v1948 = vsel %vm1947, %v1945, -inf
    %1949 = vmax.xlane.f32.xlu0 %v1948
    %v1950 = vpop.xlane.xlu0 %1949
    %v1952 = vlaneseq
    %v1953 = vshrl.u32 %v1952, 7
    %v1954 = vsub.s32 0, %v1953
    %v1955 = vrot.slane %v1950, %v1954
    %v1956 = vlaneseq
    %v1957 = vshrl.u32 %v1956, 7
    %v1958 = vsub.s32 1, %v1957
    %v1959 = vrot.slane %v1950, %v1958
    %v1962 = vsub.f32 %v1932, %v1955
    %v1963 = vsub.f32 %v1933, %v1959
    %v1964 = vmul.f32 %v1962, 1.442695
    %v1965 = vpow.pop %v1964
    %v1966 = vmul.f32 %v1963, 1.442695
    %v1967 = vpow.pop %v1966
    %1970 = vset.pattern.permute.xlu0 0
    %1971 = vperm.xlu0 %1970, %v1965
    %v1972 = vpop.permute.xlu0 %1971
    %1973 = vset.pattern.permute.xlu0 0
    %1974 = vperm.xlu0 %1973, %v1967
    %v1975 = vpop.permute.xlu0 %1974
    %v1976 = vlaneseq
    %v1977 = vshrl.u32 %v1976, 7
    %v1978 = vsub.s32 %v266, %v1977
    %v1979 = vrot.slane %v1972, %v1978
    %v1980 = vlaneseq
    %v1981 = vshrl.u32 %v1980, 7
    %v1982 = vsub.s32 %v266, %v1981
    %v1983 = vrot.slane %v1975, %v1982
    %v1984 = vsel %vm1944, %v1983, %v1979
    %v1986 = vsel %vm1947, %v1984, 0.0
    %1987 = vadd.xlane.f32.xlu0 %v1986
    %v1988 = vpop.xlane.xlu0 %1987
    %v1990 = vlaneseq
    %v1991 = vshrl.u32 %v1990, 7
    %v1992 = vsub.s32 0, %v1991
    %v1993 = vrot.slane %v1988, %v1992
    %v1994 = vlaneseq
    %v1995 = vshrl.u32 %v1994, 7
    %v1996 = vsub.s32 1, %v1995
    %v1997 = vrot.slane %v1988, %v1996
    %v2000 = vrcp.pop %v1993
    %v2001 = vmul.f32 %v1965, %v2000
    %v2002 = vrcp.pop %v1997
    %v2003 = vmul.f32 %v1967, %v2002
    %2005 = vset.pattern.permute.xlu0 0
    %2006 = vperm.xlu0 %2005, %v2001
    %v2007 = vpop.permute.xlu0 %2006
    %v2008 = vlaneseq
    %v2009 = vshrl.u32 %v2008, 7
    %v2010 = vsub.s32 %v266, %v2009
    %v2011 = vrot.slane %v2007, %v2010
    %vm2012 = vcmask 64512
    %v2013 = vsel %vm2012, %v2011, 0
    %2015 = vmatprep.subr.mxu0 0.0
    %2016 = vmatpush1.msra.mxu0 %v1571
    %2017 = vmatprep.subr.mxu0 0.0
    %2018 = vmatpush1.msra.mxu0 0.0
    %2019 = vmatprep.subr.mxu0 0.0
    %2020 = vmatpush1.msra.mxu0 0.0
    %2021 = vmatprep.subr.mxu0 0.0
    %2022 = vmatpush1.msra.mxu0 0.0
    %2023 = vmatprep.subr.mxu0 0.0
    %2024 = vmatpush1.msra.mxu0 0.0
    %2025 = vmatprep.subr.mxu0 0.0
    %2026 = vmatpush1.msra.mxu0 0.0
    %2027 = vmatprep.subr.mxu0 0.0
    %2028 = vmatpush1.msra.mxu0 0.0
    %2029 = vmatprep.subr.mxu0 0.0
    %2030 = vmatpush1.msra.mxu0 0.0
    %2031 = vmatprep.subr.mxu0 0.0
    %2032 = vmatpush1.msra.mxu0 0.0
    %2033 = vmatprep.subr.mxu0 0.0
    %2034 = vmatpush1.msra.mxu0 0.0
    %2035 = vmatprep.subr.mxu0 0.0
    %2036 = vmatpush1.msra.mxu0 0.0
    %2037 = vmatprep.subr.mxu0 0.0
    %2038 = vmatpush1.msra.mxu0 0.0
    %2039 = vmatprep.subr.mxu0 0.0
    %2040 = vmatpush1.msra.mxu0 0.0
    %2041 = vmatprep.subr.mxu0 0.0
    %2042 = vmatpush1.msra.mxu0 0.0
    %2043 = vmatprep.subr.mxu0 0.0
    %2044 = vmatpush1.msra.mxu0 0.0
    %2045 = vmatprep.subr.mxu0 0.0
    %2046 = vmatpush1.msra.mxu0 0.0
    %2047 = vmatprep.subr.mxu0 0.0
    %2048 = vmatpush1.msra.mxu0 0.0
    %2049 = vmatprep.subr.mxu0 0.0
    %2050 = vmatpush1.msra.mxu0 0.0
    %2051 = vmatprep.subr.mxu0 0.0
    %2052 = vmatpush1.msra.mxu0 0.0
    %2053 = vmatprep.subr.mxu0 0.0
    %2054 = vmatpush1.msra.mxu0 0.0
    %2055 = vmatprep.subr.mxu0 0.0
    %2056 = vmatpush1.msra.mxu0 0.0
    %2057 = vmatprep.subr.mxu0 0.0
    %2058 = vmatpush1.msra.mxu0 0.0
    %2059 = vmatprep.subr.mxu0 0.0
    %2060 = vmatpush1.msra.mxu0 0.0
    %2061 = vmatprep.subr.mxu0 0.0
    %2062 = vmatpush1.msra.mxu0 0.0
    %2063 = vmatprep.subr.mxu0 0.0
    %2064 = vmatpush1.msra.mxu0 0.0
    %2065 = vmatprep.subr.mxu0 0.0
    %2066 = vmatpush1.msra.mxu0 0.0
    %2067 = vmatprep.subr.mxu0 0.0
    %2068 = vmatpush1.msra.mxu0 0.0
    %2069 = vmatprep.subr.mxu0 0.0
    %2070 = vmatpush1.msra.mxu0 0.0
    %2071 = vmatprep.subr.mxu0 0.0
    %2072 = vmatpush1.msra.mxu0 0.0
    %2073 = vmatprep.subr.mxu0 0.0
    %2074 = vmatpush1.msra.mxu0 0.0
    %2075 = vmatprep.subr.mxu0 0.0
    %2076 = vmatpush1.msra.mxu0 0.0
    %2077 = vmatprep.subr.mxu0 0.0
    %2078 = vmatpush1.msra.mxu0 0.0
    %2079 = vmatprep.mubr.f32.mxu0 0.0
    %2080 = vmatmul.mubr.f32.gmra.mrb[0].mxu0 %v2013
    %v2081 = vpop.f32.mrb[0].mxu0
    %v2082 = vadd.f32 0.0, %v2081
    %v2083 = vpop.f32.mrb[0].mxu0
    %2084 = vdwg.mxu0
    %2086 = vset.pattern.permute.xlu0 0
    %2087 = vperm.xlu0 %2086, %v2003
    %v2088 = vpop.permute.xlu0 %2087
    %v2089 = vlaneseq
    %v2090 = vshrl.u32 %v2089, 7
    %v2091 = vsub.s32 %v266, %v2090
    %v2092 = vrot.slane %v2088, %v2091
    %v2093 = vsel %vm2012, %v2092, 0
    %2095 = vmatprep.subr.mxu0 0.0
    %2096 = vmatpush1.msra.mxu0 %v1572
    %2097 = vmatprep.subr.mxu0 0.0
    %2098 = vmatpush1.msra.mxu0 0.0
    %2099 = vmatprep.subr.mxu0 0.0
    %2100 = vmatpush1.msra.mxu0 0.0
    %2101 = vmatprep.subr.mxu0 0.0
    %2102 = vmatpush1.msra.mxu0 0.0
    %2103 = vmatprep.subr.mxu0 0.0
    %2104 = vmatpush1.msra.mxu0 0.0
    %2105 = vmatprep.subr.mxu0 0.0
    %2106 = vmatpush1.msra.mxu0 0.0
    %2107 = vmatprep.subr.mxu0 0.0
    %2108 = vmatpush1.msra.mxu0 0.0
    %2109 = vmatprep.subr.mxu0 0.0
    %2110 = vmatpush1.msra.mxu0 0.0
    %2111 = vmatprep.subr.mxu0 0.0
    %2112 = vmatpush1.msra.mxu0 0.0
    %2113 = vmatprep.subr.mxu0 0.0
    %2114 = vmatpush1.msra.mxu0 0.0
    %2115 = vmatprep.subr.mxu0 0.0
    %2116 = vmatpush1.msra.mxu0 0.0
    %2117 = vmatprep.subr.mxu0 0.0
    %2118 = vmatpush1.msra.mxu0 0.0
    %2119 = vmatprep.subr.mxu0 0.0
    %2120 = vmatpush1.msra.mxu0 0.0
    %2121 = vmatprep.subr.mxu0 0.0
    %2122 = vmatpush1.msra.mxu0 0.0
    %2123 = vmatprep.subr.mxu0 0.0
    %2124 = vmatpush1.msra.mxu0 0.0
    %2125 = vmatprep.subr.mxu0 0.0
    %2126 = vmatpush1.msra.mxu0 0.0
    %2127 = vmatprep.subr.mxu0 0.0
    %2128 = vmatpush1.msra.mxu0 0.0
    %2129 = vmatprep.subr.mxu0 0.0
    %2130 = vmatpush1.msra.mxu0 0.0
    %2131 = vmatprep.subr.mxu0 0.0
    %2132 = vmatpush1.msra.mxu0 0.0
    %2133 = vmatprep.subr.mxu0 0.0
    %2134 = vmatpush1.msra.mxu0 0.0
    %2135 = vmatprep.subr.mxu0 0.0
    %2136 = vmatpush1.msra.mxu0 0.0
    %2137 = vmatprep.subr.mxu0 0.0
    %2138 = vmatpush1.msra.mxu0 0.0
    %2139 = vmatprep.subr.mxu0 0.0
    %2140 = vmatpush1.msra.mxu0 0.0
    %2141 = vmatprep.subr.mxu0 0.0
    %2142 = vmatpush1.msra.mxu0 0.0
    %2143 = vmatprep.subr.mxu0 0.0
    %2144 = vmatpush1.msra.mxu0 0.0
    %2145 = vmatprep.subr.mxu0 0.0
    %2146 = vmatpush1.msra.mxu0 0.0
    %2147 = vmatprep.subr.mxu0 0.0
    %2148 = vmatpush1.msra.mxu0 0.0
    %2149 = vmatprep.subr.mxu0 0.0
    %2150 = vmatpush1.msra.mxu0 0.0
    %2151 = vmatprep.subr.mxu0 0.0
    %2152 = vmatpush1.msra.mxu0 0.0
    %2153 = vmatprep.subr.mxu0 0.0
    %2154 = vmatpush1.msra.mxu0 0.0
    %2155 = vmatprep.subr.mxu0 0.0
    %2156 = vmatpush1.msra.mxu0 0.0
    %2157 = vmatprep.subr.mxu0 0.0
    %2158 = vmatpush1.msra.mxu0 0.0
    %2159 = vmatprep.mubr.f32.mxu0 0.0
    %2160 = vmatmul.mubr.f32.gmra.mrb[0].mxu0 %v2093
    %v2161 = vpop.f32.mrb[0].mxu0
    %v2162 = vadd.f32 0.0, %v2161
    %v2163 = vpop.f32.mrb[0].mxu0
    %2164 = vdwg.mxu0
    %v2166 = vlaneseq
    %v2167 = vshrl.u32 %v2166, 7
    %v2168 = vsub.s32 0, %v2167
    %v2169 = vrot.slane %v262, %v2168
    %v2173 = vrot.slane %v2162, 7
    %v2174 = vsel %vm1944, %v2173, %v2082
    %v2175 = vsel %vm353, %v2174, 0
    %2177 = vmatprep.subr.mxu0 0.0
    %2178 = vmatpush1.msra.mxu0 %v258
    %2179 = vmatprep.subr.mxu0 0.0
    %2180 = vmatpush1.msra.mxu0 %v259
    %2181 = vmatprep.subr.mxu0 0.0
    %2182 = vmatpush1.msra.mxu0 %v260
    %2183 = vmatprep.subr.mxu0 0.0
    %2184 = vmatpush1.msra.mxu0 %v261
    %2185 = vmatprep.subr.mxu0 0.0
    %2186 = vmatpush1.msra.mxu0 0.0
    %2187 = vmatprep.subr.mxu0 0.0
    %2188 = vmatpush1.msra.mxu0 0.0
    %2189 = vmatprep.subr.mxu0 0.0
    %2190 = vmatpush1.msra.mxu0 0.0
    %2191 = vmatprep.subr.mxu0 0.0
    %2192 = vmatpush1.msra.mxu0 0.0
    %2193 = vmatprep.subr.mxu0 0.0
    %2194 = vmatpush1.msra.mxu0 0.0
    %2195 = vmatprep.subr.mxu0 0.0
    %2196 = vmatpush1.msra.mxu0 0.0
    %2197 = vmatprep.subr.mxu0 0.0
    %2198 = vmatpush1.msra.mxu0 0.0
    %2199 = vmatprep.subr.mxu0 0.0
    %2200 = vmatpush1.msra.mxu0 0.0
    %2201 = vmatprep.subr.mxu0 0.0
    %2202 = vmatpush1.msra.mxu0 0.0
    %2203 = vmatprep.subr.mxu0 0.0
    %2204 = vmatpush1.msra.mxu0 0.0
    %2205 = vmatprep.subr.mxu0 0.0
    %2206 = vmatpush1.msra.mxu0 0.0
    %2207 = vmatprep.subr.mxu0 0.0
    %2208 = vmatpush1.msra.mxu0 0.0
    %2209 = vmatprep.subr.mxu0 0.0
    %2210 = vmatpush1.msra.mxu0 0.0
    %2211 = vmatprep.subr.mxu0 0.0
    %2212 = vmatpush1.msra.mxu0 0.0
    %2213 = vmatprep.subr.mxu0 0.0
    %2214 = vmatpush1.msra.mxu0 0.0
    %2215 = vmatprep.subr.mxu0 0.0
    %2216 = vmatpush1.msra.mxu0 0.0
    %2217 = vmatprep.subr.mxu0 0.0
    %2218 = vmatpush1.msra.mxu0 0.0
    %2219 = vmatprep.subr.mxu0 0.0
    %2220 = vmatpush1.msra.mxu0 0.0
    %2221 = vmatprep.subr.mxu0 0.0
    %2222 = vmatpush1.msra.mxu0 0.0
    %2223 = vmatprep.subr.mxu0 0.0
    %2224 = vmatpush1.msra.mxu0 0.0
    %2225 = vmatprep.subr.mxu0 0.0
    %2226 = vmatpush1.msra.mxu0 0.0
    %2227 = vmatprep.subr.mxu0 0.0
    %2228 = vmatpush1.msra.mxu0 0.0
    %2229 = vmatprep.subr.mxu0 0.0
    %2230 = vmatpush1.msra.mxu0 0.0
    %2231 = vmatprep.subr.mxu0 0.0
    %2232 = vmatpush1.msra.mxu0 0.0
    %2233 = vmatprep.subr.mxu0 0.0
    %2234 = vmatpush1.msra.mxu0 0.0
    %2235 = vmatprep.subr.mxu0 0.0
    %2236 = vmatpush1.msra.mxu0 0.0
    %2237 = vmatprep.subr.mxu0 0.0
    %2238 = vmatpush1.msra.mxu0 0.0
    %2239 = vmatprep.subr.mxu0 0.0
    %2240 = vmatpush1.msra.mxu0 0.0
    %2241 = vmatprep.mubr.f32.mxu0 0.0
    %2242 = vmatmul.mubr.f32.gmra.mrb[0].mxu0 %v2175
    %v2243 = vpop.f32.mrb[0].mxu0
    %v2244 = vadd.f32 %v2169, %v2243
    %v2245 = vpop.f32.mrb[0].mxu0
    %2246 = vdwg.mxu0
    %v2249 = vunpack.c.l.s4 1966171168
    %v2250 = vunpack.c.0.s8 %v2249
    %v2251 = vlaneseq
    %v2252 = vshrl.u32 %v2251, 7
    %v2253 = vsub.s32 %v2250, %v2252
    %v2254 = vrot.slane %v2244, %v2253
    %v2255 = vcombine.high %v2254, %v2254
    %v2257 = vunpack.c.l.s4 1966171168
    %v2258 = vunpack.c.0.s8 %v2257
    %v2259 = vlaneseq
    %v2260 = vshrl.u32 %v2259, 7
    %v2261 = vsub.s32 %v2258, %v2260
    %v2262 = vrot.slane %v2254, %v2261
    %v2264 = vunpack.c.l.s4 1966171168
    %v2265 = vunpack.c.0.s8 %v2264
    %v2266 = vlaneseq
    %v2267 = vshrl.u32 %v2266, 7
    %v2268 = vsub.s32 %v2265, %v2267
    %v2269 = vrot.slane %v2255, %v2268
    %v2270 = vlaneseq
    %v2271 = vshrl.u32 %v2270, 7
    %v2272 = vsub.s32 0, %v2271
    %v2273 = vrot.slane %v2262, %v2272
    %v2274 = vlaneseq
    %v2275 = vshrl.u32 %v2274, 7
    %v2276 = vsub.s32 0, %v2275
    %v2277 = vrot.slane %v2269, %v2276
    %2278 = vrot.lane.b32.xlu0 %v2273, 32
    %v2279 = vpop.permute.xlu0 %2278
    %2280 = vrot.lane.b32.xlu0 %v2277, 32
    %v2281 = vpop.permute.xlu0 %2280
    %v2284 = vadd.f32 %v1657, %v2279
    %v2285 = vadd.f32 %v1662, %v2281
    %v2286 = vtanh.pop %v2284
    %v2287 = vtanh.pop %v2285
    %v2289 = vlaneseq
    %v2290 = vshrl.u32 %v2289, 7
    %v2291 = vsub.s32 0, %v2290
    %v2292 = vrot.slane %v263, %v2291
    %2293 = vrot.lane.b32.xlu0 %v2292, 32
    %v2294 = vpop.permute.xlu0 %2293
    %v2296 = vmul.f32 %v2286, %v2294
    %v2297 = vmul.f32 %v2287, %v2294
    %2300 = vrot.lane.b32.xlu0 %v2296, 96
    %v2301 = vpop.permute.xlu0 %2300
    %2302 = vrot.lane.b32.xlu0 %v2297, 96
    %v2303 = vpop.permute.xlu0 %2302
    %v2306 = vsel %vm353, %v2301, 0.0
    %2307 = vadd.xlane.f32.xlu0 %v2306
    %v2308 = vpop.xlane.xlu0 %2307
    %v2309 = vsel %vm353, %v2303, 0.0
    %2310 = vadd.xlane.f32.xlu0 %v2309
    %v2311 = vpop.xlane.xlu0 %2310
    %v2313 = vlaneseq
    %v2314 = vshrl.u32 %v2313, 7
    %v2315 = vsub.s32 0, %v2314
    %v2316 = vrot.slane %v264, %v2315
    %2317 = vset.pattern.permute.xlu0 0
    %2318 = vperm.xlu0 %2317, %v2316
    %v2319 = vpop.permute.xlu0 %2318
    %v2321 = vadd.f32 %v2308, %v2319
    %v2322 = vadd.f32 %v2311, %v2319
    %v2323 = vsel %vm1925, -100000.0, %v2321
    %v2324 = vsel %vm1925, -100000.0, %v2322
    %v2325 = vtanh.pop %v2323
    %v2326 = vtanh.pop %v2324
    %v2327 = vmul.f32 %v2325, 10.0
    %v2328 = vmul.f32 %v2326, 10.0
    %v2329 = vsel %vm1925, -100000.0, %v2327
    %v2330 = vsel %vm1925, -100000.0, %v2328
    %v2333 = vlaneseq
    %v2334 = vshrl.u32 %v2333, 7
    %v2335 = vsub.s32 %v266, %v2334
    %v2336 = vrot.slane %v2329, %v2335
    %v2337 = vlaneseq
    %v2338 = vshrl.u32 %v2337, 7
    %v2339 = vsub.s32 %v266, %v2338
    %v2340 = vrot.slane %v2330, %v2339
    %v2341 = vsel %vm1944, %v2340, %v2336
    %v2343 = vsel %vm1947, %v2341, -inf
    %2344 = vmax.xlane.f32.xlu0 %v2343
    %v2345 = vpop.xlane.xlu0 %2344
    %v2347 = vlaneseq
    %v2348 = vshrl.u32 %v2347, 7
    %v2349 = vsub.s32 0, %v2348
    %v2350 = vrot.slane %v2345, %v2349
    %v2351 = vlaneseq
    %v2352 = vshrl.u32 %v2351, 7
    %v2353 = vsub.s32 1, %v2352
    %v2354 = vrot.slane %v2345, %v2353
    %v2357 = vsub.f32 %v2329, %v2350
    %v2358 = vsub.f32 %v2330, %v2354
    %v2359 = vmul.f32 %v2357, 1.442695
    %v2360 = vpow.pop %v2359
    %v2361 = vmul.f32 %v2358, 1.442695
    %v2362 = vpow.pop %v2361
    %2365 = vset.pattern.permute.xlu0 0
    %2366 = vperm.xlu0 %2365, %v2360
    %v2367 = vpop.permute.xlu0 %2366
    %2368 = vset.pattern.permute.xlu0 0
    %2369 = vperm.xlu0 %2368, %v2362
    %v2370 = vpop.permute.xlu0 %2369
    %v2371 = vlaneseq
    %v2372 = vshrl.u32 %v2371, 7
    %v2373 = vsub.s32 %v266, %v2372
    %v2374 = vrot.slane %v2367, %v2373
    %v2375 = vlaneseq
    %v2376 = vshrl.u32 %v2375, 7
    %v2377 = vsub.s32 %v266, %v2376
    %v2378 = vrot.slane %v2370, %v2377
    %v2379 = vsel %vm1944, %v2378, %v2374
    %v2381 = vsel %vm1947, %v2379, 0.0
    %2382 = vadd.xlane.f32.xlu0 %v2381
    %v2383 = vpop.xlane.xlu0 %2382
    %v2384 = vlog2.pop %v2383
    %v2385 = vmul.f32 %v2384, 0.6931472
    %v2387 = vlaneseq
    %v2388 = vshrl.u32 %v2387, 7
    %v2389 = vsub.s32 0, %v2388
    %v2390 = vrot.slane %v2385, %v2389
    %v2391 = vlaneseq
    %v2392 = vshrl.u32 %v2391, 7
    %v2393 = vsub.s32 1, %v2392
    %v2394 = vrot.slane %v2385, %v2393
    %v2397 = vsub.f32 %v2357, %v2390
    %v2398 = vsub.f32 %v2358, %v2394
    %v2399 = vld [vmem:[#allocation25] sm:$0x3]
    %v2401 = vlaneseq
    %v2402 = vshrl.u32 %v2401, 7
    %v2403 = vsub.s32 0, %v2402
    %v2404 = vrot.slane %v2399, %v2403
    %2406 = vbcast.lane.b32.xlu0 %v2404, 256
    %v2407 = vpop.permute.xlu0 %2406
    %v2408 = vlaneseq
    %v2409 = vshrl.u32 %v2408, 7
    %v2410 = vsub.s32 1, %v2409
    %v2411 = vrot.slane %v2399, %v2410
    %2413 = vbcast.lane.b32.xlu0 %v2411, 256
    %v2414 = vpop.permute.xlu0 %2413
    %v2417 = vadd.f32 %v2329, %v2407
    %v2418 = vadd.f32 %v2330, %v2414
    %2421 = vset.pattern.permute.xlu0 0
    %2422 = vperm.xlu0 %2421, %v2417
    %v2423 = vpop.permute.xlu0 %2422
    %2424 = vset.pattern.permute.xlu0 0
    %2425 = vperm.xlu0 %2424, %v2418
    %v2426 = vpop.permute.xlu0 %2425
    %v2427 = vlaneseq
    %v2428 = vshrl.u32 %v2427, 7
    %v2429 = vsub.s32 %v266, %v2428
    %v2430 = vrot.slane %v2423, %v2429
    %v2431 = vlaneseq
    %v2432 = vshrl.u32 %v2431, 7
    %v2433 = vsub.s32 %v266, %v2432
    %v2434 = vrot.slane %v2426, %v2433
    %v2435 = vsel %vm1944, %v2434, %v2430
    %v2437 = vsel %vm1947, %v2435, -inf
    %2438 = vmax.xlane.f32.xlu0 %v2437
    %v2439 = vpop.xlane.xlu0 %2438
    %v2441 = vlaneseq
    %v2442 = vshrl.u32 %v2441, 7
    %v2443 = vsub.s32 0, %v2442
    %v2444 = vrot.slane %v2439, %v2443
    %v2445 = vlaneseq
    %v2446 = vshrl.u32 %v2445, 7
    %v2447 = vsub.s32 1, %v2446
    %v2448 = vrot.slane %v2439, %v2447
    %vm2451 = vcmp.ge.f32.partialorder %v2417, %v2444
    %vm2452 = vcmp.ge.f32.partialorder %v2418, %v2448
    %2455 = vbcast.lane.b32.xlu0 %v1665, 256
    %v2456 = vpop.permute.xlu0 %2455
    %v2458 = vsel %vm2451, %v2456, 8.0
    %v2459 = vsel %vm2452, %v2456, 8.0
    %2462 = vset.pattern.permute.xlu0 0
    %2463 = vperm.xlu0 %2462, %v2458
    %v2464 = vpop.permute.xlu0 %2463
    %2465 = vset.pattern.permute.xlu0 0
    %2466 = vperm.xlu0 %2465, %v2459
    %v2467 = vpop.permute.xlu0 %2466
    %v2468 = vlaneseq
    %v2469 = vshrl.u32 %v2468, 7
    %v2470 = vsub.s32 %v266, %v2469
    %v2471 = vrot.slane %v2464, %v2470
    %v2472 = vlaneseq
    %v2473 = vshrl.u32 %v2472, 7
    %v2474 = vsub.s32 %v266, %v2473
    %v2475 = vrot.slane %v2467, %v2474
    %v2476 = vsel %vm1944, %v2475, %v2471
    %v2478 = vsel %vm1947, %v2476, inf
    %2479 = vmin.xlane.f32.xlu0 %v2478
    %v2480 = vpop.xlane.xlu0 %2479
    %vm2481 = vcmp.eq.f32.partialorder %v1665, %v2480
    %v2482 = vcvt.f32.s32.to.zero.pseudo %v2480
    %2485 = vset.pattern.permute.xlu0 0
    %2486 = vperm.xlu0 %2485, %v2397
    %v2487 = vpop.permute.xlu0 %2486
    %2488 = vset.pattern.permute.xlu0 0
    %2489 = vperm.xlu0 %2488, %v2398
    %v2490 = vpop.permute.xlu0 %2489
    %v2491 = vlaneseq
    %v2492 = vshrl.u32 %v2491, 7
    %v2493 = vsub.s32 %v266, %v2492
    %v2494 = vrot.slane %v2487, %v2493
    %v2495 = vlaneseq
    %v2496 = vshrl.u32 %v2495, 7
    %v2497 = vsub.s32 %v266, %v2496
    %v2498 = vrot.slane %v2490, %v2497
    %v2499 = vsel %vm1944, %v2498, %v2494
    %v2501 = vsel %vm2481, %v2499, 0.0
    %v2502 = vsel %vm1947, %v2501, 0.0
    %2503 = vadd.xlane.f32.xlu0 %v2502
    %v2504 = vpop.xlane.xlu0 %2503
    %vm2505 = vcmp.eq.s32.totalorder %v266, 0
    %v2506 = vsel %vm2505, %v2504, 0.0
    %v2507 = vsel %vm2505, %v2482, 0
    %v2508 = vsel %vm2481, 1.0, 0.0
    %v2509 = vsel %vm2481, 1, 0
    %v2510 = vcvt.s32.f32 %v2509
    %v2513 = vunpack.c.l.s4 1966171168
    %v2514 = vunpack.c.0.s8 %v2513
    %v2515 = vlaneseq
    %v2516 = vshrl.u32 %v2515, 7
    %v2517 = vsub.s32 %v2514, %v2516
    %v2518 = vrot.slane %v2510, %v2517
    %v2519 = vcombine.high %v2518, %v2518
    %v2521 = vunpack.c.l.s4 1966171168
    %v2522 = vunpack.c.0.s8 %v2521
    %v2523 = vlaneseq
    %v2524 = vshrl.u32 %v2523, 7
    %v2525 = vsub.s32 %v2522, %v2524
    %v2526 = vrot.slane %v2518, %v2525
    %v2528 = vunpack.c.l.s4 1966171168
    %v2529 = vunpack.c.0.s8 %v2528
    %v2530 = vlaneseq
    %v2531 = vshrl.u32 %v2530, 7
    %v2532 = vsub.s32 %v2529, %v2531
    %v2533 = vrot.slane %v2519, %v2532
    %v2534 = vsel %vm2012, %v2526, 0
    %2536 = vmatprep.subr.mxu0 0.0
    %2537 = vmatpush1.msra.mxu0 %v340
    %2538 = vmatprep.subr.mxu0 0.0
    %2539 = vmatpush1.msra.mxu0 0.0
    %2540 = vmatprep.subr.mxu0 0.0
    %2541 = vmatpush1.msra.mxu0 0.0
    %2542 = vmatprep.subr.mxu0 0.0
    %2543 = vmatpush1.msra.mxu0 0.0
    %2544 = vmatprep.subr.mxu0 0.0
    %2545 = vmatpush1.msra.mxu0 0.0
    %2546 = vmatprep.subr.mxu0 0.0
    %2547 = vmatpush1.msra.mxu0 0.0
    %2548 = vmatprep.subr.mxu0 0.0
    %2549 = vmatpush1.msra.mxu0 0.0
    %2550 = vmatprep.subr.mxu0 0.0
    %2551 = vmatpush1.msra.mxu0 0.0
    %2552 = vmatprep.subr.mxu0 0.0
    %2553 = vmatpush1.msra.mxu0 0.0
    %2554 = vmatprep.subr.mxu0 0.0
    %2555 = vmatpush1.msra.mxu0 0.0
    %2556 = vmatprep.subr.mxu0 0.0
    %2557 = vmatpush1.msra.mxu0 0.0
    %2558 = vmatprep.subr.mxu0 0.0
    %2559 = vmatpush1.msra.mxu0 0.0
    %2560 = vmatprep.subr.mxu0 0.0
    %2561 = vmatpush1.msra.mxu0 0.0
    %2562 = vmatprep.subr.mxu0 0.0
    %2563 = vmatpush1.msra.mxu0 0.0
    %2564 = vmatprep.subr.mxu0 0.0
    %2565 = vmatpush1.msra.mxu0 0.0
    %2566 = vmatprep.subr.mxu0 0.0
    %2567 = vmatpush1.msra.mxu0 0.0
    %2568 = vmatprep.subr.mxu0 0.0
    %2569 = vmatpush1.msra.mxu0 0.0
    %2570 = vmatprep.subr.mxu0 0.0
    %2571 = vmatpush1.msra.mxu0 0.0
    %2572 = vmatprep.subr.mxu0 0.0
    %2573 = vmatpush1.msra.mxu0 0.0
    %2574 = vmatprep.subr.mxu0 0.0
    %2575 = vmatpush1.msra.mxu0 0.0
    %2576 = vmatprep.subr.mxu0 0.0
    %2577 = vmatpush1.msra.mxu0 0.0
    %2578 = vmatprep.subr.mxu0 0.0
    %2579 = vmatpush1.msra.mxu0 0.0
    %2580 = vmatprep.subr.mxu0 0.0
    %2581 = vmatpush1.msra.mxu0 0.0
    %2582 = vmatprep.subr.mxu0 0.0
    %2583 = vmatpush1.msra.mxu0 0.0
    %2584 = vmatprep.subr.mxu0 0.0
    %2585 = vmatpush1.msra.mxu0 0.0
    %2586 = vmatprep.subr.mxu0 0.0
    %2587 = vmatpush1.msra.mxu0 0.0
    %2588 = vmatprep.subr.mxu0 0.0
    %2589 = vmatpush1.msra.mxu0 0.0
    %2590 = vmatprep.subr.mxu0 0.0
    %2591 = vmatpush1.msra.mxu0 0.0
    %2592 = vmatprep.subr.mxu0 0.0
    %2593 = vmatpush1.msra.mxu0 0.0
    %2594 = vmatprep.subr.mxu0 0.0
    %2595 = vmatpush1.msra.mxu0 0.0
    %2596 = vmatprep.subr.mxu0 0.0
    %2597 = vmatpush1.msra.mxu0 0.0
    %2598 = vmatprep.subr.mxu0 0.0
    %2599 = vmatpush1.msra.mxu0 0.0
    %2600 = vmatprep.mubr.f32.mxu0 0.0
    %2601 = vmatmul.mubr.f32.gmra.mrb[0].mxu0 %v2534
    %v2602 = vpop.f32.mrb[0].mxu0
    %v2603 = vadd.f32 0.0, %v2602
    %v2604 = vpop.f32.mrb[0].mxu0
    %2605 = vdwg.mxu0
    %v2606 = vsel %vm2012, %v2533, 0
    %2608 = vmatprep.subr.mxu0 0.0
    %2609 = vmatpush1.msra.mxu0 %v341
    %2610 = vmatprep.subr.mxu0 0.0
    %2611 = vmatpush1.msra.mxu0 0.0
    %2612 = vmatprep.subr.mxu0 0.0
    %2613 = vmatpush1.msra.mxu0 0.0
    %2614 = vmatprep.subr.mxu0 0.0
    %2615 = vmatpush1.msra.mxu0 0.0
    %2616 = vmatprep.subr.mxu0 0.0
    %2617 = vmatpush1.msra.mxu0 0.0
    %2618 = vmatprep.subr.mxu0 0.0
    %2619 = vmatpush1.msra.mxu0 0.0
    %2620 = vmatprep.subr.mxu0 0.0
    %2621 = vmatpush1.msra.mxu0 0.0
    %2622 = vmatprep.subr.mxu0 0.0
    %2623 = vmatpush1.msra.mxu0 0.0
    %2624 = vmatprep.subr.mxu0 0.0
    %2625 = vmatpush1.msra.mxu0 0.0
    %2626 = vmatprep.subr.mxu0 0.0
    %2627 = vmatpush1.msra.mxu0 0.0
    %2628 = vmatprep.subr.mxu0 0.0
    %2629 = vmatpush1.msra.mxu0 0.0
    %2630 = vmatprep.subr.mxu0 0.0
    %2631 = vmatpush1.msra.mxu0 0.0
    %2632 = vmatprep.subr.mxu0 0.0
    %2633 = vmatpush1.msra.mxu0 0.0
    %2634 = vmatprep.subr.mxu0 0.0
    %2635 = vmatpush1.msra.mxu0 0.0
    %2636 = vmatprep.subr.mxu0 0.0
    %2637 = vmatpush1.msra.mxu0 0.0
    %2638 = vmatprep.subr.mxu0 0.0
    %2639 = vmatpush1.msra.mxu0 0.0
    %2640 = vmatprep.subr.mxu0 0.0
    %2641 = vmatpush1.msra.mxu0 0.0
    %2642 = vmatprep.subr.mxu0 0.0
    %2643 = vmatpush1.msra.mxu0 0.0
    %2644 = vmatprep.subr.mxu0 0.0
    %2645 = vmatpush1.msra.mxu0 0.0
    %2646 = vmatprep.subr.mxu0 0.0
    %2647 = vmatpush1.msra.mxu0 0.0
    %2648 = vmatprep.subr.mxu0 0.0
    %2649 = vmatpush1.msra.mxu0 0.0
    %2650 = vmatprep.subr.mxu0 0.0
    %2651 = vmatpush1.msra.mxu0 0.0
    %2652 = vmatprep.subr.mxu0 0.0
    %2653 = vmatpush1.msra.mxu0 0.0
    %2654 = vmatprep.subr.mxu0 0.0
    %2655 = vmatpush1.msra.mxu0 0.0
    %2656 = vmatprep.subr.mxu0 0.0
    %2657 = vmatpush1.msra.mxu0 0.0
    %2658 = vmatprep.subr.mxu0 0.0
    %2659 = vmatpush1.msra.mxu0 0.0
    %2660 = vmatprep.subr.mxu0 0.0
    %2661 = vmatpush1.msra.mxu0 0.0
    %2662 = vmatprep.subr.mxu0 0.0
    %2663 = vmatpush1.msra.mxu0 0.0
    %2664 = vmatprep.subr.mxu0 0.0
    %2665 = vmatpush1.msra.mxu0 0.0
    %2666 = vmatprep.subr.mxu0 0.0
    %2667 = vmatpush1.msra.mxu0 0.0
    %2668 = vmatprep.subr.mxu0 0.0
    %2669 = vmatpush1.msra.mxu0 0.0
    %2670 = vmatprep.subr.mxu0 0.0
    %2671 = vmatpush1.msra.mxu0 0.0
    %2672 = vmatprep.mubr.f32.mxu0 0.0
    %2673 = vmatmul.mubr.f32.gmra.mrb[0].mxu0 %v2606
    %v2674 = vpop.f32.mrb[0].mxu0
    %v2675 = vadd.f32 0.0, %v2674
    %v2676 = vpop.f32.mrb[0].mxu0
    %2677 = vdwg.mxu0
    %v2680 = vrot.slane %v2675, 7
    %v2681 = vsel %vm1944, %v2680, %v2603
    %2683 = vrot.lane.b32.xlu0 %v1781, 64
    %v2684 = vpop.permute.xlu0 %2683
    %v2686 = vsel %vm353, %v2681, %v2684
    %v2688 = vsel %vm1684, %v2686, 0
    %2690 = vmatprep.subr.mxu0 0.0
    %2691 = vmatpush1.msra.mxu0 %v242
    %2692 = vmatprep.subr.mxu0 0.0
    %2693 = vmatpush1.msra.mxu0 %v243
    %2694 = vmatprep.subr.mxu0 0.0
    %2695 = vmatpush1.msra.mxu0 %v244
    %2696 = vmatprep.subr.mxu0 0.0
    %2697 = vmatpush1.msra.mxu0 %v245
    %2698 = vmatprep.subr.mxu0 0.0
    %2699 = vmatpush1.msra.mxu0 %v246
    %2700 = vmatprep.subr.mxu0 0.0
    %2701 = vmatpush1.msra.mxu0 %v247
    %2702 = vmatprep.subr.mxu0 0.0
    %2703 = vmatpush1.msra.mxu0 %v248
    %2704 = vmatprep.subr.mxu0 0.0
    %2705 = vmatpush1.msra.mxu0 %v249
    %2706 = vmatprep.subr.mxu0 0.0
    %2707 = vmatpush1.msra.mxu0 0.0
    %2708 = vmatprep.subr.mxu0 0.0
    %2709 = vmatpush1.msra.mxu0 0.0
    %2710 = vmatprep.subr.mxu0 0.0
    %2711 = vmatpush1.msra.mxu0 0.0
    %2712 = vmatprep.subr.mxu0 0.0
    %2713 = vmatpush1.msra.mxu0 0.0
    %2714 = vmatprep.subr.mxu0 0.0
    %2715 = vmatpush1.msra.mxu0 0.0
    %2716 = vmatprep.subr.mxu0 0.0
    %2717 = vmatpush1.msra.mxu0 0.0
    %2718 = vmatprep.subr.mxu0 0.0
    %2719 = vmatpush1.msra.mxu0 0.0
    %2720 = vmatprep.subr.mxu0 0.0
    %2721 = vmatpush1.msra.mxu0 0.0
    %2722 = vmatprep.subr.mxu0 0.0
    %2723 = vmatpush1.msra.mxu0 0.0
    %2724 = vmatprep.subr.mxu0 0.0
    %2725 = vmatpush1.msra.mxu0 0.0
    %2726 = vmatprep.subr.mxu0 0.0
    %2727 = vmatpush1.msra.mxu0 0.0
    %2728 = vmatprep.subr.mxu0 0.0
    %2729 = vmatpush1.msra.mxu0 0.0
    %2730 = vmatprep.subr.mxu0 0.0
    %2731 = vmatpush1.msra.mxu0 0.0
    %2732 = vmatprep.subr.mxu0 0.0
    %2733 = vmatpush1.msra.mxu0 0.0
    %2734 = vmatprep.subr.mxu0 0.0
    %2735 = vmatpush1.msra.mxu0 0.0
    %2736 = vmatprep.subr.mxu0 0.0
    %2737 = vmatpush1.msra.mxu0 0.0
    %2738 = vmatprep.subr.mxu0 0.0
    %2739 = vmatpush1.msra.mxu0 0.0
    %2740 = vmatprep.subr.mxu0 0.0
    %2741 = vmatpush1.msra.mxu0 0.0
    %2742 = vmatprep.subr.mxu0 0.0
    %2743 = vmatpush1.msra.mxu0 0.0
    %2744 = vmatprep.subr.mxu0 0.0
    %2745 = vmatpush1.msra.mxu0 0.0
    %2746 = vmatprep.subr.mxu0 0.0
    %2747 = vmatpush1.msra.mxu0 0.0
    %2748 = vmatprep.subr.mxu0 0.0
    %2749 = vmatpush1.msra.mxu0 0.0
    %2750 = vmatprep.subr.mxu0 0.0
    %2751 = vmatpush1.msra.mxu0 0.0
    %2752 = vmatprep.subr.mxu0 0.0
    %2753 = vmatpush1.msra.mxu0 0.0
    %2754 = vmatprep.mubr.f32.mxu0 0.0
    %2755 = vmatmul.mubr.f32.gmra.mrb[0].mxu0 %v2688
    %v2756 = vpop.f32.mrb[0].mxu0
    %v2757 = vadd.f32 %v1682, %v2756
    %v2758 = vpop.f32.mrb[0].mxu0
    %2759 = vdwg.mxu0
    %v2760 = vmul.f32 %v2757, %v270
    %v2761 = vtanh.pop %v2760
    %v2762 = vmul.f32 %v2761, %v270
    %v2763 = vadd.f32 %v2762, %v271
    %v2764 = vmul.f32 %v2763, %v1775
    %2766 = vrot.lane.b32.xlu0 %v2763, 64
    %v2767 = vpop.permute.xlu0 %2766
    %v2769 = vmul.f32 %v2763, %v2767
    %2771 = vrot.lane.b32.xlu0 %v2769, 32
    %v2772 = vpop.permute.xlu0 %2771
    %v2774 = vadd.f32 %v2764, %v2772
    %v2775 = vtanh.pop %v2774
    %2777 = vrot.lane.b32.xlu0 %v2775, 64
    %v2778 = vpop.permute.xlu0 %2777
    %v2780 = vmul.f32 %v2763, %v2778
    %2782 = vrot.lane.b32.xlu0 %v2780, 32
    %v2783 = vpop.permute.xlu0 %2782
    %v2784 = vsel %vm353, %v2783, 0
    %2786 = vmatprep.subr.mxu0 0.0
    %2787 = vmatpush1.msra.mxu0 %v251
    %2788 = vmatprep.subr.mxu0 0.0
    %2789 = vmatpush1.msra.mxu0 %v252
    %2790 = vmatprep.subr.mxu0 0.0
    %2791 = vmatpush1.msra.mxu0 %v253
    %2792 = vmatprep.subr.mxu0 0.0
    %2793 = vmatpush1.msra.mxu0 %v254
    %2794 = vmatprep.subr.mxu0 0.0
    %2795 = vmatpush1.msra.mxu0 0.0
    %2796 = vmatprep.subr.mxu0 0.0
    %2797 = vmatpush1.msra.mxu0 0.0
    %2798 = vmatprep.subr.mxu0 0.0
    %2799 = vmatpush1.msra.mxu0 0.0
    %2800 = vmatprep.subr.mxu0 0.0
    %2801 = vmatpush1.msra.mxu0 0.0
    %2802 = vmatprep.subr.mxu0 0.0
    %2803 = vmatpush1.msra.mxu0 0.0
    %2804 = vmatprep.subr.mxu0 0.0
    %2805 = vmatpush1.msra.mxu0 0.0
    %2806 = vmatprep.subr.mxu0 0.0
    %2807 = vmatpush1.msra.mxu0 0.0
    %2808 = vmatprep.subr.mxu0 0.0
    %2809 = vmatpush1.msra.mxu0 0.0
    %2810 = vmatprep.subr.mxu0 0.0
    %2811 = vmatpush1.msra.mxu0 0.0
    %2812 = vmatprep.subr.mxu0 0.0
    %2813 = vmatpush1.msra.mxu0 0.0
    %2814 = vmatprep.subr.mxu0 0.0
    %2815 = vmatpush1.msra.mxu0 0.0
    %2816 = vmatprep.subr.mxu0 0.0
    %2817 = vmatpush1.msra.mxu0 0.0
    %2818 = vmatprep.subr.mxu0 0.0
    %2819 = vmatpush1.msra.mxu0 0.0
    %2820 = vmatprep.subr.mxu0 0.0
    %2821 = vmatpush1.msra.mxu0 0.0
    %2822 = vmatprep.subr.mxu0 0.0
    %2823 = vmatpush1.msra.mxu0 0.0
    %2824 = vmatprep.subr.mxu0 0.0
    %2825 = vmatpush1.msra.mxu0 0.0
    %2826 = vmatprep.subr.mxu0 0.0
    %2827 = vmatpush1.msra.mxu0 0.0
    %2828 = vmatprep.subr.mxu0 0.0
    %2829 = vmatpush1.msra.mxu0 0.0
    %2830 = vmatprep.subr.mxu0 0.0
    %2831 = vmatpush1.msra.mxu0 0.0
    %2832 = vmatprep.subr.mxu0 0.0
    %2833 = vmatpush1.msra.mxu0 0.0
    %2834 = vmatprep.subr.mxu0 0.0
    %2835 = vmatpush1.msra.mxu0 0.0
    %2836 = vmatprep.subr.mxu0 0.0
    %2837 = vmatpush1.msra.mxu0 0.0
    %2838 = vmatprep.subr.mxu0 0.0
    %2839 = vmatpush1.msra.mxu0 0.0
    %2840 = vmatprep.subr.mxu0 0.0
    %2841 = vmatpush1.msra.mxu0 0.0
    %2842 = vmatprep.subr.mxu0 0.0
    %2843 = vmatpush1.msra.mxu0 0.0
    %2844 = vmatprep.subr.mxu0 0.0
    %2845 = vmatpush1.msra.mxu0 0.0
    %2846 = vmatprep.subr.mxu0 0.0
    %2847 = vmatpush1.msra.mxu0 0.0
    %2848 = vmatprep.subr.mxu0 0.0
    %2849 = vmatpush1.msra.mxu0 0.0
    %2850 = vmatprep.mubr.f32.mxu0 0.0
    %2851 = vmatmul.mubr.f32.gmra.mrb[0].mxu0 %v2784
    %v2852 = vpop.f32.mrb[0].mxu0
    %v2853 = vadd.f32 %v1786, %v2852
    %v2854 = vpop.f32.mrb[0].mxu0
    %2855 = vdwg.mxu0
    %v2858 = vunpack.c.l.s4 1966171168
    %v2859 = vunpack.c.0.s8 %v2858
    %v2860 = vlaneseq
    %v2861 = vshrl.u32 %v2860, 7
    %v2862 = vsub.s32 %v2859, %v2861
    %v2863 = vrot.slane %v2853, %v2862
    %v2864 = vcombine.high %v2863, %v2863
    %v2866 = vunpack.c.l.s4 1966171168
    %v2867 = vunpack.c.0.s8 %v2866
    %v2868 = vlaneseq
    %v2869 = vshrl.u32 %v2868, 7
    %v2870 = vsub.s32 %v2867, %v2869
    %v2871 = vrot.slane %v2863, %v2870
    %v2873 = vunpack.c.l.s4 1966171168
    %v2874 = vunpack.c.0.s8 %v2873
    %v2875 = vlaneseq
    %v2876 = vshrl.u32 %v2875, 7
    %v2877 = vsub.s32 %v2874, %v2876
    %v2878 = vrot.slane %v2864, %v2877
    %v2879 = vlaneseq
    %v2880 = vshrl.u32 %v2879, 7
    %v2881 = vsub.s32 0, %v2880
    %v2882 = vrot.slane %v2871, %v2881
    %v2883 = vlaneseq
    %v2884 = vshrl.u32 %v2883, 7
    %v2885 = vsub.s32 0, %v2884
    %v2886 = vrot.slane %v2878, %v2885
    %v2889 = vadd.f32 %v1657, %v2882
    %v2890 = vadd.f32 %v1662, %v2886
    %v2891 = vtanh.pop %v2889
    %v2892 = vtanh.pop %v2890
    %v2893 = vmul.f32 %v2891, %v1904
    %v2894 = vmul.f32 %v2892, %v1904
    %v2895 = vsel %vm353, %v2893, 0.0
    %2896 = vadd.xlane.f32.xlu0 %v2895
    %v2897 = vpop.xlane.xlu0 %2896
    %v2898 = vsel %vm353, %v2894, 0.0
    %2899 = vadd.xlane.f32.xlu0 %v2898
    %v2900 = vpop.xlane.xlu0 %2899
    %v2901 = vadd.f32 %v2897, %v1921
    %v2902 = vadd.f32 %v2900, %v1921
    %vm2903 = vcmp.gt.f32.partialorder %v2508, 0.5
    %v2906 = vlaneseq
    %v2907 = vshrl.u32 %v2906, 7
    %v2908 = vsub.s32 %v266, %v2907
    %v2909 = vrot.slane %v2901, %v2908
    %v2910 = vlaneseq
    %v2911 = vshrl.u32 %v2910, 7
    %v2912 = vsub.s32 %v266, %v2911
    %v2913 = vrot.slane %v2902, %v2912
    %v2914 = vsel %vm1944, %v2913, %v2909
    %v2916 = vsel %vm2903, -100000.0, %v2914
    %v2917 = vtanh.pop %v2916
    %v2918 = vmul.f32 %v2917, 10.0
    %v2919 = vsel %vm2903, -100000.0, %v2918
    %v2920 = vsel %vm1947, %v2919, -inf
    %2921 = vmax.xlane.f32.xlu0 %v2920
    %v2922 = vpop.xlane.xlu0 %2921
    %v2923 = vsub.f32 %v2919, %v2922
    %v2924 = vmul.f32 %v2923, 1.442695
    %v2925 = vpow.pop %v2924
    %v2926 = vsel %vm1947, %v2925, 0.0
    %2927 = vadd.xlane.f32.xlu0 %v2926
    %v2928 = vpop.xlane.xlu0 %2927
    %v2929 = vrcp.pop %v2928
    %v2930 = vmul.f32 %v2925, %v2929
    %v2933 = vunpack.c.l.s4 1966171168
    %v2934 = vunpack.c.0.s8 %v2933
    %v2935 = vlaneseq
    %v2936 = vshrl.u32 %v2935, 7
    %v2937 = vsub.s32 %v2934, %v2936
    %v2938 = vrot.slane %v2930, %v2937
    %v2939 = vcombine.high %v2938, %v2938
    %v2941 = vunpack.c.l.s4 1966171168
    %v2942 = vunpack.c.0.s8 %v2941
    %v2943 = vlaneseq
    %v2944 = vshrl.u32 %v2943, 7
    %v2945 = vsub.s32 %v2942, %v2944
    %v2946 = vrot.slane %v2938, %v2945
    %v2948 = vunpack.c.l.s4 1966171168
    %v2949 = vunpack.c.0.s8 %v2948
    %v2950 = vlaneseq
    %v2951 = vshrl.u32 %v2950, 7
    %v2952 = vsub.s32 %v2949, %v2951
    %v2953 = vrot.slane %v2939, %v2952
    %v2954 = vsel %vm2012, %v2946, 0
    %2956 = vmatprep.subr.mxu0 0.0
    %2957 = vmatpush1.msra.mxu0 %v1571
    %2958 = vmatprep.subr.mxu0 0.0
    %2959 = vmatpush1.msra.mxu0 0.0
    %2960 = vmatprep.subr.mxu0 0.0
    %2961 = vmatpush1.msra.mxu0 0.0
    %2962 = vmatprep.subr.mxu0 0.0
    %2963 = vmatpush1.msra.mxu0 0.0
    %2964 = vmatprep.subr.mxu0 0.0
    %2965 = vmatpush1.msra.mxu0 0.0
    %2966 = vmatprep.subr.mxu0 0.0
    %2967 = vmatpush1.msra.mxu0 0.0
    %2968 = vmatprep.subr.mxu0 0.0
    %2969 = vmatpush1.msra.mxu0 0.0
    %2970 = vmatprep.subr.mxu0 0.0
    %2971 = vmatpush1.msra.mxu0 0.0
    %2972 = vmatprep.subr.mxu0 0.0
    %2973 = vmatpush1.msra.mxu0 0.0
    %2974 = vmatprep.subr.mxu0 0.0
    %2975 = vmatpush1.msra.mxu0 0.0
    %2976 = vmatprep.subr.mxu0 0.0
    %2977 = vmatpush1.msra.mxu0 0.0
    %2978 = vmatprep.subr.mxu0 0.0
    %2979 = vmatpush1.msra.mxu0 0.0
    %2980 = vmatprep.subr.mxu0 0.0
    %2981 = vmatpush1.msra.mxu0 0.0
    %2982 = vmatprep.subr.mxu0 0.0
    %2983 = vmatpush1.msra.mxu0 0.0
    %2984 = vmatprep.subr.mxu0 0.0
    %2985 = vmatpush1.msra.mxu0 0.0
    %2986 = vmatprep.subr.mxu0 0.0
    %2987 = vmatpush1.msra.mxu0 0.0
    %2988 = vmatprep.subr.mxu0 0.0
    %2989 = vmatpush1.msra.mxu0 0.0
    %2990 = vmatprep.subr.mxu0 0.0
    %2991 = vmatpush1.msra.mxu0 0.0
    %2992 = vmatprep.subr.mxu0 0.0
    %2993 = vmatpush1.msra.mxu0 0.0
    %2994 = vmatprep.subr.mxu0 0.0
    %2995 = vmatpush1.msra.mxu0 0.0
    %2996 = vmatprep.subr.mxu0 0.0
    %2997 = vmatpush1.msra.mxu0 0.0
    %2998 = vmatprep.subr.mxu0 0.0
    %2999 = vmatpush1.msra.mxu0 0.0
    %3000 = vmatprep.subr.mxu0 0.0
    %3001 = vmatpush1.msra.mxu0 0.0
    %3002 = vmatprep.subr.mxu0 0.0
    %3003 = vmatpush1.msra.mxu0 0.0
    %3004 = vmatprep.subr.mxu0 0.0
    %3005 = vmatpush1.msra.mxu0 0.0
    %3006 = vmatprep.subr.mxu0 0.0
    %3007 = vmatpush1.msra.mxu0 0.0
    %3008 = vmatprep.subr.mxu0 0.0
    %3009 = vmatpush1.msra.mxu0 0.0
    %3010 = vmatprep.subr.mxu0 0.0
    %3011 = vmatpush1.msra.mxu0 0.0
    %3012 = vmatprep.subr.mxu0 0.0
    %3013 = vmatpush1.msra.mxu0 0.0
    %3014 = vmatprep.subr.mxu0 0.0
    %3015 = vmatpush1.msra.mxu0 0.0
    %3016 = vmatprep.subr.mxu0 0.0
    %3017 = vmatpush1.msra.mxu0 0.0
    %3018 = vmatprep.subr.mxu0 0.0
    %3019 = vmatpush1.msra.mxu0 0.0
    %3020 = vmatprep.mubr.f32.mxu0 0.0
    %3021 = vmatmul.mubr.f32.gmra.mrb[0].mxu0 %v2954
    %v3022 = vpop.f32.mrb[0].mxu0
    %v3023 = vadd.f32 0.0, %v3022
    %v3024 = vpop.f32.mrb[0].mxu0
    %3025 = vdwg.mxu0
    %v3026 = vsel %vm2012, %v2953, 0
    %3028 = vmatprep.subr.mxu0 0.0
    %3029 = vmatpush1.msra.mxu0 %v1572
    %3030 = vmatprep.subr.mxu0 0.0
    %3031 = vmatpush1.msra.mxu0 0.0
    %3032 = vmatprep.subr.mxu0 0.0
    %3033 = vmatpush1.msra.mxu0 0.0
    %3034 = vmatprep.subr.mxu0 0.0
    %3035 = vmatpush1.msra.mxu0 0.0
    %3036 = vmatprep.subr.mxu0 0.0
    %3037 = vmatpush1.msra.mxu0 0.0
    %3038 = vmatprep.subr.mxu0 0.0
    %3039 = vmatpush1.msra.mxu0 0.0
    %3040 = vmatprep.subr.mxu0 0.0
    %3041 = vmatpush1.msra.mxu0 0.0
    %3042 = vmatprep.subr.mxu0 0.0
    %3043 = vmatpush1.msra.mxu0 0.0
    %3044 = vmatprep.subr.mxu0 0.0
    %3045 = vmatpush1.msra.mxu0 0.0
    %3046 = vmatprep.subr.mxu0 0.0
    %3047 = vmatpush1.msra.mxu0 0.0
    %3048 = vmatprep.subr.mxu0 0.0
    %3049 = vmatpush1.msra.mxu0 0.0
    %3050 = vmatprep.subr.mxu0 0.0
    %3051 = vmatpush1.msra.mxu0 0.0
    %3052 = vmatprep.subr.mxu0 0.0
    %3053 = vmatpush1.msra.mxu0 0.0
    %3054 = vmatprep.subr.mxu0 0.0
    %3055 = vmatpush1.msra.mxu0 0.0
    %3056 = vmatprep.subr.mxu0 0.0
    %3057 = vmatpush1.msra.mxu0 0.0
    %3058 = vmatprep.subr.mxu0 0.0
    %3059 = vmatpush1.msra.mxu0 0.0
    %3060 = vmatprep.subr.mxu0 0.0
    %3061 = vmatpush1.msra.mxu0 0.0
    %3062 = vmatprep.subr.mxu0 0.0
    %3063 = vmatpush1.msra.mxu0 0.0
    %3064 = vmatprep.subr.mxu0 0.0
    %3065 = vmatpush1.msra.mxu0 0.0
    %3066 = vmatprep.subr.mxu0 0.0
    %3067 = vmatpush1.msra.mxu0 0.0
    %3068 = vmatprep.subr.mxu0 0.0
    %3069 = vmatpush1.msra.mxu0 0.0
    %3070 = vmatprep.subr.mxu0 0.0
    %3071 = vmatpush1.msra.mxu0 0.0
    %3072 = vmatprep.subr.mxu0 0.0
    %3073 = vmatpush1.msra.mxu0 0.0
    %3074 = vmatprep.subr.mxu0 0.0
    %3075 = vmatpush1.msra.mxu0 0.0
    %3076 = vmatprep.subr.mxu0 0.0
    %3077 = vmatpush1.msra.mxu0 0.0
    %3078 = vmatprep.subr.mxu0 0.0
    %3079 = vmatpush1.msra.mxu0 0.0
    %3080 = vmatprep.subr.mxu0 0.0
    %3081 = vmatpush1.msra.mxu0 0.0
    %3082 = vmatprep.subr.mxu0 0.0
    %3083 = vmatpush1.msra.mxu0 0.0
    %3084 = vmatprep.subr.mxu0 0.0
    %3085 = vmatpush1.msra.mxu0 0.0
    %3086 = vmatprep.subr.mxu0 0.0
    %3087 = vmatpush1.msra.mxu0 0.0
    %3088 = vmatprep.subr.mxu0 0.0
    %3089 = vmatpush1.msra.mxu0 0.0
    %3090 = vmatprep.subr.mxu0 0.0
    %3091 = vmatpush1.msra.mxu0 0.0
    %3092 = vmatprep.mubr.f32.mxu0 0.0
    %3093 = vmatmul.mubr.f32.gmra.mrb[0].mxu0 %v3026
    %v3094 = vpop.f32.mrb[0].mxu0
    %v3095 = vadd.f32 0.0, %v3094
    %v3096 = vpop.f32.mrb[0].mxu0
    %3097 = vdwg.mxu0
    %v3100 = vrot.slane %v3095, 7
    %v3101 = vsel %vm1944, %v3100, %v3023
    %v3102 = vsel %vm353, %v3101, 0
    %3104 = vmatprep.subr.mxu0 0.0
    %3105 = vmatpush1.msra.mxu0 %v258
    %3106 = vmatprep.subr.mxu0 0.0
    %3107 = vmatpush1.msra.mxu0 %v259
    %3108 = vmatprep.subr.mxu0 0.0
    %3109 = vmatpush1.msra.mxu0 %v260
    %3110 = vmatprep.subr.mxu0 0.0
    %3111 = vmatpush1.msra.mxu0 %v261
    %3112 = vmatprep.subr.mxu0 0.0
    %3113 = vmatpush1.msra.mxu0 0.0
    %3114 = vmatprep.subr.mxu0 0.0
    %3115 = vmatpush1.msra.mxu0 0.0
    %3116 = vmatprep.subr.mxu0 0.0
    %3117 = vmatpush1.msra.mxu0 0.0
    %3118 = vmatprep.subr.mxu0 0.0
    %3119 = vmatpush1.msra.mxu0 0.0
    %3120 = vmatprep.subr.mxu0 0.0
    %3121 = vmatpush1.msra.mxu0 0.0
    %3122 = vmatprep.subr.mxu0 0.0
    %3123 = vmatpush1.msra.mxu0 0.0
    %3124 = vmatprep.subr.mxu0 0.0
    %3125 = vmatpush1.msra.mxu0 0.0
    %3126 = vmatprep.subr.mxu0 0.0
    %3127 = vmatpush1.msra.mxu0 0.0
    %3128 = vmatprep.subr.mxu0 0.0
    %3129 = vmatpush1.msra.mxu0 0.0
    %3130 = vmatprep.subr.mxu0 0.0
    %3131 = vmatpush1.msra.mxu0 0.0
    %3132 = vmatprep.subr.mxu0 0.0
    %3133 = vmatpush1.msra.mxu0 0.0
    %3134 = vmatprep.subr.mxu0 0.0
    %3135 = vmatpush1.msra.mxu0 0.0
    %3136 = vmatprep.subr.mxu0 0.0
    %3137 = vmatpush1.msra.mxu0 0.0
    %3138 = vmatprep.subr.mxu0 0.0
    %3139 = vmatpush1.msra.mxu0 0.0
    %3140 = vmatprep.subr.mxu0 0.0
    %3141 = vmatpush1.msra.mxu0 0.0
    %3142 = vmatprep.subr.mxu0 0.0
    %3143 = vmatpush1.msra.mxu0 0.0
    %3144 = vmatprep.subr.mxu0 0.0
    %3145 = vmatpush1.msra.mxu0 0.0
    %3146 = vmatprep.subr.mxu0 0.0
    %3147 = vmatpush1.msra.mxu0 0.0
    %3148 = vmatprep.subr.mxu0 0.0
    %3149 = vmatpush1.msra.mxu0 0.0
    %3150 = vmatprep.subr.mxu0 0.0
    %3151 = vmatpush1.msra.mxu0 0.0
    %3152 = vmatprep.subr.mxu0 0.0
    %3153 = vmatpush1.msra.mxu0 0.0
    %3154 = vmatprep.subr.mxu0 0.0
    %3155 = vmatpush1.msra.mxu0 0.0
    %3156 = vmatprep.subr.mxu0 0.0
    %3157 = vmatpush1.msra.mxu0 0.0
    %3158 = vmatprep.subr.mxu0 0.0
    %3159 = vmatpush1.msra.mxu0 0.0
    %3160 = vmatprep.subr.mxu0 0.0
    %3161 = vmatpush1.msra.mxu0 0.0
    %3162 = vmatprep.subr.mxu0 0.0
    %3163 = vmatpush1.msra.mxu0 0.0
    %3164 = vmatprep.subr.mxu0 0.0
    %3165 = vmatpush1.msra.mxu0 0.0
    %3166 = vmatprep.subr.mxu0 0.0
    %3167 = vmatpush1.msra.mxu0 0.0
    %3168 = vmatprep.mubr.f32.mxu0 0.0
    %3169 = vmatmul.mubr.f32.gmra.mrb[0].mxu0 %v3102
    %v3170 = vpop.f32.mrb[0].mxu0
    %v3171 = vadd.f32 %v2169, %v3170
    %v3172 = vpop.f32.mrb[0].mxu0
    %3173 = vdwg.mxu0
    %v3176 = vunpack.c.l.s4 1966171168
    %v3177 = vunpack.c.0.s8 %v3176
    %v3178 = vlaneseq
    %v3179 = vshrl.u32 %v3178, 7
    %v3180 = vsub.s32 %v3177, %v3179
    %v3181 = vrot.slane %v3171, %v3180
    %v3182 = vcombine.high %v3181, %v3181
    %v3184 = vunpack.c.l.s4 1966171168
    %v3185 = vunpack.c.0.s8 %v3184
    %v3186 = vlaneseq
    %v3187 = vshrl.u32 %v3186, 7
    %v3188 = vsub.s32 %v3185, %v3187
    %v3189 = vrot.slane %v3181, %v3188
    %v3191 = vunpack.c.l.s4 1966171168
    %v3192 = vunpack.c.0.s8 %v3191
    %v3193 = vlaneseq
    %v3194 = vshrl.u32 %v3193, 7
    %v3195 = vsub.s32 %v3192, %v3194
    %v3196 = vrot.slane %v3182, %v3195
    %v3197 = vlaneseq
    %v3198 = vshrl.u32 %v3197, 7
    %v3199 = vsub.s32 0, %v3198
    %v3200 = vrot.slane %v3189, %v3199
    %v3201 = vlaneseq
    %v3202 = vshrl.u32 %v3201, 7
    %v3203 = vsub.s32 0, %v3202
    %v3204 = vrot.slane %v3196, %v3203
    %3205 = vrot.lane.b32.xlu0 %v3200, 32
    %v3206 = vpop.permute.xlu0 %3205
    %3207 = vrot.lane.b32.xlu0 %v3204, 32
    %v3208 = vpop.permute.xlu0 %3207
    %v3211 = vadd.f32 %v1657, %v3206
    %v3212 = vadd.f32 %v1662, %v3208
    %v3213 = vtanh.pop %v3211
    %v3214 = vtanh.pop %v3212
    %v3215 = vmul.f32 %v3213, %v2294
    %v3216 = vmul.f32 %v3214, %v2294
    %3219 = vrot.lane.b32.xlu0 %v3215, 96
    %v3220 = vpop.permute.xlu0 %3219
    %3221 = vrot.lane.b32.xlu0 %v3216, 96
    %v3222 = vpop.permute.xlu0 %3221
    %v3225 = vsel %vm353, %v3220, 0.0
    %3226 = vadd.xlane.f32.xlu0 %v3225
    %v3227 = vpop.xlane.xlu0 %3226
    %v3228 = vsel %vm353, %v3222, 0.0
    %3229 = vadd.xlane.f32.xlu0 %v3228
    %v3230 = vpop.xlane.xlu0 %3229
    %v3231 = vadd.f32 %v3227, %v2319
    %v3232 = vadd.f32 %v3230, %v2319
    %v3235 = vlaneseq
    %v3236 = vshrl.u32 %v3235, 7
    %v3237 = vsub.s32 %v266, %v3236
    %v3238 = vrot.slane %v3231, %v3237
    %v3239 = vlaneseq
    %v3240 = vshrl.u32 %v3239, 7
    %v3241 = vsub.s32 %v266, %v3240
    %v3242 = vrot.slane %v3232, %v3241
    %v3243 = vsel %vm1944, %v3242, %v3238
    %v3245 = vsel %vm2903, -100000.0, %v3243
    %v3246 = vtanh.pop %v3245
    %v3247 = vmul.f32 %v3246, 10.0
    %v3248 = vsel %vm2903, -100000.0, %v3247
    %v3249 = vsel %vm1947, %v3248, -inf
    %3250 = vmax.xlane.f32.xlu0 %v3249
    %v3251 = vpop.xlane.xlu0 %3250
    %v3252 = vsub.f32 %v3248, %v3251
    %v3253 = vmul.f32 %v3252, 1.442695
    %v3254 = vpow.pop %v3253
    %v3255 = vsel %vm1947, %v3254, 0.0
    %3256 = vadd.xlane.f32.xlu0 %v3255
    %v3257 = vpop.xlane.xlu0 %3256
    %v3258 = vlog2.pop %v3257
    %v3259 = vmul.f32 %v3258, 0.6931472
    %v3260 = vsub.f32 %v3252, %v3259
    %s3261 = scalar_lea.vmem [#allocation25], 2
    %v3262 = vld [vmem:[%s3261] sm:$0x3]
    %v3263 = vadd.f32 %v3248, %v3262
    %v3264 = vsel %vm1947, %v3263, -inf
    %3265 = vmax.xlane.f32.xlu0 %v3264
    %v3266 = vpop.xlane.xlu0 %3265
    %vm3267 = vcmp.ge.f32.partialorder %v3263, %v3266
    %v3268 = vsel %vm3267, %v1665, 8.0
    %v3269 = vsel %vm1947, %v3268, inf
    %3270 = vmin.xlane.f32.xlu0 %v3269
    %v3271 = vpop.xlane.xlu0 %3270
    %vm3272 = vcmp.eq.f32.partialorder %v1665, %v3271
    %v3273 = vcvt.f32.s32.to.zero.pseudo %v3271
    %v3274 = vsel %vm3272, %v3260, 0.0
    %v3275 = vsel %vm1947, %v3274, 0.0
    %3276 = vadd.xlane.f32.xlu0 %v3275
    %v3277 = vpop.xlane.xlu0 %3276
    %vm3278 = vcmp.eq.s32.totalorder %v266, 1
    %v3279 = vsel %vm3278, %v3277, %v2506
    %v3280 = vsel %vm3278, %v3273, %v2507
    %v3281 = vsel %vm3272, 1.0, %v2508
    %v3282 = vsel %vm3272, 1, 0
    %v3283 = vcvt.s32.f32 %v3282
    %v3286 = vunpack.c.l.s4 1966171168
    %v3287 = vunpack.c.0.s8 %v3286
    %v3288 = vlaneseq
    %v3289 = vshrl.u32 %v3288, 7
    %v3290 = vsub.s32 %v3287, %v3289
    %v3291 = vrot.slane %v3283, %v3290
    %v3292 = vcombine.high %v3291, %v3291
    %v3294 = vunpack.c.l.s4 1966171168
    %v3295 = vunpack.c.0.s8 %v3294
    %v3296 = vlaneseq
    %v3297 = vshrl.u32 %v3296, 7
    %v3298 = vsub.s32 %v3295, %v3297
    %v3299 = vrot.slane %v3291, %v3298
    %v3301 = vunpack.c.l.s4 1966171168
    %v3302 = vunpack.c.0.s8 %v3301
    %v3303 = vlaneseq
    %v3304 = vshrl.u32 %v3303, 7
    %v3305 = vsub.s32 %v3302, %v3304
    %v3306 = vrot.slane %v3292, %v3305
    %v3307 = vsel %vm2012, %v3299, 0
    %3309 = vmatprep.subr.mxu0 0.0
    %3310 = vmatpush1.msra.mxu0 %v340
    %3311 = vmatprep.subr.mxu0 0.0
    %3312 = vmatpush1.msra.mxu0 0.0
    %3313 = vmatprep.subr.mxu0 0.0
    %3314 = vmatpush1.msra.mxu0 0.0
    %3315 = vmatprep.subr.mxu0 0.0
    %3316 = vmatpush1.msra.mxu0 0.0
    %3317 = vmatprep.subr.mxu0 0.0
    %3318 = vmatpush1.msra.mxu0 0.0
    %3319 = vmatprep.subr.mxu0 0.0
    %3320 = vmatpush1.msra.mxu0 0.0
    %3321 = vmatprep.subr.mxu0 0.0
    %3322 = vmatpush1.msra.mxu0 0.0
    %3323 = vmatprep.subr.mxu0 0.0
    %3324 = vmatpush1.msra.mxu0 0.0
    %3325 = vmatprep.subr.mxu0 0.0
    %3326 = vmatpush1.msra.mxu0 0.0
    %3327 = vmatprep.subr.mxu0 0.0
    %3328 = vmatpush1.msra.mxu0 0.0
    %3329 = vmatprep.subr.mxu0 0.0
    %3330 = vmatpush1.msra.mxu0 0.0
    %3331 = vmatprep.subr.mxu0 0.0
    %3332 = vmatpush1.msra.mxu0 0.0
    %3333 = vmatprep.subr.mxu0 0.0
    %3334 = vmatpush1.msra.mxu0 0.0
    %3335 = vmatprep.subr.mxu0 0.0
    %3336 = vmatpush1.msra.mxu0 0.0
    %3337 = vmatprep.subr.mxu0 0.0
    %3338 = vmatpush1.msra.mxu0 0.0
    %3339 = vmatprep.subr.mxu0 0.0
    %3340 = vmatpush1.msra.mxu0 0.0
    %3341 = vmatprep.subr.mxu0 0.0
    %3342 = vmatpush1.msra.mxu0 0.0
    %3343 = vmatprep.subr.mxu0 0.0
    %3344 = vmatpush1.msra.mxu0 0.0
    %3345 = vmatprep.subr.mxu0 0.0
    %3346 = vmatpush1.msra.mxu0 0.0
    %3347 = vmatprep.subr.mxu0 0.0
    %3348 = vmatpush1.msra.mxu0 0.0
    %3349 = vmatprep.subr.mxu0 0.0
    %3350 = vmatpush1.msra.mxu0 0.0
    %3351 = vmatprep.subr.mxu0 0.0
    %3352 = vmatpush1.msra.mxu0 0.0
    %3353 = vmatprep.subr.mxu0 0.0
    %3354 = vmatpush1.msra.mxu0 0.0
    %3355 = vmatprep.subr.mxu0 0.0
    %3356 = vmatpush1.msra.mxu0 0.0
    %3357 = vmatprep.subr.mxu0 0.0
    %3358 = vmatpush1.msra.mxu0 0.0
    %3359 = vmatprep.subr.mxu0 0.0
    %3360 = vmatpush1.msra.mxu0 0.0
    %3361 = vmatprep.subr.mxu0 0.0
    %3362 = vmatpush1.msra.mxu0 0.0
    %3363 = vmatprep.subr.mxu0 0.0
    %3364 = vmatpush1.msra.mxu0 0.0
    %3365 = vmatprep.subr.mxu0 0.0
    %3366 = vmatpush1.msra.mxu0 0.0
    %3367 = vmatprep.subr.mxu0 0.0
    %3368 = vmatpush1.msra.mxu0 0.0
    %3369 = vmatprep.subr.mxu0 0.0
    %3370 = vmatpush1.msra.mxu0 0.0
    %3371 = vmatprep.subr.mxu0 0.0
    %3372 = vmatpush1.msra.mxu0 0.0
    %3373 = vmatprep.mubr.f32.mxu0 0.0
    %3374 = vmatmul.mubr.f32.gmra.mrb[0].mxu0 %v3307
    %v3375 = vpop.f32.mrb[0].mxu0
    %v3376 = vadd.f32 0.0, %v3375
    %v3377 = vpop.f32.mrb[0].mxu0
    %3378 = vdwg.mxu0
    %v3379 = vsel %vm2012, %v3306, 0
    %3381 = vmatprep.subr.mxu0 0.0
    %3382 = vmatpush1.msra.mxu0 %v341
    %3383 = vmatprep.subr.mxu0 0.0
    %3384 = vmatpush1.msra.mxu0 0.0
    %3385 = vmatprep.subr.mxu0 0.0
    %3386 = vmatpush1.msra.mxu0 0.0
    %3387 = vmatprep.subr.mxu0 0.0
    %3388 = vmatpush1.msra.mxu0 0.0
    %3389 = vmatprep.subr.mxu0 0.0
    %3390 = vmatpush1.msra.mxu0 0.0
    %3391 = vmatprep.subr.mxu0 0.0
    %3392 = vmatpush1.msra.mxu0 0.0
    %3393 = vmatprep.subr.mxu0 0.0
    %3394 = vmatpush1.msra.mxu0 0.0
    %3395 = vmatprep.subr.mxu0 0.0
    %3396 = vmatpush1.msra.mxu0 0.0
    %3397 = vmatprep.subr.mxu0 0.0
    %3398 = vmatpush1.msra.mxu0 0.0
    %3399 = vmatprep.subr.mxu0 0.0
    %3400 = vmatpush1.msra.mxu0 0.0
    %3401 = vmatprep.subr.mxu0 0.0
    %3402 = vmatpush1.msra.mxu0 0.0
    %3403 = vmatprep.subr.mxu0 0.0
    %3404 = vmatpush1.msra.mxu0 0.0
    %3405 = vmatprep.subr.mxu0 0.0
    %3406 = vmatpush1.msra.mxu0 0.0
    %3407 = vmatprep.subr.mxu0 0.0
    %3408 = vmatpush1.msra.mxu0 0.0
    %3409 = vmatprep.subr.mxu0 0.0
    %3410 = vmatpush1.msra.mxu0 0.0
    %3411 = vmatprep.subr.mxu0 0.0
    %3412 = vmatpush1.msra.mxu0 0.0
    %3413 = vmatprep.subr.mxu0 0.0
    %3414 = vmatpush1.msra.mxu0 0.0
    %3415 = vmatprep.subr.mxu0 0.0
    %3416 = vmatpush1.msra.mxu0 0.0
    %3417 = vmatprep.subr.mxu0 0.0
    %3418 = vmatpush1.msra.mxu0 0.0
    %3419 = vmatprep.subr.mxu0 0.0
    %3420 = vmatpush1.msra.mxu0 0.0
    %3421 = vmatprep.subr.mxu0 0.0
    %3422 = vmatpush1.msra.mxu0 0.0
    %3423 = vmatprep.subr.mxu0 0.0
    %3424 = vmatpush1.msra.mxu0 0.0
    %3425 = vmatprep.subr.mxu0 0.0
    %3426 = vmatpush1.msra.mxu0 0.0
    %3427 = vmatprep.subr.mxu0 0.0
    %3428 = vmatpush1.msra.mxu0 0.0
    %3429 = vmatprep.subr.mxu0 0.0
    %3430 = vmatpush1.msra.mxu0 0.0
    %3431 = vmatprep.subr.mxu0 0.0
    %3432 = vmatpush1.msra.mxu0 0.0
    %3433 = vmatprep.subr.mxu0 0.0
    %3434 = vmatpush1.msra.mxu0 0.0
    %3435 = vmatprep.subr.mxu0 0.0
    %3436 = vmatpush1.msra.mxu0 0.0
    %3437 = vmatprep.subr.mxu0 0.0
    %3438 = vmatpush1.msra.mxu0 0.0
    %3439 = vmatprep.subr.mxu0 0.0
    %3440 = vmatpush1.msra.mxu0 0.0
    %3441 = vmatprep.subr.mxu0 0.0
    %3442 = vmatpush1.msra.mxu0 0.0
    %3443 = vmatprep.subr.mxu0 0.0
    %3444 = vmatpush1.msra.mxu0 0.0
    %3445 = vmatprep.mubr.f32.mxu0 0.0
    %3446 = vmatmul.mubr.f32.gmra.mrb[0].mxu0 %v3379
    %v3447 = vpop.f32.mrb[0].mxu0
    %v3448 = vadd.f32 0.0, %v3447
    %v3449 = vpop.f32.mrb[0].mxu0
    %3450 = vdwg.mxu0
    %v3453 = vrot.slane %v3448, 7
    %v3454 = vsel %vm1944, %v3453, %v3376
    %3456 = vrot.lane.b32.xlu0 %v2780, 64
    %v3457 = vpop.permute.xlu0 %3456
    %v3459 = vsel %vm353, %v3454, %v3457
    %v3461 = vsel %vm1684, %v3459, 0
    %3463 = vmatprep.subr.mxu0 0.0
    %3464 = vmatpush1.msra.mxu0 %v242
    %3465 = vmatprep.subr.mxu0 0.0
    %3466 = vmatpush1.msra.mxu0 %v243
    %3467 = vmatprep.subr.mxu0 0.0
    %3468 = vmatpush1.msra.mxu0 %v244
    %3469 = vmatprep.subr.mxu0 0.0
    %3470 = vmatpush1.msra.mxu0 %v245
    %3471 = vmatprep.subr.mxu0 0.0
    %3472 = vmatpush1.msra.mxu0 %v246
    %3473 = vmatprep.subr.mxu0 0.0
    %3474 = vmatpush1.msra.mxu0 %v247
    %3475 = vmatprep.subr.mxu0 0.0
    %3476 = vmatpush1.msra.mxu0 %v248
    %3477 = vmatprep.subr.mxu0 0.0
    %3478 = vmatpush1.msra.mxu0 %v249
    %3479 = vmatprep.subr.mxu0 0.0
    %3480 = vmatpush1.msra.mxu0 0.0
    %3481 = vmatprep.subr.mxu0 0.0
    %3482 = vmatpush1.msra.mxu0 0.0
    %3483 = vmatprep.subr.mxu0 0.0
    %3484 = vmatpush1.msra.mxu0 0.0
    %3485 = vmatprep.subr.mxu0 0.0
    %3486 = vmatpush1.msra.mxu0 0.0
    %3487 = vmatprep.subr.mxu0 0.0
    %3488 = vmatpush1.msra.mxu0 0.0
    %3489 = vmatprep.subr.mxu0 0.0
    %3490 = vmatpush1.msra.mxu0 0.0
    %3491 = vmatprep.subr.mxu0 0.0
    %3492 = vmatpush1.msra.mxu0 0.0
    %3493 = vmatprep.subr.mxu0 0.0
    %3494 = vmatpush1.msra.mxu0 0.0
    %3495 = vmatprep.subr.mxu0 0.0
    %3496 = vmatpush1.msra.mxu0 0.0
    %3497 = vmatprep.subr.mxu0 0.0
    %3498 = vmatpush1.msra.mxu0 0.0
    %3499 = vmatprep.subr.mxu0 0.0
    %3500 = vmatpush1.msra.mxu0 0.0
    %3501 = vmatprep.subr.mxu0 0.0
    %3502 = vmatpush1.msra.mxu0 0.0
    %3503 = vmatprep.subr.mxu0 0.0
    %3504 = vmatpush1.msra.mxu0 0.0
    %3505 = vmatprep.subr.mxu0 0.0
    %3506 = vmatpush1.msra.mxu0 0.0
    %3507 = vmatprep.subr.mxu0 0.0
    %3508 = vmatpush1.msra.mxu0 0.0
    %3509 = vmatprep.subr.mxu0 0.0
    %3510 = vmatpush1.msra.mxu0 0.0
    %3511 = vmatprep.subr.mxu0 0.0
    %3512 = vmatpush1.msra.mxu0 0.0
    %3513 = vmatprep.subr.mxu0 0.0
    %3514 = vmatpush1.msra.mxu0 0.0
    %3515 = vmatprep.subr.mxu0 0.0
    %3516 = vmatpush1.msra.mxu0 0.0
    %3517 = vmatprep.subr.mxu0 0.0
    %3518 = vmatpush1.msra.mxu0 0.0
    %3519 = vmatprep.subr.mxu0 0.0
    %3520 = vmatpush1.msra.mxu0 0.0
    %3521 = vmatprep.subr.mxu0 0.0
    %3522 = vmatpush1.msra.mxu0 0.0
    %3523 = vmatprep.subr.mxu0 0.0
    %3524 = vmatpush1.msra.mxu0 0.0
    %3525 = vmatprep.subr.mxu0 0.0
    %3526 = vmatpush1.msra.mxu0 0.0
    %3527 = vmatprep.mubr.f32.mxu0 0.0
    %3528 = vmatmul.mubr.f32.gmra.mrb[0].mxu0 %v3461
    %v3529 = vpop.f32.mrb[0].mxu0
    %v3530 = vadd.f32 %v1682, %v3529
    %v3531 = vpop.f32.mrb[0].mxu0
    %3532 = vdwg.mxu0
    %v3533 = vmul.f32 %v3530, %v270
    %v3534 = vtanh.pop %v3533
    %v3535 = vmul.f32 %v3534, %v270
    %v3536 = vadd.f32 %v3535, %v271
    %v3537 = vmul.f32 %v3536, %v2774
    %3539 = vrot.lane.b32.xlu0 %v3536, 64
    %v3540 = vpop.permute.xlu0 %3539
    %v3542 = vmul.f32 %v3536, %v3540
    %3544 = vrot.lane.b32.xlu0 %v3542, 32
    %v3545 = vpop.permute.xlu0 %3544
    %v3547 = vadd.f32 %v3537, %v3545
    %v3548 = vtanh.pop %v3547
    %3550 = vrot.lane.b32.xlu0 %v3548, 64
    %v3551 = vpop.permute.xlu0 %3550
    %v3553 = vmul.f32 %v3536, %v3551
    %3555 = vrot.lane.b32.xlu0 %v3553, 32
    %v3556 = vpop.permute.xlu0 %3555
    %v3557 = vsel %vm353, %v3556, 0
    %3559 = vmatprep.subr.mxu0 0.0
    %3560 = vmatpush1.msra.mxu0 %v251
    %3561 = vmatprep.subr.mxu0 0.0
    %3562 = vmatpush1.msra.mxu0 %v252
    %3563 = vmatprep.subr.mxu0 0.0
    %3564 = vmatpush1.msra.mxu0 %v253
    %3565 = vmatprep.subr.mxu0 0.0
    %3566 = vmatpush1.msra.mxu0 %v254
    %3567 = vmatprep.subr.mxu0 0.0
    %3568 = vmatpush1.msra.mxu0 0.0
    %3569 = vmatprep.subr.mxu0 0.0
    %3570 = vmatpush1.msra.mxu0 0.0
    %3571 = vmatprep.subr.mxu0 0.0
    %3572 = vmatpush1.msra.mxu0 0.0
    %3573 = vmatprep.subr.mxu0 0.0
    %3574 = vmatpush1.msra.mxu0 0.0
    %3575 = vmatprep.subr.mxu0 0.0
    %3576 = vmatpush1.msra.mxu0 0.0
    %3577 = vmatprep.subr.mxu0 0.0
    %3578 = vmatpush1.msra.mxu0 0.0
    %3579 = vmatprep.subr.mxu0 0.0
    %3580 = vmatpush1.msra.mxu0 0.0
    %3581 = vmatprep.subr.mxu0 0.0
    %3582 = vmatpush1.msra.mxu0 0.0
    %3583 = vmatprep.subr.mxu0 0.0
    %3584 = vmatpush1.msra.mxu0 0.0
    %3585 = vmatprep.subr.mxu0 0.0
    %3586 = vmatpush1.msra.mxu0 0.0
    %3587 = vmatprep.subr.mxu0 0.0
    %3588 = vmatpush1.msra.mxu0 0.0
    %3589 = vmatprep.subr.mxu0 0.0
    %3590 = vmatpush1.msra.mxu0 0.0
    %3591 = vmatprep.subr.mxu0 0.0
    %3592 = vmatpush1.msra.mxu0 0.0
    %3593 = vmatprep.subr.mxu0 0.0
    %3594 = vmatpush1.msra.mxu0 0.0
    %3595 = vmatprep.subr.mxu0 0.0
    %3596 = vmatpush1.msra.mxu0 0.0
    %3597 = vmatprep.subr.mxu0 0.0
    %3598 = vmatpush1.msra.mxu0 0.0
    %3599 = vmatprep.subr.mxu0 0.0
    %3600 = vmatpush1.msra.mxu0 0.0
    %3601 = vmatprep.subr.mxu0 0.0
    %3602 = vmatpush1.msra.mxu0 0.0
    %3603 = vmatprep.subr.mxu0 0.0
    %3604 = vmatpush1.msra.mxu0 0.0
    %3605 = vmatprep.subr.mxu0 0.0
    %3606 = vmatpush1.msra.mxu0 0.0
    %3607 = vmatprep.subr.mxu0 0.0
    %3608 = vmatpush1.msra.mxu0 0.0
    %3609 = vmatprep.subr.mxu0 0.0
    %3610 = vmatpush1.msra.mxu0 0.0
    %3611 = vmatprep.subr.mxu0 0.0
    %3612 = vmatpush1.msra.mxu0 0.0
    %3613 = vmatprep.subr.mxu0 0.0
    %3614 = vmatpush1.msra.mxu0 0.0
    %3615 = vmatprep.subr.mxu0 0.0
    %3616 = vmatpush1.msra.mxu0 0.0
    %3617 = vmatprep.subr.mxu0 0.0
    %3618 = vmatpush1.msra.mxu0 0.0
    %3619 = vmatprep.subr.mxu0 0.0
    %3620 = vmatpush1.msra.mxu0 0.0
    %3621 = vmatprep.subr.mxu0 0.0
    %3622 = vmatpush1.msra.mxu0 0.0
    %3623 = vmatprep.mubr.f32.mxu0 0.0
    %3624 = vmatmul.mubr.f32.gmra.mrb[0].mxu0 %v3557
    %v3625 = vpop.f32.mrb[0].mxu0
    %v3626 = vadd.f32 %v1786, %v3625
    %v3627 = vpop.f32.mrb[0].mxu0
    %3628 = vdwg.mxu0
    %v3631 = vunpack.c.l.s4 1966171168
    %v3632 = vunpack.c.0.s8 %v3631
    %v3633 = vlaneseq
    %v3634 = vshrl.u32 %v3633, 7
    %v3635 = vsub.s32 %v3632, %v3634
    %v3636 = vrot.slane %v3626, %v3635
    %v3637 = vcombine.high %v3636, %v3636
    %v3639 = vunpack.c.l.s4 1966171168
    %v3640 = vunpack.c.0.s8 %v3639
    %v3641 = vlaneseq
    %v3642 = vshrl.u32 %v3641, 7
    %v3643 = vsub.s32 %v3640, %v3642
    %v3644 = vrot.slane %v3636, %v3643
    %v3646 = vunpack.c.l.s4 1966171168
    %v3647 = vunpack.c.0.s8 %v3646
    %v3648 = vlaneseq
    %v3649 = vshrl.u32 %v3648, 7
    %v3650 = vsub.s32 %v3647, %v3649
    %v3651 = vrot.slane %v3637, %v3650
    %v3652 = vlaneseq
    %v3653 = vshrl.u32 %v3652, 7
    %v3654 = vsub.s32 0, %v3653
    %v3655 = vrot.slane %v3644, %v3654
    %v3656 = vlaneseq
    %v3657 = vshrl.u32 %v3656, 7
    %v3658 = vsub.s32 0, %v3657
    %v3659 = vrot.slane %v3651, %v3658
    %v3662 = vadd.f32 %v1657, %v3655
    %v3663 = vadd.f32 %v1662, %v3659
    %v3664 = vtanh.pop %v3662
    %v3665 = vtanh.pop %v3663
    %v3666 = vmul.f32 %v3664, %v1904
    %v3667 = vmul.f32 %v3665, %v1904
    %v3668 = vsel %vm353, %v3666, 0.0
    %3669 = vadd.xlane.f32.xlu0 %v3668
    %v3670 = vpop.xlane.xlu0 %3669
    %v3671 = vsel %vm353, %v3667, 0.0
    %3672 = vadd.xlane.f32.xlu0 %v3671
    %v3673 = vpop.xlane.xlu0 %3672
    %v3674 = vadd.f32 %v3670, %v1921
    %v3675 = vadd.f32 %v3673, %v1921
    %vm3676 = vcmp.gt.f32.partialorder %v3281, 0.5
    %v3679 = vlaneseq
    %v3680 = vshrl.u32 %v3679, 7
    %v3681 = vsub.s32 %v266, %v3680
    %v3682 = vrot.slane %v3674, %v3681
    %v3683 = vlaneseq
    %v3684 = vshrl.u32 %v3683, 7
    %v3685 = vsub.s32 %v266, %v3684
    %v3686 = vrot.slane %v3675, %v3685
    %v3687 = vsel %vm1944, %v3686, %v3682
    %v3689 = vsel %vm3676, -100000.0, %v3687
    %v3690 = vtanh.pop %v3689
    %v3691 = vmul.f32 %v3690, 10.0
    %v3692 = vsel %vm3676, -100000.0, %v3691
    %v3693 = vsel %vm1947, %v3692, -inf
    %3694 = vmax.xlane.f32.xlu0 %v3693
    %v3695 = vpop.xlane.xlu0 %3694
    %v3696 = vsub.f32 %v3692, %v3695
    %v3697 = vmul.f32 %v3696, 1.442695
    %v3698 = vpow.pop %v3697
    %v3699 = vsel %vm1947, %v3698, 0.0
    %3700 = vadd.xlane.f32.xlu0 %v3699
    %v3701 = vpop.xlane.xlu0 %3700
    %v3702 = vrcp.pop %v3701
    %v3703 = vmul.f32 %v3698, %v3702
    %v3706 = vunpack.c.l.s4 1966171168
    %v3707 = vunpack.c.0.s8 %v3706
    %v3708 = vlaneseq
    %v3709 = vshrl.u32 %v3708, 7
    %v3710 = vsub.s32 %v3707, %v3709
    %v3711 = vrot.slane %v3703, %v3710
    %v3712 = vcombine.high %v3711, %v3711
    %v3714 = vunpack.c.l.s4 1966171168
    %v3715 = vunpack.c.0.s8 %v3714
    %v3716 = vlaneseq
    %v3717 = vshrl.u32 %v3716, 7
    %v3718 = vsub.s32 %v3715, %v3717
    %v3719 = vrot.slane %v3711, %v3718
    %v3721 = vunpack.c.l.s4 1966171168
    %v3722 = vunpack.c.0.s8 %v3721
    %v3723 = vlaneseq
    %v3724 = vshrl.u32 %v3723, 7
    %v3725 = vsub.s32 %v3722, %v3724
    %v3726 = vrot.slane %v3712, %v3725
    %v3727 = vsel %vm2012, %v3719, 0
    %3729 = vmatprep.subr.mxu0 0.0
    %3730 = vmatpush1.msra.mxu0 %v1571
    %3731 = vmatprep.subr.mxu0 0.0
    %3732 = vmatpush1.msra.mxu0 0.0
    %3733 = vmatprep.subr.mxu0 0.0
    %3734 = vmatpush1.msra.mxu0 0.0
    %3735 = vmatprep.subr.mxu0 0.0
    %3736 = vmatpush1.msra.mxu0 0.0
    %3737 = vmatprep.subr.mxu0 0.0
    %3738 = vmatpush1.msra.mxu0 0.0
    %3739 = vmatprep.subr.mxu0 0.0
    %3740 = vmatpush1.msra.mxu0 0.0
    %3741 = vmatprep.subr.mxu0 0.0
    %3742 = vmatpush1.msra.mxu0 0.0
    %3743 = vmatprep.subr.mxu0 0.0
    %3744 = vmatpush1.msra.mxu0 0.0
    %3745 = vmatprep.subr.mxu0 0.0
    %3746 = vmatpush1.msra.mxu0 0.0
    %3747 = vmatprep.subr.mxu0 0.0
    %3748 = vmatpush1.msra.mxu0 0.0
    %3749 = vmatprep.subr.mxu0 0.0
    %3750 = vmatpush1.msra.mxu0 0.0
    %3751 = vmatprep.subr.mxu0 0.0
    %3752 = vmatpush1.msra.mxu0 0.0
    %3753 = vmatprep.subr.mxu0 0.0
    %3754 = vmatpush1.msra.mxu0 0.0
    %3755 = vmatprep.subr.mxu0 0.0
    %3756 = vmatpush1.msra.mxu0 0.0
    %3757 = vmatprep.subr.mxu0 0.0
    %3758 = vmatpush1.msra.mxu0 0.0
    %3759 = vmatprep.subr.mxu0 0.0
    %3760 = vmatpush1.msra.mxu0 0.0
    %3761 = vmatprep.subr.mxu0 0.0
    %3762 = vmatpush1.msra.mxu0 0.0
    %3763 = vmatprep.subr.mxu0 0.0
    %3764 = vmatpush1.msra.mxu0 0.0
    %3765 = vmatprep.subr.mxu0 0.0
    %3766 = vmatpush1.msra.mxu0 0.0
    %3767 = vmatprep.subr.mxu0 0.0
    %3768 = vmatpush1.msra.mxu0 0.0
    %3769 = vmatprep.subr.mxu0 0.0
    %3770 = vmatpush1.msra.mxu0 0.0
    %3771 = vmatprep.subr.mxu0 0.0
    %3772 = vmatpush1.msra.mxu0 0.0
    %3773 = vmatprep.subr.mxu0 0.0
    %3774 = vmatpush1.msra.mxu0 0.0
    %3775 = vmatprep.subr.mxu0 0.0
    %3776 = vmatpush1.msra.mxu0 0.0
    %3777 = vmatprep.subr.mxu0 0.0
    %3778 = vmatpush1.msra.mxu0 0.0
    %3779 = vmatprep.subr.mxu0 0.0
    %3780 = vmatpush1.msra.mxu0 0.0
    %3781 = vmatprep.subr.mxu0 0.0
    %3782 = vmatpush1.msra.mxu0 0.0
    %3783 = vmatprep.subr.mxu0 0.0
    %3784 = vmatpush1.msra.mxu0 0.0
    %3785 = vmatprep.subr.mxu0 0.0
    %3786 = vmatpush1.msra.mxu0 0.0
    %3787 = vmatprep.subr.mxu0 0.0
    %3788 = vmatpush1.msra.mxu0 0.0
    %3789 = vmatprep.subr.mxu0 0.0
    %3790 = vmatpush1.msra.mxu0 0.0
    %3791 = vmatprep.subr.mxu0 0.0
    %3792 = vmatpush1.msra.mxu0 0.0
    %3793 = vmatprep.mubr.f32.mxu0 0.0
    %3794 = vmatmul.mubr.f32.gmra.mrb[0].mxu0 %v3727
    %v3795 = vpop.f32.mrb[0].mxu0
    %v3796 = vadd.f32 0.0, %v3795
    %v3797 = vpop.f32.mrb[0].mxu0
    %3798 = vdwg.mxu0
    %v3799 = vsel %vm2012, %v3726, 0
    %3801 = vmatprep.subr.mxu0 0.0
    %3802 = vmatpush1.msra.mxu0 %v1572
    %3803 = vmatprep.subr.mxu0 0.0
    %3804 = vmatpush1.msra.mxu0 0.0
    %3805 = vmatprep.subr.mxu0 0.0
    %3806 = vmatpush1.msra.mxu0 0.0
    %3807 = vmatprep.subr.mxu0 0.0
    %3808 = vmatpush1.msra.mxu0 0.0
    %3809 = vmatprep.subr.mxu0 0.0
    %3810 = vmatpush1.msra.mxu0 0.0
    %3811 = vmatprep.subr.mxu0 0.0
    %3812 = vmatpush1.msra.mxu0 0.0
    %3813 = vmatprep.subr.mxu0 0.0
    %3814 = vmatpush1.msra.mxu0 0.0
    %3815 = vmatprep.subr.mxu0 0.0
    %3816 = vmatpush1.msra.mxu0 0.0
    %3817 = vmatprep.subr.mxu0 0.0
    %3818 = vmatpush1.msra.mxu0 0.0
    %3819 = vmatprep.subr.mxu0 0.0
    %3820 = vmatpush1.msra.mxu0 0.0
    %3821 = vmatprep.subr.mxu0 0.0
    %3822 = vmatpush1.msra.mxu0 0.0
    %3823 = vmatprep.subr.mxu0 0.0
    %3824 = vmatpush1.msra.mxu0 0.0
    %3825 = vmatprep.subr.mxu0 0.0
    %3826 = vmatpush1.msra.mxu0 0.0
    %3827 = vmatprep.subr.mxu0 0.0
    %3828 = vmatpush1.msra.mxu0 0.0
    %3829 = vmatprep.subr.mxu0 0.0
    %3830 = vmatpush1.msra.mxu0 0.0
    %3831 = vmatprep.subr.mxu0 0.0
    %3832 = vmatpush1.msra.mxu0 0.0
    %3833 = vmatprep.subr.mxu0 0.0
    %3834 = vmatpush1.msra.mxu0 0.0
    %3835 = vmatprep.subr.mxu0 0.0
    %3836 = vmatpush1.msra.mxu0 0.0
    %3837 = vmatprep.subr.mxu0 0.0
    %3838 = vmatpush1.msra.mxu0 0.0
    %3839 = vmatprep.subr.mxu0 0.0
    %3840 = vmatpush1.msra.mxu0 0.0
    %3841 = vmatprep.subr.mxu0 0.0
    %3842 = vmatpush1.msra.mxu0 0.0
    %3843 = vmatprep.subr.mxu0 0.0
    %3844 = vmatpush1.msra.mxu0 0.0
    %3845 = vmatprep.subr.mxu0 0.0
    %3846 = vmatpush1.msra.mxu0 0.0
    %3847 = vmatprep.subr.mxu0 0.0
    %3848 = vmatpush1.msra.mxu0 0.0
    %3849 = vmatprep.subr.mxu0 0.0
    %3850 = vmatpush1.msra.mxu0 0.0
    %3851 = vmatprep.subr.mxu0 0.0
    %3852 = vmatpush1.msra.mxu0 0.0
    %3853 = vmatprep.subr.mxu0 0.0
    %3854 = vmatpush1.msra.mxu0 0.0
    %3855 = vmatprep.subr.mxu0 0.0
    %3856 = vmatpush1.msra.mxu0 0.0
    %3857 = vmatprep.subr.mxu0 0.0
    %3858 = vmatpush1.msra.mxu0 0.0
    %3859 = vmatprep.subr.mxu0 0.0
    %3860 = vmatpush1.msra.mxu0 0.0
    %3861 = vmatprep.subr.mxu0 0.0
    %3862 = vmatpush1.msra.mxu0 0.0
    %3863 = vmatprep.subr.mxu0 0.0
    %3864 = vmatpush1.msra.mxu0 0.0
    %3865 = vmatprep.mubr.f32.mxu0 0.0
    %3866 = vmatmul.mubr.f32.gmra.mrb[0].mxu0 %v3799
    %v3867 = vpop.f32.mrb[0].mxu0
    %v3868 = vadd.f32 0.0, %v3867
    %v3869 = vpop.f32.mrb[0].mxu0
    %3870 = vdwg.mxu0
    %v3873 = vrot.slane %v3868, 7
    %v3874 = vsel %vm1944, %v3873, %v3796
    %v3875 = vsel %vm353, %v3874, 0
    %3877 = vmatprep.subr.mxu0 0.0
    %3878 = vmatpush1.msra.mxu0 %v258
    %3879 = vmatprep.subr.mxu0 0.0
    %3880 = vmatpush1.msra.mxu0 %v259
    %3881 = vmatprep.subr.mxu0 0.0
    %3882 = vmatpush1.msra.mxu0 %v260
    %3883 = vmatprep.subr.mxu0 0.0
    %3884 = vmatpush1.msra.mxu0 %v261
    %3885 = vmatprep.subr.mxu0 0.0
    %3886 = vmatpush1.msra.mxu0 0.0
    %3887 = vmatprep.subr.mxu0 0.0
    %3888 = vmatpush1.msra.mxu0 0.0
    %3889 = vmatprep.subr.mxu0 0.0
    %3890 = vmatpush1.msra.mxu0 0.0
    %3891 = vmatprep.subr.mxu0 0.0
    %3892 = vmatpush1.msra.mxu0 0.0
    %3893 = vmatprep.subr.mxu0 0.0
    %3894 = vmatpush1.msra.mxu0 0.0
    %3895 = vmatprep.subr.mxu0 0.0
    %3896 = vmatpush1.msra.mxu0 0.0
    %3897 = vmatprep.subr.mxu0 0.0
    %3898 = vmatpush1.msra.mxu0 0.0
    %3899 = vmatprep.subr.mxu0 0.0
    %3900 = vmatpush1.msra.mxu0 0.0
    %3901 = vmatprep.subr.mxu0 0.0
    %3902 = vmatpush1.msra.mxu0 0.0
    %3903 = vmatprep.subr.mxu0 0.0
    %3904 = vmatpush1.msra.mxu0 0.0
    %3905 = vmatprep.subr.mxu0 0.0
    %3906 = vmatpush1.msra.mxu0 0.0
    %3907 = vmatprep.subr.mxu0 0.0
    %3908 = vmatpush1.msra.mxu0 0.0
    %3909 = vmatprep.subr.mxu0 0.0
    %3910 = vmatpush1.msra.mxu0 0.0
    %3911 = vmatprep.subr.mxu0 0.0
    %3912 = vmatpush1.msra.mxu0 0.0
    %3913 = vmatprep.subr.mxu0 0.0
    %3914 = vmatpush1.msra.mxu0 0.0
    %3915 = vmatprep.subr.mxu0 0.0
    %3916 = vmatpush1.msra.mxu0 0.0
    %3917 = vmatprep.subr.mxu0 0.0
    %3918 = vmatpush1.msra.mxu0 0.0
    %3919 = vmatprep.subr.mxu0 0.0
    %3920 = vmatpush1.msra.mxu0 0.0
    %3921 = vmatprep.subr.mxu0 0.0
    %3922 = vmatpush1.msra.mxu0 0.0
    %3923 = vmatprep.subr.mxu0 0.0
    %3924 = vmatpush1.msra.mxu0 0.0
    %3925 = vmatprep.subr.mxu0 0.0
    %3926 = vmatpush1.msra.mxu0 0.0
    %3927 = vmatprep.subr.mxu0 0.0
    %3928 = vmatpush1.msra.mxu0 0.0
    %3929 = vmatprep.subr.mxu0 0.0
    %3930 = vmatpush1.msra.mxu0 0.0
    %3931 = vmatprep.subr.mxu0 0.0
    %3932 = vmatpush1.msra.mxu0 0.0
    %3933 = vmatprep.subr.mxu0 0.0
    %3934 = vmatpush1.msra.mxu0 0.0
    %3935 = vmatprep.subr.mxu0 0.0
    %3936 = vmatpush1.msra.mxu0 0.0
    %3937 = vmatprep.subr.mxu0 0.0
    %3938 = vmatpush1.msra.mxu0 0.0
    %3939 = vmatprep.subr.mxu0 0.0
    %3940 = vmatpush1.msra.mxu0 0.0
    %3941 = vmatprep.mubr.f32.mxu0 0.0
    %3942 = vmatmul.mubr.f32.gmra.mrb[0].mxu0 %v3875
    %v3943 = vpop.f32.mrb[0].mxu0
    %v3944 = vadd.f32 %v2169, %v3943
    %v3945 = vpop.f32.mrb[0].mxu0
    %3946 = vdwg.mxu0
    %v3949 = vunpack.c.l.s4 1966171168
    %v3950 = vunpack.c.0.s8 %v3949
    %v3951 = vlaneseq
    %v3952 = vshrl.u32 %v3951, 7
    %v3953 = vsub.s32 %v3950, %v3952
    %v3954 = vrot.slane %v3944, %v3953
    %v3955 = vcombine.high %v3954, %v3954
    %v3957 = vunpack.c.l.s4 1966171168
    %v3958 = vunpack.c.0.s8 %v3957
    %v3959 = vlaneseq
    %v3960 = vshrl.u32 %v3959, 7
    %v3961 = vsub.s32 %v3958, %v3960
    %v3962 = vrot.slane %v3954, %v3961
    %v3964 = vunpack.c.l.s4 1966171168
    %v3965 = vunpack.c.0.s8 %v3964
    %v3966 = vlaneseq
    %v3967 = vshrl.u32 %v3966, 7
    %v3968 = vsub.s32 %v3965, %v3967
    %v3969 = vrot.slane %v3955, %v3968
    %v3970 = vlaneseq
    %v3971 = vshrl.u32 %v3970, 7
    %v3972 = vsub.s32 0, %v3971
    %v3973 = vrot.slane %v3962, %v3972
    %v3974 = vlaneseq
    %v3975 = vshrl.u32 %v3974, 7
    %v3976 = vsub.s32 0, %v3975
    %v3977 = vrot.slane %v3969, %v3976
    %3978 = vrot.lane.b32.xlu0 %v3973, 32
    %v3979 = vpop.permute.xlu0 %3978
    %3980 = vrot.lane.b32.xlu0 %v3977, 32
    %v3981 = vpop.permute.xlu0 %3980
    %v3984 = vadd.f32 %v1657, %v3979
    %v3985 = vadd.f32 %v1662, %v3981
    %v3986 = vtanh.pop %v3984
    %v3987 = vtanh.pop %v3985
    %v3988 = vmul.f32 %v3986, %v2294
    %v3989 = vmul.f32 %v3987, %v2294
    %3992 = vrot.lane.b32.xlu0 %v3988, 96
    %v3993 = vpop.permute.xlu0 %3992
    %3994 = vrot.lane.b32.xlu0 %v3989, 96
    %v3995 = vpop.permute.xlu0 %3994
    %v3998 = vsel %vm353, %v3993, 0.0
    %3999 = vadd.xlane.f32.xlu0 %v3998
    %v4000 = vpop.xlane.xlu0 %3999
    %v4001 = vsel %vm353, %v3995, 0.0
    %4002 = vadd.xlane.f32.xlu0 %v4001
    %v4003 = vpop.xlane.xlu0 %4002
    %v4004 = vadd.f32 %v4000, %v2319
    %v4005 = vadd.f32 %v4003, %v2319
    %v4008 = vlaneseq
    %v4009 = vshrl.u32 %v4008, 7
    %v4010 = vsub.s32 %v266, %v4009
    %v4011 = vrot.slane %v4004, %v4010
    %v4012 = vlaneseq
    %v4013 = vshrl.u32 %v4012, 7
    %v4014 = vsub.s32 %v266, %v4013
    %v4015 = vrot.slane %v4005, %v4014
    %v4016 = vsel %vm1944, %v4015, %v4011
    %v4018 = vsel %vm3676, -100000.0, %v4016
    %v4019 = vtanh.pop %v4018
    %v4020 = vmul.f32 %v4019, 10.0
    %v4021 = vsel %vm3676, -100000.0, %v4020
    %v4022 = vsel %vm1947, %v4021, -inf
    %4023 = vmax.xlane.f32.xlu0 %v4022
    %v4024 = vpop.xlane.xlu0 %4023
    %v4025 = vsub.f32 %v4021, %v4024
    %v4026 = vmul.f32 %v4025, 1.442695
    %v4027 = vpow.pop %v4026
    %v4028 = vsel %vm1947, %v4027, 0.0
    %4029 = vadd.xlane.f32.xlu0 %v4028
    %v4030 = vpop.xlane.xlu0 %4029
    %v4031 = vlog2.pop %v4030
    %v4032 = vmul.f32 %v4031, 0.6931472
    %v4033 = vsub.f32 %v4025, %v4032
    %s4034 = scalar_lea.vmem [#allocation25], 4
    %v4035 = vld [vmem:[%s4034] sm:$0x3]
    %v4036 = vadd.f32 %v4021, %v4035
    %v4037 = vsel %vm1947, %v4036, -inf
    %4038 = vmax.xlane.f32.xlu0 %v4037
    %v4039 = vpop.xlane.xlu0 %4038
    %vm4040 = vcmp.ge.f32.partialorder %v4036, %v4039
    %v4041 = vsel %vm4040, %v1665, 8.0
    %v4042 = vsel %vm1947, %v4041, inf
    %4043 = vmin.xlane.f32.xlu0 %v4042
    %v4044 = vpop.xlane.xlu0 %4043
    %vm4045 = vcmp.eq.f32.partialorder %v1665, %v4044
    %v4046 = vcvt.f32.s32.to.zero.pseudo %v4044
    %v4047 = vsel %vm4045, %v4033, 0.0
    %v4048 = vsel %vm1947, %v4047, 0.0
    %4049 = vadd.xlane.f32.xlu0 %v4048
    %v4050 = vpop.xlane.xlu0 %4049
    %vm4051 = vcmp.eq.s32.totalorder %v266, 2
    %v4052 = vsel %vm4051, %v4050, %v3279
    %v4053 = vsel %vm4051, %v4046, %v3280
    %v4054 = vsel %vm4045, 1.0, %v3281
    %v4055 = vsel %vm4045, 1, 0
    %v4056 = vcvt.s32.f32 %v4055
    %v4059 = vunpack.c.l.s4 1966171168
    %v4060 = vunpack.c.0.s8 %v4059
    %v4061 = vlaneseq
    %v4062 = vshrl.u32 %v4061, 7
    %v4063 = vsub.s32 %v4060, %v4062
    %v4064 = vrot.slane %v4056, %v4063
    %v4065 = vcombine.high %v4064, %v4064
    %v4067 = vunpack.c.l.s4 1966171168
    %v4068 = vunpack.c.0.s8 %v4067
    %v4069 = vlaneseq
    %v4070 = vshrl.u32 %v4069, 7
    %v4071 = vsub.s32 %v4068, %v4070
    %v4072 = vrot.slane %v4064, %v4071
    %v4074 = vunpack.c.l.s4 1966171168
    %v4075 = vunpack.c.0.s8 %v4074
    %v4076 = vlaneseq
    %v4077 = vshrl.u32 %v4076, 7
    %v4078 = vsub.s32 %v4075, %v4077
    %v4079 = vrot.slane %v4065, %v4078
    %v4080 = vsel %vm2012, %v4072, 0
    %4082 = vmatprep.subr.mxu0 0.0
    %4083 = vmatpush1.msra.mxu0 %v340
    %4084 = vmatprep.subr.mxu0 0.0
    %4085 = vmatpush1.msra.mxu0 0.0
    %4086 = vmatprep.subr.mxu0 0.0
    %4087 = vmatpush1.msra.mxu0 0.0
    %4088 = vmatprep.subr.mxu0 0.0
    %4089 = vmatpush1.msra.mxu0 0.0
    %4090 = vmatprep.subr.mxu0 0.0
    %4091 = vmatpush1.msra.mxu0 0.0
    %4092 = vmatprep.subr.mxu0 0.0
    %4093 = vmatpush1.msra.mxu0 0.0
    %4094 = vmatprep.subr.mxu0 0.0
    %4095 = vmatpush1.msra.mxu0 0.0
    %4096 = vmatprep.subr.mxu0 0.0
    %4097 = vmatpush1.msra.mxu0 0.0
    %4098 = vmatprep.subr.mxu0 0.0
    %4099 = vmatpush1.msra.mxu0 0.0
    %4100 = vmatprep.subr.mxu0 0.0
    %4101 = vmatpush1.msra.mxu0 0.0
    %4102 = vmatprep.subr.mxu0 0.0
    %4103 = vmatpush1.msra.mxu0 0.0
    %4104 = vmatprep.subr.mxu0 0.0
    %4105 = vmatpush1.msra.mxu0 0.0
    %4106 = vmatprep.subr.mxu0 0.0
    %4107 = vmatpush1.msra.mxu0 0.0
    %4108 = vmatprep.subr.mxu0 0.0
    %4109 = vmatpush1.msra.mxu0 0.0
    %4110 = vmatprep.subr.mxu0 0.0
    %4111 = vmatpush1.msra.mxu0 0.0
    %4112 = vmatprep.subr.mxu0 0.0
    %4113 = vmatpush1.msra.mxu0 0.0
    %4114 = vmatprep.subr.mxu0 0.0
    %4115 = vmatpush1.msra.mxu0 0.0
    %4116 = vmatprep.subr.mxu0 0.0
    %4117 = vmatpush1.msra.mxu0 0.0
    %4118 = vmatprep.subr.mxu0 0.0
    %4119 = vmatpush1.msra.mxu0 0.0
    %4120 = vmatprep.subr.mxu0 0.0
    %4121 = vmatpush1.msra.mxu0 0.0
    %4122 = vmatprep.subr.mxu0 0.0
    %4123 = vmatpush1.msra.mxu0 0.0
    %4124 = vmatprep.subr.mxu0 0.0
    %4125 = vmatpush1.msra.mxu0 0.0
    %4126 = vmatprep.subr.mxu0 0.0
    %4127 = vmatpush1.msra.mxu0 0.0
    %4128 = vmatprep.subr.mxu0 0.0
    %4129 = vmatpush1.msra.mxu0 0.0
    %4130 = vmatprep.subr.mxu0 0.0
    %4131 = vmatpush1.msra.mxu0 0.0
    %4132 = vmatprep.subr.mxu0 0.0
    %4133 = vmatpush1.msra.mxu0 0.0
    %4134 = vmatprep.subr.mxu0 0.0
    %4135 = vmatpush1.msra.mxu0 0.0
    %4136 = vmatprep.subr.mxu0 0.0
    %4137 = vmatpush1.msra.mxu0 0.0
    %4138 = vmatprep.subr.mxu0 0.0
    %4139 = vmatpush1.msra.mxu0 0.0
    %4140 = vmatprep.subr.mxu0 0.0
    %4141 = vmatpush1.msra.mxu0 0.0
    %4142 = vmatprep.subr.mxu0 0.0
    %4143 = vmatpush1.msra.mxu0 0.0
    %4144 = vmatprep.subr.mxu0 0.0
    %4145 = vmatpush1.msra.mxu0 0.0
    %4146 = vmatprep.mubr.f32.mxu0 0.0
    %4147 = vmatmul.mubr.f32.gmra.mrb[0].mxu0 %v4080
    %v4148 = vpop.f32.mrb[0].mxu0
    %v4149 = vadd.f32 0.0, %v4148
    %v4150 = vpop.f32.mrb[0].mxu0
    %4151 = vdwg.mxu0
    %v4152 = vsel %vm2012, %v4079, 0
    %4154 = vmatprep.subr.mxu0 0.0
    %4155 = vmatpush1.msra.mxu0 %v341
    %4156 = vmatprep.subr.mxu0 0.0
    %4157 = vmatpush1.msra.mxu0 0.0
    %4158 = vmatprep.subr.mxu0 0.0
    %4159 = vmatpush1.msra.mxu0 0.0
    %4160 = vmatprep.subr.mxu0 0.0
    %4161 = vmatpush1.msra.mxu0 0.0
    %4162 = vmatprep.subr.mxu0 0.0
    %4163 = vmatpush1.msra.mxu0 0.0
    %4164 = vmatprep.subr.mxu0 0.0
    %4165 = vmatpush1.msra.mxu0 0.0
    %4166 = vmatprep.subr.mxu0 0.0
    %4167 = vmatpush1.msra.mxu0 0.0
    %4168 = vmatprep.subr.mxu0 0.0
    %4169 = vmatpush1.msra.mxu0 0.0
    %4170 = vmatprep.subr.mxu0 0.0
    %4171 = vmatpush1.msra.mxu0 0.0
    %4172 = vmatprep.subr.mxu0 0.0
    %4173 = vmatpush1.msra.mxu0 0.0
    %4174 = vmatprep.subr.mxu0 0.0
    %4175 = vmatpush1.msra.mxu0 0.0
    %4176 = vmatprep.subr.mxu0 0.0
    %4177 = vmatpush1.msra.mxu0 0.0
    %4178 = vmatprep.subr.mxu0 0.0
    %4179 = vmatpush1.msra.mxu0 0.0
    %4180 = vmatprep.subr.mxu0 0.0
    %4181 = vmatpush1.msra.mxu0 0.0
    %4182 = vmatprep.subr.mxu0 0.0
    %4183 = vmatpush1.msra.mxu0 0.0
    %4184 = vmatprep.subr.mxu0 0.0
    %4185 = vmatpush1.msra.mxu0 0.0
    %4186 = vmatprep.subr.mxu0 0.0
    %4187 = vmatpush1.msra.mxu0 0.0
    %4188 = vmatprep.subr.mxu0 0.0
    %4189 = vmatpush1.msra.mxu0 0.0
    %4190 = vmatprep.subr.mxu0 0.0
    %4191 = vmatpush1.msra.mxu0 0.0
    %4192 = vmatprep.subr.mxu0 0.0
    %4193 = vmatpush1.msra.mxu0 0.0
    %4194 = vmatprep.subr.mxu0 0.0
    %4195 = vmatpush1.msra.mxu0 0.0
    %4196 = vmatprep.subr.mxu0 0.0
    %4197 = vmatpush1.msra.mxu0 0.0
    %4198 = vmatprep.subr.mxu0 0.0
    %4199 = vmatpush1.msra.mxu0 0.0
    %4200 = vmatprep.subr.mxu0 0.0
    %4201 = vmatpush1.msra.mxu0 0.0
    %4202 = vmatprep.subr.mxu0 0.0
    %4203 = vmatpush1.msra.mxu0 0.0
    %4204 = vmatprep.subr.mxu0 0.0
    %4205 = vmatpush1.msra.mxu0 0.0
    %4206 = vmatprep.subr.mxu0 0.0
    %4207 = vmatpush1.msra.mxu0 0.0
    %4208 = vmatprep.subr.mxu0 0.0
    %4209 = vmatpush1.msra.mxu0 0.0
    %4210 = vmatprep.subr.mxu0 0.0
    %4211 = vmatpush1.msra.mxu0 0.0
    %4212 = vmatprep.subr.mxu0 0.0
    %4213 = vmatpush1.msra.mxu0 0.0
    %4214 = vmatprep.subr.mxu0 0.0
    %4215 = vmatpush1.msra.mxu0 0.0
    %4216 = vmatprep.subr.mxu0 0.0
    %4217 = vmatpush1.msra.mxu0 0.0
    %4218 = vmatprep.mubr.f32.mxu0 0.0
    %4219 = vmatmul.mubr.f32.gmra.mrb[0].mxu0 %v4152
    %v4220 = vpop.f32.mrb[0].mxu0
    %v4221 = vadd.f32 0.0, %v4220
    %v4222 = vpop.f32.mrb[0].mxu0
    %4223 = vdwg.mxu0
    %v4226 = vrot.slane %v4221, 7
    %v4227 = vsel %vm1944, %v4226, %v4149
    %4229 = vrot.lane.b32.xlu0 %v3553, 64
    %v4230 = vpop.permute.xlu0 %4229
    %v4232 = vsel %vm353, %v4227, %v4230
    %v4234 = vsel %vm1684, %v4232, 0
    %4236 = vmatprep.subr.mxu0 0.0
    %4237 = vmatpush1.msra.mxu0 %v242
    %4238 = vmatprep.subr.mxu0 0.0
    %4239 = vmatpush1.msra.mxu0 %v243
    %4240 = vmatprep.subr.mxu0 0.0
    %4241 = vmatpush1.msra.mxu0 %v244
    %4242 = vmatprep.subr.mxu0 0.0
    %4243 = vmatpush1.msra.mxu0 %v245
    %4244 = vmatprep.subr.mxu0 0.0
    %4245 = vmatpush1.msra.mxu0 %v246
    %4246 = vmatprep.subr.mxu0 0.0
    %4247 = vmatpush1.msra.mxu0 %v247
    %4248 = vmatprep.subr.mxu0 0.0
    %4249 = vmatpush1.msra.mxu0 %v248
    %4250 = vmatprep.subr.mxu0 0.0
    %4251 = vmatpush1.msra.mxu0 %v249
    %4252 = vmatprep.subr.mxu0 0.0
    %4253 = vmatpush1.msra.mxu0 0.0
    %4254 = vmatprep.subr.mxu0 0.0
    %4255 = vmatpush1.msra.mxu0 0.0
    %4256 = vmatprep.subr.mxu0 0.0
    %4257 = vmatpush1.msra.mxu0 0.0
    %4258 = vmatprep.subr.mxu0 0.0
    %4259 = vmatpush1.msra.mxu0 0.0
    %4260 = vmatprep.subr.mxu0 0.0
    %4261 = vmatpush1.msra.mxu0 0.0
    %4262 = vmatprep.subr.mxu0 0.0
    %4263 = vmatpush1.msra.mxu0 0.0
    %4264 = vmatprep.subr.mxu0 0.0
    %4265 = vmatpush1.msra.mxu0 0.0
    %4266 = vmatprep.subr.mxu0 0.0
    %4267 = vmatpush1.msra.mxu0 0.0
    %4268 = vmatprep.subr.mxu0 0.0
    %4269 = vmatpush1.msra.mxu0 0.0
    %4270 = vmatprep.subr.mxu0 0.0
    %4271 = vmatpush1.msra.mxu0 0.0
    %4272 = vmatprep.subr.mxu0 0.0
    %4273 = vmatpush1.msra.mxu0 0.0
    %4274 = vmatprep.subr.mxu0 0.0
    %4275 = vmatpush1.msra.mxu0 0.0
    %4276 = vmatprep.subr.mxu0 0.0
    %4277 = vmatpush1.msra.mxu0 0.0
    %4278 = vmatprep.subr.mxu0 0.0
    %4279 = vmatpush1.msra.mxu0 0.0
    %4280 = vmatprep.subr.mxu0 0.0
    %4281 = vmatpush1.msra.mxu0 0.0
    %4282 = vmatprep.subr.mxu0 0.0
    %4283 = vmatpush1.msra.mxu0 0.0
    %4284 = vmatprep.subr.mxu0 0.0
    %4285 = vmatpush1.msra.mxu0 0.0
    %4286 = vmatprep.subr.mxu0 0.0
    %4287 = vmatpush1.msra.mxu0 0.0
    %4288 = vmatprep.subr.mxu0 0.0
    %4289 = vmatpush1.msra.mxu0 0.0
    %4290 = vmatprep.subr.mxu0 0.0
    %4291 = vmatpush1.msra.mxu0 0.0
    %4292 = vmatprep.subr.mxu0 0.0
    %4293 = vmatpush1.msra.mxu0 0.0
    %4294 = vmatprep.subr.mxu0 0.0
    %4295 = vmatpush1.msra.mxu0 0.0
    %4296 = vmatprep.subr.mxu0 0.0
    %4297 = vmatpush1.msra.mxu0 0.0
    %4298 = vmatprep.subr.mxu0 0.0
    %4299 = vmatpush1.msra.mxu0 0.0
    %4300 = vmatprep.mubr.f32.mxu0 0.0
    %4301 = vmatmul.mubr.f32.gmra.mrb[0].mxu0 %v4234
    %v4302 = vpop.f32.mrb[0].mxu0
    %v4303 = vadd.f32 %v1682, %v4302
    %v4304 = vpop.f32.mrb[0].mxu0
    %4305 = vdwg.mxu0
    %v4306 = vmul.f32 %v4303, %v270
    %v4307 = vtanh.pop %v4306
    %v4308 = vmul.f32 %v4307, %v270
    %v4309 = vadd.f32 %v4308, %v271
    %v4310 = vmul.f32 %v4309, %v3547
    %4312 = vrot.lane.b32.xlu0 %v4309, 64
    %v4313 = vpop.permute.xlu0 %4312
    %v4315 = vmul.f32 %v4309, %v4313
    %4317 = vrot.lane.b32.xlu0 %v4315, 32
    %v4318 = vpop.permute.xlu0 %4317
    %v4320 = vadd.f32 %v4310, %v4318
    %v4321 = vtanh.pop %v4320
    %4323 = vrot.lane.b32.xlu0 %v4321, 64
    %v4324 = vpop.permute.xlu0 %4323
    %v4326 = vmul.f32 %v4309, %v4324
    %4328 = vrot.lane.b32.xlu0 %v4326, 32
    %v4329 = vpop.permute.xlu0 %4328
    %v4330 = vsel %vm353, %v4329, 0
    %4332 = vmatprep.subr.mxu0 0.0
    %4333 = vmatpush1.msra.mxu0 %v251
    %4334 = vmatprep.subr.mxu0 0.0
    %4335 = vmatpush1.msra.mxu0 %v252
    %4336 = vmatprep.subr.mxu0 0.0
    %4337 = vmatpush1.msra.mxu0 %v253
    %4338 = vmatprep.subr.mxu0 0.0
    %4339 = vmatpush1.msra.mxu0 %v254
    %4340 = vmatprep.subr.mxu0 0.0
    %4341 = vmatpush1.msra.mxu0 0.0
    %4342 = vmatprep.subr.mxu0 0.0
    %4343 = vmatpush1.msra.mxu0 0.0
    %4344 = vmatprep.subr.mxu0 0.0
    %4345 = vmatpush1.msra.mxu0 0.0
    %4346 = vmatprep.subr.mxu0 0.0
    %4347 = vmatpush1.msra.mxu0 0.0
    %4348 = vmatprep.subr.mxu0 0.0
    %4349 = vmatpush1.msra.mxu0 0.0
    %4350 = vmatprep.subr.mxu0 0.0
    %4351 = vmatpush1.msra.mxu0 0.0
    %4352 = vmatprep.subr.mxu0 0.0
    %4353 = vmatpush1.msra.mxu0 0.0
    %4354 = vmatprep.subr.mxu0 0.0
    %4355 = vmatpush1.msra.mxu0 0.0
    %4356 = vmatprep.subr.mxu0 0.0
    %4357 = vmatpush1.msra.mxu0 0.0
    %4358 = vmatprep.subr.mxu0 0.0
    %4359 = vmatpush1.msra.mxu0 0.0
    %4360 = vmatprep.subr.mxu0 0.0
    %4361 = vmatpush1.msra.mxu0 0.0
    %4362 = vmatprep.subr.mxu0 0.0
    %4363 = vmatpush1.msra.mxu0 0.0
    %4364 = vmatprep.subr.mxu0 0.0
    %4365 = vmatpush1.msra.mxu0 0.0
    %4366 = vmatprep.subr.mxu0 0.0
    %4367 = vmatpush1.msra.mxu0 0.0
    %4368 = vmatprep.subr.mxu0 0.0
    %4369 = vmatpush1.msra.mxu0 0.0
    %4370 = vmatprep.subr.mxu0 0.0
    %4371 = vmatpush1.msra.mxu0 0.0
    %4372 = vmatprep.subr.mxu0 0.0
    %4373 = vmatpush1.msra.mxu0 0.0
    %4374 = vmatprep.subr.mxu0 0.0
    %4375 = vmatpush1.msra.mxu0 0.0
    %4376 = vmatprep.subr.mxu0 0.0
    %4377 = vmatpush1.msra.mxu0 0.0
    %4378 = vmatprep.subr.mxu0 0.0
    %4379 = vmatpush1.msra.mxu0 0.0
    %4380 = vmatprep.subr.mxu0 0.0
    %4381 = vmatpush1.msra.mxu0 0.0
    %4382 = vmatprep.subr.mxu0 0.0
    %4383 = vmatpush1.msra.mxu0 0.0
    %4384 = vmatprep.subr.mxu0 0.0
    %4385 = vmatpush1.msra.mxu0 0.0
    %4386 = vmatprep.subr.mxu0 0.0
    %4387 = vmatpush1.msra.mxu0 0.0
    %4388 = vmatprep.subr.mxu0 0.0
    %4389 = vmatpush1.msra.mxu0 0.0
    %4390 = vmatprep.subr.mxu0 0.0
    %4391 = vmatpush1.msra.mxu0 0.0
    %4392 = vmatprep.subr.mxu0 0.0
    %4393 = vmatpush1.msra.mxu0 0.0
    %4394 = vmatprep.subr.mxu0 0.0
    %4395 = vmatpush1.msra.mxu0 0.0
    %4396 = vmatprep.mubr.f32.mxu0 0.0
    %4397 = vmatmul.mubr.f32.gmra.mrb[0].mxu0 %v4330
    %v4398 = vpop.f32.mrb[0].mxu0
    %v4399 = vadd.f32 %v1786, %v4398
    %v4400 = vpop.f32.mrb[0].mxu0
    %4401 = vdwg.mxu0
    %v4404 = vunpack.c.l.s4 1966171168
    %v4405 = vunpack.c.0.s8 %v4404
    %v4406 = vlaneseq
    %v4407 = vshrl.u32 %v4406, 7
    %v4408 = vsub.s32 %v4405, %v4407
    %v4409 = vrot.slane %v4399, %v4408
    %v4410 = vcombine.high %v4409, %v4409
    %v4412 = vunpack.c.l.s4 1966171168
    %v4413 = vunpack.c.0.s8 %v4412
    %v4414 = vlaneseq
    %v4415 = vshrl.u32 %v4414, 7
    %v4416 = vsub.s32 %v4413, %v4415
    %v4417 = vrot.slane %v4409, %v4416
    %v4419 = vunpack.c.l.s4 1966171168
    %v4420 = vunpack.c.0.s8 %v4419
    %v4421 = vlaneseq
    %v4422 = vshrl.u32 %v4421, 7
    %v4423 = vsub.s32 %v4420, %v4422
    %v4424 = vrot.slane %v4410, %v4423
    %v4425 = vlaneseq
    %v4426 = vshrl.u32 %v4425, 7
    %v4427 = vsub.s32 0, %v4426
    %v4428 = vrot.slane %v4417, %v4427
    %v4429 = vlaneseq
    %v4430 = vshrl.u32 %v4429, 7
    %v4431 = vsub.s32 0, %v4430
    %v4432 = vrot.slane %v4424, %v4431
    %v4435 = vadd.f32 %v1657, %v4428
    %v4436 = vadd.f32 %v1662, %v4432
    %v4437 = vtanh.pop %v4435
    %v4438 = vtanh.pop %v4436
    %v4439 = vmul.f32 %v4437, %v1904
    %v4440 = vmul.f32 %v4438, %v1904
    %v4441 = vsel %vm353, %v4439, 0.0
    %4442 = vadd.xlane.f32.xlu0 %v4441
    %v4443 = vpop.xlane.xlu0 %4442
    %v4444 = vsel %vm353, %v4440, 0.0
    %4445 = vadd.xlane.f32.xlu0 %v4444
    %v4446 = vpop.xlane.xlu0 %4445
    %v4447 = vadd.f32 %v4443, %v1921
    %v4448 = vadd.f32 %v4446, %v1921
    %vm4449 = vcmp.gt.f32.partialorder %v4054, 0.5
    %v4452 = vlaneseq
    %v4453 = vshrl.u32 %v4452, 7
    %v4454 = vsub.s32 %v266, %v4453
    %v4455 = vrot.slane %v4447, %v4454
    %v4456 = vlaneseq
    %v4457 = vshrl.u32 %v4456, 7
    %v4458 = vsub.s32 %v266, %v4457
    %v4459 = vrot.slane %v4448, %v4458
    %v4460 = vsel %vm1944, %v4459, %v4455
    %v4462 = vsel %vm4449, -100000.0, %v4460
    %v4463 = vtanh.pop %v4462
    %v4464 = vmul.f32 %v4463, 10.0
    %v4465 = vsel %vm4449, -100000.0, %v4464
    %v4466 = vsel %vm1947, %v4465, -inf
    %4467 = vmax.xlane.f32.xlu0 %v4466
    %v4468 = vpop.xlane.xlu0 %4467
    %v4469 = vsub.f32 %v4465, %v4468
    %v4470 = vmul.f32 %v4469, 1.442695
    %v4471 = vpow.pop %v4470
    %v4472 = vsel %vm1947, %v4471, 0.0
    %4473 = vadd.xlane.f32.xlu0 %v4472
    %v4474 = vpop.xlane.xlu0 %4473
    %v4475 = vrcp.pop %v4474
    %v4476 = vmul.f32 %v4471, %v4475
    %v4479 = vunpack.c.l.s4 1966171168
    %v4480 = vunpack.c.0.s8 %v4479
    %v4481 = vlaneseq
    %v4482 = vshrl.u32 %v4481, 7
    %v4483 = vsub.s32 %v4480, %v4482
    %v4484 = vrot.slane %v4476, %v4483
    %v4485 = vcombine.high %v4484, %v4484
    %v4487 = vunpack.c.l.s4 1966171168
    %v4488 = vunpack.c.0.s8 %v4487
    %v4489 = vlaneseq
    %v4490 = vshrl.u32 %v4489, 7
    %v4491 = vsub.s32 %v4488, %v4490
    %v4492 = vrot.slane %v4484, %v4491
    %v4494 = vunpack.c.l.s4 1966171168
    %v4495 = vunpack.c.0.s8 %v4494
    %v4496 = vlaneseq
    %v4497 = vshrl.u32 %v4496, 7
    %v4498 = vsub.s32 %v4495, %v4497
    %v4499 = vrot.slane %v4485, %v4498
    %v4500 = vsel %vm2012, %v4492, 0
    %4502 = vmatprep.subr.mxu0 0.0
    %4503 = vmatpush1.msra.mxu0 %v1571
    %4504 = vmatprep.subr.mxu0 0.0
    %4505 = vmatpush1.msra.mxu0 0.0
    %4506 = vmatprep.subr.mxu0 0.0
    %4507 = vmatpush1.msra.mxu0 0.0
    %4508 = vmatprep.subr.mxu0 0.0
    %4509 = vmatpush1.msra.mxu0 0.0
    %4510 = vmatprep.subr.mxu0 0.0
    %4511 = vmatpush1.msra.mxu0 0.0
    %4512 = vmatprep.subr.mxu0 0.0
    %4513 = vmatpush1.msra.mxu0 0.0
    %4514 = vmatprep.subr.mxu0 0.0
    %4515 = vmatpush1.msra.mxu0 0.0
    %4516 = vmatprep.subr.mxu0 0.0
    %4517 = vmatpush1.msra.mxu0 0.0
    %4518 = vmatprep.subr.mxu0 0.0
    %4519 = vmatpush1.msra.mxu0 0.0
    %4520 = vmatprep.subr.mxu0 0.0
    %4521 = vmatpush1.msra.mxu0 0.0
    %4522 = vmatprep.subr.mxu0 0.0
    %4523 = vmatpush1.msra.mxu0 0.0
    %4524 = vmatprep.subr.mxu0 0.0
    %4525 = vmatpush1.msra.mxu0 0.0
    %4526 = vmatprep.subr.mxu0 0.0
    %4527 = vmatpush1.msra.mxu0 0.0
    %4528 = vmatprep.subr.mxu0 0.0
    %4529 = vmatpush1.msra.mxu0 0.0
    %4530 = vmatprep.subr.mxu0 0.0
    %4531 = vmatpush1.msra.mxu0 0.0
    %4532 = vmatprep.subr.mxu0 0.0
    %4533 = vmatpush1.msra.mxu0 0.0
    %4534 = vmatprep.subr.mxu0 0.0
    %4535 = vmatpush1.msra.mxu0 0.0
    %4536 = vmatprep.subr.mxu0 0.0
    %4537 = vmatpush1.msra.mxu0 0.0
    %4538 = vmatprep.subr.mxu0 0.0
    %4539 = vmatpush1.msra.mxu0 0.0
    %4540 = vmatprep.subr.mxu0 0.0
    %4541 = vmatpush1.msra.mxu0 0.0
    %4542 = vmatprep.subr.mxu0 0.0
    %4543 = vmatpush1.msra.mxu0 0.0
    %4544 = vmatprep.subr.mxu0 0.0
    %4545 = vmatpush1.msra.mxu0 0.0
    %4546 = vmatprep.subr.mxu0 0.0
    %4547 = vmatpush1.msra.mxu0 0.0
    %4548 = vmatprep.subr.mxu0 0.0
    %4549 = vmatpush1.msra.mxu0 0.0
    %4550 = vmatprep.subr.mxu0 0.0
    %4551 = vmatpush1.msra.mxu0 0.0
    %4552 = vmatprep.subr.mxu0 0.0
    %4553 = vmatpush1.msra.mxu0 0.0
    %4554 = vmatprep.subr.mxu0 0.0
    %4555 = vmatpush1.msra.mxu0 0.0
    %4556 = vmatprep.subr.mxu0 0.0
    %4557 = vmatpush1.msra.mxu0 0.0
    %4558 = vmatprep.subr.mxu0 0.0
    %4559 = vmatpush1.msra.mxu0 0.0
    %4560 = vmatprep.subr.mxu0 0.0
    %4561 = vmatpush1.msra.mxu0 0.0
    %4562 = vmatprep.subr.mxu0 0.0
    %4563 = vmatpush1.msra.mxu0 0.0
    %4564 = vmatprep.subr.mxu0 0.0
    %4565 = vmatpush1.msra.mxu0 0.0
    %4566 = vmatprep.mubr.f32.mxu0 0.0
    %4567 = vmatmul.mubr.f32.gmra.mrb[0].mxu0 %v4500
    %v4568 = vpop.f32.mrb[0].mxu0
    %v4569 = vadd.f32 0.0, %v4568
    %v4570 = vpop.f32.mrb[0].mxu0
    %4571 = vdwg.mxu0
    %v4572 = vsel %vm2012, %v4499, 0
    %4574 = vmatprep.subr.mxu0 0.0
    %4575 = vmatpush1.msra.mxu0 %v1572
    %4576 = vmatprep.subr.mxu0 0.0
    %4577 = vmatpush1.msra.mxu0 0.0
    %4578 = vmatprep.subr.mxu0 0.0
    %4579 = vmatpush1.msra.mxu0 0.0
    %4580 = vmatprep.subr.mxu0 0.0
    %4581 = vmatpush1.msra.mxu0 0.0
    %4582 = vmatprep.subr.mxu0 0.0
    %4583 = vmatpush1.msra.mxu0 0.0
    %4584 = vmatprep.subr.mxu0 0.0
    %4585 = vmatpush1.msra.mxu0 0.0
    %4586 = vmatprep.subr.mxu0 0.0
    %4587 = vmatpush1.msra.mxu0 0.0
    %4588 = vmatprep.subr.mxu0 0.0
    %4589 = vmatpush1.msra.mxu0 0.0
    %4590 = vmatprep.subr.mxu0 0.0
    %4591 = vmatpush1.msra.mxu0 0.0
    %4592 = vmatprep.subr.mxu0 0.0
    %4593 = vmatpush1.msra.mxu0 0.0
    %4594 = vmatprep.subr.mxu0 0.0
    %4595 = vmatpush1.msra.mxu0 0.0
    %4596 = vmatprep.subr.mxu0 0.0
    %4597 = vmatpush1.msra.mxu0 0.0
    %4598 = vmatprep.subr.mxu0 0.0
    %4599 = vmatpush1.msra.mxu0 0.0
    %4600 = vmatprep.subr.mxu0 0.0
    %4601 = vmatpush1.msra.mxu0 0.0
    %4602 = vmatprep.subr.mxu0 0.0
    %4603 = vmatpush1.msra.mxu0 0.0
    %4604 = vmatprep.subr.mxu0 0.0
    %4605 = vmatpush1.msra.mxu0 0.0
    %4606 = vmatprep.subr.mxu0 0.0
    %4607 = vmatpush1.msra.mxu0 0.0
    %4608 = vmatprep.subr.mxu0 0.0
    %4609 = vmatpush1.msra.mxu0 0.0
    %4610 = vmatprep.subr.mxu0 0.0
    %4611 = vmatpush1.msra.mxu0 0.0
    %4612 = vmatprep.subr.mxu0 0.0
    %4613 = vmatpush1.msra.mxu0 0.0
    %4614 = vmatprep.subr.mxu0 0.0
    %4615 = vmatpush1.msra.mxu0 0.0
    %4616 = vmatprep.subr.mxu0 0.0
    %4617 = vmatpush1.msra.mxu0 0.0
    %4618 = vmatprep.subr.mxu0 0.0
    %4619 = vmatpush1.msra.mxu0 0.0
    %4620 = vmatprep.subr.mxu0 0.0
    %4621 = vmatpush1.msra.mxu0 0.0
    %4622 = vmatprep.subr.mxu0 0.0
    %4623 = vmatpush1.msra.mxu0 0.0
    %4624 = vmatprep.subr.mxu0 0.0
    %4625 = vmatpush1.msra.mxu0 0.0
    %4626 = vmatprep.subr.mxu0 0.0
    %4627 = vmatpush1.msra.mxu0 0.0
    %4628 = vmatprep.subr.mxu0 0.0
    %4629 = vmatpush1.msra.mxu0 0.0
    %4630 = vmatprep.subr.mxu0 0.0
    %4631 = vmatpush1.msra.mxu0 0.0
    %4632 = vmatprep.subr.mxu0 0.0
    %4633 = vmatpush1.msra.mxu0 0.0
    %4634 = vmatprep.subr.mxu0 0.0
    %4635 = vmatpush1.msra.mxu0 0.0
    %4636 = vmatprep.subr.mxu0 0.0
    %4637 = vmatpush1.msra.mxu0 0.0
    %4638 = vmatprep.mubr.f32.mxu0 0.0
    %4639 = vmatmul.mubr.f32.gmra.mrb[0].mxu0 %v4572
    %v4640 = vpop.f32.mrb[0].mxu0
    %v4641 = vadd.f32 0.0, %v4640
    %v4642 = vpop.f32.mrb[0].mxu0
    %4643 = vdwg.mxu0
    %v4646 = vrot.slane %v4641, 7
    %v4647 = vsel %vm1944, %v4646, %v4569
    %v4648 = vsel %vm353, %v4647, 0
    %4650 = vmatprep.subr.mxu0 0.0
    %4651 = vmatpush1.msra.mxu0 %v258
    %4652 = vmatprep.subr.mxu0 0.0
    %4653 = vmatpush1.msra.mxu0 %v259
    %4654 = vmatprep.subr.mxu0 0.0
    %4655 = vmatpush1.msra.mxu0 %v260
    %4656 = vmatprep.subr.mxu0 0.0
    %4657 = vmatpush1.msra.mxu0 %v261
    %4658 = vmatprep.subr.mxu0 0.0
    %4659 = vmatpush1.msra.mxu0 0.0
    %4660 = vmatprep.subr.mxu0 0.0
    %4661 = vmatpush1.msra.mxu0 0.0
    %4662 = vmatprep.subr.mxu0 0.0
    %4663 = vmatpush1.msra.mxu0 0.0
    %4664 = vmatprep.subr.mxu0 0.0
    %4665 = vmatpush1.msra.mxu0 0.0
    %4666 = vmatprep.subr.mxu0 0.0
    %4667 = vmatpush1.msra.mxu0 0.0
    %4668 = vmatprep.subr.mxu0 0.0
    %4669 = vmatpush1.msra.mxu0 0.0
    %4670 = vmatprep.subr.mxu0 0.0
    %4671 = vmatpush1.msra.mxu0 0.0
    %4672 = vmatprep.subr.mxu0 0.0
    %4673 = vmatpush1.msra.mxu0 0.0
    %4674 = vmatprep.subr.mxu0 0.0
    %4675 = vmatpush1.msra.mxu0 0.0
    %4676 = vmatprep.subr.mxu0 0.0
    %4677 = vmatpush1.msra.mxu0 0.0
    %4678 = vmatprep.subr.mxu0 0.0
    %4679 = vmatpush1.msra.mxu0 0.0
    %4680 = vmatprep.subr.mxu0 0.0
    %4681 = vmatpush1.msra.mxu0 0.0
    %4682 = vmatprep.subr.mxu0 0.0
    %4683 = vmatpush1.msra.mxu0 0.0
    %4684 = vmatprep.subr.mxu0 0.0
    %4685 = vmatpush1.msra.mxu0 0.0
    %4686 = vmatprep.subr.mxu0 0.0
    %4687 = vmatpush1.msra.mxu0 0.0
    %4688 = vmatprep.subr.mxu0 0.0
    %4689 = vmatpush1.msra.mxu0 0.0
    %4690 = vmatprep.subr.mxu0 0.0
    %4691 = vmatpush1.msra.mxu0 0.0
    %4692 = vmatprep.subr.mxu0 0.0
    %4693 = vmatpush1.msra.mxu0 0.0
    %4694 = vmatprep.subr.mxu0 0.0
    %4695 = vmatpush1.msra.mxu0 0.0
    %4696 = vmatprep.subr.mxu0 0.0
    %4697 = vmatpush1.msra.mxu0 0.0
    %4698 = vmatprep.subr.mxu0 0.0
    %4699 = vmatpush1.msra.mxu0 0.0
    %4700 = vmatprep.subr.mxu0 0.0
    %4701 = vmatpush1.msra.mxu0 0.0
    %4702 = vmatprep.subr.mxu0 0.0
    %4703 = vmatpush1.msra.mxu0 0.0
    %4704 = vmatprep.subr.mxu0 0.0
    %4705 = vmatpush1.msra.mxu0 0.0
    %4706 = vmatprep.subr.mxu0 0.0
    %4707 = vmatpush1.msra.mxu0 0.0
    %4708 = vmatprep.subr.mxu0 0.0
    %4709 = vmatpush1.msra.mxu0 0.0
    %4710 = vmatprep.subr.mxu0 0.0
    %4711 = vmatpush1.msra.mxu0 0.0
    %4712 = vmatprep.subr.mxu0 0.0
    %4713 = vmatpush1.msra.mxu0 0.0
    %4714 = vmatprep.mubr.f32.mxu0 0.0
    %4715 = vmatmul.mubr.f32.gmra.mrb[0].mxu0 %v4648
    %v4716 = vpop.f32.mrb[0].mxu0
    %v4717 = vadd.f32 %v2169, %v4716
    %v4718 = vpop.f32.mrb[0].mxu0
    %4719 = vdwg.mxu0
    %v4722 = vunpack.c.l.s4 1966171168
    %v4723 = vunpack.c.0.s8 %v4722
    %v4724 = vlaneseq
    %v4725 = vshrl.u32 %v4724, 7
    %v4726 = vsub.s32 %v4723, %v4725
    %v4727 = vrot.slane %v4717, %v4726
    %v4728 = vcombine.high %v4727, %v4727
    %v4730 = vunpack.c.l.s4 1966171168
    %v4731 = vunpack.c.0.s8 %v4730
    %v4732 = vlaneseq
    %v4733 = vshrl.u32 %v4732, 7
    %v4734 = vsub.s32 %v4731, %v4733
    %v4735 = vrot.slane %v4727, %v4734
    %v4737 = vunpack.c.l.s4 1966171168
    %v4738 = vunpack.c.0.s8 %v4737
    %v4739 = vlaneseq
    %v4740 = vshrl.u32 %v4739, 7
    %v4741 = vsub.s32 %v4738, %v4740
    %v4742 = vrot.slane %v4728, %v4741
    %v4743 = vlaneseq
    %v4744 = vshrl.u32 %v4743, 7
    %v4745 = vsub.s32 0, %v4744
    %v4746 = vrot.slane %v4735, %v4745
    %v4747 = vlaneseq
    %v4748 = vshrl.u32 %v4747, 7
    %v4749 = vsub.s32 0, %v4748
    %v4750 = vrot.slane %v4742, %v4749
    %4751 = vrot.lane.b32.xlu0 %v4746, 32
    %v4752 = vpop.permute.xlu0 %4751
    %4753 = vrot.lane.b32.xlu0 %v4750, 32
    %v4754 = vpop.permute.xlu0 %4753
    %v4757 = vadd.f32 %v1657, %v4752
    %v4758 = vadd.f32 %v1662, %v4754
    %v4759 = vtanh.pop %v4757
    %v4760 = vtanh.pop %v4758
    %v4761 = vmul.f32 %v4759, %v2294
    %v4762 = vmul.f32 %v4760, %v2294
    %4765 = vrot.lane.b32.xlu0 %v4761, 96
    %v4766 = vpop.permute.xlu0 %4765
    %4767 = vrot.lane.b32.xlu0 %v4762, 96
    %v4768 = vpop.permute.xlu0 %4767
    %v4771 = vsel %vm353, %v4766, 0.0
    %4772 = vadd.xlane.f32.xlu0 %v4771
    %v4773 = vpop.xlane.xlu0 %4772
    %v4774 = vsel %vm353, %v4768, 0.0
    %4775 = vadd.xlane.f32.xlu0 %v4774
    %v4776 = vpop.xlane.xlu0 %4775
    %v4777 = vadd.f32 %v4773, %v2319
    %v4778 = vadd.f32 %v4776, %v2319
    %v4781 = vlaneseq
    %v4782 = vshrl.u32 %v4781, 7
    %v4783 = vsub.s32 %v266, %v4782
    %v4784 = vrot.slane %v4777, %v4783
    %v4785 = vlaneseq
    %v4786 = vshrl.u32 %v4785, 7
    %v4787 = vsub.s32 %v266, %v4786
    %v4788 = vrot.slane %v4778, %v4787
    %v4789 = vsel %vm1944, %v4788, %v4784
    %v4791 = vsel %vm4449, -100000.0, %v4789
    %v4792 = vtanh.pop %v4791
    %v4793 = vmul.f32 %v4792, 10.0
    %v4794 = vsel %vm4449, -100000.0, %v4793
    %v4795 = vsel %vm1947, %v4794, -inf
    %4796 = vmax.xlane.f32.xlu0 %v4795
    %v4797 = vpop.xlane.xlu0 %4796
    %v4798 = vsub.f32 %v4794, %v4797
    %v4799 = vmul.f32 %v4798, 1.442695
    %v4800 = vpow.pop %v4799
    %v4801 = vsel %vm1947, %v4800, 0.0
    %4802 = vadd.xlane.f32.xlu0 %v4801
    %v4803 = vpop.xlane.xlu0 %4802
    %v4804 = vlog2.pop %v4803
    %v4805 = vmul.f32 %v4804, 0.6931472
    %v4806 = vsub.f32 %v4798, %v4805
    %s4807 = scalar_lea.vmem [#allocation25], 6
    %v4808 = vld [vmem:[%s4807] sm:$0x3]
    %v4809 = vadd.f32 %v4794, %v4808
    %v4810 = vsel %vm1947, %v4809, -inf
    %4811 = vmax.xlane.f32.xlu0 %v4810
    %v4812 = vpop.xlane.xlu0 %4811
    %vm4813 = vcmp.ge.f32.partialorder %v4809, %v4812
    %v4814 = vsel %vm4813, %v1665, 8.0
    %v4815 = vsel %vm1947, %v4814, inf
    %4816 = vmin.xlane.f32.xlu0 %v4815
    %v4817 = vpop.xlane.xlu0 %4816
    %vm4818 = vcmp.eq.f32.partialorder %v1665, %v4817
    %v4819 = vcvt.f32.s32.to.zero.pseudo %v4817
    %v4820 = vsel %vm4818, %v4806, 0.0
    %v4821 = vsel %vm1947, %v4820, 0.0
    %4822 = vadd.xlane.f32.xlu0 %v4821
    %v4823 = vpop.xlane.xlu0 %4822
    %vm4824 = vcmp.eq.s32.totalorder %v266, 3
    %v4825 = vsel %vm4824, %v4823, %v4052
    %v4826 = vsel %vm4824, %v4819, %v4053
    %v4827 = vsel %vm4818, 1.0, %v4054
    %v4828 = vsel %vm4818, 1, 0
    %v4829 = vcvt.s32.f32 %v4828
    %v4832 = vunpack.c.l.s4 1966171168
    %v4833 = vunpack.c.0.s8 %v4832
    %v4834 = vlaneseq
    %v4835 = vshrl.u32 %v4834, 7
    %v4836 = vsub.s32 %v4833, %v4835
    %v4837 = vrot.slane %v4829, %v4836
    %v4838 = vcombine.high %v4837, %v4837
    %v4840 = vunpack.c.l.s4 1966171168
    %v4841 = vunpack.c.0.s8 %v4840
    %v4842 = vlaneseq
    %v4843 = vshrl.u32 %v4842, 7
    %v4844 = vsub.s32 %v4841, %v4843
    %v4845 = vrot.slane %v4837, %v4844
    %v4847 = vunpack.c.l.s4 1966171168
    %v4848 = vunpack.c.0.s8 %v4847
    %v4849 = vlaneseq
    %v4850 = vshrl.u32 %v4849, 7
    %v4851 = vsub.s32 %v4848, %v4850
    %v4852 = vrot.slane %v4838, %v4851
    %v4853 = vsel %vm2012, %v4845, 0
    %4855 = vmatprep.subr.mxu0 0.0
    %4856 = vmatpush1.msra.mxu0 %v340
    %4857 = vmatprep.subr.mxu0 0.0
    %4858 = vmatpush1.msra.mxu0 0.0
    %4859 = vmatprep.subr.mxu0 0.0
    %4860 = vmatpush1.msra.mxu0 0.0
    %4861 = vmatprep.subr.mxu0 0.0
    %4862 = vmatpush1.msra.mxu0 0.0
    %4863 = vmatprep.subr.mxu0 0.0
    %4864 = vmatpush1.msra.mxu0 0.0
    %4865 = vmatprep.subr.mxu0 0.0
    %4866 = vmatpush1.msra.mxu0 0.0
    %4867 = vmatprep.subr.mxu0 0.0
    %4868 = vmatpush1.msra.mxu0 0.0
    %4869 = vmatprep.subr.mxu0 0.0
    %4870 = vmatpush1.msra.mxu0 0.0
    %4871 = vmatprep.subr.mxu0 0.0
    %4872 = vmatpush1.msra.mxu0 0.0
    %4873 = vmatprep.subr.mxu0 0.0
    %4874 = vmatpush1.msra.mxu0 0.0
    %4875 = vmatprep.subr.mxu0 0.0
    %4876 = vmatpush1.msra.mxu0 0.0
    %4877 = vmatprep.subr.mxu0 0.0
    %4878 = vmatpush1.msra.mxu0 0.0
    %4879 = vmatprep.subr.mxu0 0.0
    %4880 = vmatpush1.msra.mxu0 0.0
    %4881 = vmatprep.subr.mxu0 0.0
    %4882 = vmatpush1.msra.mxu0 0.0
    %4883 = vmatprep.subr.mxu0 0.0
    %4884 = vmatpush1.msra.mxu0 0.0
    %4885 = vmatprep.subr.mxu0 0.0
    %4886 = vmatpush1.msra.mxu0 0.0
    %4887 = vmatprep.subr.mxu0 0.0
    %4888 = vmatpush1.msra.mxu0 0.0
    %4889 = vmatprep.subr.mxu0 0.0
    %4890 = vmatpush1.msra.mxu0 0.0
    %4891 = vmatprep.subr.mxu0 0.0
    %4892 = vmatpush1.msra.mxu0 0.0
    %4893 = vmatprep.subr.mxu0 0.0
    %4894 = vmatpush1.msra.mxu0 0.0
    %4895 = vmatprep.subr.mxu0 0.0
    %4896 = vmatpush1.msra.mxu0 0.0
    %4897 = vmatprep.subr.mxu0 0.0
    %4898 = vmatpush1.msra.mxu0 0.0
    %4899 = vmatprep.subr.mxu0 0.0
    %4900 = vmatpush1.msra.mxu0 0.0
    %4901 = vmatprep.subr.mxu0 0.0
    %4902 = vmatpush1.msra.mxu0 0.0
    %4903 = vmatprep.subr.mxu0 0.0
    %4904 = vmatpush1.msra.mxu0 0.0
    %4905 = vmatprep.subr.mxu0 0.0
    %4906 = vmatpush1.msra.mxu0 0.0
    %4907 = vmatprep.subr.mxu0 0.0
    %4908 = vmatpush1.msra.mxu0 0.0
    %4909 = vmatprep.subr.mxu0 0.0
    %4910 = vmatpush1.msra.mxu0 0.0
    %4911 = vmatprep.subr.mxu0 0.0
    %4912 = vmatpush1.msra.mxu0 0.0
    %4913 = vmatprep.subr.mxu0 0.0
    %4914 = vmatpush1.msra.mxu0 0.0
    %4915 = vmatprep.subr.mxu0 0.0
    %4916 = vmatpush1.msra.mxu0 0.0
    %4917 = vmatprep.subr.mxu0 0.0
    %4918 = vmatpush1.msra.mxu0 0.0
    %4919 = vmatprep.mubr.f32.mxu0 0.0
    %4920 = vmatmul.mubr.f32.gmra.mrb[0].mxu0 %v4853
    %v4921 = vpop.f32.mrb[0].mxu0
    %v4922 = vadd.f32 0.0, %v4921
    %v4923 = vpop.f32.mrb[0].mxu0
    %4924 = vdwg.mxu0
    %v4925 = vsel %vm2012, %v4852, 0
    %4927 = vmatprep.subr.mxu0 0.0
    %4928 = vmatpush1.msra.mxu0 %v341
    %4929 = vmatprep.subr.mxu0 0.0
    %4930 = vmatpush1.msra.mxu0 0.0
    %4931 = vmatprep.subr.mxu0 0.0
    %4932 = vmatpush1.msra.mxu0 0.0
    %4933 = vmatprep.subr.mxu0 0.0
    %4934 = vmatpush1.msra.mxu0 0.0
    %4935 = vmatprep.subr.mxu0 0.0
    %4936 = vmatpush1.msra.mxu0 0.0
    %4937 = vmatprep.subr.mxu0 0.0
    %4938 = vmatpush1.msra.mxu0 0.0
    %4939 = vmatprep.subr.mxu0 0.0
    %4940 = vmatpush1.msra.mxu0 0.0
    %4941 = vmatprep.subr.mxu0 0.0
    %4942 = vmatpush1.msra.mxu0 0.0
    %4943 = vmatprep.subr.mxu0 0.0
    %4944 = vmatpush1.msra.mxu0 0.0
    %4945 = vmatprep.subr.mxu0 0.0
    %4946 = vmatpush1.msra.mxu0 0.0
    %4947 = vmatprep.subr.mxu0 0.0
    %4948 = vmatpush1.msra.mxu0 0.0
    %4949 = vmatprep.subr.mxu0 0.0
    %4950 = vmatpush1.msra.mxu0 0.0
    %4951 = vmatprep.subr.mxu0 0.0
    %4952 = vmatpush1.msra.mxu0 0.0
    %4953 = vmatprep.subr.mxu0 0.0
    %4954 = vmatpush1.msra.mxu0 0.0
    %4955 = vmatprep.subr.mxu0 0.0
    %4956 = vmatpush1.msra.mxu0 0.0
    %4957 = vmatprep.subr.mxu0 0.0
    %4958 = vmatpush1.msra.mxu0 0.0
    %4959 = vmatprep.subr.mxu0 0.0
    %4960 = vmatpush1.msra.mxu0 0.0
    %4961 = vmatprep.subr.mxu0 0.0
    %4962 = vmatpush1.msra.mxu0 0.0
    %4963 = vmatprep.subr.mxu0 0.0
    %4964 = vmatpush1.msra.mxu0 0.0
    %4965 = vmatprep.subr.mxu0 0.0
    %4966 = vmatpush1.msra.mxu0 0.0
    %4967 = vmatprep.subr.mxu0 0.0
    %4968 = vmatpush1.msra.mxu0 0.0
    %4969 = vmatprep.subr.mxu0 0.0
    %4970 = vmatpush1.msra.mxu0 0.0
    %4971 = vmatprep.subr.mxu0 0.0
    %4972 = vmatpush1.msra.mxu0 0.0
    %4973 = vmatprep.subr.mxu0 0.0
    %4974 = vmatpush1.msra.mxu0 0.0
    %4975 = vmatprep.subr.mxu0 0.0
    %4976 = vmatpush1.msra.mxu0 0.0
    %4977 = vmatprep.subr.mxu0 0.0
    %4978 = vmatpush1.msra.mxu0 0.0
    %4979 = vmatprep.subr.mxu0 0.0
    %4980 = vmatpush1.msra.mxu0 0.0
    %4981 = vmatprep.subr.mxu0 0.0
    %4982 = vmatpush1.msra.mxu0 0.0
    %4983 = vmatprep.subr.mxu0 0.0
    %4984 = vmatpush1.msra.mxu0 0.0
    %4985 = vmatprep.subr.mxu0 0.0
    %4986 = vmatpush1.msra.mxu0 0.0
    %4987 = vmatprep.subr.mxu0 0.0
    %4988 = vmatpush1.msra.mxu0 0.0
    %4989 = vmatprep.subr.mxu0 0.0
    %4990 = vmatpush1.msra.mxu0 0.0
    %4991 = vmatprep.mubr.f32.mxu0 0.0
    %4992 = vmatmul.mubr.f32.gmra.mrb[0].mxu0 %v4925
    %v4993 = vpop.f32.mrb[0].mxu0
    %v4994 = vadd.f32 0.0, %v4993
    %v4995 = vpop.f32.mrb[0].mxu0
    %4996 = vdwg.mxu0
    %v4999 = vrot.slane %v4994, 7
    %v5000 = vsel %vm1944, %v4999, %v4922
    %5002 = vrot.lane.b32.xlu0 %v4326, 64
    %v5003 = vpop.permute.xlu0 %5002
    %v5005 = vsel %vm353, %v5000, %v5003
    %v5007 = vsel %vm1684, %v5005, 0
    %5009 = vmatprep.subr.mxu0 0.0
    %5010 = vmatpush1.msra.mxu0 %v242
    %5011 = vmatprep.subr.mxu0 0.0
    %5012 = vmatpush1.msra.mxu0 %v243
    %5013 = vmatprep.subr.mxu0 0.0
    %5014 = vmatpush1.msra.mxu0 %v244
    %5015 = vmatprep.subr.mxu0 0.0
    %5016 = vmatpush1.msra.mxu0 %v245
    %5017 = vmatprep.subr.mxu0 0.0
    %5018 = vmatpush1.msra.mxu0 %v246
    %5019 = vmatprep.subr.mxu0 0.0
    %5020 = vmatpush1.msra.mxu0 %v247
    %5021 = vmatprep.subr.mxu0 0.0
    %5022 = vmatpush1.msra.mxu0 %v248
    %5023 = vmatprep.subr.mxu0 0.0
    %5024 = vmatpush1.msra.mxu0 %v249
    %5025 = vmatprep.subr.mxu0 0.0
    %5026 = vmatpush1.msra.mxu0 0.0
    %5027 = vmatprep.subr.mxu0 0.0
    %5028 = vmatpush1.msra.mxu0 0.0
    %5029 = vmatprep.subr.mxu0 0.0
    %5030 = vmatpush1.msra.mxu0 0.0
    %5031 = vmatprep.subr.mxu0 0.0
    %5032 = vmatpush1.msra.mxu0 0.0
    %5033 = vmatprep.subr.mxu0 0.0
    %5034 = vmatpush1.msra.mxu0 0.0
    %5035 = vmatprep.subr.mxu0 0.0
    %5036 = vmatpush1.msra.mxu0 0.0
    %5037 = vmatprep.subr.mxu0 0.0
    %5038 = vmatpush1.msra.mxu0 0.0
    %5039 = vmatprep.subr.mxu0 0.0
    %5040 = vmatpush1.msra.mxu0 0.0
    %5041 = vmatprep.subr.mxu0 0.0
    %5042 = vmatpush1.msra.mxu0 0.0
    %5043 = vmatprep.subr.mxu0 0.0
    %5044 = vmatpush1.msra.mxu0 0.0
    %5045 = vmatprep.subr.mxu0 0.0
    %5046 = vmatpush1.msra.mxu0 0.0
    %5047 = vmatprep.subr.mxu0 0.0
    %5048 = vmatpush1.msra.mxu0 0.0
    %5049 = vmatprep.subr.mxu0 0.0
    %5050 = vmatpush1.msra.mxu0 0.0
    %5051 = vmatprep.subr.mxu0 0.0
    %5052 = vmatpush1.msra.mxu0 0.0
    %5053 = vmatprep.subr.mxu0 0.0
    %5054 = vmatpush1.msra.mxu0 0.0
    %5055 = vmatprep.subr.mxu0 0.0
    %5056 = vmatpush1.msra.mxu0 0.0
    %5057 = vmatprep.subr.mxu0 0.0
    %5058 = vmatpush1.msra.mxu0 0.0
    %5059 = vmatprep.subr.mxu0 0.0
    %5060 = vmatpush1.msra.mxu0 0.0
    %5061 = vmatprep.subr.mxu0 0.0
    %5062 = vmatpush1.msra.mxu0 0.0
    %5063 = vmatprep.subr.mxu0 0.0
    %5064 = vmatpush1.msra.mxu0 0.0
    %5065 = vmatprep.subr.mxu0 0.0
    %5066 = vmatpush1.msra.mxu0 0.0
    %5067 = vmatprep.subr.mxu0 0.0
    %5068 = vmatpush1.msra.mxu0 0.0
    %5069 = vmatprep.subr.mxu0 0.0
    %5070 = vmatpush1.msra.mxu0 0.0
    %5071 = vmatprep.subr.mxu0 0.0
    %5072 = vmatpush1.msra.mxu0 0.0
    %5073 = vmatprep.mubr.f32.mxu0 0.0
    %5074 = vmatmul.mubr.f32.gmra.mrb[0].mxu0 %v5007
    %v5075 = vpop.f32.mrb[0].mxu0
    %v5076 = vadd.f32 %v1682, %v5075
    %v5077 = vpop.f32.mrb[0].mxu0
    %5078 = vdwg.mxu0
    %v5079 = vmul.f32 %v5076, %v270
    %v5080 = vtanh.pop %v5079
    %v5081 = vmul.f32 %v5080, %v270
    %v5082 = vadd.f32 %v5081, %v271
    %v5083 = vmul.f32 %v5082, %v4320
    %5085 = vrot.lane.b32.xlu0 %v5082, 64
    %v5086 = vpop.permute.xlu0 %5085
    %v5088 = vmul.f32 %v5082, %v5086
    %5090 = vrot.lane.b32.xlu0 %v5088, 32
    %v5091 = vpop.permute.xlu0 %5090
    %v5093 = vadd.f32 %v5083, %v5091
    %v5094 = vtanh.pop %v5093
    %5096 = vrot.lane.b32.xlu0 %v5094, 64
    %v5097 = vpop.permute.xlu0 %5096
    %v5099 = vmul.f32 %v5082, %v5097
    %5101 = vrot.lane.b32.xlu0 %v5099, 32
    %v5102 = vpop.permute.xlu0 %5101
    %v5103 = vsel %vm353, %v5102, 0
    %5105 = vmatprep.subr.mxu0 0.0
    %5106 = vmatpush1.msra.mxu0 %v251
    %5107 = vmatprep.subr.mxu0 0.0
    %5108 = vmatpush1.msra.mxu0 %v252
    %5109 = vmatprep.subr.mxu0 0.0
    %5110 = vmatpush1.msra.mxu0 %v253
    %5111 = vmatprep.subr.mxu0 0.0
    %5112 = vmatpush1.msra.mxu0 %v254
    %5113 = vmatprep.subr.mxu0 0.0
    %5114 = vmatpush1.msra.mxu0 0.0
    %5115 = vmatprep.subr.mxu0 0.0
    %5116 = vmatpush1.msra.mxu0 0.0
    %5117 = vmatprep.subr.mxu0 0.0
    %5118 = vmatpush1.msra.mxu0 0.0
    %5119 = vmatprep.subr.mxu0 0.0
    %5120 = vmatpush1.msra.mxu0 0.0
    %5121 = vmatprep.subr.mxu0 0.0
    %5122 = vmatpush1.msra.mxu0 0.0
    %5123 = vmatprep.subr.mxu0 0.0
    %5124 = vmatpush1.msra.mxu0 0.0
    %5125 = vmatprep.subr.mxu0 0.0
    %5126 = vmatpush1.msra.mxu0 0.0
    %5127 = vmatprep.subr.mxu0 0.0
    %5128 = vmatpush1.msra.mxu0 0.0
    %5129 = vmatprep.subr.mxu0 0.0
    %5130 = vmatpush1.msra.mxu0 0.0
    %5131 = vmatprep.subr.mxu0 0.0
    %5132 = vmatpush1.msra.mxu0 0.0
    %5133 = vmatprep.subr.mxu0 0.0
    %5134 = vmatpush1.msra.mxu0 0.0
    %5135 = vmatprep.subr.mxu0 0.0
    %5136 = vmatpush1.msra.mxu0 0.0
    %5137 = vmatprep.subr.mxu0 0.0
    %5138 = vmatpush1.msra.mxu0 0.0
    %5139 = vmatprep.subr.mxu0 0.0
    %5140 = vmatpush1.msra.mxu0 0.0
    %5141 = vmatprep.subr.mxu0 0.0
    %5142 = vmatpush1.msra.mxu0 0.0
    %5143 = vmatprep.subr.mxu0 0.0
    %5144 = vmatpush1.msra.mxu0 0.0
    %5145 = vmatprep.subr.mxu0 0.0
    %5146 = vmatpush1.msra.mxu0 0.0
    %5147 = vmatprep.subr.mxu0 0.0
    %5148 = vmatpush1.msra.mxu0 0.0
    %5149 = vmatprep.subr.mxu0 0.0
    %5150 = vmatpush1.msra.mxu0 0.0
    %5151 = vmatprep.subr.mxu0 0.0
    %5152 = vmatpush1.msra.mxu0 0.0
    %5153 = vmatprep.subr.mxu0 0.0
    %5154 = vmatpush1.msra.mxu0 0.0
    %5155 = vmatprep.subr.mxu0 0.0
    %5156 = vmatpush1.msra.mxu0 0.0
    %5157 = vmatprep.subr.mxu0 0.0
    %5158 = vmatpush1.msra.mxu0 0.0
    %5159 = vmatprep.subr.mxu0 0.0
    %5160 = vmatpush1.msra.mxu0 0.0
    %5161 = vmatprep.subr.mxu0 0.0
    %5162 = vmatpush1.msra.mxu0 0.0
    %5163 = vmatprep.subr.mxu0 0.0
    %5164 = vmatpush1.msra.mxu0 0.0
    %5165 = vmatprep.subr.mxu0 0.0
    %5166 = vmatpush1.msra.mxu0 0.0
    %5167 = vmatprep.subr.mxu0 0.0
    %5168 = vmatpush1.msra.mxu0 0.0
    %5169 = vmatprep.mubr.f32.mxu0 0.0
    %5170 = vmatmul.mubr.f32.gmra.mrb[0].mxu0 %v5103
    %v5171 = vpop.f32.mrb[0].mxu0
    %v5172 = vadd.f32 %v1786, %v5171
    %v5173 = vpop.f32.mrb[0].mxu0
    %5174 = vdwg.mxu0
    %v5177 = vunpack.c.l.s4 1966171168
    %v5178 = vunpack.c.0.s8 %v5177
    %v5179 = vlaneseq
    %v5180 = vshrl.u32 %v5179, 7
    %v5181 = vsub.s32 %v5178, %v5180
    %v5182 = vrot.slane %v5172, %v5181
    %v5183 = vcombine.high %v5182, %v5182
    %v5185 = vunpack.c.l.s4 1966171168
    %v5186 = vunpack.c.0.s8 %v5185
    %v5187 = vlaneseq
    %v5188 = vshrl.u32 %v5187, 7
    %v5189 = vsub.s32 %v5186, %v5188
    %v5190 = vrot.slane %v5182, %v5189
    %v5192 = vunpack.c.l.s4 1966171168
    %v5193 = vunpack.c.0.s8 %v5192
    %v5194 = vlaneseq
    %v5195 = vshrl.u32 %v5194, 7
    %v5196 = vsub.s32 %v5193, %v5195
    %v5197 = vrot.slane %v5183, %v5196
    %v5198 = vlaneseq
    %v5199 = vshrl.u32 %v5198, 7
    %v5200 = vsub.s32 0, %v5199
    %v5201 = vrot.slane %v5190, %v5200
    %v5202 = vlaneseq
    %v5203 = vshrl.u32 %v5202, 7
    %v5204 = vsub.s32 0, %v5203
    %v5205 = vrot.slane %v5197, %v5204
    %v5208 = vadd.f32 %v1657, %v5201
    %v5209 = vadd.f32 %v1662, %v5205
    %v5210 = vtanh.pop %v5208
    %v5211 = vtanh.pop %v5209
    %v5212 = vmul.f32 %v5210, %v1904
    %v5213 = vmul.f32 %v5211, %v1904
    %v5214 = vsel %vm353, %v5212, 0.0
    %5215 = vadd.xlane.f32.xlu0 %v5214
    %v5216 = vpop.xlane.xlu0 %5215
    %v5217 = vsel %vm353, %v5213, 0.0
    %5218 = vadd.xlane.f32.xlu0 %v5217
    %v5219 = vpop.xlane.xlu0 %5218
    %v5220 = vadd.f32 %v5216, %v1921
    %v5221 = vadd.f32 %v5219, %v1921
    %vm5222 = vcmp.gt.f32.partialorder %v4827, 0.5
    %v5225 = vlaneseq
    %v5226 = vshrl.u32 %v5225, 7
    %v5227 = vsub.s32 %v266, %v5226
    %v5228 = vrot.slane %v5220, %v5227
    %v5229 = vlaneseq
    %v5230 = vshrl.u32 %v5229, 7
    %v5231 = vsub.s32 %v266, %v5230
    %v5232 = vrot.slane %v5221, %v5231
    %v5233 = vsel %vm1944, %v5232, %v5228
    %v5235 = vsel %vm5222, -100000.0, %v5233
    %v5236 = vtanh.pop %v5235
    %v5237 = vmul.f32 %v5236, 10.0
    %v5238 = vsel %vm5222, -100000.0, %v5237
    %v5239 = vsel %vm1947, %v5238, -inf
    %5240 = vmax.xlane.f32.xlu0 %v5239
    %v5241 = vpop.xlane.xlu0 %5240
    %v5242 = vsub.f32 %v5238, %v5241
    %v5243 = vmul.f32 %v5242, 1.442695
    %v5244 = vpow.pop %v5243
    %v5245 = vsel %vm1947, %v5244, 0.0
    %5246 = vadd.xlane.f32.xlu0 %v5245
    %v5247 = vpop.xlane.xlu0 %5246
    %v5248 = vrcp.pop %v5247
    %v5249 = vmul.f32 %v5244, %v5248
    %v5252 = vunpack.c.l.s4 1966171168
    %v5253 = vunpack.c.0.s8 %v5252
    %v5254 = vlaneseq
    %v5255 = vshrl.u32 %v5254, 7
    %v5256 = vsub.s32 %v5253, %v5255
    %v5257 = vrot.slane %v5249, %v5256
    %v5258 = vcombine.high %v5257, %v5257
    %v5260 = vunpack.c.l.s4 1966171168
    %v5261 = vunpack.c.0.s8 %v5260
    %v5262 = vlaneseq
    %v5263 = vshrl.u32 %v5262, 7
    %v5264 = vsub.s32 %v5261, %v5263
    %v5265 = vrot.slane %v5257, %v5264
    %v5267 = vunpack.c.l.s4 1966171168
    %v5268 = vunpack.c.0.s8 %v5267
    %v5269 = vlaneseq
    %v5270 = vshrl.u32 %v5269, 7
    %v5271 = vsub.s32 %v5268, %v5270
    %v5272 = vrot.slane %v5258, %v5271
    %v5273 = vsel %vm2012, %v5265, 0
    %5275 = vmatprep.subr.mxu0 0.0
    %5276 = vmatpush1.msra.mxu0 %v1571
    %5277 = vmatprep.subr.mxu0 0.0
    %5278 = vmatpush1.msra.mxu0 0.0
    %5279 = vmatprep.subr.mxu0 0.0
    %5280 = vmatpush1.msra.mxu0 0.0
    %5281 = vmatprep.subr.mxu0 0.0
    %5282 = vmatpush1.msra.mxu0 0.0
    %5283 = vmatprep.subr.mxu0 0.0
    %5284 = vmatpush1.msra.mxu0 0.0
    %5285 = vmatprep.subr.mxu0 0.0
    %5286 = vmatpush1.msra.mxu0 0.0
    %5287 = vmatprep.subr.mxu0 0.0
    %5288 = vmatpush1.msra.mxu0 0.0
    %5289 = vmatprep.subr.mxu0 0.0
    %5290 = vmatpush1.msra.mxu0 0.0
    %5291 = vmatprep.subr.mxu0 0.0
    %5292 = vmatpush1.msra.mxu0 0.0
    %5293 = vmatprep.subr.mxu0 0.0
    %5294 = vmatpush1.msra.mxu0 0.0
    %5295 = vmatprep.subr.mxu0 0.0
    %5296 = vmatpush1.msra.mxu0 0.0
    %5297 = vmatprep.subr.mxu0 0.0
    %5298 = vmatpush1.msra.mxu0 0.0
    %5299 = vmatprep.subr.mxu0 0.0
    %5300 = vmatpush1.msra.mxu0 0.0
    %5301 = vmatprep.subr.mxu0 0.0
    %5302 = vmatpush1.msra.mxu0 0.0
    %5303 = vmatprep.subr.mxu0 0.0
    %5304 = vmatpush1.msra.mxu0 0.0
    %5305 = vmatprep.subr.mxu0 0.0
    %5306 = vmatpush1.msra.mxu0 0.0
    %5307 = vmatprep.subr.mxu0 0.0
    %5308 = vmatpush1.msra.mxu0 0.0
    %5309 = vmatprep.subr.mxu0 0.0
    %5310 = vmatpush1.msra.mxu0 0.0
    %5311 = vmatprep.subr.mxu0 0.0
    %5312 = vmatpush1.msra.mxu0 0.0
    %5313 = vmatprep.subr.mxu0 0.0
    %5314 = vmatpush1.msra.mxu0 0.0
    %5315 = vmatprep.subr.mxu0 0.0
    %5316 = vmatpush1.msra.mxu0 0.0
    %5317 = vmatprep.subr.mxu0 0.0
    %5318 = vmatpush1.msra.mxu0 0.0
    %5319 = vmatprep.subr.mxu0 0.0
    %5320 = vmatpush1.msra.mxu0 0.0
    %5321 = vmatprep.subr.mxu0 0.0
    %5322 = vmatpush1.msra.mxu0 0.0
    %5323 = vmatprep.subr.mxu0 0.0
    %5324 = vmatpush1.msra.mxu0 0.0
    %5325 = vmatprep.subr.mxu0 0.0
    %5326 = vmatpush1.msra.mxu0 0.0
    %5327 = vmatprep.subr.mxu0 0.0
    %5328 = vmatpush1.msra.mxu0 0.0
    %5329 = vmatprep.subr.mxu0 0.0
    %5330 = vmatpush1.msra.mxu0 0.0
    %5331 = vmatprep.subr.mxu0 0.0
    %5332 = vmatpush1.msra.mxu0 0.0
    %5333 = vmatprep.subr.mxu0 0.0
    %5334 = vmatpush1.msra.mxu0 0.0
    %5335 = vmatprep.subr.mxu0 0.0
    %5336 = vmatpush1.msra.mxu0 0.0
    %5337 = vmatprep.subr.mxu0 0.0
    %5338 = vmatpush1.msra.mxu0 0.0
    %5339 = vmatprep.mubr.f32.mxu0 0.0
    %5340 = vmatmul.mubr.f32.gmra.mrb[0].mxu0 %v5273
    %v5341 = vpop.f32.mrb[0].mxu0
    %v5342 = vadd.f32 0.0, %v5341
    %v5343 = vpop.f32.mrb[0].mxu0
    %5344 = vdwg.mxu0
    %v5345 = vsel %vm2012, %v5272, 0
    %5347 = vmatprep.subr.mxu0 0.0
    %5348 = vmatpush1.msra.mxu0 %v1572
    %5349 = vmatprep.subr.mxu0 0.0
    %5350 = vmatpush1.msra.mxu0 0.0
    %5351 = vmatprep.subr.mxu0 0.0
    %5352 = vmatpush1.msra.mxu0 0.0
    %5353 = vmatprep.subr.mxu0 0.0
    %5354 = vmatpush1.msra.mxu0 0.0
    %5355 = vmatprep.subr.mxu0 0.0
    %5356 = vmatpush1.msra.mxu0 0.0
    %5357 = vmatprep.subr.mxu0 0.0
    %5358 = vmatpush1.msra.mxu0 0.0
    %5359 = vmatprep.subr.mxu0 0.0
    %5360 = vmatpush1.msra.mxu0 0.0
    %5361 = vmatprep.subr.mxu0 0.0
    %5362 = vmatpush1.msra.mxu0 0.0
    %5363 = vmatprep.subr.mxu0 0.0
    %5364 = vmatpush1.msra.mxu0 0.0
    %5365 = vmatprep.subr.mxu0 0.0
    %5366 = vmatpush1.msra.mxu0 0.0
    %5367 = vmatprep.subr.mxu0 0.0
    %5368 = vmatpush1.msra.mxu0 0.0
    %5369 = vmatprep.subr.mxu0 0.0
    %5370 = vmatpush1.msra.mxu0 0.0
    %5371 = vmatprep.subr.mxu0 0.0
    %5372 = vmatpush1.msra.mxu0 0.0
    %5373 = vmatprep.subr.mxu0 0.0
    %5374 = vmatpush1.msra.mxu0 0.0
    %5375 = vmatprep.subr.mxu0 0.0
    %5376 = vmatpush1.msra.mxu0 0.0
    %5377 = vmatprep.subr.mxu0 0.0
    %5378 = vmatpush1.msra.mxu0 0.0
    %5379 = vmatprep.subr.mxu0 0.0
    %5380 = vmatpush1.msra.mxu0 0.0
    %5381 = vmatprep.subr.mxu0 0.0
    %5382 = vmatpush1.msra.mxu0 0.0
    %5383 = vmatprep.subr.mxu0 0.0
    %5384 = vmatpush1.msra.mxu0 0.0
    %5385 = vmatprep.subr.mxu0 0.0
    %5386 = vmatpush1.msra.mxu0 0.0
    %5387 = vmatprep.subr.mxu0 0.0
    %5388 = vmatpush1.msra.mxu0 0.0
    %5389 = vmatprep.subr.mxu0 0.0
    %5390 = vmatpush1.msra.mxu0 0.0
    %5391 = vmatprep.subr.mxu0 0.0
    %5392 = vmatpush1.msra.mxu0 0.0
    %5393 = vmatprep.subr.mxu0 0.0
    %5394 = vmatpush1.msra.mxu0 0.0
    %5395 = vmatprep.subr.mxu0 0.0
    %5396 = vmatpush1.msra.mxu0 0.0
    %5397 = vmatprep.subr.mxu0 0.0
    %5398 = vmatpush1.msra.mxu0 0.0
    %5399 = vmatprep.subr.mxu0 0.0
    %5400 = vmatpush1.msra.mxu0 0.0
    %5401 = vmatprep.subr.mxu0 0.0
    %5402 = vmatpush1.msra.mxu0 0.0
    %5403 = vmatprep.subr.mxu0 0.0
    %5404 = vmatpush1.msra.mxu0 0.0
    %5405 = vmatprep.subr.mxu0 0.0
    %5406 = vmatpush1.msra.mxu0 0.0
    %5407 = vmatprep.subr.mxu0 0.0
    %5408 = vmatpush1.msra.mxu0 0.0
    %5409 = vmatprep.subr.mxu0 0.0
    %5410 = vmatpush1.msra.mxu0 0.0
    %5411 = vmatprep.mubr.f32.mxu0 0.0
    %5412 = vmatmul.mubr.f32.gmra.mrb[0].mxu0 %v5345
    %v5413 = vpop.f32.mrb[0].mxu0
    %v5414 = vadd.f32 0.0, %v5413
    %v5415 = vpop.f32.mrb[0].mxu0
    %5416 = vdwg.mxu0
    %v5419 = vrot.slane %v5414, 7
    %v5420 = vsel %vm1944, %v5419, %v5342
    %v5421 = vsel %vm353, %v5420, 0
    %5423 = vmatprep.subr.mxu0 0.0
    %5424 = vmatpush1.msra.mxu0 %v258
    %5425 = vmatprep.subr.mxu0 0.0
    %5426 = vmatpush1.msra.mxu0 %v259
    %5427 = vmatprep.subr.mxu0 0.0
    %5428 = vmatpush1.msra.mxu0 %v260
    %5429 = vmatprep.subr.mxu0 0.0
    %5430 = vmatpush1.msra.mxu0 %v261
    %5431 = vmatprep.subr.mxu0 0.0
    %5432 = vmatpush1.msra.mxu0 0.0
    %5433 = vmatprep.subr.mxu0 0.0
    %5434 = vmatpush1.msra.mxu0 0.0
    %5435 = vmatprep.subr.mxu0 0.0
    %5436 = vmatpush1.msra.mxu0 0.0
    %5437 = vmatprep.subr.mxu0 0.0
    %5438 = vmatpush1.msra.mxu0 0.0
    %5439 = vmatprep.subr.mxu0 0.0
    %5440 = vmatpush1.msra.mxu0 0.0
    %5441 = vmatprep.subr.mxu0 0.0
    %5442 = vmatpush1.msra.mxu0 0.0
    %5443 = vmatprep.subr.mxu0 0.0
    %5444 = vmatpush1.msra.mxu0 0.0
    %5445 = vmatprep.subr.mxu0 0.0
    %5446 = vmatpush1.msra.mxu0 0.0
    %5447 = vmatprep.subr.mxu0 0.0
    %5448 = vmatpush1.msra.mxu0 0.0
    %5449 = vmatprep.subr.mxu0 0.0
    %5450 = vmatpush1.msra.mxu0 0.0
    %5451 = vmatprep.subr.mxu0 0.0
    %5452 = vmatpush1.msra.mxu0 0.0
    %5453 = vmatprep.subr.mxu0 0.0
    %5454 = vmatpush1.msra.mxu0 0.0
    %5455 = vmatprep.subr.mxu0 0.0
    %5456 = vmatpush1.msra.mxu0 0.0
    %5457 = vmatprep.subr.mxu0 0.0
    %5458 = vmatpush1.msra.mxu0 0.0
    %5459 = vmatprep.subr.mxu0 0.0
    %5460 = vmatpush1.msra.mxu0 0.0
    %5461 = vmatprep.subr.mxu0 0.0
    %5462 = vmatpush1.msra.mxu0 0.0
    %5463 = vmatprep.subr.mxu0 0.0
    %5464 = vmatpush1.msra.mxu0 0.0
    %5465 = vmatprep.subr.mxu0 0.0
    %5466 = vmatpush1.msra.mxu0 0.0
    %5467 = vmatprep.subr.mxu0 0.0
    %5468 = vmatpush1.msra.mxu0 0.0
    %5469 = vmatprep.subr.mxu0 0.0
    %5470 = vmatpush1.msra.mxu0 0.0
    %5471 = vmatprep.subr.mxu0 0.0
    %5472 = vmatpush1.msra.mxu0 0.0
    %5473 = vmatprep.subr.mxu0 0.0
    %5474 = vmatpush1.msra.mxu0 0.0
    %5475 = vmatprep.subr.mxu0 0.0
    %5476 = vmatpush1.msra.mxu0 0.0
    %5477 = vmatprep.subr.mxu0 0.0
    %5478 = vmatpush1.msra.mxu0 0.0
    %5479 = vmatprep.subr.mxu0 0.0
    %5480 = vmatpush1.msra.mxu0 0.0
    %5481 = vmatprep.subr.mxu0 0.0
    %5482 = vmatpush1.msra.mxu0 0.0
    %5483 = vmatprep.subr.mxu0 0.0
    %5484 = vmatpush1.msra.mxu0 0.0
    %5485 = vmatprep.subr.mxu0 0.0
    %5486 = vmatpush1.msra.mxu0 0.0
    %5487 = vmatprep.mubr.f32.mxu0 0.0
    %5488 = vmatmul.mubr.f32.gmra.mrb[0].mxu0 %v5421
    %v5489 = vpop.f32.mrb[0].mxu0
    %v5490 = vadd.f32 %v2169, %v5489
    %v5491 = vpop.f32.mrb[0].mxu0
    %5492 = vdwg.mxu0
    %v5495 = vunpack.c.l.s4 1966171168
    %v5496 = vunpack.c.0.s8 %v5495
    %v5497 = vlaneseq
    %v5498 = vshrl.u32 %v5497, 7
    %v5499 = vsub.s32 %v5496, %v5498
    %v5500 = vrot.slane %v5490, %v5499
    %v5501 = vcombine.high %v5500, %v5500
    %v5503 = vunpack.c.l.s4 1966171168
    %v5504 = vunpack.c.0.s8 %v5503
    %v5505 = vlaneseq
    %v5506 = vshrl.u32 %v5505, 7
    %v5507 = vsub.s32 %v5504, %v5506
    %v5508 = vrot.slane %v5500, %v5507
    %v5510 = vunpack.c.l.s4 1966171168
    %v5511 = vunpack.c.0.s8 %v5510
    %v5512 = vlaneseq
    %v5513 = vshrl.u32 %v5512, 7
    %v5514 = vsub.s32 %v5511, %v5513
    %v5515 = vrot.slane %v5501, %v5514
    %v5516 = vlaneseq
    %v5517 = vshrl.u32 %v5516, 7
    %v5518 = vsub.s32 0, %v5517
    %v5519 = vrot.slane %v5508, %v5518
    %v5520 = vlaneseq
    %v5521 = vshrl.u32 %v5520, 7
    %v5522 = vsub.s32 0, %v5521
    %v5523 = vrot.slane %v5515, %v5522
    %5524 = vrot.lane.b32.xlu0 %v5519, 32
    %v5525 = vpop.permute.xlu0 %5524
    %5526 = vrot.lane.b32.xlu0 %v5523, 32
    %v5527 = vpop.permute.xlu0 %5526
    %v5530 = vadd.f32 %v1657, %v5525
    %v5531 = vadd.f32 %v1662, %v5527
    %v5532 = vtanh.pop %v5530
    %v5533 = vtanh.pop %v5531
    %v5534 = vmul.f32 %v5532, %v2294
    %v5535 = vmul.f32 %v5533, %v2294
    %5538 = vrot.lane.b32.xlu0 %v5534, 96
    %v5539 = vpop.permute.xlu0 %5538
    %5540 = vrot.lane.b32.xlu0 %v5535, 96
    %v5541 = vpop.permute.xlu0 %5540
    %v5544 = vsel %vm353, %v5539, 0.0
    %5545 = vadd.xlane.f32.xlu0 %v5544
    %v5546 = vpop.xlane.xlu0 %5545
    %v5547 = vsel %vm353, %v5541, 0.0
    %5548 = vadd.xlane.f32.xlu0 %v5547
    %v5549 = vpop.xlane.xlu0 %5548
    %v5550 = vadd.f32 %v5546, %v2319
    %v5551 = vadd.f32 %v5549, %v2319
    %v5554 = vlaneseq
    %v5555 = vshrl.u32 %v5554, 7
    %v5556 = vsub.s32 %v266, %v5555
    %v5557 = vrot.slane %v5550, %v5556
    %v5558 = vlaneseq
    %v5559 = vshrl.u32 %v5558, 7
    %v5560 = vsub.s32 %v266, %v5559
    %v5561 = vrot.slane %v5551, %v5560
    %v5562 = vsel %vm1944, %v5561, %v5557
    %v5564 = vsel %vm5222, -100000.0, %v5562
    %v5565 = vtanh.pop %v5564
    %v5566 = vmul.f32 %v5565, 10.0
    %v5567 = vsel %vm5222, -100000.0, %v5566
    %v5568 = vsel %vm1947, %v5567, -inf
    %5569 = vmax.xlane.f32.xlu0 %v5568
    %v5570 = vpop.xlane.xlu0 %5569
    %v5571 = vsub.f32 %v5567, %v5570
    %v5572 = vmul.f32 %v5571, 1.442695
    %v5573 = vpow.pop %v5572
    %v5574 = vsel %vm1947, %v5573, 0.0
    %5575 = vadd.xlane.f32.xlu0 %v5574
    %v5576 = vpop.xlane.xlu0 %5575
    %v5577 = vlog2.pop %v5576
    %v5578 = vmul.f32 %v5577, 0.6931472
    %v5579 = vsub.f32 %v5571, %v5578
    %s5580 = scalar_lea.vmem [#allocation25], 8
    %v5581 = vld [vmem:[%s5580] sm:$0x3]
    %v5582 = vadd.f32 %v5567, %v5581
    %v5583 = vsel %vm1947, %v5582, -inf
    %5584 = vmax.xlane.f32.xlu0 %v5583
    %v5585 = vpop.xlane.xlu0 %5584
    %vm5586 = vcmp.ge.f32.partialorder %v5582, %v5585
    %v5587 = vsel %vm5586, %v1665, 8.0
    %v5588 = vsel %vm1947, %v5587, inf
    %5589 = vmin.xlane.f32.xlu0 %v5588
    %v5590 = vpop.xlane.xlu0 %5589
    %vm5591 = vcmp.eq.f32.partialorder %v1665, %v5590
    %v5592 = vcvt.f32.s32.to.zero.pseudo %v5590
    %v5593 = vsel %vm5591, %v5579, 0.0
    %v5594 = vsel %vm1947, %v5593, 0.0
    %5595 = vadd.xlane.f32.xlu0 %v5594
    %v5596 = vpop.xlane.xlu0 %5595
    %vm5597 = vcmp.eq.s32.totalorder %v266, 4
    %v5598 = vsel %vm5597, %v5596, %v4825
    %v5599 = vsel %vm5597, %v5592, %v4826
    %v5600 = vsel %vm5591, 1.0, %v4827
    %v5601 = vsel %vm5591, 1, 0
    %v5602 = vcvt.s32.f32 %v5601
    %v5605 = vunpack.c.l.s4 1966171168
    %v5606 = vunpack.c.0.s8 %v5605
    %v5607 = vlaneseq
    %v5608 = vshrl.u32 %v5607, 7
    %v5609 = vsub.s32 %v5606, %v5608
    %v5610 = vrot.slane %v5602, %v5609
    %v5611 = vcombine.high %v5610, %v5610
    %v5613 = vunpack.c.l.s4 1966171168
    %v5614 = vunpack.c.0.s8 %v5613
    %v5615 = vlaneseq
    %v5616 = vshrl.u32 %v5615, 7
    %v5617 = vsub.s32 %v5614, %v5616
    %v5618 = vrot.slane %v5610, %v5617
    %v5620 = vunpack.c.l.s4 1966171168
    %v5621 = vunpack.c.0.s8 %v5620
    %v5622 = vlaneseq
    %v5623 = vshrl.u32 %v5622, 7
    %v5624 = vsub.s32 %v5621, %v5623
    %v5625 = vrot.slane %v5611, %v5624
    %v5626 = vsel %vm2012, %v5618, 0
    %5628 = vmatprep.subr.mxu0 0.0
    %5629 = vmatpush1.msra.mxu0 %v340
    %5630 = vmatprep.subr.mxu0 0.0
    %5631 = vmatpush1.msra.mxu0 0.0
    %5632 = vmatprep.subr.mxu0 0.0
    %5633 = vmatpush1.msra.mxu0 0.0
    %5634 = vmatprep.subr.mxu0 0.0
    %5635 = vmatpush1.msra.mxu0 0.0
    %5636 = vmatprep.subr.mxu0 0.0
    %5637 = vmatpush1.msra.mxu0 0.0
    %5638 = vmatprep.subr.mxu0 0.0
    %5639 = vmatpush1.msra.mxu0 0.0
    %5640 = vmatprep.subr.mxu0 0.0
    %5641 = vmatpush1.msra.mxu0 0.0
    %5642 = vmatprep.subr.mxu0 0.0
    %5643 = vmatpush1.msra.mxu0 0.0
    %5644 = vmatprep.subr.mxu0 0.0
    %5645 = vmatpush1.msra.mxu0 0.0
    %5646 = vmatprep.subr.mxu0 0.0
    %5647 = vmatpush1.msra.mxu0 0.0
    %5648 = vmatprep.subr.mxu0 0.0
    %5649 = vmatpush1.msra.mxu0 0.0
    %5650 = vmatprep.subr.mxu0 0.0
    %5651 = vmatpush1.msra.mxu0 0.0
    %5652 = vmatprep.subr.mxu0 0.0
    %5653 = vmatpush1.msra.mxu0 0.0
    %5654 = vmatprep.subr.mxu0 0.0
    %5655 = vmatpush1.msra.mxu0 0.0
    %5656 = vmatprep.subr.mxu0 0.0
    %5657 = vmatpush1.msra.mxu0 0.0
    %5658 = vmatprep.subr.mxu0 0.0
    %5659 = vmatpush1.msra.mxu0 0.0
    %5660 = vmatprep.subr.mxu0 0.0
    %5661 = vmatpush1.msra.mxu0 0.0
    %5662 = vmatprep.subr.mxu0 0.0
    %5663 = vmatpush1.msra.mxu0 0.0
    %5664 = vmatprep.subr.mxu0 0.0
    %5665 = vmatpush1.msra.mxu0 0.0
    %5666 = vmatprep.subr.mxu0 0.0
    %5667 = vmatpush1.msra.mxu0 0.0
    %5668 = vmatprep.subr.mxu0 0.0
    %5669 = vmatpush1.msra.mxu0 0.0
    %5670 = vmatprep.subr.mxu0 0.0
    %5671 = vmatpush1.msra.mxu0 0.0
    %5672 = vmatprep.subr.mxu0 0.0
    %5673 = vmatpush1.msra.mxu0 0.0
    %5674 = vmatprep.subr.mxu0 0.0
    %5675 = vmatpush1.msra.mxu0 0.0
    %5676 = vmatprep.subr.mxu0 0.0
    %5677 = vmatpush1.msra.mxu0 0.0
    %5678 = vmatprep.subr.mxu0 0.0
    %5679 = vmatpush1.msra.mxu0 0.0
    %5680 = vmatprep.subr.mxu0 0.0
    %5681 = vmatpush1.msra.mxu0 0.0
    %5682 = vmatprep.subr.mxu0 0.0
    %5683 = vmatpush1.msra.mxu0 0.0
    %5684 = vmatprep.subr.mxu0 0.0
    %5685 = vmatpush1.msra.mxu0 0.0
    %5686 = vmatprep.subr.mxu0 0.0
    %5687 = vmatpush1.msra.mxu0 0.0
    %5688 = vmatprep.subr.mxu0 0.0
    %5689 = vmatpush1.msra.mxu0 0.0
    %5690 = vmatprep.subr.mxu0 0.0
    %5691 = vmatpush1.msra.mxu0 0.0
    %5692 = vmatprep.mubr.f32.mxu0 0.0
    %5693 = vmatmul.mubr.f32.gmra.mrb[0].mxu0 %v5626
    %v5694 = vpop.f32.mrb[0].mxu0
    %v5695 = vadd.f32 0.0, %v5694
    %v5696 = vpop.f32.mrb[0].mxu0
    %5697 = vdwg.mxu0
    %v5698 = vsel %vm2012, %v5625, 0
    %5700 = vmatprep.subr.mxu0 0.0
    %5701 = vmatpush1.msra.mxu0 %v341
    %5702 = vmatprep.subr.mxu0 0.0
    %5703 = vmatpush1.msra.mxu0 0.0
    %5704 = vmatprep.subr.mxu0 0.0
    %5705 = vmatpush1.msra.mxu0 0.0
    %5706 = vmatprep.subr.mxu0 0.0
    %5707 = vmatpush1.msra.mxu0 0.0
    %5708 = vmatprep.subr.mxu0 0.0
    %5709 = vmatpush1.msra.mxu0 0.0
    %5710 = vmatprep.subr.mxu0 0.0
    %5711 = vmatpush1.msra.mxu0 0.0
    %5712 = vmatprep.subr.mxu0 0.0
    %5713 = vmatpush1.msra.mxu0 0.0
    %5714 = vmatprep.subr.mxu0 0.0
    %5715 = vmatpush1.msra.mxu0 0.0
    %5716 = vmatprep.subr.mxu0 0.0
    %5717 = vmatpush1.msra.mxu0 0.0
    %5718 = vmatprep.subr.mxu0 0.0
    %5719 = vmatpush1.msra.mxu0 0.0
    %5720 = vmatprep.subr.mxu0 0.0
    %5721 = vmatpush1.msra.mxu0 0.0
    %5722 = vmatprep.subr.mxu0 0.0
    %5723 = vmatpush1.msra.mxu0 0.0
    %5724 = vmatprep.subr.mxu0 0.0
    %5725 = vmatpush1.msra.mxu0 0.0
    %5726 = vmatprep.subr.mxu0 0.0
    %5727 = vmatpush1.msra.mxu0 0.0
    %5728 = vmatprep.subr.mxu0 0.0
    %5729 = vmatpush1.msra.mxu0 0.0
    %5730 = vmatprep.subr.mxu0 0.0
    %5731 = vmatpush1.msra.mxu0 0.0
    %5732 = vmatprep.subr.mxu0 0.0
    %5733 = vmatpush1.msra.mxu0 0.0
    %5734 = vmatprep.subr.mxu0 0.0
    %5735 = vmatpush1.msra.mxu0 0.0
    %5736 = vmatprep.subr.mxu0 0.0
    %5737 = vmatpush1.msra.mxu0 0.0
    %5738 = vmatprep.subr.mxu0 0.0
    %5739 = vmatpush1.msra.mxu0 0.0
    %5740 = vmatprep.subr.mxu0 0.0
    %5741 = vmatpush1.msra.mxu0 0.0
    %5742 = vmatprep.subr.mxu0 0.0
    %5743 = vmatpush1.msra.mxu0 0.0
    %5744 = vmatprep.subr.mxu0 0.0
    %5745 = vmatpush1.msra.mxu0 0.0
    %5746 = vmatprep.subr.mxu0 0.0
    %5747 = vmatpush1.msra.mxu0 0.0
    %5748 = vmatprep.subr.mxu0 0.0
    %5749 = vmatpush1.msra.mxu0 0.0
    %5750 = vmatprep.subr.mxu0 0.0
    %5751 = vmatpush1.msra.mxu0 0.0
    %5752 = vmatprep.subr.mxu0 0.0
    %5753 = vmatpush1.msra.mxu0 0.0
    %5754 = vmatprep.subr.mxu0 0.0
    %5755 = vmatpush1.msra.mxu0 0.0
    %5756 = vmatprep.subr.mxu0 0.0
    %5757 = vmatpush1.msra.mxu0 0.0
    %5758 = vmatprep.subr.mxu0 0.0
    %5759 = vmatpush1.msra.mxu0 0.0
    %5760 = vmatprep.subr.mxu0 0.0
    %5761 = vmatpush1.msra.mxu0 0.0
    %5762 = vmatprep.subr.mxu0 0.0
    %5763 = vmatpush1.msra.mxu0 0.0
    %5764 = vmatprep.mubr.f32.mxu0 0.0
    %5765 = vmatmul.mubr.f32.gmra.mrb[0].mxu0 %v5698
    %v5766 = vpop.f32.mrb[0].mxu0
    %v5767 = vadd.f32 0.0, %v5766
    %v5768 = vpop.f32.mrb[0].mxu0
    %5769 = vdwg.mxu0
    %v5772 = vrot.slane %v5767, 7
    %v5773 = vsel %vm1944, %v5772, %v5695
    %5775 = vrot.lane.b32.xlu0 %v5099, 64
    %v5776 = vpop.permute.xlu0 %5775
    %v5778 = vsel %vm353, %v5773, %v5776
    %v5780 = vsel %vm1684, %v5778, 0
    %5782 = vmatprep.subr.mxu0 0.0
    %5783 = vmatpush1.msra.mxu0 %v242
    %5784 = vmatprep.subr.mxu0 0.0
    %5785 = vmatpush1.msra.mxu0 %v243
    %5786 = vmatprep.subr.mxu0 0.0
    %5787 = vmatpush1.msra.mxu0 %v244
    %5788 = vmatprep.subr.mxu0 0.0
    %5789 = vmatpush1.msra.mxu0 %v245
    %5790 = vmatprep.subr.mxu0 0.0
    %5791 = vmatpush1.msra.mxu0 %v246
    %5792 = vmatprep.subr.mxu0 0.0
    %5793 = vmatpush1.msra.mxu0 %v247
    %5794 = vmatprep.subr.mxu0 0.0
    %5795 = vmatpush1.msra.mxu0 %v248
    %5796 = vmatprep.subr.mxu0 0.0
    %5797 = vmatpush1.msra.mxu0 %v249
    %5798 = vmatprep.subr.mxu0 0.0
    %5799 = vmatpush1.msra.mxu0 0.0
    %5800 = vmatprep.subr.mxu0 0.0
    %5801 = vmatpush1.msra.mxu0 0.0
    %5802 = vmatprep.subr.mxu0 0.0
    %5803 = vmatpush1.msra.mxu0 0.0
    %5804 = vmatprep.subr.mxu0 0.0
    %5805 = vmatpush1.msra.mxu0 0.0
    %5806 = vmatprep.subr.mxu0 0.0
    %5807 = vmatpush1.msra.mxu0 0.0
    %5808 = vmatprep.subr.mxu0 0.0
    %5809 = vmatpush1.msra.mxu0 0.0
    %5810 = vmatprep.subr.mxu0 0.0
    %5811 = vmatpush1.msra.mxu0 0.0
    %5812 = vmatprep.subr.mxu0 0.0
    %5813 = vmatpush1.msra.mxu0 0.0
    %5814 = vmatprep.subr.mxu0 0.0
    %5815 = vmatpush1.msra.mxu0 0.0
    %5816 = vmatprep.subr.mxu0 0.0
    %5817 = vmatpush1.msra.mxu0 0.0
    %5818 = vmatprep.subr.mxu0 0.0
    %5819 = vmatpush1.msra.mxu0 0.0
    %5820 = vmatprep.subr.mxu0 0.0
    %5821 = vmatpush1.msra.mxu0 0.0
    %5822 = vmatprep.subr.mxu0 0.0
    %5823 = vmatpush1.msra.mxu0 0.0
    %5824 = vmatprep.subr.mxu0 0.0
    %5825 = vmatpush1.msra.mxu0 0.0
    %5826 = vmatprep.subr.mxu0 0.0
    %5827 = vmatpush1.msra.mxu0 0.0
    %5828 = vmatprep.subr.mxu0 0.0
    %5829 = vmatpush1.msra.mxu0 0.0
    %5830 = vmatprep.subr.mxu0 0.0
    %5831 = vmatpush1.msra.mxu0 0.0
    %5832 = vmatprep.subr.mxu0 0.0
    %5833 = vmatpush1.msra.mxu0 0.0
    %5834 = vmatprep.subr.mxu0 0.0
    %5835 = vmatpush1.msra.mxu0 0.0
    %5836 = vmatprep.subr.mxu0 0.0
    %5837 = vmatpush1.msra.mxu0 0.0
    %5838 = vmatprep.subr.mxu0 0.0
    %5839 = vmatpush1.msra.mxu0 0.0
    %5840 = vmatprep.subr.mxu0 0.0
    %5841 = vmatpush1.msra.mxu0 0.0
    %5842 = vmatprep.subr.mxu0 0.0
    %5843 = vmatpush1.msra.mxu0 0.0
    %5844 = vmatprep.subr.mxu0 0.0
    %5845 = vmatpush1.msra.mxu0 0.0
    %5846 = vmatprep.mubr.f32.mxu0 0.0
    %5847 = vmatmul.mubr.f32.gmra.mrb[0].mxu0 %v5780
    %v5848 = vpop.f32.mrb[0].mxu0
    %v5849 = vadd.f32 %v1682, %v5848
    %v5850 = vpop.f32.mrb[0].mxu0
    %5851 = vdwg.mxu0
    %v5852 = vmul.f32 %v5849, %v270
    %v5853 = vtanh.pop %v5852
    %v5854 = vmul.f32 %v5853, %v270
    %v5855 = vadd.f32 %v5854, %v271
    %v5856 = vmul.f32 %v5855, %v5093
    %5858 = vrot.lane.b32.xlu0 %v5855, 64
    %v5859 = vpop.permute.xlu0 %5858
    %v5861 = vmul.f32 %v5855, %v5859
    %5863 = vrot.lane.b32.xlu0 %v5861, 32
    %v5864 = vpop.permute.xlu0 %5863
    %v5866 = vadd.f32 %v5856, %v5864
    %v5867 = vtanh.pop %v5866
    %5869 = vrot.lane.b32.xlu0 %v5867, 64
    %v5870 = vpop.permute.xlu0 %5869
    %v5872 = vmul.f32 %v5855, %v5870
    %5874 = vrot.lane.b32.xlu0 %v5872, 32
    %v5875 = vpop.permute.xlu0 %5874
    %v5876 = vsel %vm353, %v5875, 0
    %5878 = vmatprep.subr.mxu0 0.0
    %5879 = vmatpush1.msra.mxu0 %v251
    %5880 = vmatprep.subr.mxu0 0.0
    %5881 = vmatpush1.msra.mxu0 %v252
    %5882 = vmatprep.subr.mxu0 0.0
    %5883 = vmatpush1.msra.mxu0 %v253
    %5884 = vmatprep.subr.mxu0 0.0
    %5885 = vmatpush1.msra.mxu0 %v254
    %5886 = vmatprep.subr.mxu0 0.0
    %5887 = vmatpush1.msra.mxu0 0.0
    %5888 = vmatprep.subr.mxu0 0.0
    %5889 = vmatpush1.msra.mxu0 0.0
    %5890 = vmatprep.subr.mxu0 0.0
    %5891 = vmatpush1.msra.mxu0 0.0
    %5892 = vmatprep.subr.mxu0 0.0
    %5893 = vmatpush1.msra.mxu0 0.0
    %5894 = vmatprep.subr.mxu0 0.0
    %5895 = vmatpush1.msra.mxu0 0.0
    %5896 = vmatprep.subr.mxu0 0.0
    %5897 = vmatpush1.msra.mxu0 0.0
    %5898 = vmatprep.subr.mxu0 0.0
    %5899 = vmatpush1.msra.mxu0 0.0
    %5900 = vmatprep.subr.mxu0 0.0
    %5901 = vmatpush1.msra.mxu0 0.0
    %5902 = vmatprep.subr.mxu0 0.0
    %5903 = vmatpush1.msra.mxu0 0.0
    %5904 = vmatprep.subr.mxu0 0.0
    %5905 = vmatpush1.msra.mxu0 0.0
    %5906 = vmatprep.subr.mxu0 0.0
    %5907 = vmatpush1.msra.mxu0 0.0
    %5908 = vmatprep.subr.mxu0 0.0
    %5909 = vmatpush1.msra.mxu0 0.0
    %5910 = vmatprep.subr.mxu0 0.0
    %5911 = vmatpush1.msra.mxu0 0.0
    %5912 = vmatprep.subr.mxu0 0.0
    %5913 = vmatpush1.msra.mxu0 0.0
    %5914 = vmatprep.subr.mxu0 0.0
    %5915 = vmatpush1.msra.mxu0 0.0
    %5916 = vmatprep.subr.mxu0 0.0
    %5917 = vmatpush1.msra.mxu0 0.0
    %5918 = vmatprep.subr.mxu0 0.0
    %5919 = vmatpush1.msra.mxu0 0.0
    %5920 = vmatprep.subr.mxu0 0.0
    %5921 = vmatpush1.msra.mxu0 0.0
    %5922 = vmatprep.subr.mxu0 0.0
    %5923 = vmatpush1.msra.mxu0 0.0
    %5924 = vmatprep.subr.mxu0 0.0
    %5925 = vmatpush1.msra.mxu0 0.0
    %5926 = vmatprep.subr.mxu0 0.0
    %5927 = vmatpush1.msra.mxu0 0.0
    %5928 = vmatprep.subr.mxu0 0.0
    %5929 = vmatpush1.msra.mxu0 0.0
    %5930 = vmatprep.subr.mxu0 0.0
    %5931 = vmatpush1.msra.mxu0 0.0
    %5932 = vmatprep.subr.mxu0 0.0
    %5933 = vmatpush1.msra.mxu0 0.0
    %5934 = vmatprep.subr.mxu0 0.0
    %5935 = vmatpush1.msra.mxu0 0.0
    %5936 = vmatprep.subr.mxu0 0.0
    %5937 = vmatpush1.msra.mxu0 0.0
    %5938 = vmatprep.subr.mxu0 0.0
    %5939 = vmatpush1.msra.mxu0 0.0
    %5940 = vmatprep.subr.mxu0 0.0
    %5941 = vmatpush1.msra.mxu0 0.0
    %5942 = vmatprep.mubr.f32.mxu0 0.0
    %5943 = vmatmul.mubr.f32.gmra.mrb[0].mxu0 %v5876
    %v5944 = vpop.f32.mrb[0].mxu0
    %v5945 = vadd.f32 %v1786, %v5944
    %v5946 = vpop.f32.mrb[0].mxu0
    %5947 = vdwg.mxu0
    %v5950 = vunpack.c.l.s4 1966171168
    %v5951 = vunpack.c.0.s8 %v5950
    %v5952 = vlaneseq
    %v5953 = vshrl.u32 %v5952, 7
    %v5954 = vsub.s32 %v5951, %v5953
    %v5955 = vrot.slane %v5945, %v5954
    %v5956 = vcombine.high %v5955, %v5955
    %v5958 = vunpack.c.l.s4 1966171168
    %v5959 = vunpack.c.0.s8 %v5958
    %v5960 = vlaneseq
    %v5961 = vshrl.u32 %v5960, 7
    %v5962 = vsub.s32 %v5959, %v5961
    %v5963 = vrot.slane %v5955, %v5962
    %v5965 = vunpack.c.l.s4 1966171168
    %v5966 = vunpack.c.0.s8 %v5965
    %v5967 = vlaneseq
    %v5968 = vshrl.u32 %v5967, 7
    %v5969 = vsub.s32 %v5966, %v5968
    %v5970 = vrot.slane %v5956, %v5969
    %v5971 = vlaneseq
    %v5972 = vshrl.u32 %v5971, 7
    %v5973 = vsub.s32 0, %v5972
    %v5974 = vrot.slane %v5963, %v5973
    %v5975 = vlaneseq
    %v5976 = vshrl.u32 %v5975, 7
    %v5977 = vsub.s32 0, %v5976
    %v5978 = vrot.slane %v5970, %v5977
    %v5981 = vadd.f32 %v1657, %v5974
    %v5982 = vadd.f32 %v1662, %v5978
    %v5983 = vtanh.pop %v5981
    %v5984 = vtanh.pop %v5982
    %v5985 = vmul.f32 %v5983, %v1904
    %v5986 = vmul.f32 %v5984, %v1904
    %v5987 = vsel %vm353, %v5985, 0.0
    %5988 = vadd.xlane.f32.xlu0 %v5987
    %v5989 = vpop.xlane.xlu0 %5988
    %v5990 = vsel %vm353, %v5986, 0.0
    %5991 = vadd.xlane.f32.xlu0 %v5990
    %v5992 = vpop.xlane.xlu0 %5991
    %v5993 = vadd.f32 %v5989, %v1921
    %v5994 = vadd.f32 %v5992, %v1921
    %vm5995 = vcmp.gt.f32.partialorder %v5600, 0.5
    %v5998 = vlaneseq
    %v5999 = vshrl.u32 %v5998, 7
    %v6000 = vsub.s32 %v266, %v5999
    %v6001 = vrot.slane %v5993, %v6000
    %v6002 = vlaneseq
    %v6003 = vshrl.u32 %v6002, 7
    %v6004 = vsub.s32 %v266, %v6003
    %v6005 = vrot.slane %v5994, %v6004
    %v6006 = vsel %vm1944, %v6005, %v6001
    %v6008 = vsel %vm5995, -100000.0, %v6006
    %v6009 = vtanh.pop %v6008
    %v6010 = vmul.f32 %v6009, 10.0
    %v6011 = vsel %vm5995, -100000.0, %v6010
    %v6012 = vsel %vm1947, %v6011, -inf
    %6013 = vmax.xlane.f32.xlu0 %v6012
    %v6014 = vpop.xlane.xlu0 %6013
    %v6015 = vsub.f32 %v6011, %v6014
    %v6016 = vmul.f32 %v6015, 1.442695
    %v6017 = vpow.pop %v6016
    %v6018 = vsel %vm1947, %v6017, 0.0
    %6019 = vadd.xlane.f32.xlu0 %v6018
    %v6020 = vpop.xlane.xlu0 %6019
    %v6021 = vrcp.pop %v6020
    %v6022 = vmul.f32 %v6017, %v6021
    %v6025 = vunpack.c.l.s4 1966171168
    %v6026 = vunpack.c.0.s8 %v6025
    %v6027 = vlaneseq
    %v6028 = vshrl.u32 %v6027, 7
    %v6029 = vsub.s32 %v6026, %v6028
    %v6030 = vrot.slane %v6022, %v6029
    %v6031 = vcombine.high %v6030, %v6030
    %v6033 = vunpack.c.l.s4 1966171168
    %v6034 = vunpack.c.0.s8 %v6033
    %v6035 = vlaneseq
    %v6036 = vshrl.u32 %v6035, 7
    %v6037 = vsub.s32 %v6034, %v6036
    %v6038 = vrot.slane %v6030, %v6037
    %v6040 = vunpack.c.l.s4 1966171168
    %v6041 = vunpack.c.0.s8 %v6040
    %v6042 = vlaneseq
    %v6043 = vshrl.u32 %v6042, 7
    %v6044 = vsub.s32 %v6041, %v6043
    %v6045 = vrot.slane %v6031, %v6044
    %v6046 = vsel %vm2012, %v6038, 0
    %6048 = vmatprep.subr.mxu0 0.0
    %6049 = vmatpush1.msra.mxu0 %v1571
    %6050 = vmatprep.subr.mxu0 0.0
    %6051 = vmatpush1.msra.mxu0 0.0
    %6052 = vmatprep.subr.mxu0 0.0
    %6053 = vmatpush1.msra.mxu0 0.0
    %6054 = vmatprep.subr.mxu0 0.0
    %6055 = vmatpush1.msra.mxu0 0.0
    %6056 = vmatprep.subr.mxu0 0.0
    %6057 = vmatpush1.msra.mxu0 0.0
    %6058 = vmatprep.subr.mxu0 0.0
    %6059 = vmatpush1.msra.mxu0 0.0
    %6060 = vmatprep.subr.mxu0 0.0
    %6061 = vmatpush1.msra.mxu0 0.0
    %6062 = vmatprep.subr.mxu0 0.0
    %6063 = vmatpush1.msra.mxu0 0.0
    %6064 = vmatprep.subr.mxu0 0.0
    %6065 = vmatpush1.msra.mxu0 0.0
    %6066 = vmatprep.subr.mxu0 0.0
    %6067 = vmatpush1.msra.mxu0 0.0
    %6068 = vmatprep.subr.mxu0 0.0
    %6069 = vmatpush1.msra.mxu0 0.0
    %6070 = vmatprep.subr.mxu0 0.0
    %6071 = vmatpush1.msra.mxu0 0.0
    %6072 = vmatprep.subr.mxu0 0.0
    %6073 = vmatpush1.msra.mxu0 0.0
    %6074 = vmatprep.subr.mxu0 0.0
    %6075 = vmatpush1.msra.mxu0 0.0
    %6076 = vmatprep.subr.mxu0 0.0
    %6077 = vmatpush1.msra.mxu0 0.0
    %6078 = vmatprep.subr.mxu0 0.0
    %6079 = vmatpush1.msra.mxu0 0.0
    %6080 = vmatprep.subr.mxu0 0.0
    %6081 = vmatpush1.msra.mxu0 0.0
    %6082 = vmatprep.subr.mxu0 0.0
    %6083 = vmatpush1.msra.mxu0 0.0
    %6084 = vmatprep.subr.mxu0 0.0
    %6085 = vmatpush1.msra.mxu0 0.0
    %6086 = vmatprep.subr.mxu0 0.0
    %6087 = vmatpush1.msra.mxu0 0.0
    %6088 = vmatprep.subr.mxu0 0.0
    %6089 = vmatpush1.msra.mxu0 0.0
    %6090 = vmatprep.subr.mxu0 0.0
    %6091 = vmatpush1.msra.mxu0 0.0
    %6092 = vmatprep.subr.mxu0 0.0
    %6093 = vmatpush1.msra.mxu0 0.0
    %6094 = vmatprep.subr.mxu0 0.0
    %6095 = vmatpush1.msra.mxu0 0.0
    %6096 = vmatprep.subr.mxu0 0.0
    %6097 = vmatpush1.msra.mxu0 0.0
    %6098 = vmatprep.subr.mxu0 0.0
    %6099 = vmatpush1.msra.mxu0 0.0
    %6100 = vmatprep.subr.mxu0 0.0
    %6101 = vmatpush1.msra.mxu0 0.0
    %6102 = vmatprep.subr.mxu0 0.0
    %6103 = vmatpush1.msra.mxu0 0.0
    %6104 = vmatprep.subr.mxu0 0.0
    %6105 = vmatpush1.msra.mxu0 0.0
    %6106 = vmatprep.subr.mxu0 0.0
    %6107 = vmatpush1.msra.mxu0 0.0
    %6108 = vmatprep.subr.mxu0 0.0
    %6109 = vmatpush1.msra.mxu0 0.0
    %6110 = vmatprep.subr.mxu0 0.0
    %6111 = vmatpush1.msra.mxu0 0.0
    %6112 = vmatprep.mubr.f32.mxu0 0.0
    %6113 = vmatmul.mubr.f32.gmra.mrb[0].mxu0 %v6046
    %v6114 = vpop.f32.mrb[0].mxu0
    %v6115 = vadd.f32 0.0, %v6114
    %v6116 = vpop.f32.mrb[0].mxu0
    %6117 = vdwg.mxu0
    %v6118 = vsel %vm2012, %v6045, 0
    %6120 = vmatprep.subr.mxu0 0.0
    %6121 = vmatpush1.msra.mxu0 %v1572
    %6122 = vmatprep.subr.mxu0 0.0
    %6123 = vmatpush1.msra.mxu0 0.0
    %6124 = vmatprep.subr.mxu0 0.0
    %6125 = vmatpush1.msra.mxu0 0.0
    %6126 = vmatprep.subr.mxu0 0.0
    %6127 = vmatpush1.msra.mxu0 0.0
    %6128 = vmatprep.subr.mxu0 0.0
    %6129 = vmatpush1.msra.mxu0 0.0
    %6130 = vmatprep.subr.mxu0 0.0
    %6131 = vmatpush1.msra.mxu0 0.0
    %6132 = vmatprep.subr.mxu0 0.0
    %6133 = vmatpush1.msra.mxu0 0.0
    %6134 = vmatprep.subr.mxu0 0.0
    %6135 = vmatpush1.msra.mxu0 0.0
    %6136 = vmatprep.subr.mxu0 0.0
    %6137 = vmatpush1.msra.mxu0 0.0
    %6138 = vmatprep.subr.mxu0 0.0
    %6139 = vmatpush1.msra.mxu0 0.0
    %6140 = vmatprep.subr.mxu0 0.0
    %6141 = vmatpush1.msra.mxu0 0.0
    %6142 = vmatprep.subr.mxu0 0.0
    %6143 = vmatpush1.msra.mxu0 0.0
    %6144 = vmatprep.subr.mxu0 0.0
    %6145 = vmatpush1.msra.mxu0 0.0
    %6146 = vmatprep.subr.mxu0 0.0
    %6147 = vmatpush1.msra.mxu0 0.0
    %6148 = vmatprep.subr.mxu0 0.0
    %6149 = vmatpush1.msra.mxu0 0.0
    %6150 = vmatprep.subr.mxu0 0.0
    %6151 = vmatpush1.msra.mxu0 0.0
    %6152 = vmatprep.subr.mxu0 0.0
    %6153 = vmatpush1.msra.mxu0 0.0
    %6154 = vmatprep.subr.mxu0 0.0
    %6155 = vmatpush1.msra.mxu0 0.0
    %6156 = vmatprep.subr.mxu0 0.0
    %6157 = vmatpush1.msra.mxu0 0.0
    %6158 = vmatprep.subr.mxu0 0.0
    %6159 = vmatpush1.msra.mxu0 0.0
    %6160 = vmatprep.subr.mxu0 0.0
    %6161 = vmatpush1.msra.mxu0 0.0
    %6162 = vmatprep.subr.mxu0 0.0
    %6163 = vmatpush1.msra.mxu0 0.0
    %6164 = vmatprep.subr.mxu0 0.0
    %6165 = vmatpush1.msra.mxu0 0.0
    %6166 = vmatprep.subr.mxu0 0.0
    %6167 = vmatpush1.msra.mxu0 0.0
    %6168 = vmatprep.subr.mxu0 0.0
    %6169 = vmatpush1.msra.mxu0 0.0
    %6170 = vmatprep.subr.mxu0 0.0
    %6171 = vmatpush1.msra.mxu0 0.0
    %6172 = vmatprep.subr.mxu0 0.0
    %6173 = vmatpush1.msra.mxu0 0.0
    %6174 = vmatprep.subr.mxu0 0.0
    %6175 = vmatpush1.msra.mxu0 0.0
    %6176 = vmatprep.subr.mxu0 0.0
    %6177 = vmatpush1.msra.mxu0 0.0
    %6178 = vmatprep.subr.mxu0 0.0
    %6179 = vmatpush1.msra.mxu0 0.0
    %6180 = vmatprep.subr.mxu0 0.0
    %6181 = vmatpush1.msra.mxu0 0.0
    %6182 = vmatprep.subr.mxu0 0.0
    %6183 = vmatpush1.msra.mxu0 0.0
    %6184 = vmatprep.mubr.f32.mxu0 0.0
    %6185 = vmatmul.mubr.f32.gmra.mrb[0].mxu0 %v6118
    %v6186 = vpop.f32.mrb[0].mxu0
    %v6187 = vadd.f32 0.0, %v6186
    %v6188 = vpop.f32.mrb[0].mxu0
    %6189 = vdwg.mxu0
    %v6192 = vrot.slane %v6187, 7
    %v6193 = vsel %vm1944, %v6192, %v6115
    %v6194 = vsel %vm353, %v6193, 0
    %6196 = vmatprep.subr.mxu0 0.0
    %6197 = vmatpush1.msra.mxu0 %v258
    %6198 = vmatprep.subr.mxu0 0.0
    %6199 = vmatpush1.msra.mxu0 %v259
    %6200 = vmatprep.subr.mxu0 0.0
    %6201 = vmatpush1.msra.mxu0 %v260
    %6202 = vmatprep.subr.mxu0 0.0
    %6203 = vmatpush1.msra.mxu0 %v261
    %6204 = vmatprep.subr.mxu0 0.0
    %6205 = vmatpush1.msra.mxu0 0.0
    %6206 = vmatprep.subr.mxu0 0.0
    %6207 = vmatpush1.msra.mxu0 0.0
    %6208 = vmatprep.subr.mxu0 0.0
    %6209 = vmatpush1.msra.mxu0 0.0
    %6210 = vmatprep.subr.mxu0 0.0
    %6211 = vmatpush1.msra.mxu0 0.0
    %6212 = vmatprep.subr.mxu0 0.0
    %6213 = vmatpush1.msra.mxu0 0.0
    %6214 = vmatprep.subr.mxu0 0.0
    %6215 = vmatpush1.msra.mxu0 0.0
    %6216 = vmatprep.subr.mxu0 0.0
    %6217 = vmatpush1.msra.mxu0 0.0
    %6218 = vmatprep.subr.mxu0 0.0
    %6219 = vmatpush1.msra.mxu0 0.0
    %6220 = vmatprep.subr.mxu0 0.0
    %6221 = vmatpush1.msra.mxu0 0.0
    %6222 = vmatprep.subr.mxu0 0.0
    %6223 = vmatpush1.msra.mxu0 0.0
    %6224 = vmatprep.subr.mxu0 0.0
    %6225 = vmatpush1.msra.mxu0 0.0
    %6226 = vmatprep.subr.mxu0 0.0
    %6227 = vmatpush1.msra.mxu0 0.0
    %6228 = vmatprep.subr.mxu0 0.0
    %6229 = vmatpush1.msra.mxu0 0.0
    %6230 = vmatprep.subr.mxu0 0.0
    %6231 = vmatpush1.msra.mxu0 0.0
    %6232 = vmatprep.subr.mxu0 0.0
    %6233 = vmatpush1.msra.mxu0 0.0
    %6234 = vmatprep.subr.mxu0 0.0
    %6235 = vmatpush1.msra.mxu0 0.0
    %6236 = vmatprep.subr.mxu0 0.0
    %6237 = vmatpush1.msra.mxu0 0.0
    %6238 = vmatprep.subr.mxu0 0.0
    %6239 = vmatpush1.msra.mxu0 0.0
    %6240 = vmatprep.subr.mxu0 0.0
    %6241 = vmatpush1.msra.mxu0 0.0
    %6242 = vmatprep.subr.mxu0 0.0
    %6243 = vmatpush1.msra.mxu0 0.0
    %6244 = vmatprep.subr.mxu0 0.0
    %6245 = vmatpush1.msra.mxu0 0.0
    %6246 = vmatprep.subr.mxu0 0.0
    %6247 = vmatpush1.msra.mxu0 0.0
    %6248 = vmatprep.subr.mxu0 0.0
    %6249 = vmatpush1.msra.mxu0 0.0
    %6250 = vmatprep.subr.mxu0 0.0
    %6251 = vmatpush1.msra.mxu0 0.0
    %6252 = vmatprep.subr.mxu0 0.0
    %6253 = vmatpush1.msra.mxu0 0.0
    %6254 = vmatprep.subr.mxu0 0.0
    %6255 = vmatpush1.msra.mxu0 0.0
    %6256 = vmatprep.subr.mxu0 0.0
    %6257 = vmatpush1.msra.mxu0 0.0
    %6258 = vmatprep.subr.mxu0 0.0
    %6259 = vmatpush1.msra.mxu0 0.0
    %6260 = vmatprep.mubr.f32.mxu0 0.0
    %6261 = vmatmul.mubr.f32.gmra.mrb[0].mxu0 %v6194
    %v6262 = vpop.f32.mrb[0].mxu0
    %v6263 = vadd.f32 %v2169, %v6262
    %v6264 = vpop.f32.mrb[0].mxu0
    %6265 = vdwg.mxu0
    %v6268 = vunpack.c.l.s4 1966171168
    %v6269 = vunpack.c.0.s8 %v6268
    %v6270 = vlaneseq
    %v6271 = vshrl.u32 %v6270, 7
    %v6272 = vsub.s32 %v6269, %v6271
    %v6273 = vrot.slane %v6263, %v6272
    %v6274 = vcombine.high %v6273, %v6273
    %v6276 = vunpack.c.l.s4 1966171168
    %v6277 = vunpack.c.0.s8 %v6276
    %v6278 = vlaneseq
    %v6279 = vshrl.u32 %v6278, 7
    %v6280 = vsub.s32 %v6277, %v6279
    %v6281 = vrot.slane %v6273, %v6280
    %v6283 = vunpack.c.l.s4 1966171168
    %v6284 = vunpack.c.0.s8 %v6283
    %v6285 = vlaneseq
    %v6286 = vshrl.u32 %v6285, 7
    %v6287 = vsub.s32 %v6284, %v6286
    %v6288 = vrot.slane %v6274, %v6287
    %v6289 = vlaneseq
    %v6290 = vshrl.u32 %v6289, 7
    %v6291 = vsub.s32 0, %v6290
    %v6292 = vrot.slane %v6281, %v6291
    %v6293 = vlaneseq
    %v6294 = vshrl.u32 %v6293, 7
    %v6295 = vsub.s32 0, %v6294
    %v6296 = vrot.slane %v6288, %v6295
    %6297 = vrot.lane.b32.xlu0 %v6292, 32
    %v6298 = vpop.permute.xlu0 %6297
    %6299 = vrot.lane.b32.xlu0 %v6296, 32
    %v6300 = vpop.permute.xlu0 %6299
    %v6303 = vadd.f32 %v1657, %v6298
    %v6304 = vadd.f32 %v1662, %v6300
    %v6305 = vtanh.pop %v6303
    %v6306 = vtanh.pop %v6304
    %v6307 = vmul.f32 %v6305, %v2294
    %v6308 = vmul.f32 %v6306, %v2294
    %6311 = vrot.lane.b32.xlu0 %v6307, 96
    %v6312 = vpop.permute.xlu0 %6311
    %6313 = vrot.lane.b32.xlu0 %v6308, 96
    %v6314 = vpop.permute.xlu0 %6313
    %v6317 = vsel %vm353, %v6312, 0.0
    %6318 = vadd.xlane.f32.xlu0 %v6317
    %v6319 = vpop.xlane.xlu0 %6318
    %v6320 = vsel %vm353, %v6314, 0.0
    %6321 = vadd.xlane.f32.xlu0 %v6320
    %v6322 = vpop.xlane.xlu0 %6321
    %v6323 = vadd.f32 %v6319, %v2319
    %v6324 = vadd.f32 %v6322, %v2319
    %v6327 = vlaneseq
    %v6328 = vshrl.u32 %v6327, 7
    %v6329 = vsub.s32 %v266, %v6328
    %v6330 = vrot.slane %v6323, %v6329
    %v6331 = vlaneseq
    %v6332 = vshrl.u32 %v6331, 7
    %v6333 = vsub.s32 %v266, %v6332
    %v6334 = vrot.slane %v6324, %v6333
    %v6335 = vsel %vm1944, %v6334, %v6330
    %v6337 = vsel %vm5995, -100000.0, %v6335
    %v6338 = vtanh.pop %v6337
    %v6339 = vmul.f32 %v6338, 10.0
    %v6340 = vsel %vm5995, -100000.0, %v6339
    %v6341 = vsel %vm1947, %v6340, -inf
    %6342 = vmax.xlane.f32.xlu0 %v6341
    %v6343 = vpop.xlane.xlu0 %6342
    %v6344 = vsub.f32 %v6340, %v6343
    %v6345 = vmul.f32 %v6344, 1.442695
    %v6346 = vpow.pop %v6345
    %v6347 = vsel %vm1947, %v6346, 0.0
    %6348 = vadd.xlane.f32.xlu0 %v6347
    %v6349 = vpop.xlane.xlu0 %6348
    %v6350 = vlog2.pop %v6349
    %v6351 = vmul.f32 %v6350, 0.6931472
    %v6352 = vsub.f32 %v6344, %v6351
    %s6353 = scalar_lea.vmem [#allocation25], 10
    %v6354 = vld [vmem:[%s6353] sm:$0x3]
    %v6355 = vadd.f32 %v6340, %v6354
    %v6356 = vsel %vm1947, %v6355, -inf
    %6357 = vmax.xlane.f32.xlu0 %v6356
    %v6358 = vpop.xlane.xlu0 %6357
    %vm6359 = vcmp.ge.f32.partialorder %v6355, %v6358
    %v6360 = vsel %vm6359, %v1665, 8.0
    %v6361 = vsel %vm1947, %v6360, inf
    %6362 = vmin.xlane.f32.xlu0 %v6361
    %v6363 = vpop.xlane.xlu0 %6362
    %vm6364 = vcmp.eq.f32.partialorder %v1665, %v6363
    %v6365 = vcvt.f32.s32.to.zero.pseudo %v6363
    %v6366 = vsel %vm6364, %v6352, 0.0
    %v6367 = vsel %vm1947, %v6366, 0.0
    %6368 = vadd.xlane.f32.xlu0 %v6367
    %v6369 = vpop.xlane.xlu0 %6368
    %vm6370 = vcmp.eq.s32.totalorder %v266, 5
    %v6371 = vsel %vm6370, %v6369, %v5598
    %v6372 = vsel %vm6370, %v6365, %v5599
    %v6373 = vsel %vm6364, 1.0, %v5600
    %v6374 = vsel %vm6364, 1, 0
    %v6375 = vcvt.s32.f32 %v6374
    %v6378 = vunpack.c.l.s4 1966171168
    %v6379 = vunpack.c.0.s8 %v6378
    %v6380 = vlaneseq
    %v6381 = vshrl.u32 %v6380, 7
    %v6382 = vsub.s32 %v6379, %v6381
    %v6383 = vrot.slane %v6375, %v6382
    %v6384 = vcombine.high %v6383, %v6383
    %v6386 = vunpack.c.l.s4 1966171168
    %v6387 = vunpack.c.0.s8 %v6386
    %v6388 = vlaneseq
    %v6389 = vshrl.u32 %v6388, 7
    %v6390 = vsub.s32 %v6387, %v6389
    %v6391 = vrot.slane %v6383, %v6390
    %v6393 = vunpack.c.l.s4 1966171168
    %v6394 = vunpack.c.0.s8 %v6393
    %v6395 = vlaneseq
    %v6396 = vshrl.u32 %v6395, 7
    %v6397 = vsub.s32 %v6394, %v6396
    %v6398 = vrot.slane %v6384, %v6397
    %v6399 = vsel %vm2012, %v6391, 0
    %6401 = vmatprep.subr.mxu0 0.0
    %6402 = vmatpush1.msra.mxu0 %v340
    %6403 = vmatprep.subr.mxu0 0.0
    %6404 = vmatpush1.msra.mxu0 0.0
    %6405 = vmatprep.subr.mxu0 0.0
    %6406 = vmatpush1.msra.mxu0 0.0
    %6407 = vmatprep.subr.mxu0 0.0
    %6408 = vmatpush1.msra.mxu0 0.0
    %6409 = vmatprep.subr.mxu0 0.0
    %6410 = vmatpush1.msra.mxu0 0.0
    %6411 = vmatprep.subr.mxu0 0.0
    %6412 = vmatpush1.msra.mxu0 0.0
    %6413 = vmatprep.subr.mxu0 0.0
    %6414 = vmatpush1.msra.mxu0 0.0
    %6415 = vmatprep.subr.mxu0 0.0
    %6416 = vmatpush1.msra.mxu0 0.0
    %6417 = vmatprep.subr.mxu0 0.0
    %6418 = vmatpush1.msra.mxu0 0.0
    %6419 = vmatprep.subr.mxu0 0.0
    %6420 = vmatpush1.msra.mxu0 0.0
    %6421 = vmatprep.subr.mxu0 0.0
    %6422 = vmatpush1.msra.mxu0 0.0
    %6423 = vmatprep.subr.mxu0 0.0
    %6424 = vmatpush1.msra.mxu0 0.0
    %6425 = vmatprep.subr.mxu0 0.0
    %6426 = vmatpush1.msra.mxu0 0.0
    %6427 = vmatprep.subr.mxu0 0.0
    %6428 = vmatpush1.msra.mxu0 0.0
    %6429 = vmatprep.subr.mxu0 0.0
    %6430 = vmatpush1.msra.mxu0 0.0
    %6431 = vmatprep.subr.mxu0 0.0
    %6432 = vmatpush1.msra.mxu0 0.0
    %6433 = vmatprep.subr.mxu0 0.0
    %6434 = vmatpush1.msra.mxu0 0.0
    %6435 = vmatprep.subr.mxu0 0.0
    %6436 = vmatpush1.msra.mxu0 0.0
    %6437 = vmatprep.subr.mxu0 0.0
    %6438 = vmatpush1.msra.mxu0 0.0
    %6439 = vmatprep.subr.mxu0 0.0
    %6440 = vmatpush1.msra.mxu0 0.0
    %6441 = vmatprep.subr.mxu0 0.0
    %6442 = vmatpush1.msra.mxu0 0.0
    %6443 = vmatprep.subr.mxu0 0.0
    %6444 = vmatpush1.msra.mxu0 0.0
    %6445 = vmatprep.subr.mxu0 0.0
    %6446 = vmatpush1.msra.mxu0 0.0
    %6447 = vmatprep.subr.mxu0 0.0
    %6448 = vmatpush1.msra.mxu0 0.0
    %6449 = vmatprep.subr.mxu0 0.0
    %6450 = vmatpush1.msra.mxu0 0.0
    %6451 = vmatprep.subr.mxu0 0.0
    %6452 = vmatpush1.msra.mxu0 0.0
    %6453 = vmatprep.subr.mxu0 0.0
    %6454 = vmatpush1.msra.mxu0 0.0
    %6455 = vmatprep.subr.mxu0 0.0
    %6456 = vmatpush1.msra.mxu0 0.0
    %6457 = vmatprep.subr.mxu0 0.0
    %6458 = vmatpush1.msra.mxu0 0.0
    %6459 = vmatprep.subr.mxu0 0.0
    %6460 = vmatpush1.msra.mxu0 0.0
    %6461 = vmatprep.subr.mxu0 0.0
    %6462 = vmatpush1.msra.mxu0 0.0
    %6463 = vmatprep.subr.mxu0 0.0
    %6464 = vmatpush1.msra.mxu0 0.0
    %6465 = vmatprep.mubr.f32.mxu0 0.0
    %6466 = vmatmul.mubr.f32.gmra.mrb[0].mxu0 %v6399
    %v6467 = vpop.f32.mrb[0].mxu0
    %v6468 = vadd.f32 0.0, %v6467
    %v6469 = vpop.f32.mrb[0].mxu0
    %6470 = vdwg.mxu0
    %v6471 = vsel %vm2012, %v6398, 0
    %6473 = vmatprep.subr.mxu0 0.0
    %6474 = vmatpush1.msra.mxu0 %v341
    %6475 = vmatprep.subr.mxu0 0.0
    %6476 = vmatpush1.msra.mxu0 0.0
    %6477 = vmatprep.subr.mxu0 0.0
    %6478 = vmatpush1.msra.mxu0 0.0
    %6479 = vmatprep.subr.mxu0 0.0
    %6480 = vmatpush1.msra.mxu0 0.0
    %6481 = vmatprep.subr.mxu0 0.0
    %6482 = vmatpush1.msra.mxu0 0.0
    %6483 = vmatprep.subr.mxu0 0.0
    %6484 = vmatpush1.msra.mxu0 0.0
    %6485 = vmatprep.subr.mxu0 0.0
    %6486 = vmatpush1.msra.mxu0 0.0
    %6487 = vmatprep.subr.mxu0 0.0
    %6488 = vmatpush1.msra.mxu0 0.0
    %6489 = vmatprep.subr.mxu0 0.0
    %6490 = vmatpush1.msra.mxu0 0.0
    %6491 = vmatprep.subr.mxu0 0.0
    %6492 = vmatpush1.msra.mxu0 0.0
    %6493 = vmatprep.subr.mxu0 0.0
    %6494 = vmatpush1.msra.mxu0 0.0
    %6495 = vmatprep.subr.mxu0 0.0
    %6496 = vmatpush1.msra.mxu0 0.0
    %6497 = vmatprep.subr.mxu0 0.0
    %6498 = vmatpush1.msra.mxu0 0.0
    %6499 = vmatprep.subr.mxu0 0.0
    %6500 = vmatpush1.msra.mxu0 0.0
    %6501 = vmatprep.subr.mxu0 0.0
    %6502 = vmatpush1.msra.mxu0 0.0
    %6503 = vmatprep.subr.mxu0 0.0
    %6504 = vmatpush1.msra.mxu0 0.0
    %6505 = vmatprep.subr.mxu0 0.0
    %6506 = vmatpush1.msra.mxu0 0.0
    %6507 = vmatprep.subr.mxu0 0.0
    %6508 = vmatpush1.msra.mxu0 0.0
    %6509 = vmatprep.subr.mxu0 0.0
    %6510 = vmatpush1.msra.mxu0 0.0
    %6511 = vmatprep.subr.mxu0 0.0
    %6512 = vmatpush1.msra.mxu0 0.0
    %6513 = vmatprep.subr.mxu0 0.0
    %6514 = vmatpush1.msra.mxu0 0.0
    %6515 = vmatprep.subr.mxu0 0.0
    %6516 = vmatpush1.msra.mxu0 0.0
    %6517 = vmatprep.subr.mxu0 0.0
    %6518 = vmatpush1.msra.mxu0 0.0
    %6519 = vmatprep.subr.mxu0 0.0
    %6520 = vmatpush1.msra.mxu0 0.0
    %6521 = vmatprep.subr.mxu0 0.0
    %6522 = vmatpush1.msra.mxu0 0.0
    %6523 = vmatprep.subr.mxu0 0.0
    %6524 = vmatpush1.msra.mxu0 0.0
    %6525 = vmatprep.subr.mxu0 0.0
    %6526 = vmatpush1.msra.mxu0 0.0
    %6527 = vmatprep.subr.mxu0 0.0
    %6528 = vmatpush1.msra.mxu0 0.0
    %6529 = vmatprep.subr.mxu0 0.0
    %6530 = vmatpush1.msra.mxu0 0.0
    %6531 = vmatprep.subr.mxu0 0.0
    %6532 = vmatpush1.msra.mxu0 0.0
    %6533 = vmatprep.subr.mxu0 0.0
    %6534 = vmatpush1.msra.mxu0 0.0
    %6535 = vmatprep.subr.mxu0 0.0
    %6536 = vmatpush1.msra.mxu0 0.0
    %6537 = vmatprep.mubr.f32.mxu0 0.0
    %6538 = vmatmul.mubr.f32.gmra.mrb[0].mxu0 %v6471
    %v6539 = vpop.f32.mrb[0].mxu0
    %v6540 = vadd.f32 0.0, %v6539
    %v6541 = vpop.f32.mrb[0].mxu0
    %6542 = vdwg.mxu0
    %v6545 = vrot.slane %v6540, 7
    %v6546 = vsel %vm1944, %v6545, %v6468
    %6548 = vrot.lane.b32.xlu0 %v5872, 64
    %v6549 = vpop.permute.xlu0 %6548
    %v6551 = vsel %vm353, %v6546, %v6549
    %v6553 = vsel %vm1684, %v6551, 0
    %6555 = vmatprep.subr.mxu0 0.0
    %6556 = vmatpush1.msra.mxu0 %v242
    %6557 = vmatprep.subr.mxu0 0.0
    %6558 = vmatpush1.msra.mxu0 %v243
    %6559 = vmatprep.subr.mxu0 0.0
    %6560 = vmatpush1.msra.mxu0 %v244
    %6561 = vmatprep.subr.mxu0 0.0
    %6562 = vmatpush1.msra.mxu0 %v245
    %6563 = vmatprep.subr.mxu0 0.0
    %6564 = vmatpush1.msra.mxu0 %v246
    %6565 = vmatprep.subr.mxu0 0.0
    %6566 = vmatpush1.msra.mxu0 %v247
    %6567 = vmatprep.subr.mxu0 0.0
    %6568 = vmatpush1.msra.mxu0 %v248
    %6569 = vmatprep.subr.mxu0 0.0
    %6570 = vmatpush1.msra.mxu0 %v249
    %6571 = vmatprep.subr.mxu0 0.0
    %6572 = vmatpush1.msra.mxu0 0.0
    %6573 = vmatprep.subr.mxu0 0.0
    %6574 = vmatpush1.msra.mxu0 0.0
    %6575 = vmatprep.subr.mxu0 0.0
    %6576 = vmatpush1.msra.mxu0 0.0
    %6577 = vmatprep.subr.mxu0 0.0
    %6578 = vmatpush1.msra.mxu0 0.0
    %6579 = vmatprep.subr.mxu0 0.0
    %6580 = vmatpush1.msra.mxu0 0.0
    %6581 = vmatprep.subr.mxu0 0.0
    %6582 = vmatpush1.msra.mxu0 0.0
    %6583 = vmatprep.subr.mxu0 0.0
    %6584 = vmatpush1.msra.mxu0 0.0
    %6585 = vmatprep.subr.mxu0 0.0
    %6586 = vmatpush1.msra.mxu0 0.0
    %6587 = vmatprep.subr.mxu0 0.0
    %6588 = vmatpush1.msra.mxu0 0.0
    %6589 = vmatprep.subr.mxu0 0.0
    %6590 = vmatpush1.msra.mxu0 0.0
    %6591 = vmatprep.subr.mxu0 0.0
    %6592 = vmatpush1.msra.mxu0 0.0
    %6593 = vmatprep.subr.mxu0 0.0
    %6594 = vmatpush1.msra.mxu0 0.0
    %6595 = vmatprep.subr.mxu0 0.0
    %6596 = vmatpush1.msra.mxu0 0.0
    %6597 = vmatprep.subr.mxu0 0.0
    %6598 = vmatpush1.msra.mxu0 0.0
    %6599 = vmatprep.subr.mxu0 0.0
    %6600 = vmatpush1.msra.mxu0 0.0
    %6601 = vmatprep.subr.mxu0 0.0
    %6602 = vmatpush1.msra.mxu0 0.0
    %6603 = vmatprep.subr.mxu0 0.0
    %6604 = vmatpush1.msra.mxu0 0.0
    %6605 = vmatprep.subr.mxu0 0.0
    %6606 = vmatpush1.msra.mxu0 0.0
    %6607 = vmatprep.subr.mxu0 0.0
    %6608 = vmatpush1.msra.mxu0 0.0
    %6609 = vmatprep.subr.mxu0 0.0
    %6610 = vmatpush1.msra.mxu0 0.0
    %6611 = vmatprep.subr.mxu0 0.0
    %6612 = vmatpush1.msra.mxu0 0.0
    %6613 = vmatprep.subr.mxu0 0.0
    %6614 = vmatpush1.msra.mxu0 0.0
    %6615 = vmatprep.subr.mxu0 0.0
    %6616 = vmatpush1.msra.mxu0 0.0
    %6617 = vmatprep.subr.mxu0 0.0
    %6618 = vmatpush1.msra.mxu0 0.0
    %6619 = vmatprep.mubr.f32.mxu0 0.0
    %6620 = vmatmul.mubr.f32.gmra.mrb[0].mxu0 %v6553
    %v6621 = vpop.f32.mrb[0].mxu0
    %v6622 = vadd.f32 %v1682, %v6621
    %v6623 = vpop.f32.mrb[0].mxu0
    %6624 = vdwg.mxu0
    %v6625 = vmul.f32 %v6622, %v270
    %v6626 = vtanh.pop %v6625
    %v6627 = vmul.f32 %v6626, %v270
    %v6628 = vadd.f32 %v6627, %v271
    %v6629 = vmul.f32 %v6628, %v5866
    %6631 = vrot.lane.b32.xlu0 %v6628, 64
    %v6632 = vpop.permute.xlu0 %6631
    %v6634 = vmul.f32 %v6628, %v6632
    %6636 = vrot.lane.b32.xlu0 %v6634, 32
    %v6637 = vpop.permute.xlu0 %6636
    %v6639 = vadd.f32 %v6629, %v6637
    %v6640 = vtanh.pop %v6639
    %6642 = vrot.lane.b32.xlu0 %v6640, 64
    %v6643 = vpop.permute.xlu0 %6642
    %v6645 = vmul.f32 %v6628, %v6643
    %6647 = vrot.lane.b32.xlu0 %v6645, 32
    %v6648 = vpop.permute.xlu0 %6647
    %v6649 = vsel %vm353, %v6648, 0
    %6651 = vmatprep.subr.mxu0 0.0
    %6652 = vmatpush1.msra.mxu0 %v251
    %6653 = vmatprep.subr.mxu0 0.0
    %6654 = vmatpush1.msra.mxu0 %v252
    %6655 = vmatprep.subr.mxu0 0.0
    %6656 = vmatpush1.msra.mxu0 %v253
    %6657 = vmatprep.subr.mxu0 0.0
    %6658 = vmatpush1.msra.mxu0 %v254
    %6659 = vmatprep.subr.mxu0 0.0
    %6660 = vmatpush1.msra.mxu0 0.0
    %6661 = vmatprep.subr.mxu0 0.0
    %6662 = vmatpush1.msra.mxu0 0.0
    %6663 = vmatprep.subr.mxu0 0.0
    %6664 = vmatpush1.msra.mxu0 0.0
    %6665 = vmatprep.subr.mxu0 0.0
    %6666 = vmatpush1.msra.mxu0 0.0
    %6667 = vmatprep.subr.mxu0 0.0
    %6668 = vmatpush1.msra.mxu0 0.0
    %6669 = vmatprep.subr.mxu0 0.0
    %6670 = vmatpush1.msra.mxu0 0.0
    %6671 = vmatprep.subr.mxu0 0.0
    %6672 = vmatpush1.msra.mxu0 0.0
    %6673 = vmatprep.subr.mxu0 0.0
    %6674 = vmatpush1.msra.mxu0 0.0
    %6675 = vmatprep.subr.mxu0 0.0
    %6676 = vmatpush1.msra.mxu0 0.0
    %6677 = vmatprep.subr.mxu0 0.0
    %6678 = vmatpush1.msra.mxu0 0.0
    %6679 = vmatprep.subr.mxu0 0.0
    %6680 = vmatpush1.msra.mxu0 0.0
    %6681 = vmatprep.subr.mxu0 0.0
    %6682 = vmatpush1.msra.mxu0 0.0
    %6683 = vmatprep.subr.mxu0 0.0
    %6684 = vmatpush1.msra.mxu0 0.0
    %6685 = vmatprep.subr.mxu0 0.0
    %6686 = vmatpush1.msra.mxu0 0.0
    %6687 = vmatprep.subr.mxu0 0.0
    %6688 = vmatpush1.msra.mxu0 0.0
    %6689 = vmatprep.subr.mxu0 0.0
    %6690 = vmatpush1.msra.mxu0 0.0
    %6691 = vmatprep.subr.mxu0 0.0
    %6692 = vmatpush1.msra.mxu0 0.0
    %6693 = vmatprep.subr.mxu0 0.0
    %6694 = vmatpush1.msra.mxu0 0.0
    %6695 = vmatprep.subr.mxu0 0.0
    %6696 = vmatpush1.msra.mxu0 0.0
    %6697 = vmatprep.subr.mxu0 0.0
    %6698 = vmatpush1.msra.mxu0 0.0
    %6699 = vmatprep.subr.mxu0 0.0
    %6700 = vmatpush1.msra.mxu0 0.0
    %6701 = vmatprep.subr.mxu0 0.0
    %6702 = vmatpush1.msra.mxu0 0.0
    %6703 = vmatprep.subr.mxu0 0.0
    %6704 = vmatpush1.msra.mxu0 0.0
    %6705 = vmatprep.subr.mxu0 0.0
    %6706 = vmatpush1.msra.mxu0 0.0
    %6707 = vmatprep.subr.mxu0 0.0
    %6708 = vmatpush1.msra.mxu0 0.0
    %6709 = vmatprep.subr.mxu0 0.0
    %6710 = vmatpush1.msra.mxu0 0.0
    %6711 = vmatprep.subr.mxu0 0.0
    %6712 = vmatpush1.msra.mxu0 0.0
    %6713 = vmatprep.subr.mxu0 0.0
    %6714 = vmatpush1.msra.mxu0 0.0
    %6715 = vmatprep.mubr.f32.mxu0 0.0
    %6716 = vmatmul.mubr.f32.gmra.mrb[0].mxu0 %v6649
    %v6717 = vpop.f32.mrb[0].mxu0
    %v6718 = vadd.f32 %v1786, %v6717
    %v6719 = vpop.f32.mrb[0].mxu0
    %6720 = vdwg.mxu0
    %v6723 = vunpack.c.l.s4 1966171168
    %v6724 = vunpack.c.0.s8 %v6723
    %v6725 = vlaneseq
    %v6726 = vshrl.u32 %v6725, 7
    %v6727 = vsub.s32 %v6724, %v6726
    %v6728 = vrot.slane %v6718, %v6727
    %v6729 = vcombine.high %v6728, %v6728
    %v6731 = vunpack.c.l.s4 1966171168
    %v6732 = vunpack.c.0.s8 %v6731
    %v6733 = vlaneseq
    %v6734 = vshrl.u32 %v6733, 7
    %v6735 = vsub.s32 %v6732, %v6734
    %v6736 = vrot.slane %v6728, %v6735
    %v6738 = vunpack.c.l.s4 1966171168
    %v6739 = vunpack.c.0.s8 %v6738
    %v6740 = vlaneseq
    %v6741 = vshrl.u32 %v6740, 7
    %v6742 = vsub.s32 %v6739, %v6741
    %v6743 = vrot.slane %v6729, %v6742
    %v6744 = vlaneseq
    %v6745 = vshrl.u32 %v6744, 7
    %v6746 = vsub.s32 0, %v6745
    %v6747 = vrot.slane %v6736, %v6746
    %v6748 = vlaneseq
    %v6749 = vshrl.u32 %v6748, 7
    %v6750 = vsub.s32 0, %v6749
    %v6751 = vrot.slane %v6743, %v6750
    %v6754 = vadd.f32 %v1657, %v6747
    %v6755 = vadd.f32 %v1662, %v6751
    %v6756 = vtanh.pop %v6754
    %v6757 = vtanh.pop %v6755
    %v6758 = vmul.f32 %v6756, %v1904
    %v6759 = vmul.f32 %v6757, %v1904
    %v6760 = vsel %vm353, %v6758, 0.0
    %6761 = vadd.xlane.f32.xlu0 %v6760
    %v6762 = vpop.xlane.xlu0 %6761
    %v6763 = vsel %vm353, %v6759, 0.0
    %6764 = vadd.xlane.f32.xlu0 %v6763
    %v6765 = vpop.xlane.xlu0 %6764
    %v6766 = vadd.f32 %v6762, %v1921
    %v6767 = vadd.f32 %v6765, %v1921
    %vm6768 = vcmp.gt.f32.partialorder %v6373, 0.5
    %v6771 = vlaneseq
    %v6772 = vshrl.u32 %v6771, 7
    %v6773 = vsub.s32 %v266, %v6772
    %v6774 = vrot.slane %v6766, %v6773
    %v6775 = vlaneseq
    %v6776 = vshrl.u32 %v6775, 7
    %v6777 = vsub.s32 %v266, %v6776
    %v6778 = vrot.slane %v6767, %v6777
    %v6779 = vsel %vm1944, %v6778, %v6774
    %v6781 = vsel %vm6768, -100000.0, %v6779
    %v6782 = vtanh.pop %v6781
    %v6783 = vmul.f32 %v6782, 10.0
    %v6784 = vsel %vm6768, -100000.0, %v6783
    %v6785 = vsel %vm1947, %v6784, -inf
    %6786 = vmax.xlane.f32.xlu0 %v6785
    %v6787 = vpop.xlane.xlu0 %6786
    %v6788 = vsub.f32 %v6784, %v6787
    %v6789 = vmul.f32 %v6788, 1.442695
    %v6790 = vpow.pop %v6789
    %v6791 = vsel %vm1947, %v6790, 0.0
    %6792 = vadd.xlane.f32.xlu0 %v6791
    %v6793 = vpop.xlane.xlu0 %6792
    %v6794 = vrcp.pop %v6793
    %v6795 = vmul.f32 %v6790, %v6794
    %v6798 = vunpack.c.l.s4 1966171168
    %v6799 = vunpack.c.0.s8 %v6798
    %v6800 = vlaneseq
    %v6801 = vshrl.u32 %v6800, 7
    %v6802 = vsub.s32 %v6799, %v6801
    %v6803 = vrot.slane %v6795, %v6802
    %v6804 = vcombine.high %v6803, %v6803
    %v6806 = vunpack.c.l.s4 1966171168
    %v6807 = vunpack.c.0.s8 %v6806
    %v6808 = vlaneseq
    %v6809 = vshrl.u32 %v6808, 7
    %v6810 = vsub.s32 %v6807, %v6809
    %v6811 = vrot.slane %v6803, %v6810
    %v6813 = vunpack.c.l.s4 1966171168
    %v6814 = vunpack.c.0.s8 %v6813
    %v6815 = vlaneseq
    %v6816 = vshrl.u32 %v6815, 7
    %v6817 = vsub.s32 %v6814, %v6816
    %v6818 = vrot.slane %v6804, %v6817
    %v6819 = vsel %vm2012, %v6811, 0
    %6821 = vmatprep.subr.mxu0 0.0
    %6822 = vmatpush1.msra.mxu0 %v1571
    %6823 = vmatprep.subr.mxu0 0.0
    %6824 = vmatpush1.msra.mxu0 0.0
    %6825 = vmatprep.subr.mxu0 0.0
    %6826 = vmatpush1.msra.mxu0 0.0
    %6827 = vmatprep.subr.mxu0 0.0
    %6828 = vmatpush1.msra.mxu0 0.0
    %6829 = vmatprep.subr.mxu0 0.0
    %6830 = vmatpush1.msra.mxu0 0.0
    %6831 = vmatprep.subr.mxu0 0.0
    %6832 = vmatpush1.msra.mxu0 0.0
    %6833 = vmatprep.subr.mxu0 0.0
    %6834 = vmatpush1.msra.mxu0 0.0
    %6835 = vmatprep.subr.mxu0 0.0
    %6836 = vmatpush1.msra.mxu0 0.0
    %6837 = vmatprep.subr.mxu0 0.0
    %6838 = vmatpush1.msra.mxu0 0.0
    %6839 = vmatprep.subr.mxu0 0.0
    %6840 = vmatpush1.msra.mxu0 0.0
    %6841 = vmatprep.subr.mxu0 0.0
    %6842 = vmatpush1.msra.mxu0 0.0
    %6843 = vmatprep.subr.mxu0 0.0
    %6844 = vmatpush1.msra.mxu0 0.0
    %6845 = vmatprep.subr.mxu0 0.0
    %6846 = vmatpush1.msra.mxu0 0.0
    %6847 = vmatprep.subr.mxu0 0.0
    %6848 = vmatpush1.msra.mxu0 0.0
    %6849 = vmatprep.subr.mxu0 0.0
    %6850 = vmatpush1.msra.mxu0 0.0
    %6851 = vmatprep.subr.mxu0 0.0
    %6852 = vmatpush1.msra.mxu0 0.0
    %6853 = vmatprep.subr.mxu0 0.0
    %6854 = vmatpush1.msra.mxu0 0.0
    %6855 = vmatprep.subr.mxu0 0.0
    %6856 = vmatpush1.msra.mxu0 0.0
    %6857 = vmatprep.subr.mxu0 0.0
    %6858 = vmatpush1.msra.mxu0 0.0
    %6859 = vmatprep.subr.mxu0 0.0
    %6860 = vmatpush1.msra.mxu0 0.0
    %6861 = vmatprep.subr.mxu0 0.0
    %6862 = vmatpush1.msra.mxu0 0.0
    %6863 = vmatprep.subr.mxu0 0.0
    %6864 = vmatpush1.msra.mxu0 0.0
    %6865 = vmatprep.subr.mxu0 0.0
    %6866 = vmatpush1.msra.mxu0 0.0
    %6867 = vmatprep.subr.mxu0 0.0
    %6868 = vmatpush1.msra.mxu0 0.0
    %6869 = vmatprep.subr.mxu0 0.0
    %6870 = vmatpush1.msra.mxu0 0.0
    %6871 = vmatprep.subr.mxu0 0.0
    %6872 = vmatpush1.msra.mxu0 0.0
    %6873 = vmatprep.subr.mxu0 0.0
    %6874 = vmatpush1.msra.mxu0 0.0
    %6875 = vmatprep.subr.mxu0 0.0
    %6876 = vmatpush1.msra.mxu0 0.0
    %6877 = vmatprep.subr.mxu0 0.0
    %6878 = vmatpush1.msra.mxu0 0.0
    %6879 = vmatprep.subr.mxu0 0.0
    %6880 = vmatpush1.msra.mxu0 0.0
    %6881 = vmatprep.subr.mxu0 0.0
    %6882 = vmatpush1.msra.mxu0 0.0
    %6883 = vmatprep.subr.mxu0 0.0
    %6884 = vmatpush1.msra.mxu0 0.0
    %6885 = vmatprep.mubr.f32.mxu0 0.0
    %6886 = vmatmul.mubr.f32.gmra.mrb[0].mxu0 %v6819
    %v6887 = vpop.f32.mrb[0].mxu0
    %v6888 = vadd.f32 0.0, %v6887
    %v6889 = vpop.f32.mrb[0].mxu0
    %6890 = vdwg.mxu0
    %v6891 = vsel %vm2012, %v6818, 0
    %6893 = vmatprep.subr.mxu0 0.0
    %6894 = vmatpush1.msra.mxu0 %v1572
    %6895 = vmatprep.subr.mxu0 0.0
    %6896 = vmatpush1.msra.mxu0 0.0
    %6897 = vmatprep.subr.mxu0 0.0
    %6898 = vmatpush1.msra.mxu0 0.0
    %6899 = vmatprep.subr.mxu0 0.0
    %6900 = vmatpush1.msra.mxu0 0.0
    %6901 = vmatprep.subr.mxu0 0.0
    %6902 = vmatpush1.msra.mxu0 0.0
    %6903 = vmatprep.subr.mxu0 0.0
    %6904 = vmatpush1.msra.mxu0 0.0
    %6905 = vmatprep.subr.mxu0 0.0
    %6906 = vmatpush1.msra.mxu0 0.0
    %6907 = vmatprep.subr.mxu0 0.0
    %6908 = vmatpush1.msra.mxu0 0.0
    %6909 = vmatprep.subr.mxu0 0.0
    %6910 = vmatpush1.msra.mxu0 0.0
    %6911 = vmatprep.subr.mxu0 0.0
    %6912 = vmatpush1.msra.mxu0 0.0
    %6913 = vmatprep.subr.mxu0 0.0
    %6914 = vmatpush1.msra.mxu0 0.0
    %6915 = vmatprep.subr.mxu0 0.0
    %6916 = vmatpush1.msra.mxu0 0.0
    %6917 = vmatprep.subr.mxu0 0.0
    %6918 = vmatpush1.msra.mxu0 0.0
    %6919 = vmatprep.subr.mxu0 0.0
    %6920 = vmatpush1.msra.mxu0 0.0
    %6921 = vmatprep.subr.mxu0 0.0
    %6922 = vmatpush1.msra.mxu0 0.0
    %6923 = vmatprep.subr.mxu0 0.0
    %6924 = vmatpush1.msra.mxu0 0.0
    %6925 = vmatprep.subr.mxu0 0.0
    %6926 = vmatpush1.msra.mxu0 0.0
    %6927 = vmatprep.subr.mxu0 0.0
    %6928 = vmatpush1.msra.mxu0 0.0
    %6929 = vmatprep.subr.mxu0 0.0
    %6930 = vmatpush1.msra.mxu0 0.0
    %6931 = vmatprep.subr.mxu0 0.0
    %6932 = vmatpush1.msra.mxu0 0.0
    %6933 = vmatprep.subr.mxu0 0.0
    %6934 = vmatpush1.msra.mxu0 0.0
    %6935 = vmatprep.subr.mxu0 0.0
    %6936 = vmatpush1.msra.mxu0 0.0
    %6937 = vmatprep.subr.mxu0 0.0
    %6938 = vmatpush1.msra.mxu0 0.0
    %6939 = vmatprep.subr.mxu0 0.0
    %6940 = vmatpush1.msra.mxu0 0.0
    %6941 = vmatprep.subr.mxu0 0.0
    %6942 = vmatpush1.msra.mxu0 0.0
    %6943 = vmatprep.subr.mxu0 0.0
    %6944 = vmatpush1.msra.mxu0 0.0
    %6945 = vmatprep.subr.mxu0 0.0
    %6946 = vmatpush1.msra.mxu0 0.0
    %6947 = vmatprep.subr.mxu0 0.0
    %6948 = vmatpush1.msra.mxu0 0.0
    %6949 = vmatprep.subr.mxu0 0.0
    %6950 = vmatpush1.msra.mxu0 0.0
    %6951 = vmatprep.subr.mxu0 0.0
    %6952 = vmatpush1.msra.mxu0 0.0
    %6953 = vmatprep.subr.mxu0 0.0
    %6954 = vmatpush1.msra.mxu0 0.0
    %6955 = vmatprep.subr.mxu0 0.0
    %6956 = vmatpush1.msra.mxu0 0.0
    %6957 = vmatprep.mubr.f32.mxu0 0.0
    %6958 = vmatmul.mubr.f32.gmra.mrb[0].mxu0 %v6891
    %v6959 = vpop.f32.mrb[0].mxu0
    %v6960 = vadd.f32 0.0, %v6959
    %v6961 = vpop.f32.mrb[0].mxu0
    %6962 = vdwg.mxu0
    %v6965 = vrot.slane %v6960, 7
    %v6966 = vsel %vm1944, %v6965, %v6888
    %v6967 = vsel %vm353, %v6966, 0
    %6969 = vmatprep.subr.mxu0 0.0
    %6970 = vmatpush1.msra.mxu0 %v258
    %6971 = vmatprep.subr.mxu0 0.0
    %6972 = vmatpush1.msra.mxu0 %v259
    %6973 = vmatprep.subr.mxu0 0.0
    %6974 = vmatpush1.msra.mxu0 %v260
    %6975 = vmatprep.subr.mxu0 0.0
    %6976 = vmatpush1.msra.mxu0 %v261
    %6977 = vmatprep.subr.mxu0 0.0
    %6978 = vmatpush1.msra.mxu0 0.0
    %6979 = vmatprep.subr.mxu0 0.0
    %6980 = vmatpush1.msra.mxu0 0.0
    %6981 = vmatprep.subr.mxu0 0.0
    %6982 = vmatpush1.msra.mxu0 0.0
    %6983 = vmatprep.subr.mxu0 0.0
    %6984 = vmatpush1.msra.mxu0 0.0
    %6985 = vmatprep.subr.mxu0 0.0
    %6986 = vmatpush1.msra.mxu0 0.0
    %6987 = vmatprep.subr.mxu0 0.0
    %6988 = vmatpush1.msra.mxu0 0.0
    %6989 = vmatprep.subr.mxu0 0.0
    %6990 = vmatpush1.msra.mxu0 0.0
    %6991 = vmatprep.subr.mxu0 0.0
    %6992 = vmatpush1.msra.mxu0 0.0
    %6993 = vmatprep.subr.mxu0 0.0
    %6994 = vmatpush1.msra.mxu0 0.0
    %6995 = vmatprep.subr.mxu0 0.0
    %6996 = vmatpush1.msra.mxu0 0.0
    %6997 = vmatprep.subr.mxu0 0.0
    %6998 = vmatpush1.msra.mxu0 0.0
    %6999 = vmatprep.subr.mxu0 0.0
    %7000 = vmatpush1.msra.mxu0 0.0
    %7001 = vmatprep.subr.mxu0 0.0
    %7002 = vmatpush1.msra.mxu0 0.0
    %7003 = vmatprep.subr.mxu0 0.0
    %7004 = vmatpush1.msra.mxu0 0.0
    %7005 = vmatprep.subr.mxu0 0.0
    %7006 = vmatpush1.msra.mxu0 0.0
    %7007 = vmatprep.subr.mxu0 0.0
    %7008 = vmatpush1.msra.mxu0 0.0
    %7009 = vmatprep.subr.mxu0 0.0
    %7010 = vmatpush1.msra.mxu0 0.0
    %7011 = vmatprep.subr.mxu0 0.0
    %7012 = vmatpush1.msra.mxu0 0.0
    %7013 = vmatprep.subr.mxu0 0.0
    %7014 = vmatpush1.msra.mxu0 0.0
    %7015 = vmatprep.subr.mxu0 0.0
    %7016 = vmatpush1.msra.mxu0 0.0
    %7017 = vmatprep.subr.mxu0 0.0
    %7018 = vmatpush1.msra.mxu0 0.0
    %7019 = vmatprep.subr.mxu0 0.0
    %7020 = vmatpush1.msra.mxu0 0.0
    %7021 = vmatprep.subr.mxu0 0.0
    %7022 = vmatpush1.msra.mxu0 0.0
    %7023 = vmatprep.subr.mxu0 0.0
    %7024 = vmatpush1.msra.mxu0 0.0
    %7025 = vmatprep.subr.mxu0 0.0
    %7026 = vmatpush1.msra.mxu0 0.0
    %7027 = vmatprep.subr.mxu0 0.0
    %7028 = vmatpush1.msra.mxu0 0.0
    %7029 = vmatprep.subr.mxu0 0.0
    %7030 = vmatpush1.msra.mxu0 0.0
    %7031 = vmatprep.subr.mxu0 0.0
    %7032 = vmatpush1.msra.mxu0 0.0
    %7033 = vmatprep.mubr.f32.mxu0 0.0
    %7034 = vmatmul.mubr.f32.gmra.mrb[0].mxu0 %v6967
    %v7035 = vpop.f32.mrb[0].mxu0
    %v7036 = vadd.f32 %v2169, %v7035
    %v7037 = vpop.f32.mrb[0].mxu0
    %7038 = vdwg.mxu0
    %v7041 = vunpack.c.l.s4 1966171168
    %v7042 = vunpack.c.0.s8 %v7041
    %v7043 = vlaneseq
    %v7044 = vshrl.u32 %v7043, 7
    %v7045 = vsub.s32 %v7042, %v7044
    %v7046 = vrot.slane %v7036, %v7045
    %v7047 = vcombine.high %v7046, %v7046
    %v7049 = vunpack.c.l.s4 1966171168
    %v7050 = vunpack.c.0.s8 %v7049
    %v7051 = vlaneseq
    %v7052 = vshrl.u32 %v7051, 7
    %v7053 = vsub.s32 %v7050, %v7052
    %v7054 = vrot.slane %v7046, %v7053
    %v7056 = vunpack.c.l.s4 1966171168
    %v7057 = vunpack.c.0.s8 %v7056
    %v7058 = vlaneseq
    %v7059 = vshrl.u32 %v7058, 7
    %v7060 = vsub.s32 %v7057, %v7059
    %v7061 = vrot.slane %v7047, %v7060
    %v7062 = vlaneseq
    %v7063 = vshrl.u32 %v7062, 7
    %v7064 = vsub.s32 0, %v7063
    %v7065 = vrot.slane %v7054, %v7064
    %v7066 = vlaneseq
    %v7067 = vshrl.u32 %v7066, 7
    %v7068 = vsub.s32 0, %v7067
    %v7069 = vrot.slane %v7061, %v7068
    %7070 = vrot.lane.b32.xlu0 %v7065, 32
    %v7071 = vpop.permute.xlu0 %7070
    %7072 = vrot.lane.b32.xlu0 %v7069, 32
    %v7073 = vpop.permute.xlu0 %7072
    %v7076 = vadd.f32 %v1657, %v7071
    %v7077 = vadd.f32 %v1662, %v7073
    %v7078 = vtanh.pop %v7076
    %v7079 = vtanh.pop %v7077
    %v7080 = vmul.f32 %v7078, %v2294
    %v7081 = vmul.f32 %v7079, %v2294
    %7084 = vrot.lane.b32.xlu0 %v7080, 96
    %v7085 = vpop.permute.xlu0 %7084
    %7086 = vrot.lane.b32.xlu0 %v7081, 96
    %v7087 = vpop.permute.xlu0 %7086
    %v7090 = vsel %vm353, %v7085, 0.0
    %7091 = vadd.xlane.f32.xlu0 %v7090
    %v7092 = vpop.xlane.xlu0 %7091
    %v7093 = vsel %vm353, %v7087, 0.0
    %7094 = vadd.xlane.f32.xlu0 %v7093
    %v7095 = vpop.xlane.xlu0 %7094
    %v7096 = vadd.f32 %v7092, %v2319
    %v7097 = vadd.f32 %v7095, %v2319
    %v7100 = vlaneseq
    %v7101 = vshrl.u32 %v7100, 7
    %v7102 = vsub.s32 %v266, %v7101
    %v7103 = vrot.slane %v7096, %v7102
    %v7104 = vlaneseq
    %v7105 = vshrl.u32 %v7104, 7
    %v7106 = vsub.s32 %v266, %v7105
    %v7107 = vrot.slane %v7097, %v7106
    %v7108 = vsel %vm1944, %v7107, %v7103
    %v7110 = vsel %vm6768, -100000.0, %v7108
    %v7111 = vtanh.pop %v7110
    %v7112 = vmul.f32 %v7111, 10.0
    %v7113 = vsel %vm6768, -100000.0, %v7112
    %v7114 = vsel %vm1947, %v7113, -inf
    %7115 = vmax.xlane.f32.xlu0 %v7114
    %v7116 = vpop.xlane.xlu0 %7115
    %v7117 = vsub.f32 %v7113, %v7116
    %v7118 = vmul.f32 %v7117, 1.442695
    %v7119 = vpow.pop %v7118
    %v7120 = vsel %vm1947, %v7119, 0.0
    %7121 = vadd.xlane.f32.xlu0 %v7120
    %v7122 = vpop.xlane.xlu0 %7121
    %v7123 = vlog2.pop %v7122
    %v7124 = vmul.f32 %v7123, 0.6931472
    %v7125 = vsub.f32 %v7117, %v7124
    %s7126 = scalar_lea.vmem [#allocation25], 12
    %v7127 = vld [vmem:[%s7126] sm:$0x3]
    %v7128 = vadd.f32 %v7113, %v7127
    %v7129 = vsel %vm1947, %v7128, -inf
    %7130 = vmax.xlane.f32.xlu0 %v7129
    %v7131 = vpop.xlane.xlu0 %7130
    %vm7132 = vcmp.ge.f32.partialorder %v7128, %v7131
    %v7133 = vsel %vm7132, %v1665, 8.0
    %v7134 = vsel %vm1947, %v7133, inf
    %7135 = vmin.xlane.f32.xlu0 %v7134
    %v7136 = vpop.xlane.xlu0 %7135
    %vm7137 = vcmp.eq.f32.partialorder %v1665, %v7136
    %v7138 = vcvt.f32.s32.to.zero.pseudo %v7136
    %v7139 = vsel %vm7137, %v7125, 0.0
    %v7140 = vsel %vm1947, %v7139, 0.0
    %7141 = vadd.xlane.f32.xlu0 %v7140
    %v7142 = vpop.xlane.xlu0 %7141
    %vm7143 = vcmp.eq.s32.totalorder %v266, 6
    %v7144 = vsel %vm7143, %v7142, %v6371
    %v7145 = vsel %vm7143, %v7138, %v6372
    %v7146 = vsel %vm7137, 1.0, %v6373
    %v7147 = vsel %vm7137, 1, 0
    %v7148 = vcvt.s32.f32 %v7147
    %v7151 = vunpack.c.l.s4 1966171168
    %v7152 = vunpack.c.0.s8 %v7151
    %v7153 = vlaneseq
    %v7154 = vshrl.u32 %v7153, 7
    %v7155 = vsub.s32 %v7152, %v7154
    %v7156 = vrot.slane %v7148, %v7155
    %v7157 = vcombine.high %v7156, %v7156
    %v7159 = vunpack.c.l.s4 1966171168
    %v7160 = vunpack.c.0.s8 %v7159
    %v7161 = vlaneseq
    %v7162 = vshrl.u32 %v7161, 7
    %v7163 = vsub.s32 %v7160, %v7162
    %v7164 = vrot.slane %v7156, %v7163
    %v7166 = vunpack.c.l.s4 1966171168
    %v7167 = vunpack.c.0.s8 %v7166
    %v7168 = vlaneseq
    %v7169 = vshrl.u32 %v7168, 7
    %v7170 = vsub.s32 %v7167, %v7169
    %v7171 = vrot.slane %v7157, %v7170
    %v7172 = vsel %vm2012, %v7164, 0
    %7174 = vmatprep.subr.mxu0 0.0
    %7175 = vmatpush1.msra.mxu0 %v340
    %7176 = vmatprep.subr.mxu0 0.0
    %7177 = vmatpush1.msra.mxu0 0.0
    %7178 = vmatprep.subr.mxu0 0.0
    %7179 = vmatpush1.msra.mxu0 0.0
    %7180 = vmatprep.subr.mxu0 0.0
    %7181 = vmatpush1.msra.mxu0 0.0
    %7182 = vmatprep.subr.mxu0 0.0
    %7183 = vmatpush1.msra.mxu0 0.0
    %7184 = vmatprep.subr.mxu0 0.0
    %7185 = vmatpush1.msra.mxu0 0.0
    %7186 = vmatprep.subr.mxu0 0.0
    %7187 = vmatpush1.msra.mxu0 0.0
    %7188 = vmatprep.subr.mxu0 0.0
    %7189 = vmatpush1.msra.mxu0 0.0
    %7190 = vmatprep.subr.mxu0 0.0
    %7191 = vmatpush1.msra.mxu0 0.0
    %7192 = vmatprep.subr.mxu0 0.0
    %7193 = vmatpush1.msra.mxu0 0.0
    %7194 = vmatprep.subr.mxu0 0.0
    %7195 = vmatpush1.msra.mxu0 0.0
    %7196 = vmatprep.subr.mxu0 0.0
    %7197 = vmatpush1.msra.mxu0 0.0
    %7198 = vmatprep.subr.mxu0 0.0
    %7199 = vmatpush1.msra.mxu0 0.0
    %7200 = vmatprep.subr.mxu0 0.0
    %7201 = vmatpush1.msra.mxu0 0.0
    %7202 = vmatprep.subr.mxu0 0.0
    %7203 = vmatpush1.msra.mxu0 0.0
    %7204 = vmatprep.subr.mxu0 0.0
    %7205 = vmatpush1.msra.mxu0 0.0
    %7206 = vmatprep.subr.mxu0 0.0
    %7207 = vmatpush1.msra.mxu0 0.0
    %7208 = vmatprep.subr.mxu0 0.0
    %7209 = vmatpush1.msra.mxu0 0.0
    %7210 = vmatprep.subr.mxu0 0.0
    %7211 = vmatpush1.msra.mxu0 0.0
    %7212 = vmatprep.subr.mxu0 0.0
    %7213 = vmatpush1.msra.mxu0 0.0
    %7214 = vmatprep.subr.mxu0 0.0
    %7215 = vmatpush1.msra.mxu0 0.0
    %7216 = vmatprep.subr.mxu0 0.0
    %7217 = vmatpush1.msra.mxu0 0.0
    %7218 = vmatprep.subr.mxu0 0.0
    %7219 = vmatpush1.msra.mxu0 0.0
    %7220 = vmatprep.subr.mxu0 0.0
    %7221 = vmatpush1.msra.mxu0 0.0
    %7222 = vmatprep.subr.mxu0 0.0
    %7223 = vmatpush1.msra.mxu0 0.0
    %7224 = vmatprep.subr.mxu0 0.0
    %7225 = vmatpush1.msra.mxu0 0.0
    %7226 = vmatprep.subr.mxu0 0.0
    %7227 = vmatpush1.msra.mxu0 0.0
    %7228 = vmatprep.subr.mxu0 0.0
    %7229 = vmatpush1.msra.mxu0 0.0
    %7230 = vmatprep.subr.mxu0 0.0
    %7231 = vmatpush1.msra.mxu0 0.0
    %7232 = vmatprep.subr.mxu0 0.0
    %7233 = vmatpush1.msra.mxu0 0.0
    %7234 = vmatprep.subr.mxu0 0.0
    %7235 = vmatpush1.msra.mxu0 0.0
    %7236 = vmatprep.subr.mxu0 0.0
    %7237 = vmatpush1.msra.mxu0 0.0
    %7238 = vmatprep.mubr.f32.mxu0 0.0
    %7239 = vmatmul.mubr.f32.gmra.mrb[0].mxu0 %v7172
    %v7240 = vpop.f32.mrb[0].mxu0
    %v7241 = vadd.f32 0.0, %v7240
    %v7242 = vpop.f32.mrb[0].mxu0
    %7243 = vdwg.mxu0
    %v7244 = vsel %vm2012, %v7171, 0
    %7246 = vmatprep.subr.mxu0 0.0
    %7247 = vmatpush1.msra.mxu0 %v341
    %7248 = vmatprep.subr.mxu0 0.0
    %7249 = vmatpush1.msra.mxu0 0.0
    %7250 = vmatprep.subr.mxu0 0.0
    %7251 = vmatpush1.msra.mxu0 0.0
    %7252 = vmatprep.subr.mxu0 0.0
    %7253 = vmatpush1.msra.mxu0 0.0
    %7254 = vmatprep.subr.mxu0 0.0
    %7255 = vmatpush1.msra.mxu0 0.0
    %7256 = vmatprep.subr.mxu0 0.0
    %7257 = vmatpush1.msra.mxu0 0.0
    %7258 = vmatprep.subr.mxu0 0.0
    %7259 = vmatpush1.msra.mxu0 0.0
    %7260 = vmatprep.subr.mxu0 0.0
    %7261 = vmatpush1.msra.mxu0 0.0
    %7262 = vmatprep.subr.mxu0 0.0
    %7263 = vmatpush1.msra.mxu0 0.0
    %7264 = vmatprep.subr.mxu0 0.0
    %7265 = vmatpush1.msra.mxu0 0.0
    %7266 = vmatprep.subr.mxu0 0.0
    %7267 = vmatpush1.msra.mxu0 0.0
    %7268 = vmatprep.subr.mxu0 0.0
    %7269 = vmatpush1.msra.mxu0 0.0
    %7270 = vmatprep.subr.mxu0 0.0
    %7271 = vmatpush1.msra.mxu0 0.0
    %7272 = vmatprep.subr.mxu0 0.0
    %7273 = vmatpush1.msra.mxu0 0.0
    %7274 = vmatprep.subr.mxu0 0.0
    %7275 = vmatpush1.msra.mxu0 0.0
    %7276 = vmatprep.subr.mxu0 0.0
    %7277 = vmatpush1.msra.mxu0 0.0
    %7278 = vmatprep.subr.mxu0 0.0
    %7279 = vmatpush1.msra.mxu0 0.0
    %7280 = vmatprep.subr.mxu0 0.0
    %7281 = vmatpush1.msra.mxu0 0.0
    %7282 = vmatprep.subr.mxu0 0.0
    %7283 = vmatpush1.msra.mxu0 0.0
    %7284 = vmatprep.subr.mxu0 0.0
    %7285 = vmatpush1.msra.mxu0 0.0
    %7286 = vmatprep.subr.mxu0 0.0
    %7287 = vmatpush1.msra.mxu0 0.0
    %7288 = vmatprep.subr.mxu0 0.0
    %7289 = vmatpush1.msra.mxu0 0.0
    %7290 = vmatprep.subr.mxu0 0.0
    %7291 = vmatpush1.msra.mxu0 0.0
    %7292 = vmatprep.subr.mxu0 0.0
    %7293 = vmatpush1.msra.mxu0 0.0
    %7294 = vmatprep.subr.mxu0 0.0
    %7295 = vmatpush1.msra.mxu0 0.0
    %7296 = vmatprep.subr.mxu0 0.0
    %7297 = vmatpush1.msra.mxu0 0.0
    %7298 = vmatprep.subr.mxu0 0.0
    %7299 = vmatpush1.msra.mxu0 0.0
    %7300 = vmatprep.subr.mxu0 0.0
    %7301 = vmatpush1.msra.mxu0 0.0
    %7302 = vmatprep.subr.mxu0 0.0
    %7303 = vmatpush1.msra.mxu0 0.0
    %7304 = vmatprep.subr.mxu0 0.0
    %7305 = vmatpush1.msra.mxu0 0.0
    %7306 = vmatprep.subr.mxu0 0.0
    %7307 = vmatpush1.msra.mxu0 0.0
    %7308 = vmatprep.subr.mxu0 0.0
    %7309 = vmatpush1.msra.mxu0 0.0
    %7310 = vmatprep.mubr.f32.mxu0 0.0
    %7311 = vmatmul.mubr.f32.gmra.mrb[0].mxu0 %v7244
    %v7312 = vpop.f32.mrb[0].mxu0
    %v7313 = vadd.f32 0.0, %v7312
    %v7314 = vpop.f32.mrb[0].mxu0
    %7315 = vdwg.mxu0
    %v7318 = vrot.slane %v7313, 7
    %v7319 = vsel %vm1944, %v7318, %v7241
    %7321 = vrot.lane.b32.xlu0 %v6645, 64
    %v7322 = vpop.permute.xlu0 %7321
    %v7324 = vsel %vm353, %v7319, %v7322
    %v7326 = vsel %vm1684, %v7324, 0
    %7328 = vmatprep.subr.mxu0 0.0
    %7329 = vmatpush1.msra.mxu0 %v242
    %7330 = vmatprep.subr.mxu0 0.0
    %7331 = vmatpush1.msra.mxu0 %v243
    %7332 = vmatprep.subr.mxu0 0.0
    %7333 = vmatpush1.msra.mxu0 %v244
    %7334 = vmatprep.subr.mxu0 0.0
    %7335 = vmatpush1.msra.mxu0 %v245
    %7336 = vmatprep.subr.mxu0 0.0
    %7337 = vmatpush1.msra.mxu0 %v246
    %7338 = vmatprep.subr.mxu0 0.0
    %7339 = vmatpush1.msra.mxu0 %v247
    %7340 = vmatprep.subr.mxu0 0.0
    %7341 = vmatpush1.msra.mxu0 %v248
    %7342 = vmatprep.subr.mxu0 0.0
    %7343 = vmatpush1.msra.mxu0 %v249
    %7344 = vmatprep.subr.mxu0 0.0
    %7345 = vmatpush1.msra.mxu0 0.0
    %7346 = vmatprep.subr.mxu0 0.0
    %7347 = vmatpush1.msra.mxu0 0.0
    %7348 = vmatprep.subr.mxu0 0.0
    %7349 = vmatpush1.msra.mxu0 0.0
    %7350 = vmatprep.subr.mxu0 0.0
    %7351 = vmatpush1.msra.mxu0 0.0
    %7352 = vmatprep.subr.mxu0 0.0
    %7353 = vmatpush1.msra.mxu0 0.0
    %7354 = vmatprep.subr.mxu0 0.0
    %7355 = vmatpush1.msra.mxu0 0.0
    %7356 = vmatprep.subr.mxu0 0.0
    %7357 = vmatpush1.msra.mxu0 0.0
    %7358 = vmatprep.subr.mxu0 0.0
    %7359 = vmatpush1.msra.mxu0 0.0
    %7360 = vmatprep.subr.mxu0 0.0
    %7361 = vmatpush1.msra.mxu0 0.0
    %7362 = vmatprep.subr.mxu0 0.0
    %7363 = vmatpush1.msra.mxu0 0.0
    %7364 = vmatprep.subr.mxu0 0.0
    %7365 = vmatpush1.msra.mxu0 0.0
    %7366 = vmatprep.subr.mxu0 0.0
    %7367 = vmatpush1.msra.mxu0 0.0
    %7368 = vmatprep.subr.mxu0 0.0
    %7369 = vmatpush1.msra.mxu0 0.0
    %7370 = vmatprep.subr.mxu0 0.0
    %7371 = vmatpush1.msra.mxu0 0.0
    %7372 = vmatprep.subr.mxu0 0.0
    %7373 = vmatpush1.msra.mxu0 0.0
    %7374 = vmatprep.subr.mxu0 0.0
    %7375 = vmatpush1.msra.mxu0 0.0
    %7376 = vmatprep.subr.mxu0 0.0
    %7377 = vmatpush1.msra.mxu0 0.0
    %7378 = vmatprep.subr.mxu0 0.0
    %7379 = vmatpush1.msra.mxu0 0.0
    %7380 = vmatprep.subr.mxu0 0.0
    %7381 = vmatpush1.msra.mxu0 0.0
    %7382 = vmatprep.subr.mxu0 0.0
    %7383 = vmatpush1.msra.mxu0 0.0
    %7384 = vmatprep.subr.mxu0 0.0
    %7385 = vmatpush1.msra.mxu0 0.0
    %7386 = vmatprep.subr.mxu0 0.0
    %7387 = vmatpush1.msra.mxu0 0.0
    %7388 = vmatprep.subr.mxu0 0.0
    %7389 = vmatpush1.msra.mxu0 0.0
    %7390 = vmatprep.subr.mxu0 0.0
    %7391 = vmatpush1.msra.mxu0 0.0
    %7392 = vmatprep.mubr.f32.mxu0 0.0
    %7393 = vmatmul.mubr.f32.gmra.mrb[0].mxu0 %v7326
    %v7394 = vpop.f32.mrb[0].mxu0
    %v7395 = vadd.f32 %v1682, %v7394
    %v7396 = vpop.f32.mrb[0].mxu0
    %7397 = vdwg.mxu0
    %v7398 = vmul.f32 %v7395, %v270
    %v7399 = vtanh.pop %v7398
    %v7400 = vmul.f32 %v7399, %v270
    %v7401 = vadd.f32 %v7400, %v271
    %v7402 = vmul.f32 %v7401, %v6639
    %7404 = vrot.lane.b32.xlu0 %v7401, 64
    %v7405 = vpop.permute.xlu0 %7404
    %v7407 = vmul.f32 %v7401, %v7405
    %7409 = vrot.lane.b32.xlu0 %v7407, 32
    %v7410 = vpop.permute.xlu0 %7409
    %v7412 = vadd.f32 %v7402, %v7410
    %v7413 = vtanh.pop %v7412
    %7415 = vrot.lane.b32.xlu0 %v7413, 64
    %v7416 = vpop.permute.xlu0 %7415
    %v7418 = vmul.f32 %v7401, %v7416
    %7420 = vrot.lane.b32.xlu0 %v7418, 32
    %v7421 = vpop.permute.xlu0 %7420
    %v7422 = vsel %vm353, %v7421, 0
    %7424 = vmatprep.subr.mxu0 0.0
    %7425 = vmatpush1.msra.mxu0 %v251
    %7426 = vmatprep.subr.mxu0 0.0
    %7427 = vmatpush1.msra.mxu0 %v252
    %7428 = vmatprep.subr.mxu0 0.0
    %7429 = vmatpush1.msra.mxu0 %v253
    %7430 = vmatprep.subr.mxu0 0.0
    %7431 = vmatpush1.msra.mxu0 %v254
    %7432 = vmatprep.subr.mxu0 0.0
    %7433 = vmatpush1.msra.mxu0 0.0
    %7434 = vmatprep.subr.mxu0 0.0
    %7435 = vmatpush1.msra.mxu0 0.0
    %7436 = vmatprep.subr.mxu0 0.0
    %7437 = vmatpush1.msra.mxu0 0.0
    %7438 = vmatprep.subr.mxu0 0.0
    %7439 = vmatpush1.msra.mxu0 0.0
    %7440 = vmatprep.subr.mxu0 0.0
    %7441 = vmatpush1.msra.mxu0 0.0
    %7442 = vmatprep.subr.mxu0 0.0
    %7443 = vmatpush1.msra.mxu0 0.0
    %7444 = vmatprep.subr.mxu0 0.0
    %7445 = vmatpush1.msra.mxu0 0.0
    %7446 = vmatprep.subr.mxu0 0.0
    %7447 = vmatpush1.msra.mxu0 0.0
    %7448 = vmatprep.subr.mxu0 0.0
    %7449 = vmatpush1.msra.mxu0 0.0
    %7450 = vmatprep.subr.mxu0 0.0
    %7451 = vmatpush1.msra.mxu0 0.0
    %7452 = vmatprep.subr.mxu0 0.0
    %7453 = vmatpush1.msra.mxu0 0.0
    %7454 = vmatprep.subr.mxu0 0.0
    %7455 = vmatpush1.msra.mxu0 0.0
    %7456 = vmatprep.subr.mxu0 0.0
    %7457 = vmatpush1.msra.mxu0 0.0
    %7458 = vmatprep.subr.mxu0 0.0
    %7459 = vmatpush1.msra.mxu0 0.0
    %7460 = vmatprep.subr.mxu0 0.0
    %7461 = vmatpush1.msra.mxu0 0.0
    %7462 = vmatprep.subr.mxu0 0.0
    %7463 = vmatpush1.msra.mxu0 0.0
    %7464 = vmatprep.subr.mxu0 0.0
    %7465 = vmatpush1.msra.mxu0 0.0
    %7466 = vmatprep.subr.mxu0 0.0
    %7467 = vmatpush1.msra.mxu0 0.0
    %7468 = vmatprep.subr.mxu0 0.0
    %7469 = vmatpush1.msra.mxu0 0.0
    %7470 = vmatprep.subr.mxu0 0.0
    %7471 = vmatpush1.msra.mxu0 0.0
    %7472 = vmatprep.subr.mxu0 0.0
    %7473 = vmatpush1.msra.mxu0 0.0
    %7474 = vmatprep.subr.mxu0 0.0
    %7475 = vmatpush1.msra.mxu0 0.0
    %7476 = vmatprep.subr.mxu0 0.0
    %7477 = vmatpush1.msra.mxu0 0.0
    %7478 = vmatprep.subr.mxu0 0.0
    %7479 = vmatpush1.msra.mxu0 0.0
    %7480 = vmatprep.subr.mxu0 0.0
    %7481 = vmatpush1.msra.mxu0 0.0
    %7482 = vmatprep.subr.mxu0 0.0
    %7483 = vmatpush1.msra.mxu0 0.0
    %7484 = vmatprep.subr.mxu0 0.0
    %7485 = vmatpush1.msra.mxu0 0.0
    %7486 = vmatprep.subr.mxu0 0.0
    %7487 = vmatpush1.msra.mxu0 0.0
    %7488 = vmatprep.mubr.f32.mxu0 0.0
    %7489 = vmatmul.mubr.f32.gmra.mrb[0].mxu0 %v7422
    %v7490 = vpop.f32.mrb[0].mxu0
    %v7491 = vadd.f32 %v1786, %v7490
    %v7492 = vpop.f32.mrb[0].mxu0
    %7493 = vdwg.mxu0
    %v7496 = vunpack.c.l.s4 1966171168
    %v7497 = vunpack.c.0.s8 %v7496
    %v7498 = vlaneseq
    %v7499 = vshrl.u32 %v7498, 7
    %v7500 = vsub.s32 %v7497, %v7499
    %v7501 = vrot.slane %v7491, %v7500
    %v7502 = vcombine.high %v7501, %v7501
    %v7504 = vunpack.c.l.s4 1966171168
    %v7505 = vunpack.c.0.s8 %v7504
    %v7506 = vlaneseq
    %v7507 = vshrl.u32 %v7506, 7
    %v7508 = vsub.s32 %v7505, %v7507
    %v7509 = vrot.slane %v7501, %v7508
    %v7511 = vunpack.c.l.s4 1966171168
    %v7512 = vunpack.c.0.s8 %v7511
    %v7513 = vlaneseq
    %v7514 = vshrl.u32 %v7513, 7
    %v7515 = vsub.s32 %v7512, %v7514
    %v7516 = vrot.slane %v7502, %v7515
    %v7517 = vlaneseq
    %v7518 = vshrl.u32 %v7517, 7
    %v7519 = vsub.s32 0, %v7518
    %v7520 = vrot.slane %v7509, %v7519
    %v7521 = vlaneseq
    %v7522 = vshrl.u32 %v7521, 7
    %v7523 = vsub.s32 0, %v7522
    %v7524 = vrot.slane %v7516, %v7523
    %v7527 = vadd.f32 %v1657, %v7520
    %v7528 = vadd.f32 %v1662, %v7524
    %v7529 = vtanh.pop %v7527
    %v7530 = vtanh.pop %v7528
    %v7531 = vmul.f32 %v7529, %v1904
    %v7532 = vmul.f32 %v7530, %v1904
    %v7533 = vsel %vm353, %v7531, 0.0
    %7534 = vadd.xlane.f32.xlu0 %v7533
    %v7535 = vpop.xlane.xlu0 %7534
    %v7536 = vsel %vm353, %v7532, 0.0
    %7537 = vadd.xlane.f32.xlu0 %v7536
    %v7538 = vpop.xlane.xlu0 %7537
    %v7539 = vadd.f32 %v7535, %v1921
    %v7540 = vadd.f32 %v7538, %v1921
    %vm7541 = vcmp.gt.f32.partialorder %v7146, 0.5
    %v7544 = vlaneseq
    %v7545 = vshrl.u32 %v7544, 7
    %v7546 = vsub.s32 %v266, %v7545
    %v7547 = vrot.slane %v7539, %v7546
    %v7548 = vlaneseq
    %v7549 = vshrl.u32 %v7548, 7
    %v7550 = vsub.s32 %v266, %v7549
    %v7551 = vrot.slane %v7540, %v7550
    %v7552 = vsel %vm1944, %v7551, %v7547
    %v7554 = vsel %vm7541, -100000.0, %v7552
    %v7555 = vtanh.pop %v7554
    %v7556 = vmul.f32 %v7555, 10.0
    %v7557 = vsel %vm7541, -100000.0, %v7556
    %v7558 = vsel %vm1947, %v7557, -inf
    %7559 = vmax.xlane.f32.xlu0 %v7558
    %v7560 = vpop.xlane.xlu0 %7559
    %v7561 = vsub.f32 %v7557, %v7560
    %v7562 = vmul.f32 %v7561, 1.442695
    %v7563 = vpow.pop %v7562
    %v7564 = vsel %vm1947, %v7563, 0.0
    %7565 = vadd.xlane.f32.xlu0 %v7564
    %v7566 = vpop.xlane.xlu0 %7565
    %v7567 = vrcp.pop %v7566
    %v7568 = vmul.f32 %v7563, %v7567
    %v7571 = vunpack.c.l.s4 1966171168
    %v7572 = vunpack.c.0.s8 %v7571
    %v7573 = vlaneseq
    %v7574 = vshrl.u32 %v7573, 7
    %v7575 = vsub.s32 %v7572, %v7574
    %v7576 = vrot.slane %v7568, %v7575
    %v7577 = vcombine.high %v7576, %v7576
    %v7579 = vunpack.c.l.s4 1966171168
    %v7580 = vunpack.c.0.s8 %v7579
    %v7581 = vlaneseq
    %v7582 = vshrl.u32 %v7581, 7
    %v7583 = vsub.s32 %v7580, %v7582
    %v7584 = vrot.slane %v7576, %v7583
    %v7586 = vunpack.c.l.s4 1966171168
    %v7587 = vunpack.c.0.s8 %v7586
    %v7588 = vlaneseq
    %v7589 = vshrl.u32 %v7588, 7
    %v7590 = vsub.s32 %v7587, %v7589
    %v7591 = vrot.slane %v7577, %v7590
    %v7592 = vsel %vm2012, %v7584, 0
    %7594 = vmatprep.subr.mxu0 0.0
    %7595 = vmatpush1.msra.mxu0 %v1571
    %7596 = vmatprep.subr.mxu0 0.0
    %7597 = vmatpush1.msra.mxu0 0.0
    %7598 = vmatprep.subr.mxu0 0.0
    %7599 = vmatpush1.msra.mxu0 0.0
    %7600 = vmatprep.subr.mxu0 0.0
    %7601 = vmatpush1.msra.mxu0 0.0
    %7602 = vmatprep.subr.mxu0 0.0
    %7603 = vmatpush1.msra.mxu0 0.0
    %7604 = vmatprep.subr.mxu0 0.0
    %7605 = vmatpush1.msra.mxu0 0.0
    %7606 = vmatprep.subr.mxu0 0.0
    %7607 = vmatpush1.msra.mxu0 0.0
    %7608 = vmatprep.subr.mxu0 0.0
    %7609 = vmatpush1.msra.mxu0 0.0
    %7610 = vmatprep.subr.mxu0 0.0
    %7611 = vmatpush1.msra.mxu0 0.0
    %7612 = vmatprep.subr.mxu0 0.0
    %7613 = vmatpush1.msra.mxu0 0.0
    %7614 = vmatprep.subr.mxu0 0.0
    %7615 = vmatpush1.msra.mxu0 0.0
    %7616 = vmatprep.subr.mxu0 0.0
    %7617 = vmatpush1.msra.mxu0 0.0
    %7618 = vmatprep.subr.mxu0 0.0
    %7619 = vmatpush1.msra.mxu0 0.0
    %7620 = vmatprep.subr.mxu0 0.0
    %7621 = vmatpush1.msra.mxu0 0.0
    %7622 = vmatprep.subr.mxu0 0.0
    %7623 = vmatpush1.msra.mxu0 0.0
    %7624 = vmatprep.subr.mxu0 0.0
    %7625 = vmatpush1.msra.mxu0 0.0
    %7626 = vmatprep.subr.mxu0 0.0
    %7627 = vmatpush1.msra.mxu0 0.0
    %7628 = vmatprep.subr.mxu0 0.0
    %7629 = vmatpush1.msra.mxu0 0.0
    %7630 = vmatprep.subr.mxu0 0.0
    %7631 = vmatpush1.msra.mxu0 0.0
    %7632 = vmatprep.subr.mxu0 0.0
    %7633 = vmatpush1.msra.mxu0 0.0
    %7634 = vmatprep.subr.mxu0 0.0
    %7635 = vmatpush1.msra.mxu0 0.0
    %7636 = vmatprep.subr.mxu0 0.0
    %7637 = vmatpush1.msra.mxu0 0.0
    %7638 = vmatprep.subr.mxu0 0.0
    %7639 = vmatpush1.msra.mxu0 0.0
    %7640 = vmatprep.subr.mxu0 0.0
    %7641 = vmatpush1.msra.mxu0 0.0
    %7642 = vmatprep.subr.mxu0 0.0
    %7643 = vmatpush1.msra.mxu0 0.0
    %7644 = vmatprep.subr.mxu0 0.0
    %7645 = vmatpush1.msra.mxu0 0.0
    %7646 = vmatprep.subr.mxu0 0.0
    %7647 = vmatpush1.msra.mxu0 0.0
    %7648 = vmatprep.subr.mxu0 0.0
    %7649 = vmatpush1.msra.mxu0 0.0
    %7650 = vmatprep.subr.mxu0 0.0
    %7651 = vmatpush1.msra.mxu0 0.0
    %7652 = vmatprep.subr.mxu0 0.0
    %7653 = vmatpush1.msra.mxu0 0.0
    %7654 = vmatprep.subr.mxu0 0.0
    %7655 = vmatpush1.msra.mxu0 0.0
    %7656 = vmatprep.subr.mxu0 0.0
    %7657 = vmatpush1.msra.mxu0 0.0
    %7658 = vmatprep.mubr.f32.mxu0 0.0
    %7659 = vmatmul.mubr.f32.gmra.mrb[0].mxu0 %v7592
    %v7660 = vpop.f32.mrb[0].mxu0
    %v7661 = vadd.f32 0.0, %v7660
    %v7662 = vpop.f32.mrb[0].mxu0
    %7663 = vdwg.mxu0
    %v7664 = vsel %vm2012, %v7591, 0
    %7666 = vmatprep.subr.mxu0 0.0
    %7667 = vmatpush1.msra.mxu0 %v1572
    %7668 = vmatprep.subr.mxu0 0.0
    %7669 = vmatpush1.msra.mxu0 0.0
    %7670 = vmatprep.subr.mxu0 0.0
    %7671 = vmatpush1.msra.mxu0 0.0
    %7672 = vmatprep.subr.mxu0 0.0
    %7673 = vmatpush1.msra.mxu0 0.0
    %7674 = vmatprep.subr.mxu0 0.0
    %7675 = vmatpush1.msra.mxu0 0.0
    %7676 = vmatprep.subr.mxu0 0.0
    %7677 = vmatpush1.msra.mxu0 0.0
    %7678 = vmatprep.subr.mxu0 0.0
    %7679 = vmatpush1.msra.mxu0 0.0
    %7680 = vmatprep.subr.mxu0 0.0
    %7681 = vmatpush1.msra.mxu0 0.0
    %7682 = vmatprep.subr.mxu0 0.0
    %7683 = vmatpush1.msra.mxu0 0.0
    %7684 = vmatprep.subr.mxu0 0.0
    %7685 = vmatpush1.msra.mxu0 0.0
    %7686 = vmatprep.subr.mxu0 0.0
    %7687 = vmatpush1.msra.mxu0 0.0
    %7688 = vmatprep.subr.mxu0 0.0
    %7689 = vmatpush1.msra.mxu0 0.0
    %7690 = vmatprep.subr.mxu0 0.0
    %7691 = vmatpush1.msra.mxu0 0.0
    %7692 = vmatprep.subr.mxu0 0.0
    %7693 = vmatpush1.msra.mxu0 0.0
    %7694 = vmatprep.subr.mxu0 0.0
    %7695 = vmatpush1.msra.mxu0 0.0
    %7696 = vmatprep.subr.mxu0 0.0
    %7697 = vmatpush1.msra.mxu0 0.0
    %7698 = vmatprep.subr.mxu0 0.0
    %7699 = vmatpush1.msra.mxu0 0.0
    %7700 = vmatprep.subr.mxu0 0.0
    %7701 = vmatpush1.msra.mxu0 0.0
    %7702 = vmatprep.subr.mxu0 0.0
    %7703 = vmatpush1.msra.mxu0 0.0
    %7704 = vmatprep.subr.mxu0 0.0
    %7705 = vmatpush1.msra.mxu0 0.0
    %7706 = vmatprep.subr.mxu0 0.0
    %7707 = vmatpush1.msra.mxu0 0.0
    %7708 = vmatprep.subr.mxu0 0.0
    %7709 = vmatpush1.msra.mxu0 0.0
    %7710 = vmatprep.subr.mxu0 0.0
    %7711 = vmatpush1.msra.mxu0 0.0
    %7712 = vmatprep.subr.mxu0 0.0
    %7713 = vmatpush1.msra.mxu0 0.0
    %7714 = vmatprep.subr.mxu0 0.0
    %7715 = vmatpush1.msra.mxu0 0.0
    %7716 = vmatprep.subr.mxu0 0.0
    %7717 = vmatpush1.msra.mxu0 0.0
    %7718 = vmatprep.subr.mxu0 0.0
    %7719 = vmatpush1.msra.mxu0 0.0
    %7720 = vmatprep.subr.mxu0 0.0
    %7721 = vmatpush1.msra.mxu0 0.0
    %7722 = vmatprep.subr.mxu0 0.0
    %7723 = vmatpush1.msra.mxu0 0.0
    %7724 = vmatprep.subr.mxu0 0.0
    %7725 = vmatpush1.msra.mxu0 0.0
    %7726 = vmatprep.subr.mxu0 0.0
    %7727 = vmatpush1.msra.mxu0 0.0
    %7728 = vmatprep.subr.mxu0 0.0
    %7729 = vmatpush1.msra.mxu0 0.0
    %7730 = vmatprep.mubr.f32.mxu0 0.0
    %7731 = vmatmul.mubr.f32.gmra.mrb[0].mxu0 %v7664
    %v7732 = vpop.f32.mrb[0].mxu0
    %v7733 = vadd.f32 0.0, %v7732
    %v7734 = vpop.f32.mrb[0].mxu0
    %7735 = vdwg.mxu0
    %v7738 = vrot.slane %v7733, 7
    %v7739 = vsel %vm1944, %v7738, %v7661
    %v7740 = vsel %vm353, %v7739, 0
    %7742 = vmatprep.subr.mxu0 0.0
    %7743 = vmatpush1.msra.mxu0 %v258
    %7744 = vmatprep.subr.mxu0 0.0
    %7745 = vmatpush1.msra.mxu0 %v259
    %7746 = vmatprep.subr.mxu0 0.0
    %7747 = vmatpush1.msra.mxu0 %v260
    %7748 = vmatprep.subr.mxu0 0.0
    %7749 = vmatpush1.msra.mxu0 %v261
    %7750 = vmatprep.subr.mxu0 0.0
    %7751 = vmatpush1.msra.mxu0 0.0
    %7752 = vmatprep.subr.mxu0 0.0
    %7753 = vmatpush1.msra.mxu0 0.0
    %7754 = vmatprep.subr.mxu0 0.0
    %7755 = vmatpush1.msra.mxu0 0.0
    %7756 = vmatprep.subr.mxu0 0.0
    %7757 = vmatpush1.msra.mxu0 0.0
    %7758 = vmatprep.subr.mxu0 0.0
    %7759 = vmatpush1.msra.mxu0 0.0
    %7760 = vmatprep.subr.mxu0 0.0
    %7761 = vmatpush1.msra.mxu0 0.0
    %7762 = vmatprep.subr.mxu0 0.0
    %7763 = vmatpush1.msra.mxu0 0.0
    %7764 = vmatprep.subr.mxu0 0.0
    %7765 = vmatpush1.msra.mxu0 0.0
    %7766 = vmatprep.subr.mxu0 0.0
    %7767 = vmatpush1.msra.mxu0 0.0
    %7768 = vmatprep.subr.mxu0 0.0
    %7769 = vmatpush1.msra.mxu0 0.0
    %7770 = vmatprep.subr.mxu0 0.0
    %7771 = vmatpush1.msra.mxu0 0.0
    %7772 = vmatprep.subr.mxu0 0.0
    %7773 = vmatpush1.msra.mxu0 0.0
    %7774 = vmatprep.subr.mxu0 0.0
    %7775 = vmatpush1.msra.mxu0 0.0
    %7776 = vmatprep.subr.mxu0 0.0
    %7777 = vmatpush1.msra.mxu0 0.0
    %7778 = vmatprep.subr.mxu0 0.0
    %7779 = vmatpush1.msra.mxu0 0.0
    %7780 = vmatprep.subr.mxu0 0.0
    %7781 = vmatpush1.msra.mxu0 0.0
    %7782 = vmatprep.subr.mxu0 0.0
    %7783 = vmatpush1.msra.mxu0 0.0
    %7784 = vmatprep.subr.mxu0 0.0
    %7785 = vmatpush1.msra.mxu0 0.0
    %7786 = vmatprep.subr.mxu0 0.0
    %7787 = vmatpush1.msra.mxu0 0.0
    %7788 = vmatprep.subr.mxu0 0.0
    %7789 = vmatpush1.msra.mxu0 0.0
    %7790 = vmatprep.subr.mxu0 0.0
    %7791 = vmatpush1.msra.mxu0 0.0
    %7792 = vmatprep.subr.mxu0 0.0
    %7793 = vmatpush1.msra.mxu0 0.0
    %7794 = vmatprep.subr.mxu0 0.0
    %7795 = vmatpush1.msra.mxu0 0.0
    %7796 = vmatprep.subr.mxu0 0.0
    %7797 = vmatpush1.msra.mxu0 0.0
    %7798 = vmatprep.subr.mxu0 0.0
    %7799 = vmatpush1.msra.mxu0 0.0
    %7800 = vmatprep.subr.mxu0 0.0
    %7801 = vmatpush1.msra.mxu0 0.0
    %7802 = vmatprep.subr.mxu0 0.0
    %7803 = vmatpush1.msra.mxu0 0.0
    %7804 = vmatprep.subr.mxu0 0.0
    %7805 = vmatpush1.msra.mxu0 0.0
    %7806 = vmatprep.mubr.f32.mxu0 0.0
    %7807 = vmatmul.mubr.f32.gmra.mrb[0].mxu0 %v7740
    %v7808 = vpop.f32.mrb[0].mxu0
    %v7809 = vadd.f32 %v2169, %v7808
    %v7810 = vpop.f32.mrb[0].mxu0
    %7811 = vdwg.mxu0
    %v7814 = vunpack.c.l.s4 1966171168
    %v7815 = vunpack.c.0.s8 %v7814
    %v7816 = vlaneseq
    %v7817 = vshrl.u32 %v7816, 7
    %v7818 = vsub.s32 %v7815, %v7817
    %v7819 = vrot.slane %v7809, %v7818
    %v7820 = vcombine.high %v7819, %v7819
    %v7822 = vunpack.c.l.s4 1966171168
    %v7823 = vunpack.c.0.s8 %v7822
    %v7824 = vlaneseq
    %v7825 = vshrl.u32 %v7824, 7
    %v7826 = vsub.s32 %v7823, %v7825
    %v7827 = vrot.slane %v7819, %v7826
    %v7829 = vunpack.c.l.s4 1966171168
    %v7830 = vunpack.c.0.s8 %v7829
    %v7831 = vlaneseq
    %v7832 = vshrl.u32 %v7831, 7
    %v7833 = vsub.s32 %v7830, %v7832
    %v7834 = vrot.slane %v7820, %v7833
    %v7835 = vlaneseq
    %v7836 = vshrl.u32 %v7835, 7
    %v7837 = vsub.s32 0, %v7836
    %v7838 = vrot.slane %v7827, %v7837
    %v7839 = vlaneseq
    %v7840 = vshrl.u32 %v7839, 7
    %v7841 = vsub.s32 0, %v7840
    %v7842 = vrot.slane %v7834, %v7841
    %7843 = vrot.lane.b32.xlu0 %v7838, 32
    %v7844 = vpop.permute.xlu0 %7843
    %7845 = vrot.lane.b32.xlu0 %v7842, 32
    %v7846 = vpop.permute.xlu0 %7845
    %v7849 = vadd.f32 %v1657, %v7844
    %v7850 = vadd.f32 %v1662, %v7846
    %v7851 = vtanh.pop %v7849
    %v7852 = vtanh.pop %v7850
    %v7853 = vmul.f32 %v7851, %v2294
    %v7854 = vmul.f32 %v7852, %v2294
    %7857 = vrot.lane.b32.xlu0 %v7853, 96
    %v7858 = vpop.permute.xlu0 %7857
    %7859 = vrot.lane.b32.xlu0 %v7854, 96
    %v7860 = vpop.permute.xlu0 %7859
    %v7863 = vsel %vm353, %v7858, 0.0
    %7864 = vadd.xlane.f32.xlu0 %v7863
    %v7865 = vpop.xlane.xlu0 %7864
    %v7866 = vsel %vm353, %v7860, 0.0
    %7867 = vadd.xlane.f32.xlu0 %v7866
    %v7868 = vpop.xlane.xlu0 %7867
    %v7869 = vadd.f32 %v7865, %v2319
    %v7870 = vadd.f32 %v7868, %v2319
    %v7873 = vlaneseq
    %v7874 = vshrl.u32 %v7873, 7
    %v7875 = vsub.s32 %v266, %v7874
    %v7876 = vrot.slane %v7869, %v7875
    %v7877 = vlaneseq
    %v7878 = vshrl.u32 %v7877, 7
    %v7879 = vsub.s32 %v266, %v7878
    %v7880 = vrot.slane %v7870, %v7879
    %v7881 = vsel %vm1944, %v7880, %v7876
    %v7883 = vsel %vm7541, -100000.0, %v7881
    %v7884 = vtanh.pop %v7883
    %v7885 = vmul.f32 %v7884, 10.0
    %v7886 = vsel %vm7541, -100000.0, %v7885
    %v7887 = vsel %vm1947, %v7886, -inf
    %7888 = vmax.xlane.f32.xlu0 %v7887
    %v7889 = vpop.xlane.xlu0 %7888
    %v7890 = vsub.f32 %v7886, %v7889
    %v7891 = vmul.f32 %v7890, 1.442695
    %v7892 = vpow.pop %v7891
    %v7893 = vsel %vm1947, %v7892, 0.0
    %7894 = vadd.xlane.f32.xlu0 %v7893
    %v7895 = vpop.xlane.xlu0 %7894
    %v7896 = vlog2.pop %v7895
    %v7897 = vmul.f32 %v7896, 0.6931472
    %v7898 = vsub.f32 %v7890, %v7897
    %s7899 = scalar_lea.vmem [#allocation25], 14
    %v7900 = vld [vmem:[%s7899] sm:$0x3]
    %v7901 = vadd.f32 %v7886, %v7900
    %v7902 = vsel %vm1947, %v7901, -inf
    %7903 = vmax.xlane.f32.xlu0 %v7902
    %v7904 = vpop.xlane.xlu0 %7903
    %vm7905 = vcmp.ge.f32.partialorder %v7901, %v7904
    %v7906 = vsel %vm7905, %v1665, 8.0
    %v7907 = vsel %vm1947, %v7906, inf
    %7908 = vmin.xlane.f32.xlu0 %v7907
    %v7909 = vpop.xlane.xlu0 %7908
    %vm7910 = vcmp.eq.f32.partialorder %v1665, %v7909
    %v7911 = vcvt.f32.s32.to.zero.pseudo %v7909
    %v7912 = vsel %vm7910, %v7898, 0.0
    %v7913 = vsel %vm1947, %v7912, 0.0
    %7914 = vadd.xlane.f32.xlu0 %v7913
    %v7915 = vpop.xlane.xlu0 %7914
    %vm7916 = vcmp.eq.s32.totalorder %v266, 7
    %v7917 = vsel %vm7916, %v7915, %v7144
    %v7918 = vsel %vm7916, %v7911, %v7145
    %7919 = vst.msk [vmem:[#allocation26] sm:$0x3] %vm1947, %v7917
    %7920 = vst.msk [vmem:[#allocation27] sm:$0x3] %vm1947, %v7918
    // Predicated region
    $region138: #{tpu_custom_call.1} parent=1 // pred_check
      _
    $region139: #{tpu_custom_call.1} parent=1 // pred_check_branch
      %7922 = sbr.rel (0) target = $region141
    $region140: #{tpu_custom_call.1} parent=1 // pred_region
      %s7924 = ssub.s32 32, 32
      %7925 = vsyncadd [#allocation7], %s7924
      %s7927 = sshll.u32 [#allocation26], 4
      %s7928 = int_to_ptr.vmem [resolvable:$true] %s7927
      %7930 = dma.vmem_to_hbm [thread:$0]  %s7928, 32, %s21, [#allocation7]
    $region141: #{tpu_custom_call.1} parent=1 // pred_fallthru
      _
    // Predicated region
    $region142: #{tpu_custom_call.1} parent=1 // pred_check
      _
    $region143: #{tpu_custom_call.1} parent=1 // pred_check_branch
      %7932 = sbr.rel (0) target = $region145
    $region144: #{tpu_custom_call.1} parent=1 // pred_region
      %s7934 = ssub.s32 32, 32
      %7935 = vsyncadd [#allocation28], %s7934
      %s7937 = sshll.u32 [#allocation27], 4
      %s7938 = int_to_ptr.vmem [resolvable:$true] %s7937
      %7940 = dma.vmem_to_hbm [thread:$0]  %s7938, 32, %s22, [#allocation28]
    $region145: #{tpu_custom_call.1} parent=1 // pred_fallthru
      _
    // Predicated region
    $region146: #{tpu_custom_call.1} parent=1 // pred_check
      _
    $region147: #{tpu_custom_call.1} parent=1 // pred_check_branch
      %7942 = sbr.rel (0) target = $region149
    $region148: #{tpu_custom_call.1} parent=1 // pred_region
      %7943 = dma.done [#allocation7], 32
    $region149: #{tpu_custom_call.1} parent=1 // pred_fallthru
      _
    // Predicated region
    $region150: #{tpu_custom_call.1} parent=1 // pred_check
      _
    $region151: #{tpu_custom_call.1} parent=1 // pred_check_branch
      %7945 = sbr.rel (0) target = $region153
    $region152: #{tpu_custom_call.1} parent=1 // pred_region
      %7946 = dma.done [#allocation28], 32
    $region153: #{tpu_custom_call.1} parent=1 // pred_fallthru
      _
    %7947 = vsyncpa [#allocation6], 1
    %7948 = vsyncpa [#allocation9], 1
    %7949 = vsyncpa [#allocation12], 1
    %7950 = vsyncpa [#allocation15], 1
    %7951 = vsyncpa [#allocation18], 1
    %7952 = vsyncpa [#allocation21], 1
    %7953 = vsyncpa [#allocation24], 1
    %7954 = vsyncpa [#allocation7], 1
    %7955 = vsyncpa [#allocation28], 1

</llo_original>
